<compile_context>
chip_gen: v6e
topology: v6e:2x2x1
jax: 0.10.0
libtpu: 0.0.40
codegen_flags: <defaults>
</compile_context>

<pallas_src>
import functools

import numpy as np
import jax
import jax.numpy as jnp
from jax import lax
from jax.experimental import pallas as pl
from jax.experimental.pallas import tpu as pltpu

NUM_LAYERS = 4
EPS = 1e-5  # PyTorch GroupNorm default


def _dense_box_kernel(x_ref, fp_ref, mask_ref, tw_ref, tb_ref, tg_ref, tbe_ref,
                      bw_ref, bb_ref, segmask_ref, out_ref, stack_ref,
                      *, width, hw):
    C = x_ref.shape[1]
    L = x_ref.shape[2]                 # SPG * H * W lanes
    n_seg = segmask_ref.shape[0]       # samples folded onto the lane axis
    inv_count = 1.0 / (C * hw)         # GroupNorm(1, C) element count per sample

    x = x_ref[0]                       # (C, L) features of SPG samples
    fp = fp_ref[0]                     # (C, SPG) projected filter columns

    # --- expand per-sample filter columns onto lanes (replaces the old
    #     (C, L) broadcast-filter DMA), then attention = <filter, feat> -------
    fl = fp[:, 0:1] * segmask_ref[0]                       # (C,1)*(1,L) -> (C,L)
    for j in range(1, n_seg):
        fl = fl + fp[:, j:j + 1] * segmask_ref[j]
    att = jnp.sum(fl * x, axis=0, keepdims=True)           # (1, L) sublane reduce
    y = x * att                                            # gated features (C, L)

    def build_tap_stack(y_cur):
        # stack[k*C:(k+1)*C, :] = shift_k(y) with zero "same" padding at borders.
        # Shifts are lane rotations (XLU) + 0/1 boundary masks (VPU); the mask
        # also kills any cross-sample leakage from folding samples onto lanes.
        for k in range(9):
            kh, kw = divmod(k, 3)
            off = (kh - 1) * width + (kw - 1)
            if off == 0:
                stack_ref[pl.ds(k * C, C), :] = y_cur.astype(stack_ref.dtype)
            else:
                shifted = pltpu.roll(y_cur, (-off) % L, 1)
                stack_ref[pl.ds(k * C, C), :] = (shifted * mask_ref[k]).astype(stack_ref.dtype)

    def seg_broadcast_mean(row):
        # row: (1, L) per-lane channel sums -> per-sample mean broadcast to (1, L)
        out = jnp.zeros_like(row)
        for j in range(n_seg):
            m_j = segmask_ref[j]                                       # (1, L) 0/1
            out = out + jnp.sum(row * m_j, keepdims=True) * inv_count * m_j
        return out

    # --- tower: 4 x [conv3x3(pad=1) -> GroupNorm(1, C) -> ReLU] ---------------
    for l in range(NUM_LAYERS):
        build_tap_stack(y)
        acc = jnp.dot(tw_ref[l], stack_ref[...],
                      preferred_element_type=jnp.float32) + tb_ref[l]  # (C, L)
        # single-pass GroupNorm stats (E[x], E[x^2]) per sample, fused affine
        s1 = jnp.sum(acc, axis=0, keepdims=True)                       # (1, L)
        s2 = jnp.sum(acc * acc, axis=0, keepdims=True)                 # (1, L)
        mean = seg_broadcast_mean(s1)
        var = seg_broadcast_mean(s2) - mean * mean                     # biased variance
        scale = tg_ref[l] * lax.rsqrt(var + EPS)                       # (C,1)*(1,L) -> (C,L)
        y = jnp.maximum((acc - mean) * scale + tbe_ref[l], 0.0)        # ReLU

    # --- bbreg: conv3x3 (C -> 4), then exp ------------------------------------
    build_tap_stack(y)
    accb = jnp.dot(bw_ref[...], stack_ref[...],
                   preferred_element_type=jnp.float32) + bb_ref[...]   # (4, L)
    out_ref[0] = jnp.exp(accb)


def _make_tap_masks(H, W, spg):
    """mask[k, 0, p] = 1 iff tap k's source pixel for output p is inside the image."""
    HW = H * W
    m = np.zeros((9, HW), np.float32)
    for kh in range(3):
        for kw in range(3):
            k = kh * 3 + kw
            for h in range(H):
                if not (0 <= h + kh - 1 < H):
                    continue
                for w in range(W):
                    if 0 <= w + kw - 1 < W:
                        m[k, h * W + w] = 1.0
    return jnp.asarray(np.tile(m, (1, spg)).reshape(9, 1, spg * HW))


def _make_segment_masks(HW, spg):
    """segmask[j, 0, p] = 1 iff lane p belongs to sample j of the grid block."""
    seg = np.zeros((spg, 1, spg * HW), np.float32)
    for j in range(spg):
        seg[j, 0, j * HW:(j + 1) * HW] = 1.0
    return jnp.asarray(seg)


def _pick_samples_per_step(nb, c, hw, itemsize=4, vmem_budget=12 << 20):
    """Largest divisor of nb that keeps a >=2-step grid (megacore / 2 v7x TCs)
    and keeps the dominant resident VMEM buffers under a conservative budget
    (tap stack + double-buffered feature block + output block + masks)."""
    best = 1
    for spg in range(1, nb // 2 + 1):
        if nb % spg:
            continue
        L = spg * hw
        resident = (9 * c * L            # tap-stack scratch
                    + 2 * c * L          # feature block, double-buffered
                    + 2 * 4 * L          # output block, double-buffered
                    + (9 + spg) * L      # boundary + segment masks
                    ) * itemsize
        if resident <= vmem_budget:
            best = spg
    return best


def dense_box_regressor_pallas(feat, filt, params, *,
                               matmul_dtype=jnp.float32, samples_per_step=None):
    nf, ns, C, H, W = feat.shape
    NB, HW = nf * ns, H * W
    spg = samples_per_step or _pick_samples_per_step(NB, C, HW)
    assert NB % spg == 0
    G, L = NB // spg, spg * HW

    # features: batch index b = n*ns + s; fold spg consecutive samples onto lanes
    x = feat.astype(jnp.float32).reshape(NB, C, HW)
    x = x.reshape(G, spg, C, HW).transpose(0, 2, 1, 3).reshape(G, C, L)

    # filter projection (nn.Linear) hoisted out of the kernel; only the (C,)
    # per-sample columns are shipped — lane expansion happens in-kernel.
    fproj = filt.astype(jnp.float32) @ params["lw"].T + params["lb"]       # (ns, C)
    fp = jnp.broadcast_to(fproj[None], (nf, ns, C)).reshape(NB, C)         # (NB, C)
    fp2 = fp.reshape(G, spg, C).transpose(0, 2, 1)                         # (G, C, spg)

    masks = _make_tap_masks(H, W, spg)            # (9, 1, L) conv boundary masks
    segmask = _make_segment_masks(HW, spg)        # (spg, 1, L) sample-membership masks

    # fused tap weights: column index = k*C + i  (k = kh*3 + kw)
    tw2 = params["tw"].transpose(0, 1, 3, 4, 2).reshape(NUM_LAYERS, C, 9 * C).astype(matmul_dtype)
    bw2 = params["bw"].transpose(0, 2, 3, 1).reshape(4, 9 * C).astype(matmul_dtype)
    tb = params["tb"].reshape(NUM_LAYERS, C, 1)
    tg = params["tg"].reshape(NUM_LAYERS, C, 1)
    tbe = params["tbeta"].reshape(NUM_LAYERS, C, 1)
    bb = params["bb"].reshape(4, 1)

    def full(a):
        return pl.BlockSpec(a.shape, lambda g, _n=a.ndim: (0,) * _n)

    kernel = functools.partial(_dense_box_kernel, width=W, hw=HW)

    # NOTE: at these sizes all resident buffers fit comfortably in the default
    # scoped VMEM on every generation; at production ToMP sizes on v7x the
    # loop-invariant weight inputs could additionally be single-buffered
    # (pipeline_mode=pl.Buffered(1)) to save VMEM.
    out = pl.pallas_call(
        kernel,
        out_shape=jax.ShapeDtypeStruct((G, 4, L), jnp.float32),
        grid_spec=pltpu.PrefetchScalarGridSpec(
            num_scalar_prefetch=0,
            grid=(G,),
            in_specs=[
                pl.BlockSpec((1, C, L), lambda g: (g, 0, 0)),     # features
                pl.BlockSpec((1, C, spg), lambda g: (g, 0, 0)),   # projected filter cols
                full(masks), full(tw2), full(tb), full(tg), full(tbe),
                full(bw2), full(bb), full(segmask),
            ],
            out_specs=pl.BlockSpec((1, 4, L), lambda g: (g, 0, 0)),
            scratch_shapes=[pltpu.VMEM((9 * C, L), matmul_dtype)],   # shifted-tap stack
        ),
        compiler_params=pltpu.CompilerParams(dimension_semantics=("parallel",)),
    )(x, fp2, masks, tw2, tb, tg, tbe, bw2, bb, segmask)

    out = out.reshape(G, 4, spg, HW).transpose(0, 2, 1, 3).reshape(NB, 4, H, W)
    return out[None]                                                 # (1, nf*ns, 4, H, W)


def dense_box_regressor_reference(feat, filt, params):
    """Pure-JAX reference mirroring the PyTorch forward (for validation only)."""
    nf, ns, C, H, W = feat.shape
    fproj = filt @ params["lw"].T + params["lb"]                      # (ns, C)
    att = jnp.einsum("nschw,sc->nshw", feat, fproj)                   # apply_filter (1x1)
    y = (att[:, :, None] * feat).reshape(nf * ns, C, H, W)
    dn = ("NCHW", "OIHW", "NCHW")
    for l in range(NUM_LAYERS):
        y = lax.conv_general_dilated(y, params["tw"][l], (1, 1), "SAME", dimension_numbers=dn)
        y = y + params["tb"][l].reshape(1, C, 1, 1)
        mean = y.mean(axis=(1, 2, 3), keepdims=True)
        var = ((y - mean) ** 2).mean(axis=(1, 2, 3), keepdims=True)
        y = (y - mean) / jnp.sqrt(var + EPS)
        y = y * params["tg"][l].reshape(1, C, 1, 1) + params["tbeta"][l].reshape(1, C, 1, 1)
        y = jnp.maximum(y, 0.0)
    y = lax.conv_general_dilated(y, params["bw"], (1, 1), "SAME", dimension_numbers=dn)
    y = y + params["bb"].reshape(1, 4, 1, 1)
    return jnp.exp(y)[None]


def init_params(key, C):
    ks = jax.random.split(key, 8)
    return {
        "lw": jax.random.normal(ks[0], (C, C), jnp.float32) * 0.1,          # nn.Linear weight (out, in)
        "lb": jax.random.normal(ks[1], (C,), jnp.float32) * 0.01,           # nn.Linear bias
        "tw": jax.random.normal(ks[2], (NUM_LAYERS, C, C, 3, 3), jnp.float32) * 0.08,  # OIHW per layer
        "tb": jax.random.normal(ks[3], (NUM_LAYERS, C), jnp.float32) * 0.01,
        "tg": 1.0 + 0.1 * jax.random.normal(ks[4], (NUM_LAYERS, C), jnp.float32),      # GN gamma
        "tbeta": 0.01 * jax.random.normal(ks[5], (NUM_LAYERS, C), jnp.float32),        # GN beta
        "bw": jax.random.normal(ks[6], (4, C, 3, 3), jnp.float32) * 0.05,    # bbreg conv OIHW
        "bb": jax.random.normal(ks[7], (4,), jnp.float32) * 0.01,
    }


if __name__ == "__main__":
    key = jax.random.PRNGKey(0)
    nf, ns, C, H, W = 2, 2, 32, 16, 16
    kf, kfil, kp = jax.random.split(key, 3)

    feat = jax.random.normal(kf, (nf, ns, C, H, W), jnp.float32)   # (num_frames, num_seq, C, H, W)
    filt = jax.random.normal(kfil, (ns, C), jnp.float32)           # per-sequence filter (ns, C)
    params = init_params(kp, C)

    ref = jax.block_until_ready(dense_box_regressor_reference(feat, filt, params))

    # f32 MXU path (default): strict check against the PyTorch-equivalent reference.
    out = jax.block_until_ready(dense_box_regressor_pallas(feat, filt, params))
    assert out.shape == (1, nf * ns, 4, H, W), out.shape
    max_rel = jnp.max(jnp.abs(out - ref) / (jnp.abs(ref) + 1e-6))
    if not bool(max_rel < 5e-3):
        raise AssertionError(f"f32 Pallas kernel mismatch vs reference, max rel err = {max_rel}")

    # bf16 MXU-operand path (perf option): tolerance loosened commensurate with
    # bf16's ~2^-8 mantissa accumulated over 5 conv layers (output is exp(z), so
    # relative error ~ absolute error of the pre-activation z).
    out_bf16 = jax.block_until_ready(
        dense_box_regressor_pallas(feat, filt, params, matmul_dtype=jnp.bfloat16))
    max_rel_bf16 = jnp.max(jnp.abs(out_bf16 - ref) / (jnp.abs(ref) + 1e-6))
    if not bool(max_rel_bf16 < 5e-2):
        raise AssertionError(f"bf16 Pallas kernel mismatch vs reference, max rel err = {max_rel_bf16}")

    print("KERNEL_OK")
</pallas_src>

<mosaic_0001>
module attributes {stable_mosaic.version = 11 : i64} {
  func.func @_dense_box_kernel(%arg0: i32, %arg1: memref<1x32x512xf32, #tpu.memory_space<vmem>>, %arg2: memref<1x32x2xf32, #tpu.memory_space<vmem>>, %arg3: memref<9x1x512xf32, #tpu.memory_space<vmem>>, %arg4: memref<4x32x288xf32, #tpu.memory_space<vmem>>, %arg5: memref<4x32x1xf32, #tpu.memory_space<vmem>>, %arg6: memref<4x32x1xf32, #tpu.memory_space<vmem>>, %arg7: memref<4x32x1xf32, #tpu.memory_space<vmem>>, %arg8: memref<4x288xf32, #tpu.memory_space<vmem>>, %arg9: memref<4x1xf32, #tpu.memory_space<vmem>>, %arg10: memref<2x1x512xf32, #tpu.memory_space<vmem>>, %arg11: memref<1x4x512xf32, #tpu.memory_space<vmem>>, %arg12: memref<288x512xf32, #tpu.memory_space<vmem>>) attributes {dimension_semantics = [#tpu.dimension_semantics<parallel>], iteration_bounds = array<i64: 2>, scalar_prefetch = 0 : i64, scratch_operands = 1 : i64, tpu.core_type = #tpu.core_type<tc>, window_params = [{transform_indices = @transform_0, window_bounds = array<i64: 1, 32, 512>}, {transform_indices = @transform_1, window_bounds = array<i64: 1, 32, 2>}, {pipeline_mode = #tpu.pipeline_mode<synchronous>, transform_indices = @transform_2, window_bounds = array<i64: 9, 1, 512>}, {pipeline_mode = #tpu.pipeline_mode<synchronous>, transform_indices = @transform_3, window_bounds = array<i64: 4, 32, 288>}, {pipeline_mode = #tpu.pipeline_mode<synchronous>, transform_indices = @transform_4, window_bounds = array<i64: 4, 32, 1>}, {pipeline_mode = #tpu.pipeline_mode<synchronous>, transform_indices = @transform_5, window_bounds = array<i64: 4, 32, 1>}, {pipeline_mode = #tpu.pipeline_mode<synchronous>, transform_indices = @transform_6, window_bounds = array<i64: 4, 32, 1>}, {pipeline_mode = #tpu.pipeline_mode<synchronous>, transform_indices = @transform_7, window_bounds = array<i64: 4, 288>}, {pipeline_mode = #tpu.pipeline_mode<synchronous>, transform_indices = @transform_8, window_bounds = array<i64: 4, 1>}, {pipeline_mode = #tpu.pipeline_mode<synchronous>, transform_indices = @transform_9, window_bounds = array<i64: 2, 1, 512>}, {transform_indices = @transform_10, window_bounds = array<i64: 1, 4, 512>}]} {
    %c0 = arith.constant 0 : index
    %c0_0 = arith.constant 0 : index
    %c0_1 = arith.constant 0 : index
    %0 = vector.load %arg1[%c0, %c0_0, %c0_1] : memref<1x32x512xf32, #tpu.memory_space<vmem>>, vector<1x32x512xf32>
    %1 = vector.shape_cast %0 : vector<1x32x512xf32> to vector<32x512xf32>
    %c0_2 = arith.constant 0 : index
    %c0_3 = arith.constant 0 : index
    %c0_4 = arith.constant 0 : index
    %2 = vector.load %arg2[%c0_2, %c0_3, %c0_4] : memref<1x32x2xf32, #tpu.memory_space<vmem>>, vector<1x32x2xf32>
    %3 = vector.shape_cast %2 : vector<1x32x2xf32> to vector<32x2xf32>
    %4 = vector.extract_strided_slice %3 {offsets = [0, 0], sizes = [32, 1], strides = [1, 1]} : vector<32x2xf32> to vector<32x1xf32>
    %c0_5 = arith.constant 0 : index
    %c0_6 = arith.constant 0 : index
    %c0_7 = arith.constant 0 : index
    %5 = vector.load %arg10[%c0_5, %c0_6, %c0_7] : memref<2x1x512xf32, #tpu.memory_space<vmem>>, vector<1x1x512xf32>
    %6 = vector.shape_cast %5 : vector<1x1x512xf32> to vector<1x512xf32>
    %7 = vector.broadcast %4 : vector<32x1xf32> to vector<32x512xf32>
    %8 = vector.broadcast %6 : vector<1x512xf32> to vector<32x512xf32>
    %9 = arith.mulf %7, %8 : vector<32x512xf32>
    %10 = vector.extract_strided_slice %3 {offsets = [0, 1], sizes = [32, 1], strides = [1, 1]} : vector<32x2xf32> to vector<32x1xf32>
    %c1 = arith.constant 1 : index
    %c0_8 = arith.constant 0 : index
    %c0_9 = arith.constant 0 : index
    %11 = vector.load %arg10[%c1, %c0_8, %c0_9] : memref<2x1x512xf32, #tpu.memory_space<vmem>>, vector<1x1x512xf32>
    %12 = vector.shape_cast %11 : vector<1x1x512xf32> to vector<1x512xf32>
    %13 = vector.broadcast %10 : vector<32x1xf32> to vector<32x512xf32>
    %14 = vector.broadcast %12 : vector<1x512xf32> to vector<32x512xf32>
    %15 = arith.mulf %13, %14 : vector<32x512xf32>
    %16 = arith.addf %9, %15 : vector<32x512xf32>
    %17 = arith.mulf %16, %1 : vector<32x512xf32>
    %cst = arith.constant dense<0.000000e+00> : vector<512xf32>
    %18 = vector.multi_reduction <add>, %17, %cst [0] : vector<32x512xf32> to vector<512xf32>
    %19 = vector.shape_cast %18 : vector<512xf32> to vector<1x512xf32>
    %20 = vector.broadcast %19 : vector<1x512xf32> to vector<32x512xf32>
    %21 = arith.mulf %1, %20 : vector<32x512xf32>
    %c17_i32 = arith.constant 17 : i32
    %22 = tpu.dynamic_rotate %21 by %c17_i32 dim 1 : vector<32x512xf32>, i32 -> vector<32x512xf32>
    %c0_10 = arith.constant 0 : index
    %c0_11 = arith.constant 0 : index
    %c0_12 = arith.constant 0 : index
    %23 = vector.load %arg3[%c0_10, %c0_11, %c0_12] : memref<9x1x512xf32, #tpu.memory_space<vmem>>, vector<1x1x512xf32>
    %24 = vector.shape_cast %23 : vector<1x1x512xf32> to vector<1x512xf32>
    %25 = vector.broadcast %24 : vector<1x512xf32> to vector<32x512xf32>
    %26 = arith.mulf %22, %25 : vector<32x512xf32>
    %c0_13 = arith.constant 0 : index
    %c0_14 = arith.constant 0 : index
    %27 = vector.load %arg12[%c0_13, %c0_14] : memref<288x512xf32, #tpu.memory_space<vmem>>, vector<32x512xf32>
    tpu.vector_store %arg12[%c0_13, %c0_14], %26 {strides = array<i32>} : memref<288x512xf32, #tpu.memory_space<vmem>>, vector<32x512xf32>,
    %c16_i32 = arith.constant 16 : i32
    %28 = tpu.dynamic_rotate %21 by %c16_i32 dim 1 : vector<32x512xf32>, i32 -> vector<32x512xf32>
    %c1_15 = arith.constant 1 : index
    %c0_16 = arith.constant 0 : index
    %c0_17 = arith.constant 0 : index
    %29 = vector.load %arg3[%c1_15, %c0_16, %c0_17] : memref<9x1x512xf32, #tpu.memory_space<vmem>>, vector<1x1x512xf32>
    %30 = vector.shape_cast %29 : vector<1x1x512xf32> to vector<1x512xf32>
    %31 = vector.broadcast %30 : vector<1x512xf32> to vector<32x512xf32>
    %32 = arith.mulf %28, %31 : vector<32x512xf32>
    %c32 = arith.constant 32 : index
    %c0_18 = arith.constant 0 : index
    %33 = vector.load %arg12[%c32, %c0_18] : memref<288x512xf32, #tpu.memory_space<vmem>>, vector<32x512xf32>
    tpu.vector_store %arg12[%c32, %c0_18], %32 {strides = array<i32>} : memref<288x512xf32, #tpu.memory_space<vmem>>, vector<32x512xf32>,
    %c15_i32 = arith.constant 15 : i32
    %34 = tpu.dynamic_rotate %21 by %c15_i32 dim 1 : vector<32x512xf32>, i32 -> vector<32x512xf32>
    %c2 = arith.constant 2 : index
    %c0_19 = arith.constant 0 : index
    %c0_20 = arith.constant 0 : index
    %35 = vector.load %arg3[%c2, %c0_19, %c0_20] : memref<9x1x512xf32, #tpu.memory_space<vmem>>, vector<1x1x512xf32>
    %36 = vector.shape_cast %35 : vector<1x1x512xf32> to vector<1x512xf32>
    %37 = vector.broadcast %36 : vector<1x512xf32> to vector<32x512xf32>
    %38 = arith.mulf %34, %37 : vector<32x512xf32>
    %c64 = arith.constant 64 : index
    %c0_21 = arith.constant 0 : index
    %39 = vector.load %arg12[%c64, %c0_21] : memref<288x512xf32, #tpu.memory_space<vmem>>, vector<32x512xf32>
    tpu.vector_store %arg12[%c64, %c0_21], %38 {strides = array<i32>} : memref<288x512xf32, #tpu.memory_space<vmem>>, vector<32x512xf32>,
    %c1_i32 = arith.constant 1 : i32
    %40 = tpu.dynamic_rotate %21 by %c1_i32 dim 1 : vector<32x512xf32>, i32 -> vector<32x512xf32>
    %c3 = arith.constant 3 : index
    %c0_22 = arith.constant 0 : index
    %c0_23 = arith.constant 0 : index
    %41 = vector.load %arg3[%c3, %c0_22, %c0_23] : memref<9x1x512xf32, #tpu.memory_space<vmem>>, vector<1x1x512xf32>
    %42 = vector.shape_cast %41 : vector<1x1x512xf32> to vector<1x512xf32>
    %43 = vector.broadcast %42 : vector<1x512xf32> to vector<32x512xf32>
    %44 = arith.mulf %40, %43 : vector<32x512xf32>
    %c96 = arith.constant 96 : index
    %c0_24 = arith.constant 0 : index
    %45 = vector.load %arg12[%c96, %c0_24] : memref<288x512xf32, #tpu.memory_space<vmem>>, vector<32x512xf32>
    tpu.vector_store %arg12[%c96, %c0_24], %44 {strides = array<i32>} : memref<288x512xf32, #tpu.memory_space<vmem>>, vector<32x512xf32>,
    %c128 = arith.constant 128 : index
    %c0_25 = arith.constant 0 : index
    %46 = vector.load %arg12[%c128, %c0_25] : memref<288x512xf32, #tpu.memory_space<vmem>>, vector<32x512xf32>
    tpu.vector_store %arg12[%c128, %c0_25], %21 {strides = array<i32>} : memref<288x512xf32, #tpu.memory_space<vmem>>, vector<32x512xf32>,
    %c511_i32 = arith.constant 511 : i32
    %47 = tpu.dynamic_rotate %21 by %c511_i32 dim 1 : vector<32x512xf32>, i32 -> vector<32x512xf32>
    %c5 = arith.constant 5 : index
    %c0_26 = arith.constant 0 : index
    %c0_27 = arith.constant 0 : index
    %48 = vector.load %arg3[%c5, %c0_26, %c0_27] : memref<9x1x512xf32, #tpu.memory_space<vmem>>, vector<1x1x512xf32>
    %49 = vector.shape_cast %48 : vector<1x1x512xf32> to vector<1x512xf32>
    %50 = vector.broadcast %49 : vector<1x512xf32> to vector<32x512xf32>
    %51 = arith.mulf %47, %50 : vector<32x512xf32>
    %c160 = arith.constant 160 : index
    %c0_28 = arith.constant 0 : index
    %52 = vector.load %arg12[%c160, %c0_28] : memref<288x512xf32, #tpu.memory_space<vmem>>, vector<32x512xf32>
    tpu.vector_store %arg12[%c160, %c0_28], %51 {strides = array<i32>} : memref<288x512xf32, #tpu.memory_space<vmem>>, vector<32x512xf32>,
    %c497_i32 = arith.constant 497 : i32
    %53 = tpu.dynamic_rotate %21 by %c497_i32 dim 1 : vector<32x512xf32>, i32 -> vector<32x512xf32>
    %c6 = arith.constant 6 : index
    %c0_29 = arith.constant 0 : index
    %c0_30 = arith.constant 0 : index
    %54 = vector.load %arg3[%c6, %c0_29, %c0_30] : memref<9x1x512xf32, #tpu.memory_space<vmem>>, vector<1x1x512xf32>
    %55 = vector.shape_cast %54 : vector<1x1x512xf32> to vector<1x512xf32>
    %56 = vector.broadcast %55 : vector<1x512xf32> to vector<32x512xf32>
    %57 = arith.mulf %53, %56 : vector<32x512xf32>
    %c192 = arith.constant 192 : index
    %c0_31 = arith.constant 0 : index
    %58 = vector.load %arg12[%c192, %c0_31] : memref<288x512xf32, #tpu.memory_space<vmem>>, vector<32x512xf32>
    tpu.vector_store %arg12[%c192, %c0_31], %57 {strides = array<i32>} : memref<288x512xf32, #tpu.memory_space<vmem>>, vector<32x512xf32>,
    %c496_i32 = arith.constant 496 : i32
    %59 = tpu.dynamic_rotate %21 by %c496_i32 dim 1 : vector<32x512xf32>, i32 -> vector<32x512xf32>
    %c7 = arith.constant 7 : index
    %c0_32 = arith.constant 0 : index
    %c0_33 = arith.constant 0 : index
    %60 = vector.load %arg3[%c7, %c0_32, %c0_33] : memref<9x1x512xf32, #tpu.memory_space<vmem>>, vector<1x1x512xf32>
    %61 = vector.shape_cast %60 : vector<1x1x512xf32> to vector<1x512xf32>
    %62 = vector.broadcast %61 : vector<1x512xf32> to vector<32x512xf32>
    %63 = arith.mulf %59, %62 : vector<32x512xf32>
    %c224 = arith.constant 224 : index
    %c0_34 = arith.constant 0 : index
    %64 = vector.load %arg12[%c224, %c0_34] : memref<288x512xf32, #tpu.memory_space<vmem>>, vector<32x512xf32>
    tpu.vector_store %arg12[%c224, %c0_34], %63 {strides = array<i32>} : memref<288x512xf32, #tpu.memory_space<vmem>>, vector<32x512xf32>,
    %c495_i32 = arith.constant 495 : i32
    %65 = tpu.dynamic_rotate %21 by %c495_i32 dim 1 : vector<32x512xf32>, i32 -> vector<32x512xf32>
    %c8 = arith.constant 8 : index
    %c0_35 = arith.constant 0 : index
    %c0_36 = arith.constant 0 : index
    %66 = vector.load %arg3[%c8, %c0_35, %c0_36] : memref<9x1x512xf32, #tpu.memory_space<vmem>>, vector<1x1x512xf32>
    %67 = vector.shape_cast %66 : vector<1x1x512xf32> to vector<1x512xf32>
    %68 = vector.broadcast %67 : vector<1x512xf32> to vector<32x512xf32>
    %69 = arith.mulf %65, %68 : vector<32x512xf32>
    %c256 = arith.constant 256 : index
    %c0_37 = arith.constant 0 : index
    %70 = vector.load %arg12[%c256, %c0_37] : memref<288x512xf32, #tpu.memory_space<vmem>>, vector<32x512xf32>
    tpu.vector_store %arg12[%c256, %c0_37], %69 {strides = array<i32>} : memref<288x512xf32, #tpu.memory_space<vmem>>, vector<32x512xf32>,
    %c0_38 = arith.constant 0 : index
    %c0_39 = arith.constant 0 : index
    %c0_40 = arith.constant 0 : index
    %71 = vector.load %arg4[%c0_38, %c0_39, %c0_40] : memref<4x32x288xf32, #tpu.memory_space<vmem>>, vector<1x32x288xf32>
    %72 = vector.shape_cast %71 : vector<1x32x288xf32> to vector<32x288xf32>
    %c0_41 = arith.constant 0 : index
    %c0_42 = arith.constant 0 : index
    %73 = vector.load %arg12[%c0_41, %c0_42] : memref<288x512xf32, #tpu.memory_space<vmem>>, vector<288x512xf32>
    %cst_43 = arith.constant dense<0.000000e+00> : vector<32x512xf32>
    %74 = tpu.matmul %72, %73, %cst_43 {dimension_numbers = #tpu.dot_dimension_numbers<[1], [0], [0], [1], [0, 0, 1, 1], [], []>} : vector<32x288xf32>, vector<288x512xf32>, vector<32x512xf32> -> vector<32x512xf32>
    %c0_44 = arith.constant 0 : index
    %c0_45 = arith.constant 0 : index
    %c0_46 = arith.constant 0 : index
    %75 = vector.load %arg5[%c0_44, %c0_45, %c0_46] : memref<4x32x1xf32, #tpu.memory_space<vmem>>, vector<1x32x1xf32>
    %76 = vector.shape_cast %75 : vector<1x32x1xf32> to vector<32x1xf32>
    %77 = vector.broadcast %76 : vector<32x1xf32> to vector<32x512xf32>
    %78 = arith.addf %74, %77 : vector<32x512xf32>
    %cst_47 = arith.constant dense<0.000000e+00> : vector<512xf32>
    %79 = vector.multi_reduction <add>, %78, %cst_47 [0] : vector<32x512xf32> to vector<512xf32>
    %80 = vector.shape_cast %79 : vector<512xf32> to vector<1x512xf32>
    %81 = arith.mulf %78, %78 : vector<32x512xf32>
    %cst_48 = arith.constant dense<0.000000e+00> : vector<512xf32>
    %82 = vector.multi_reduction <add>, %81, %cst_48 [0] : vector<32x512xf32> to vector<512xf32>
    %83 = vector.shape_cast %82 : vector<512xf32> to vector<1x512xf32>
    %cst_49 = arith.constant 0.000000e+00 : f32
    %84 = vector.broadcast %cst_49 : f32 to vector<1x512xf32>
    %c0_50 = arith.constant 0 : index
    %c0_51 = arith.constant 0 : index
    %c0_52 = arith.constant 0 : index
    %85 = vector.load %arg10[%c0_50, %c0_51, %c0_52] : memref<2x1x512xf32, #tpu.memory_space<vmem>>, vector<1x1x512xf32>
    %86 = vector.shape_cast %85 : vector<1x1x512xf32> to vector<1x512xf32>
    %87 = arith.mulf %80, %86 : vector<1x512xf32>
    %88 = vector.shape_cast %87 : vector<1x512xf32> to vector<1x1x512xf32>
    %cst_53 = arith.constant dense<0.000000e+00> : vector<1xf32>
    %89 = vector.multi_reduction <add>, %88, %cst_53 [1, 2] : vector<1x1x512xf32> to vector<1xf32>
    %90 = vector.shape_cast %89 : vector<1xf32> to vector<1x1x1xf32>
    %91 = vector.extract %90[0, 0, 0] : f32 from vector<1x1x1xf32>
    %92 = vector.broadcast %91 : f32 to vector<1x1xf32>
    %cst_54 = arith.constant 1.22070313E-4 : f32
    %93 = vector.broadcast %cst_54 : f32 to vector<1x1xf32>
    %94 = arith.mulf %92, %93 : vector<1x1xf32>
    %95 = vector.broadcast %94 : vector<1x1xf32> to vector<1x512xf32>
    %96 = arith.mulf %95, %86 : vector<1x512xf32>
    %97 = arith.addf %84, %96 : vector<1x512xf32>
    %c1_55 = arith.constant 1 : index
    %c0_56 = arith.constant 0 : index
    %c0_57 = arith.constant 0 : index
    %98 = vector.load %arg10[%c1_55, %c0_56, %c0_57] : memref<2x1x512xf32, #tpu.memory_space<vmem>>, vector<1x1x512xf32>
    %99 = vector.shape_cast %98 : vector<1x1x512xf32> to vector<1x512xf32>
    %100 = arith.mulf %80, %99 : vector<1x512xf32>
    %101 = vector.shape_cast %100 : vector<1x512xf32> to vector<1x1x512xf32>
    %cst_58 = arith.constant dense<0.000000e+00> : vector<1xf32>
    %102 = vector.multi_reduction <add>, %101, %cst_58 [1, 2] : vector<1x1x512xf32> to vector<1xf32>
    %103 = vector.shape_cast %102 : vector<1xf32> to vector<1x1x1xf32>
    %104 = vector.extract %103[0, 0, 0] : f32 from vector<1x1x1xf32>
    %105 = vector.broadcast %104 : f32 to vector<1x1xf32>
    %cst_59 = arith.constant 1.22070313E-4 : f32
    %106 = vector.broadcast %cst_59 : f32 to vector<1x1xf32>
    %107 = arith.mulf %105, %106 : vector<1x1xf32>
    %108 = vector.broadcast %107 : vector<1x1xf32> to vector<1x512xf32>
    %109 = arith.mulf %108, %99 : vector<1x512xf32>
    %110 = arith.addf %97, %109 : vector<1x512xf32>
    %cst_60 = arith.constant 0.000000e+00 : f32
    %111 = vector.broadcast %cst_60 : f32 to vector<1x512xf32>
    %c0_61 = arith.constant 0 : index
    %c0_62 = arith.constant 0 : index
    %c0_63 = arith.constant 0 : index
    %112 = vector.load %arg10[%c0_61, %c0_62, %c0_63] : memref<2x1x512xf32, #tpu.memory_space<vmem>>, vector<1x1x512xf32>
    %113 = vector.shape_cast %112 : vector<1x1x512xf32> to vector<1x512xf32>
    %114 = arith.mulf %83, %113 : vector<1x512xf32>
    %115 = vector.shape_cast %114 : vector<1x512xf32> to vector<1x1x512xf32>
    %cst_64 = arith.constant dense<0.000000e+00> : vector<1xf32>
    %116 = vector.multi_reduction <add>, %115, %cst_64 [1, 2] : vector<1x1x512xf32> to vector<1xf32>
    %117 = vector.shape_cast %116 : vector<1xf32> to vector<1x1x1xf32>
    %118 = vector.extract %117[0, 0, 0] : f32 from vector<1x1x1xf32>
    %119 = vector.broadcast %118 : f32 to vector<1x1xf32>
    %cst_65 = arith.constant 1.22070313E-4 : f32
    %120 = vector.broadcast %cst_65 : f32 to vector<1x1xf32>
    %121 = arith.mulf %119, %120 : vector<1x1xf32>
    %122 = vector.broadcast %121 : vector<1x1xf32> to vector<1x512xf32>
    %123 = arith.mulf %122, %113 : vector<1x512xf32>
    %124 = arith.addf %111, %123 : vector<1x512xf32>
    %c1_66 = arith.constant 1 : index
    %c0_67 = arith.constant 0 : index
    %c0_68 = arith.constant 0 : index
    %125 = vector.load %arg10[%c1_66, %c0_67, %c0_68] : memref<2x1x512xf32, #tpu.memory_space<vmem>>, vector<1x1x512xf32>
    %126 = vector.shape_cast %125 : vector<1x1x512xf32> to vector<1x512xf32>
    %127 = arith.mulf %83, %126 : vector<1x512xf32>
    %128 = vector.shape_cast %127 : vector<1x512xf32> to vector<1x1x512xf32>
    %cst_69 = arith.constant dense<0.000000e+00> : vector<1xf32>
    %129 = vector.multi_reduction <add>, %128, %cst_69 [1, 2] : vector<1x1x512xf32> to vector<1xf32>
    %130 = vector.shape_cast %129 : vector<1xf32> to vector<1x1x1xf32>
    %131 = vector.extract %130[0, 0, 0] : f32 from vector<1x1x1xf32>
    %132 = vector.broadcast %131 : f32 to vector<1x1xf32>
    %cst_70 = arith.constant 1.22070313E-4 : f32
    %133 = vector.broadcast %cst_70 : f32 to vector<1x1xf32>
    %134 = arith.mulf %132, %133 : vector<1x1xf32>
    %135 = vector.broadcast %134 : vector<1x1xf32> to vector<1x512xf32>
    %136 = arith.mulf %135, %126 : vector<1x512xf32>
    %137 = arith.addf %124, %136 : vector<1x512xf32>
    %138 = arith.mulf %110, %110 : vector<1x512xf32>
    %139 = arith.subf %137, %138 : vector<1x512xf32>
    %c0_71 = arith.constant 0 : index
    %c0_72 = arith.constant 0 : index
    %c0_73 = arith.constant 0 : index
    %140 = vector.load %arg6[%c0_71, %c0_72, %c0_73] : memref<4x32x1xf32, #tpu.memory_space<vmem>>, vector<1x32x1xf32>
    %141 = vector.shape_cast %140 : vector<1x32x1xf32> to vector<32x1xf32>
    %cst_74 = arith.constant 9.99999974E-6 : f32
    %142 = vector.broadcast %cst_74 : f32 to vector<1x512xf32>
    %143 = arith.addf %139, %142 : vector<1x512xf32>
    %144 = math.rsqrt %143 : vector<1x512xf32>
    %145 = vector.broadcast %141 : vector<32x1xf32> to vector<32x512xf32>
    %146 = vector.broadcast %144 : vector<1x512xf32> to vector<32x512xf32>
    %147 = arith.mulf %145, %146 : vector<32x512xf32>
    %148 = vector.broadcast %110 : vector<1x512xf32> to vector<32x512xf32>
    %149 = arith.subf %78, %148 : vector<32x512xf32>
    %150 = arith.mulf %149, %147 : vector<32x512xf32>
    %c0_75 = arith.constant 0 : index
    %c0_76 = arith.constant 0 : index
    %c0_77 = arith.constant 0 : index
    %151 = vector.load %arg7[%c0_75, %c0_76, %c0_77] : memref<4x32x1xf32, #tpu.memory_space<vmem>>, vector<1x32x1xf32>
    %152 = vector.shape_cast %151 : vector<1x32x1xf32> to vector<32x1xf32>
    %153 = vector.broadcast %152 : vector<32x1xf32> to vector<32x512xf32>
    %154 = arith.addf %150, %153 : vector<32x512xf32>
    %cst_78 = arith.constant 0.000000e+00 : f32
    %155 = vector.broadcast %cst_78 : f32 to vector<32x512xf32>
    %156 = arith.maximumf %154, %155 : vector<32x512xf32>
    %c17_i32_79 = arith.constant 17 : i32
    %157 = tpu.dynamic_rotate %156 by %c17_i32_79 dim 1 : vector<32x512xf32>, i32 -> vector<32x512xf32>
    %c0_80 = arith.constant 0 : index
    %c0_81 = arith.constant 0 : index
    %c0_82 = arith.constant 0 : index
    %158 = vector.load %arg3[%c0_80, %c0_81, %c0_82] : memref<9x1x512xf32, #tpu.memory_space<vmem>>, vector<1x1x512xf32>
    %159 = vector.shape_cast %158 : vector<1x1x512xf32> to vector<1x512xf32>
    %160 = vector.broadcast %159 : vector<1x512xf32> to vector<32x512xf32>
    %161 = arith.mulf %157, %160 : vector<32x512xf32>
    %c0_83 = arith.constant 0 : index
    %c0_84 = arith.constant 0 : index
    %162 = vector.load %arg12[%c0_83, %c0_84] : memref<288x512xf32, #tpu.memory_space<vmem>>, vector<32x512xf32>
    tpu.vector_store %arg12[%c0_83, %c0_84], %161 {strides = array<i32>} : memref<288x512xf32, #tpu.memory_space<vmem>>, vector<32x512xf32>,
    %c16_i32_85 = arith.constant 16 : i32
    %163 = tpu.dynamic_rotate %156 by %c16_i32_85 dim 1 : vector<32x512xf32>, i32 -> vector<32x512xf32>
    %c1_86 = arith.constant 1 : index
    %c0_87 = arith.constant 0 : index
    %c0_88 = arith.constant 0 : index
    %164 = vector.load %arg3[%c1_86, %c0_87, %c0_88] : memref<9x1x512xf32, #tpu.memory_space<vmem>>, vector<1x1x512xf32>
    %165 = vector.shape_cast %164 : vector<1x1x512xf32> to vector<1x512xf32>
    %166 = vector.broadcast %165 : vector<1x512xf32> to vector<32x512xf32>
    %167 = arith.mulf %163, %166 : vector<32x512xf32>
    %c32_89 = arith.constant 32 : index
    %c0_90 = arith.constant 0 : index
    %168 = vector.load %arg12[%c32_89, %c0_90] : memref<288x512xf32, #tpu.memory_space<vmem>>, vector<32x512xf32>
    tpu.vector_store %arg12[%c32_89, %c0_90], %167 {strides = array<i32>} : memref<288x512xf32, #tpu.memory_space<vmem>>, vector<32x512xf32>,
    %c15_i32_91 = arith.constant 15 : i32
    %169 = tpu.dynamic_rotate %156 by %c15_i32_91 dim 1 : vector<32x512xf32>, i32 -> vector<32x512xf32>
    %c2_92 = arith.constant 2 : index
    %c0_93 = arith.constant 0 : index
    %c0_94 = arith.constant 0 : index
    %170 = vector.load %arg3[%c2_92, %c0_93, %c0_94] : memref<9x1x512xf32, #tpu.memory_space<vmem>>, vector<1x1x512xf32>
    %171 = vector.shape_cast %170 : vector<1x1x512xf32> to vector<1x512xf32>
    %172 = vector.broadcast %171 : vector<1x512xf32> to vector<32x512xf32>
    %173 = arith.mulf %169, %172 : vector<32x512xf32>
    %c64_95 = arith.constant 64 : index
    %c0_96 = arith.constant 0 : index
    %174 = vector.load %arg12[%c64_95, %c0_96] : memref<288x512xf32, #tpu.memory_space<vmem>>, vector<32x512xf32>
    tpu.vector_store %arg12[%c64_95, %c0_96], %173 {strides = array<i32>} : memref<288x512xf32, #tpu.memory_space<vmem>>, vector<32x512xf32>,
    %c1_i32_97 = arith.constant 1 : i32
    %175 = tpu.dynamic_rotate %156 by %c1_i32_97 dim 1 : vector<32x512xf32>, i32 -> vector<32x512xf32>
    %c3_98 = arith.constant 3 : index
    %c0_99 = arith.constant 0 : index
    %c0_100 = arith.constant 0 : index
    %176 = vector.load %arg3[%c3_98, %c0_99, %c0_100] : memref<9x1x512xf32, #tpu.memory_space<vmem>>, vector<1x1x512xf32>
    %177 = vector.shape_cast %176 : vector<1x1x512xf32> to vector<1x512xf32>
    %178 = vector.broadcast %177 : vector<1x512xf32> to vector<32x512xf32>
    %179 = arith.mulf %175, %178 : vector<32x512xf32>
    %c96_101 = arith.constant 96 : index
    %c0_102 = arith.constant 0 : index
    %180 = vector.load %arg12[%c96_101, %c0_102] : memref<288x512xf32, #tpu.memory_space<vmem>>, vector<32x512xf32>
    tpu.vector_store %arg12[%c96_101, %c0_102], %179 {strides = array<i32>} : memref<288x512xf32, #tpu.memory_space<vmem>>, vector<32x512xf32>,
    %c128_103 = arith.constant 128 : index
    %c0_104 = arith.constant 0 : index
    %181 = vector.load %arg12[%c128_103, %c0_104] : memref<288x512xf32, #tpu.memory_space<vmem>>, vector<32x512xf32>
    tpu.vector_store %arg12[%c128_103, %c0_104], %156 {strides = array<i32>} : memref<288x512xf32, #tpu.memory_space<vmem>>, vector<32x512xf32>,
    %c511_i32_105 = arith.constant 511 : i32
    %182 = tpu.dynamic_rotate %156 by %c511_i32_105 dim 1 : vector<32x512xf32>, i32 -> vector<32x512xf32>
    %c5_106 = arith.constant 5 : index
    %c0_107 = arith.constant 0 : index
    %c0_108 = arith.constant 0 : index
    %183 = vector.load %arg3[%c5_106, %c0_107, %c0_108] : memref<9x1x512xf32, #tpu.memory_space<vmem>>, vector<1x1x512xf32>
    %184 = vector.shape_cast %183 : vector<1x1x512xf32> to vector<1x512xf32>
    %185 = vector.broadcast %184 : vector<1x512xf32> to vector<32x512xf32>
    %186 = arith.mulf %182, %185 : vector<32x512xf32>
    %c160_109 = arith.constant 160 : index
    %c0_110 = arith.constant 0 : index
    %187 = vector.load %arg12[%c160_109, %c0_110] : memref<288x512xf32, #tpu.memory_space<vmem>>, vector<32x512xf32>
    tpu.vector_store %arg12[%c160_109, %c0_110], %186 {strides = array<i32>} : memref<288x512xf32, #tpu.memory_space<vmem>>, vector<32x512xf32>,
    %c497_i32_111 = arith.constant 497 : i32
    %188 = tpu.dynamic_rotate %156 by %c497_i32_111 dim 1 : vector<32x512xf32>, i32 -> vector<32x512xf32>
    %c6_112 = arith.constant 6 : index
    %c0_113 = arith.constant 0 : index
    %c0_114 = arith.constant 0 : index
    %189 = vector.load %arg3[%c6_112, %c0_113, %c0_114] : memref<9x1x512xf32, #tpu.memory_space<vmem>>, vector<1x1x512xf32>
    %190 = vector.shape_cast %189 : vector<1x1x512xf32> to vector<1x512xf32>
    %191 = vector.broadcast %190 : vector<1x512xf32> to vector<32x512xf32>
    %192 = arith.mulf %188, %191 : vector<32x512xf32>
    %c192_115 = arith.constant 192 : index
    %c0_116 = arith.constant 0 : index
    %193 = vector.load %arg12[%c192_115, %c0_116] : memref<288x512xf32, #tpu.memory_space<vmem>>, vector<32x512xf32>
    tpu.vector_store %arg12[%c192_115, %c0_116], %192 {strides = array<i32>} : memref<288x512xf32, #tpu.memory_space<vmem>>, vector<32x512xf32>,
    %c496_i32_117 = arith.constant 496 : i32
    %194 = tpu.dynamic_rotate %156 by %c496_i32_117 dim 1 : vector<32x512xf32>, i32 -> vector<32x512xf32>
    %c7_118 = arith.constant 7 : index
    %c0_119 = arith.constant 0 : index
    %c0_120 = arith.constant 0 : index
    %195 = vector.load %arg3[%c7_118, %c0_119, %c0_120] : memref<9x1x512xf32, #tpu.memory_space<vmem>>, vector<1x1x512xf32>
    %196 = vector.shape_cast %195 : vector<1x1x512xf32> to vector<1x512xf32>
    %197 = vector.broadcast %196 : vector<1x512xf32> to vector<32x512xf32>
    %198 = arith.mulf %194, %197 : vector<32x512xf32>
    %c224_121 = arith.constant 224 : index
    %c0_122 = arith.constant 0 : index
    %199 = vector.load %arg12[%c224_121, %c0_122] : memref<288x512xf32, #tpu.memory_space<vmem>>, vector<32x512xf32>
    tpu.vector_store %arg12[%c224_121, %c0_122], %198 {strides = array<i32>} : memref<288x512xf32, #tpu.memory_space<vmem>>, vector<32x512xf32>,
    %c495_i32_123 = arith.constant 495 : i32
    %200 = tpu.dynamic_rotate %156 by %c495_i32_123 dim 1 : vector<32x512xf32>, i32 -> vector<32x512xf32>
    %c8_124 = arith.constant 8 : index
    %c0_125 = arith.constant 0 : index
    %c0_126 = arith.constant 0 : index
    %201 = vector.load %arg3[%c8_124, %c0_125, %c0_126] : memref<9x1x512xf32, #tpu.memory_space<vmem>>, vector<1x1x512xf32>
    %202 = vector.shape_cast %201 : vector<1x1x512xf32> to vector<1x512xf32>
    %203 = vector.broadcast %202 : vector<1x512xf32> to vector<32x512xf32>
    %204 = arith.mulf %200, %203 : vector<32x512xf32>
    %c256_127 = arith.constant 256 : index
    %c0_128 = arith.constant 0 : index
    %205 = vector.load %arg12[%c256_127, %c0_128] : memref<288x512xf32, #tpu.memory_space<vmem>>, vector<32x512xf32>
    tpu.vector_store %arg12[%c256_127, %c0_128], %204 {strides = array<i32>} : memref<288x512xf32, #tpu.memory_space<vmem>>, vector<32x512xf32>,
    %c1_129 = arith.constant 1 : index
    %c0_130 = arith.constant 0 : index
    %c0_131 = arith.constant 0 : index
    %206 = vector.load %arg4[%c1_129, %c0_130, %c0_131] : memref<4x32x288xf32, #tpu.memory_space<vmem>>, vector<1x32x288xf32>
    %207 = vector.shape_cast %206 : vector<1x32x288xf32> to vector<32x288xf32>
    %c0_132 = arith.constant 0 : index
    %c0_133 = arith.constant 0 : index
    %208 = vector.load %arg12[%c0_132, %c0_133] : memref<288x512xf32, #tpu.memory_space<vmem>>, vector<288x512xf32>
    %cst_134 = arith.constant dense<0.000000e+00> : vector<32x512xf32>
    %209 = tpu.matmul %207, %208, %cst_134 {dimension_numbers = #tpu.dot_dimension_numbers<[1], [0], [0], [1], [0, 0, 1, 1], [], []>} : vector<32x288xf32>, vector<288x512xf32>, vector<32x512xf32> -> vector<32x512xf32>
    %c1_135 = arith.constant 1 : index
    %c0_136 = arith.constant 0 : index
    %c0_137 = arith.constant 0 : index
    %210 = vector.load %arg5[%c1_135, %c0_136, %c0_137] : memref<4x32x1xf32, #tpu.memory_space<vmem>>, vector<1x32x1xf32>
    %211 = vector.shape_cast %210 : vector<1x32x1xf32> to vector<32x1xf32>
    %212 = vector.broadcast %211 : vector<32x1xf32> to vector<32x512xf32>
    %213 = arith.addf %209, %212 : vector<32x512xf32>
    %cst_138 = arith.constant dense<0.000000e+00> : vector<512xf32>
    %214 = vector.multi_reduction <add>, %213, %cst_138 [0] : vector<32x512xf32> to vector<512xf32>
    %215 = vector.shape_cast %214 : vector<512xf32> to vector<1x512xf32>
    %216 = arith.mulf %213, %213 : vector<32x512xf32>
    %cst_139 = arith.constant dense<0.000000e+00> : vector<512xf32>
    %217 = vector.multi_reduction <add>, %216, %cst_139 [0] : vector<32x512xf32> to vector<512xf32>
    %218 = vector.shape_cast %217 : vector<512xf32> to vector<1x512xf32>
    %cst_140 = arith.constant 0.000000e+00 : f32
    %219 = vector.broadcast %cst_140 : f32 to vector<1x512xf32>
    %c0_141 = arith.constant 0 : index
    %c0_142 = arith.constant 0 : index
    %c0_143 = arith.constant 0 : index
    %220 = vector.load %arg10[%c0_141, %c0_142, %c0_143] : memref<2x1x512xf32, #tpu.memory_space<vmem>>, vector<1x1x512xf32>
    %221 = vector.shape_cast %220 : vector<1x1x512xf32> to vector<1x512xf32>
    %222 = arith.mulf %215, %221 : vector<1x512xf32>
    %223 = vector.shape_cast %222 : vector<1x512xf32> to vector<1x1x512xf32>
    %cst_144 = arith.constant dense<0.000000e+00> : vector<1xf32>
    %224 = vector.multi_reduction <add>, %223, %cst_144 [1, 2] : vector<1x1x512xf32> to vector<1xf32>
    %225 = vector.shape_cast %224 : vector<1xf32> to vector<1x1x1xf32>
    %226 = vector.extract %225[0, 0, 0] : f32 from vector<1x1x1xf32>
    %227 = vector.broadcast %226 : f32 to vector<1x1xf32>
    %cst_145 = arith.constant 1.22070313E-4 : f32
    %228 = vector.broadcast %cst_145 : f32 to vector<1x1xf32>
    %229 = arith.mulf %227, %228 : vector<1x1xf32>
    %230 = vector.broadcast %229 : vector<1x1xf32> to vector<1x512xf32>
    %231 = arith.mulf %230, %221 : vector<1x512xf32>
    %232 = arith.addf %219, %231 : vector<1x512xf32>
    %c1_146 = arith.constant 1 : index
    %c0_147 = arith.constant 0 : index
    %c0_148 = arith.constant 0 : index
    %233 = vector.load %arg10[%c1_146, %c0_147, %c0_148] : memref<2x1x512xf32, #tpu.memory_space<vmem>>, vector<1x1x512xf32>
    %234 = vector.shape_cast %233 : vector<1x1x512xf32> to vector<1x512xf32>
    %235 = arith.mulf %215, %234 : vector<1x512xf32>
    %236 = vector.shape_cast %235 : vector<1x512xf32> to vector<1x1x512xf32>
    %cst_149 = arith.constant dense<0.000000e+00> : vector<1xf32>
    %237 = vector.multi_reduction <add>, %236, %cst_149 [1, 2] : vector<1x1x512xf32> to vector<1xf32>
    %238 = vector.shape_cast %237 : vector<1xf32> to vector<1x1x1xf32>
    %239 = vector.extract %238[0, 0, 0] : f32 from vector<1x1x1xf32>
    %240 = vector.broadcast %239 : f32 to vector<1x1xf32>
    %cst_150 = arith.constant 1.22070313E-4 : f32
    %241 = vector.broadcast %cst_150 : f32 to vector<1x1xf32>
    %242 = arith.mulf %240, %241 : vector<1x1xf32>
    %243 = vector.broadcast %242 : vector<1x1xf32> to vector<1x512xf32>
    %244 = arith.mulf %243, %234 : vector<1x512xf32>
    %245 = arith.addf %232, %244 : vector<1x512xf32>
    %cst_151 = arith.constant 0.000000e+00 : f32
    %246 = vector.broadcast %cst_151 : f32 to vector<1x512xf32>
    %c0_152 = arith.constant 0 : index
    %c0_153 = arith.constant 0 : index
    %c0_154 = arith.constant 0 : index
    %247 = vector.load %arg10[%c0_152, %c0_153, %c0_154] : memref<2x1x512xf32, #tpu.memory_space<vmem>>, vector<1x1x512xf32>
    %248 = vector.shape_cast %247 : vector<1x1x512xf32> to vector<1x512xf32>
    %249 = arith.mulf %218, %248 : vector<1x512xf32>
    %250 = vector.shape_cast %249 : vector<1x512xf32> to vector<1x1x512xf32>
    %cst_155 = arith.constant dense<0.000000e+00> : vector<1xf32>
    %251 = vector.multi_reduction <add>, %250, %cst_155 [1, 2] : vector<1x1x512xf32> to vector<1xf32>
    %252 = vector.shape_cast %251 : vector<1xf32> to vector<1x1x1xf32>
    %253 = vector.extract %252[0, 0, 0] : f32 from vector<1x1x1xf32>
    %254 = vector.broadcast %253 : f32 to vector<1x1xf32>
    %cst_156 = arith.constant 1.22070313E-4 : f32
    %255 = vector.broadcast %cst_156 : f32 to vector<1x1xf32>
    %256 = arith.mulf %254, %255 : vector<1x1xf32>
    %257 = vector.broadcast %256 : vector<1x1xf32> to vector<1x512xf32>
    %258 = arith.mulf %257, %248 : vector<1x512xf32>
    %259 = arith.addf %246, %258 : vector<1x512xf32>
    %c1_157 = arith.constant 1 : index
    %c0_158 = arith.constant 0 : index
    %c0_159 = arith.constant 0 : index
    %260 = vector.load %arg10[%c1_157, %c0_158, %c0_159] : memref<2x1x512xf32, #tpu.memory_space<vmem>>, vector<1x1x512xf32>
    %261 = vector.shape_cast %260 : vector<1x1x512xf32> to vector<1x512xf32>
    %262 = arith.mulf %218, %261 : vector<1x512xf32>
    %263 = vector.shape_cast %262 : vector<1x512xf32> to vector<1x1x512xf32>
    %cst_160 = arith.constant dense<0.000000e+00> : vector<1xf32>
    %264 = vector.multi_reduction <add>, %263, %cst_160 [1, 2] : vector<1x1x512xf32> to vector<1xf32>
    %265 = vector.shape_cast %264 : vector<1xf32> to vector<1x1x1xf32>
    %266 = vector.extract %265[0, 0, 0] : f32 from vector<1x1x1xf32>
    %267 = vector.broadcast %266 : f32 to vector<1x1xf32>
    %cst_161 = arith.constant 1.22070313E-4 : f32
    %268 = vector.broadcast %cst_161 : f32 to vector<1x1xf32>
    %269 = arith.mulf %267, %268 : vector<1x1xf32>
    %270 = vector.broadcast %269 : vector<1x1xf32> to vector<1x512xf32>
    %271 = arith.mulf %270, %261 : vector<1x512xf32>
    %272 = arith.addf %259, %271 : vector<1x512xf32>
    %273 = arith.mulf %245, %245 : vector<1x512xf32>
    %274 = arith.subf %272, %273 : vector<1x512xf32>
    %c1_162 = arith.constant 1 : index
    %c0_163 = arith.constant 0 : index
    %c0_164 = arith.constant 0 : index
    %275 = vector.load %arg6[%c1_162, %c0_163, %c0_164] : memref<4x32x1xf32, #tpu.memory_space<vmem>>, vector<1x32x1xf32>
    %276 = vector.shape_cast %275 : vector<1x32x1xf32> to vector<32x1xf32>
    %cst_165 = arith.constant 9.99999974E-6 : f32
    %277 = vector.broadcast %cst_165 : f32 to vector<1x512xf32>
    %278 = arith.addf %274, %277 : vector<1x512xf32>
    %279 = math.rsqrt %278 : vector<1x512xf32>
    %280 = vector.broadcast %276 : vector<32x1xf32> to vector<32x512xf32>
    %281 = vector.broadcast %279 : vector<1x512xf32> to vector<32x512xf32>
    %282 = arith.mulf %280, %281 : vector<32x512xf32>
    %283 = vector.broadcast %245 : vector<1x512xf32> to vector<32x512xf32>
    %284 = arith.subf %213, %283 : vector<32x512xf32>
    %285 = arith.mulf %284, %282 : vector<32x512xf32>
    %c1_166 = arith.constant 1 : index
    %c0_167 = arith.constant 0 : index
    %c0_168 = arith.constant 0 : index
    %286 = vector.load %arg7[%c1_166, %c0_167, %c0_168] : memref<4x32x1xf32, #tpu.memory_space<vmem>>, vector<1x32x1xf32>
    %287 = vector.shape_cast %286 : vector<1x32x1xf32> to vector<32x1xf32>
    %288 = vector.broadcast %287 : vector<32x1xf32> to vector<32x512xf32>
    %289 = arith.addf %285, %288 : vector<32x512xf32>
    %cst_169 = arith.constant 0.000000e+00 : f32
    %290 = vector.broadcast %cst_169 : f32 to vector<32x512xf32>
    %291 = arith.maximumf %289, %290 : vector<32x512xf32>
    %c17_i32_170 = arith.constant 17 : i32
    %292 = tpu.dynamic_rotate %291 by %c17_i32_170 dim 1 : vector<32x512xf32>, i32 -> vector<32x512xf32>
    %c0_171 = arith.constant 0 : index
    %c0_172 = arith.constant 0 : index
    %c0_173 = arith.constant 0 : index
    %293 = vector.load %arg3[%c0_171, %c0_172, %c0_173] : memref<9x1x512xf32, #tpu.memory_space<vmem>>, vector<1x1x512xf32>
    %294 = vector.shape_cast %293 : vector<1x1x512xf32> to vector<1x512xf32>
    %295 = vector.broadcast %294 : vector<1x512xf32> to vector<32x512xf32>
    %296 = arith.mulf %292, %295 : vector<32x512xf32>
    %c0_174 = arith.constant 0 : index
    %c0_175 = arith.constant 0 : index
    %297 = vector.load %arg12[%c0_174, %c0_175] : memref<288x512xf32, #tpu.memory_space<vmem>>, vector<32x512xf32>
    tpu.vector_store %arg12[%c0_174, %c0_175], %296 {strides = array<i32>} : memref<288x512xf32, #tpu.memory_space<vmem>>, vector<32x512xf32>,
    %c16_i32_176 = arith.constant 16 : i32
    %298 = tpu.dynamic_rotate %291 by %c16_i32_176 dim 1 : vector<32x512xf32>, i32 -> vector<32x512xf32>
    %c1_177 = arith.constant 1 : index
    %c0_178 = arith.constant 0 : index
    %c0_179 = arith.constant 0 : index
    %299 = vector.load %arg3[%c1_177, %c0_178, %c0_179] : memref<9x1x512xf32, #tpu.memory_space<vmem>>, vector<1x1x512xf32>
    %300 = vector.shape_cast %299 : vector<1x1x512xf32> to vector<1x512xf32>
    %301 = vector.broadcast %300 : vector<1x512xf32> to vector<32x512xf32>
    %302 = arith.mulf %298, %301 : vector<32x512xf32>
    %c32_180 = arith.constant 32 : index
    %c0_181 = arith.constant 0 : index
    %303 = vector.load %arg12[%c32_180, %c0_181] : memref<288x512xf32, #tpu.memory_space<vmem>>, vector<32x512xf32>
    tpu.vector_store %arg12[%c32_180, %c0_181], %302 {strides = array<i32>} : memref<288x512xf32, #tpu.memory_space<vmem>>, vector<32x512xf32>,
    %c15_i32_182 = arith.constant 15 : i32
    %304 = tpu.dynamic_rotate %291 by %c15_i32_182 dim 1 : vector<32x512xf32>, i32 -> vector<32x512xf32>
    %c2_183 = arith.constant 2 : index
    %c0_184 = arith.constant 0 : index
    %c0_185 = arith.constant 0 : index
    %305 = vector.load %arg3[%c2_183, %c0_184, %c0_185] : memref<9x1x512xf32, #tpu.memory_space<vmem>>, vector<1x1x512xf32>
    %306 = vector.shape_cast %305 : vector<1x1x512xf32> to vector<1x512xf32>
    %307 = vector.broadcast %306 : vector<1x512xf32> to vector<32x512xf32>
    %308 = arith.mulf %304, %307 : vector<32x512xf32>
    %c64_186 = arith.constant 64 : index
    %c0_187 = arith.constant 0 : index
    %309 = vector.load %arg12[%c64_186, %c0_187] : memref<288x512xf32, #tpu.memory_space<vmem>>, vector<32x512xf32>
    tpu.vector_store %arg12[%c64_186, %c0_187], %308 {strides = array<i32>} : memref<288x512xf32, #tpu.memory_space<vmem>>, vector<32x512xf32>,
    %c1_i32_188 = arith.constant 1 : i32
    %310 = tpu.dynamic_rotate %291 by %c1_i32_188 dim 1 : vector<32x512xf32>, i32 -> vector<32x512xf32>
    %c3_189 = arith.constant 3 : index
    %c0_190 = arith.constant 0 : index
    %c0_191 = arith.constant 0 : index
    %311 = vector.load %arg3[%c3_189, %c0_190, %c0_191] : memref<9x1x512xf32, #tpu.memory_space<vmem>>, vector<1x1x512xf32>
    %312 = vector.shape_cast %311 : vector<1x1x512xf32> to vector<1x512xf32>
    %313 = vector.broadcast %312 : vector<1x512xf32> to vector<32x512xf32>
    %314 = arith.mulf %310, %313 : vector<32x512xf32>
    %c96_192 = arith.constant 96 : index
    %c0_193 = arith.constant 0 : index
    %315 = vector.load %arg12[%c96_192, %c0_193] : memref<288x512xf32, #tpu.memory_space<vmem>>, vector<32x512xf32>
    tpu.vector_store %arg12[%c96_192, %c0_193], %314 {strides = array<i32>} : memref<288x512xf32, #tpu.memory_space<vmem>>, vector<32x512xf32>,
    %c128_194 = arith.constant 128 : index
    %c0_195 = arith.constant 0 : index
    %316 = vector.load %arg12[%c128_194, %c0_195] : memref<288x512xf32, #tpu.memory_space<vmem>>, vector<32x512xf32>
    tpu.vector_store %arg12[%c128_194, %c0_195], %291 {strides = array<i32>} : memref<288x512xf32, #tpu.memory_space<vmem>>, vector<32x512xf32>,
    %c511_i32_196 = arith.constant 511 : i32
    %317 = tpu.dynamic_rotate %291 by %c511_i32_196 dim 1 : vector<32x512xf32>, i32 -> vector<32x512xf32>
    %c5_197 = arith.constant 5 : index
    %c0_198 = arith.constant 0 : index
    %c0_199 = arith.constant 0 : index
    %318 = vector.load %arg3[%c5_197, %c0_198, %c0_199] : memref<9x1x512xf32, #tpu.memory_space<vmem>>, vector<1x1x512xf32>
    %319 = vector.shape_cast %318 : vector<1x1x512xf32> to vector<1x512xf32>
    %320 = vector.broadcast %319 : vector<1x512xf32> to vector<32x512xf32>
    %321 = arith.mulf %317, %320 : vector<32x512xf32>
    %c160_200 = arith.constant 160 : index
    %c0_201 = arith.constant 0 : index
    %322 = vector.load %arg12[%c160_200, %c0_201] : memref<288x512xf32, #tpu.memory_space<vmem>>, vector<32x512xf32>
    tpu.vector_store %arg12[%c160_200, %c0_201], %321 {strides = array<i32>} : memref<288x512xf32, #tpu.memory_space<vmem>>, vector<32x512xf32>,
    %c497_i32_202 = arith.constant 497 : i32
    %323 = tpu.dynamic_rotate %291 by %c497_i32_202 dim 1 : vector<32x512xf32>, i32 -> vector<32x512xf32>
    %c6_203 = arith.constant 6 : index
    %c0_204 = arith.constant 0 : index
    %c0_205 = arith.constant 0 : index
    %324 = vector.load %arg3[%c6_203, %c0_204, %c0_205] : memref<9x1x512xf32, #tpu.memory_space<vmem>>, vector<1x1x512xf32>
    %325 = vector.shape_cast %324 : vector<1x1x512xf32> to vector<1x512xf32>
    %326 = vector.broadcast %325 : vector<1x512xf32> to vector<32x512xf32>
    %327 = arith.mulf %323, %326 : vector<32x512xf32>
    %c192_206 = arith.constant 192 : index
    %c0_207 = arith.constant 0 : index
    %328 = vector.load %arg12[%c192_206, %c0_207] : memref<288x512xf32, #tpu.memory_space<vmem>>, vector<32x512xf32>
    tpu.vector_store %arg12[%c192_206, %c0_207], %327 {strides = array<i32>} : memref<288x512xf32, #tpu.memory_space<vmem>>, vector<32x512xf32>,
    %c496_i32_208 = arith.constant 496 : i32
    %329 = tpu.dynamic_rotate %291 by %c496_i32_208 dim 1 : vector<32x512xf32>, i32 -> vector<32x512xf32>
    %c7_209 = arith.constant 7 : index
    %c0_210 = arith.constant 0 : index
    %c0_211 = arith.constant 0 : index
    %330 = vector.load %arg3[%c7_209, %c0_210, %c0_211] : memref<9x1x512xf32, #tpu.memory_space<vmem>>, vector<1x1x512xf32>
    %331 = vector.shape_cast %330 : vector<1x1x512xf32> to vector<1x512xf32>
    %332 = vector.broadcast %331 : vector<1x512xf32> to vector<32x512xf32>
    %333 = arith.mulf %329, %332 : vector<32x512xf32>
    %c224_212 = arith.constant 224 : index
    %c0_213 = arith.constant 0 : index
    %334 = vector.load %arg12[%c224_212, %c0_213] : memref<288x512xf32, #tpu.memory_space<vmem>>, vector<32x512xf32>
    tpu.vector_store %arg12[%c224_212, %c0_213], %333 {strides = array<i32>} : memref<288x512xf32, #tpu.memory_space<vmem>>, vector<32x512xf32>,
    %c495_i32_214 = arith.constant 495 : i32
    %335 = tpu.dynamic_rotate %291 by %c495_i32_214 dim 1 : vector<32x512xf32>, i32 -> vector<32x512xf32>
    %c8_215 = arith.constant 8 : index
    %c0_216 = arith.constant 0 : index
    %c0_217 = arith.constant 0 : index
    %336 = vector.load %arg3[%c8_215, %c0_216, %c0_217] : memref<9x1x512xf32, #tpu.memory_space<vmem>>, vector<1x1x512xf32>
    %337 = vector.shape_cast %336 : vector<1x1x512xf32> to vector<1x512xf32>
    %338 = vector.broadcast %337 : vector<1x512xf32> to vector<32x512xf32>
    %339 = arith.mulf %335, %338 : vector<32x512xf32>
    %c256_218 = arith.constant 256 : index
    %c0_219 = arith.constant 0 : index
    %340 = vector.load %arg12[%c256_218, %c0_219] : memref<288x512xf32, #tpu.memory_space<vmem>>, vector<32x512xf32>
    tpu.vector_store %arg12[%c256_218, %c0_219], %339 {strides = array<i32>} : memref<288x512xf32, #tpu.memory_space<vmem>>, vector<32x512xf32>,
    %c2_220 = arith.constant 2 : index
    %c0_221 = arith.constant 0 : index
    %c0_222 = arith.constant 0 : index
    %341 = vector.load %arg4[%c2_220, %c0_221, %c0_222] : memref<4x32x288xf32, #tpu.memory_space<vmem>>, vector<1x32x288xf32>
    %342 = vector.shape_cast %341 : vector<1x32x288xf32> to vector<32x288xf32>
    %c0_223 = arith.constant 0 : index
    %c0_224 = arith.constant 0 : index
    %343 = vector.load %arg12[%c0_223, %c0_224] : memref<288x512xf32, #tpu.memory_space<vmem>>, vector<288x512xf32>
    %cst_225 = arith.constant dense<0.000000e+00> : vector<32x512xf32>
    %344 = tpu.matmul %342, %343, %cst_225 {dimension_numbers = #tpu.dot_dimension_numbers<[1], [0], [0], [1], [0, 0, 1, 1], [], []>} : vector<32x288xf32>, vector<288x512xf32>, vector<32x512xf32> -> vector<32x512xf32>
    %c2_226 = arith.constant 2 : index
    %c0_227 = arith.constant 0 : index
    %c0_228 = arith.constant 0 : index
    %345 = vector.load %arg5[%c2_226, %c0_227, %c0_228] : memref<4x32x1xf32, #tpu.memory_space<vmem>>, vector<1x32x1xf32>
    %346 = vector.shape_cast %345 : vector<1x32x1xf32> to vector<32x1xf32>
    %347 = vector.broadcast %346 : vector<32x1xf32> to vector<32x512xf32>
    %348 = arith.addf %344, %347 : vector<32x512xf32>
    %cst_229 = arith.constant dense<0.000000e+00> : vector<512xf32>
    %349 = vector.multi_reduction <add>, %348, %cst_229 [0] : vector<32x512xf32> to vector<512xf32>
    %350 = vector.shape_cast %349 : vector<512xf32> to vector<1x512xf32>
    %351 = arith.mulf %348, %348 : vector<32x512xf32>
    %cst_230 = arith.constant dense<0.000000e+00> : vector<512xf32>
    %352 = vector.multi_reduction <add>, %351, %cst_230 [0] : vector<32x512xf32> to vector<512xf32>
    %353 = vector.shape_cast %352 : vector<512xf32> to vector<1x512xf32>
    %cst_231 = arith.constant 0.000000e+00 : f32
    %354 = vector.broadcast %cst_231 : f32 to vector<1x512xf32>
    %c0_232 = arith.constant 0 : index
    %c0_233 = arith.constant 0 : index
    %c0_234 = arith.constant 0 : index
    %355 = vector.load %arg10[%c0_232, %c0_233, %c0_234] : memref<2x1x512xf32, #tpu.memory_space<vmem>>, vector<1x1x512xf32>
    %356 = vector.shape_cast %355 : vector<1x1x512xf32> to vector<1x512xf32>
    %357 = arith.mulf %350, %356 : vector<1x512xf32>
    %358 = vector.shape_cast %357 : vector<1x512xf32> to vector<1x1x512xf32>
    %cst_235 = arith.constant dense<0.000000e+00> : vector<1xf32>
    %359 = vector.multi_reduction <add>, %358, %cst_235 [1, 2] : vector<1x1x512xf32> to vector<1xf32>
    %360 = vector.shape_cast %359 : vector<1xf32> to vector<1x1x1xf32>
    %361 = vector.extract %360[0, 0, 0] : f32 from vector<1x1x1xf32>
    %362 = vector.broadcast %361 : f32 to vector<1x1xf32>
    %cst_236 = arith.constant 1.22070313E-4 : f32
    %363 = vector.broadcast %cst_236 : f32 to vector<1x1xf32>
    %364 = arith.mulf %362, %363 : vector<1x1xf32>
    %365 = vector.broadcast %364 : vector<1x1xf32> to vector<1x512xf32>
    %366 = arith.mulf %365, %356 : vector<1x512xf32>
    %367 = arith.addf %354, %366 : vector<1x512xf32>
    %c1_237 = arith.constant 1 : index
    %c0_238 = arith.constant 0 : index
    %c0_239 = arith.constant 0 : index
    %368 = vector.load %arg10[%c1_237, %c0_238, %c0_239] : memref<2x1x512xf32, #tpu.memory_space<vmem>>, vector<1x1x512xf32>
    %369 = vector.shape_cast %368 : vector<1x1x512xf32> to vector<1x512xf32>
    %370 = arith.mulf %350, %369 : vector<1x512xf32>
    %371 = vector.shape_cast %370 : vector<1x512xf32> to vector<1x1x512xf32>
    %cst_240 = arith.constant dense<0.000000e+00> : vector<1xf32>
    %372 = vector.multi_reduction <add>, %371, %cst_240 [1, 2] : vector<1x1x512xf32> to vector<1xf32>
    %373 = vector.shape_cast %372 : vector<1xf32> to vector<1x1x1xf32>
    %374 = vector.extract %373[0, 0, 0] : f32 from vector<1x1x1xf32>
    %375 = vector.broadcast %374 : f32 to vector<1x1xf32>
    %cst_241 = arith.constant 1.22070313E-4 : f32
    %376 = vector.broadcast %cst_241 : f32 to vector<1x1xf32>
    %377 = arith.mulf %375, %376 : vector<1x1xf32>
    %378 = vector.broadcast %377 : vector<1x1xf32> to vector<1x512xf32>
    %379 = arith.mulf %378, %369 : vector<1x512xf32>
    %380 = arith.addf %367, %379 : vector<1x512xf32>
    %cst_242 = arith.constant 0.000000e+00 : f32
    %381 = vector.broadcast %cst_242 : f32 to vector<1x512xf32>
    %c0_243 = arith.constant 0 : index
    %c0_244 = arith.constant 0 : index
    %c0_245 = arith.constant 0 : index
    %382 = vector.load %arg10[%c0_243, %c0_244, %c0_245] : memref<2x1x512xf32, #tpu.memory_space<vmem>>, vector<1x1x512xf32>
    %383 = vector.shape_cast %382 : vector<1x1x512xf32> to vector<1x512xf32>
    %384 = arith.mulf %353, %383 : vector<1x512xf32>
    %385 = vector.shape_cast %384 : vector<1x512xf32> to vector<1x1x512xf32>
    %cst_246 = arith.constant dense<0.000000e+00> : vector<1xf32>
    %386 = vector.multi_reduction <add>, %385, %cst_246 [1, 2] : vector<1x1x512xf32> to vector<1xf32>
    %387 = vector.shape_cast %386 : vector<1xf32> to vector<1x1x1xf32>
    %388 = vector.extract %387[0, 0, 0] : f32 from vector<1x1x1xf32>
    %389 = vector.broadcast %388 : f32 to vector<1x1xf32>
    %cst_247 = arith.constant 1.22070313E-4 : f32
    %390 = vector.broadcast %cst_247 : f32 to vector<1x1xf32>
    %391 = arith.mulf %389, %390 : vector<1x1xf32>
    %392 = vector.broadcast %391 : vector<1x1xf32> to vector<1x512xf32>
    %393 = arith.mulf %392, %383 : vector<1x512xf32>
    %394 = arith.addf %381, %393 : vector<1x512xf32>
    %c1_248 = arith.constant 1 : index
    %c0_249 = arith.constant 0 : index
    %c0_250 = arith.constant 0 : index
    %395 = vector.load %arg10[%c1_248, %c0_249, %c0_250] : memref<2x1x512xf32, #tpu.memory_space<vmem>>, vector<1x1x512xf32>
    %396 = vector.shape_cast %395 : vector<1x1x512xf32> to vector<1x512xf32>
    %397 = arith.mulf %353, %396 : vector<1x512xf32>
    %398 = vector.shape_cast %397 : vector<1x512xf32> to vector<1x1x512xf32>
    %cst_251 = arith.constant dense<0.000000e+00> : vector<1xf32>
    %399 = vector.multi_reduction <add>, %398, %cst_251 [1, 2] : vector<1x1x512xf32> to vector<1xf32>
    %400 = vector.shape_cast %399 : vector<1xf32> to vector<1x1x1xf32>
    %401 = vector.extract %400[0, 0, 0] : f32 from vector<1x1x1xf32>
    %402 = vector.broadcast %401 : f32 to vector<1x1xf32>
    %cst_252 = arith.constant 1.22070313E-4 : f32
    %403 = vector.broadcast %cst_252 : f32 to vector<1x1xf32>
    %404 = arith.mulf %402, %403 : vector<1x1xf32>
    %405 = vector.broadcast %404 : vector<1x1xf32> to vector<1x512xf32>
    %406 = arith.mulf %405, %396 : vector<1x512xf32>
    %407 = arith.addf %394, %406 : vector<1x512xf32>
    %408 = arith.mulf %380, %380 : vector<1x512xf32>
    %409 = arith.subf %407, %408 : vector<1x512xf32>
    %c2_253 = arith.constant 2 : index
    %c0_254 = arith.constant 0 : index
    %c0_255 = arith.constant 0 : index
    %410 = vector.load %arg6[%c2_253, %c0_254, %c0_255] : memref<4x32x1xf32, #tpu.memory_space<vmem>>, vector<1x32x1xf32>
    %411 = vector.shape_cast %410 : vector<1x32x1xf32> to vector<32x1xf32>
    %cst_256 = arith.constant 9.99999974E-6 : f32
    %412 = vector.broadcast %cst_256 : f32 to vector<1x512xf32>
    %413 = arith.addf %409, %412 : vector<1x512xf32>
    %414 = math.rsqrt %413 : vector<1x512xf32>
    %415 = vector.broadcast %411 : vector<32x1xf32> to vector<32x512xf32>
    %416 = vector.broadcast %414 : vector<1x512xf32> to vector<32x512xf32>
    %417 = arith.mulf %415, %416 : vector<32x512xf32>
    %418 = vector.broadcast %380 : vector<1x512xf32> to vector<32x512xf32>
    %419 = arith.subf %348, %418 : vector<32x512xf32>
    %420 = arith.mulf %419, %417 : vector<32x512xf32>
    %c2_257 = arith.constant 2 : index
    %c0_258 = arith.constant 0 : index
    %c0_259 = arith.constant 0 : index
    %421 = vector.load %arg7[%c2_257, %c0_258, %c0_259] : memref<4x32x1xf32, #tpu.memory_space<vmem>>, vector<1x32x1xf32>
    %422 = vector.shape_cast %421 : vector<1x32x1xf32> to vector<32x1xf32>
    %423 = vector.broadcast %422 : vector<32x1xf32> to vector<32x512xf32>
    %424 = arith.addf %420, %423 : vector<32x512xf32>
    %cst_260 = arith.constant 0.000000e+00 : f32
    %425 = vector.broadcast %cst_260 : f32 to vector<32x512xf32>
    %426 = arith.maximumf %424, %425 : vector<32x512xf32>
    %c17_i32_261 = arith.constant 17 : i32
    %427 = tpu.dynamic_rotate %426 by %c17_i32_261 dim 1 : vector<32x512xf32>, i32 -> vector<32x512xf32>
    %c0_262 = arith.constant 0 : index
    %c0_263 = arith.constant 0 : index
    %c0_264 = arith.constant 0 : index
    %428 = vector.load %arg3[%c0_262, %c0_263, %c0_264] : memref<9x1x512xf32, #tpu.memory_space<vmem>>, vector<1x1x512xf32>
    %429 = vector.shape_cast %428 : vector<1x1x512xf32> to vector<1x512xf32>
    %430 = vector.broadcast %429 : vector<1x512xf32> to vector<32x512xf32>
    %431 = arith.mulf %427, %430 : vector<32x512xf32>
    %c0_265 = arith.constant 0 : index
    %c0_266 = arith.constant 0 : index
    %432 = vector.load %arg12[%c0_265, %c0_266] : memref<288x512xf32, #tpu.memory_space<vmem>>, vector<32x512xf32>
    tpu.vector_store %arg12[%c0_265, %c0_266], %431 {strides = array<i32>} : memref<288x512xf32, #tpu.memory_space<vmem>>, vector<32x512xf32>,
    %c16_i32_267 = arith.constant 16 : i32
    %433 = tpu.dynamic_rotate %426 by %c16_i32_267 dim 1 : vector<32x512xf32>, i32 -> vector<32x512xf32>
    %c1_268 = arith.constant 1 : index
    %c0_269 = arith.constant 0 : index
    %c0_270 = arith.constant 0 : index
    %434 = vector.load %arg3[%c1_268, %c0_269, %c0_270] : memref<9x1x512xf32, #tpu.memory_space<vmem>>, vector<1x1x512xf32>
    %435 = vector.shape_cast %434 : vector<1x1x512xf32> to vector<1x512xf32>
    %436 = vector.broadcast %435 : vector<1x512xf32> to vector<32x512xf32>
    %437 = arith.mulf %433, %436 : vector<32x512xf32>
    %c32_271 = arith.constant 32 : index
    %c0_272 = arith.constant 0 : index
    %438 = vector.load %arg12[%c32_271, %c0_272] : memref<288x512xf32, #tpu.memory_space<vmem>>, vector<32x512xf32>
    tpu.vector_store %arg12[%c32_271, %c0_272], %437 {strides = array<i32>} : memref<288x512xf32, #tpu.memory_space<vmem>>, vector<32x512xf32>,
    %c15_i32_273 = arith.constant 15 : i32
    %439 = tpu.dynamic_rotate %426 by %c15_i32_273 dim 1 : vector<32x512xf32>, i32 -> vector<32x512xf32>
    %c2_274 = arith.constant 2 : index
    %c0_275 = arith.constant 0 : index
    %c0_276 = arith.constant 0 : index
    %440 = vector.load %arg3[%c2_274, %c0_275, %c0_276] : memref<9x1x512xf32, #tpu.memory_space<vmem>>, vector<1x1x512xf32>
    %441 = vector.shape_cast %440 : vector<1x1x512xf32> to vector<1x512xf32>
    %442 = vector.broadcast %441 : vector<1x512xf32> to vector<32x512xf32>
    %443 = arith.mulf %439, %442 : vector<32x512xf32>
    %c64_277 = arith.constant 64 : index
    %c0_278 = arith.constant 0 : index
    %444 = vector.load %arg12[%c64_277, %c0_278] : memref<288x512xf32, #tpu.memory_space<vmem>>, vector<32x512xf32>
    tpu.vector_store %arg12[%c64_277, %c0_278], %443 {strides = array<i32>} : memref<288x512xf32, #tpu.memory_space<vmem>>, vector<32x512xf32>,
    %c1_i32_279 = arith.constant 1 : i32
    %445 = tpu.dynamic_rotate %426 by %c1_i32_279 dim 1 : vector<32x512xf32>, i32 -> vector<32x512xf32>
    %c3_280 = arith.constant 3 : index
    %c0_281 = arith.constant 0 : index
    %c0_282 = arith.constant 0 : index
    %446 = vector.load %arg3[%c3_280, %c0_281, %c0_282] : memref<9x1x512xf32, #tpu.memory_space<vmem>>, vector<1x1x512xf32>
    %447 = vector.shape_cast %446 : vector<1x1x512xf32> to vector<1x512xf32>
    %448 = vector.broadcast %447 : vector<1x512xf32> to vector<32x512xf32>
    %449 = arith.mulf %445, %448 : vector<32x512xf32>
    %c96_283 = arith.constant 96 : index
    %c0_284 = arith.constant 0 : index
    %450 = vector.load %arg12[%c96_283, %c0_284] : memref<288x512xf32, #tpu.memory_space<vmem>>, vector<32x512xf32>
    tpu.vector_store %arg12[%c96_283, %c0_284], %449 {strides = array<i32>} : memref<288x512xf32, #tpu.memory_space<vmem>>, vector<32x512xf32>,
    %c128_285 = arith.constant 128 : index
    %c0_286 = arith.constant 0 : index
    %451 = vector.load %arg12[%c128_285, %c0_286] : memref<288x512xf32, #tpu.memory_space<vmem>>, vector<32x512xf32>
    tpu.vector_store %arg12[%c128_285, %c0_286], %426 {strides = array<i32>} : memref<288x512xf32, #tpu.memory_space<vmem>>, vector<32x512xf32>,
    %c511_i32_287 = arith.constant 511 : i32
    %452 = tpu.dynamic_rotate %426 by %c511_i32_287 dim 1 : vector<32x512xf32>, i32 -> vector<32x512xf32>
    %c5_288 = arith.constant 5 : index
    %c0_289 = arith.constant 0 : index
    %c0_290 = arith.constant 0 : index
    %453 = vector.load %arg3[%c5_288, %c0_289, %c0_290] : memref<9x1x512xf32, #tpu.memory_space<vmem>>, vector<1x1x512xf32>
    %454 = vector.shape_cast %453 : vector<1x1x512xf32> to vector<1x512xf32>
    %455 = vector.broadcast %454 : vector<1x512xf32> to vector<32x512xf32>
    %456 = arith.mulf %452, %455 : vector<32x512xf32>
    %c160_291 = arith.constant 160 : index
    %c0_292 = arith.constant 0 : index
    %457 = vector.load %arg12[%c160_291, %c0_292] : memref<288x512xf32, #tpu.memory_space<vmem>>, vector<32x512xf32>
    tpu.vector_store %arg12[%c160_291, %c0_292], %456 {strides = array<i32>} : memref<288x512xf32, #tpu.memory_space<vmem>>, vector<32x512xf32>,
    %c497_i32_293 = arith.constant 497 : i32
    %458 = tpu.dynamic_rotate %426 by %c497_i32_293 dim 1 : vector<32x512xf32>, i32 -> vector<32x512xf32>
    %c6_294 = arith.constant 6 : index
    %c0_295 = arith.constant 0 : index
    %c0_296 = arith.constant 0 : index
    %459 = vector.load %arg3[%c6_294, %c0_295, %c0_296] : memref<9x1x512xf32, #tpu.memory_space<vmem>>, vector<1x1x512xf32>
    %460 = vector.shape_cast %459 : vector<1x1x512xf32> to vector<1x512xf32>
    %461 = vector.broadcast %460 : vector<1x512xf32> to vector<32x512xf32>
    %462 = arith.mulf %458, %461 : vector<32x512xf32>
    %c192_297 = arith.constant 192 : index
    %c0_298 = arith.constant 0 : index
    %463 = vector.load %arg12[%c192_297, %c0_298] : memref<288x512xf32, #tpu.memory_space<vmem>>, vector<32x512xf32>
    tpu.vector_store %arg12[%c192_297, %c0_298], %462 {strides = array<i32>} : memref<288x512xf32, #tpu.memory_space<vmem>>, vector<32x512xf32>,
    %c496_i32_299 = arith.constant 496 : i32
    %464 = tpu.dynamic_rotate %426 by %c496_i32_299 dim 1 : vector<32x512xf32>, i32 -> vector<32x512xf32>
    %c7_300 = arith.constant 7 : index
    %c0_301 = arith.constant 0 : index
    %c0_302 = arith.constant 0 : index
    %465 = vector.load %arg3[%c7_300, %c0_301, %c0_302] : memref<9x1x512xf32, #tpu.memory_space<vmem>>, vector<1x1x512xf32>
    %466 = vector.shape_cast %465 : vector<1x1x512xf32> to vector<1x512xf32>
    %467 = vector.broadcast %466 : vector<1x512xf32> to vector<32x512xf32>
    %468 = arith.mulf %464, %467 : vector<32x512xf32>
    %c224_303 = arith.constant 224 : index
    %c0_304 = arith.constant 0 : index
    %469 = vector.load %arg12[%c224_303, %c0_304] : memref<288x512xf32, #tpu.memory_space<vmem>>, vector<32x512xf32>
    tpu.vector_store %arg12[%c224_303, %c0_304], %468 {strides = array<i32>} : memref<288x512xf32, #tpu.memory_space<vmem>>, vector<32x512xf32>,
    %c495_i32_305 = arith.constant 495 : i32
    %470 = tpu.dynamic_rotate %426 by %c495_i32_305 dim 1 : vector<32x512xf32>, i32 -> vector<32x512xf32>
    %c8_306 = arith.constant 8 : index
    %c0_307 = arith.constant 0 : index
    %c0_308 = arith.constant 0 : index
    %471 = vector.load %arg3[%c8_306, %c0_307, %c0_308] : memref<9x1x512xf32, #tpu.memory_space<vmem>>, vector<1x1x512xf32>
    %472 = vector.shape_cast %471 : vector<1x1x512xf32> to vector<1x512xf32>
    %473 = vector.broadcast %472 : vector<1x512xf32> to vector<32x512xf32>
    %474 = arith.mulf %470, %473 : vector<32x512xf32>
    %c256_309 = arith.constant 256 : index
    %c0_310 = arith.constant 0 : index
    %475 = vector.load %arg12[%c256_309, %c0_310] : memref<288x512xf32, #tpu.memory_space<vmem>>, vector<32x512xf32>
    tpu.vector_store %arg12[%c256_309, %c0_310], %474 {strides = array<i32>} : memref<288x512xf32, #tpu.memory_space<vmem>>, vector<32x512xf32>,
    %c3_311 = arith.constant 3 : index
    %c0_312 = arith.constant 0 : index
    %c0_313 = arith.constant 0 : index
    %476 = vector.load %arg4[%c3_311, %c0_312, %c0_313] : memref<4x32x288xf32, #tpu.memory_space<vmem>>, vector<1x32x288xf32>
    %477 = vector.shape_cast %476 : vector<1x32x288xf32> to vector<32x288xf32>
    %c0_314 = arith.constant 0 : index
    %c0_315 = arith.constant 0 : index
    %478 = vector.load %arg12[%c0_314, %c0_315] : memref<288x512xf32, #tpu.memory_space<vmem>>, vector<288x512xf32>
    %cst_316 = arith.constant dense<0.000000e+00> : vector<32x512xf32>
    %479 = tpu.matmul %477, %478, %cst_316 {dimension_numbers = #tpu.dot_dimension_numbers<[1], [0], [0], [1], [0, 0, 1, 1], [], []>} : vector<32x288xf32>, vector<288x512xf32>, vector<32x512xf32> -> vector<32x512xf32>
    %c3_317 = arith.constant 3 : index
    %c0_318 = arith.constant 0 : index
    %c0_319 = arith.constant 0 : index
    %480 = vector.load %arg5[%c3_317, %c0_318, %c0_319] : memref<4x32x1xf32, #tpu.memory_space<vmem>>, vector<1x32x1xf32>
    %481 = vector.shape_cast %480 : vector<1x32x1xf32> to vector<32x1xf32>
    %482 = vector.broadcast %481 : vector<32x1xf32> to vector<32x512xf32>
    %483 = arith.addf %479, %482 : vector<32x512xf32>
    %cst_320 = arith.constant dense<0.000000e+00> : vector<512xf32>
    %484 = vector.multi_reduction <add>, %483, %cst_320 [0] : vector<32x512xf32> to vector<512xf32>
    %485 = vector.shape_cast %484 : vector<512xf32> to vector<1x512xf32>
    %486 = arith.mulf %483, %483 : vector<32x512xf32>
    %cst_321 = arith.constant dense<0.000000e+00> : vector<512xf32>
    %487 = vector.multi_reduction <add>, %486, %cst_321 [0] : vector<32x512xf32> to vector<512xf32>
    %488 = vector.shape_cast %487 : vector<512xf32> to vector<1x512xf32>
    %cst_322 = arith.constant 0.000000e+00 : f32
    %489 = vector.broadcast %cst_322 : f32 to vector<1x512xf32>
    %c0_323 = arith.constant 0 : index
    %c0_324 = arith.constant 0 : index
    %c0_325 = arith.constant 0 : index
    %490 = vector.load %arg10[%c0_323, %c0_324, %c0_325] : memref<2x1x512xf32, #tpu.memory_space<vmem>>, vector<1x1x512xf32>
    %491 = vector.shape_cast %490 : vector<1x1x512xf32> to vector<1x512xf32>
    %492 = arith.mulf %485, %491 : vector<1x512xf32>
    %493 = vector.shape_cast %492 : vector<1x512xf32> to vector<1x1x512xf32>
    %cst_326 = arith.constant dense<0.000000e+00> : vector<1xf32>
    %494 = vector.multi_reduction <add>, %493, %cst_326 [1, 2] : vector<1x1x512xf32> to vector<1xf32>
    %495 = vector.shape_cast %494 : vector<1xf32> to vector<1x1x1xf32>
    %496 = vector.extract %495[0, 0, 0] : f32 from vector<1x1x1xf32>
    %497 = vector.broadcast %496 : f32 to vector<1x1xf32>
    %cst_327 = arith.constant 1.22070313E-4 : f32
    %498 = vector.broadcast %cst_327 : f32 to vector<1x1xf32>
    %499 = arith.mulf %497, %498 : vector<1x1xf32>
    %500 = vector.broadcast %499 : vector<1x1xf32> to vector<1x512xf32>
    %501 = arith.mulf %500, %491 : vector<1x512xf32>
    %502 = arith.addf %489, %501 : vector<1x512xf32>
    %c1_328 = arith.constant 1 : index
    %c0_329 = arith.constant 0 : index
    %c0_330 = arith.constant 0 : index
    %503 = vector.load %arg10[%c1_328, %c0_329, %c0_330] : memref<2x1x512xf32, #tpu.memory_space<vmem>>, vector<1x1x512xf32>
    %504 = vector.shape_cast %503 : vector<1x1x512xf32> to vector<1x512xf32>
    %505 = arith.mulf %485, %504 : vector<1x512xf32>
    %506 = vector.shape_cast %505 : vector<1x512xf32> to vector<1x1x512xf32>
    %cst_331 = arith.constant dense<0.000000e+00> : vector<1xf32>
    %507 = vector.multi_reduction <add>, %506, %cst_331 [1, 2] : vector<1x1x512xf32> to vector<1xf32>
    %508 = vector.shape_cast %507 : vector<1xf32> to vector<1x1x1xf32>
    %509 = vector.extract %508[0, 0, 0] : f32 from vector<1x1x1xf32>
    %510 = vector.broadcast %509 : f32 to vector<1x1xf32>
    %cst_332 = arith.constant 1.22070313E-4 : f32
    %511 = vector.broadcast %cst_332 : f32 to vector<1x1xf32>
    %512 = arith.mulf %510, %511 : vector<1x1xf32>
    %513 = vector.broadcast %512 : vector<1x1xf32> to vector<1x512xf32>
    %514 = arith.mulf %513, %504 : vector<1x512xf32>
    %515 = arith.addf %502, %514 : vector<1x512xf32>
    %cst_333 = arith.constant 0.000000e+00 : f32
    %516 = vector.broadcast %cst_333 : f32 to vector<1x512xf32>
    %c0_334 = arith.constant 0 : index
    %c0_335 = arith.constant 0 : index
    %c0_336 = arith.constant 0 : index
    %517 = vector.load %arg10[%c0_334, %c0_335, %c0_336] : memref<2x1x512xf32, #tpu.memory_space<vmem>>, vector<1x1x512xf32>
    %518 = vector.shape_cast %517 : vector<1x1x512xf32> to vector<1x512xf32>
    %519 = arith.mulf %488, %518 : vector<1x512xf32>
    %520 = vector.shape_cast %519 : vector<1x512xf32> to vector<1x1x512xf32>
    %cst_337 = arith.constant dense<0.000000e+00> : vector<1xf32>
    %521 = vector.multi_reduction <add>, %520, %cst_337 [1, 2] : vector<1x1x512xf32> to vector<1xf32>
    %522 = vector.shape_cast %521 : vector<1xf32> to vector<1x1x1xf32>
    %523 = vector.extract %522[0, 0, 0] : f32 from vector<1x1x1xf32>
    %524 = vector.broadcast %523 : f32 to vector<1x1xf32>
    %cst_338 = arith.constant 1.22070313E-4 : f32
    %525 = vector.broadcast %cst_338 : f32 to vector<1x1xf32>
    %526 = arith.mulf %524, %525 : vector<1x1xf32>
    %527 = vector.broadcast %526 : vector<1x1xf32> to vector<1x512xf32>
    %528 = arith.mulf %527, %518 : vector<1x512xf32>
    %529 = arith.addf %516, %528 : vector<1x512xf32>
    %c1_339 = arith.constant 1 : index
    %c0_340 = arith.constant 0 : index
    %c0_341 = arith.constant 0 : index
    %530 = vector.load %arg10[%c1_339, %c0_340, %c0_341] : memref<2x1x512xf32, #tpu.memory_space<vmem>>, vector<1x1x512xf32>
    %531 = vector.shape_cast %530 : vector<1x1x512xf32> to vector<1x512xf32>
    %532 = arith.mulf %488, %531 : vector<1x512xf32>
    %533 = vector.shape_cast %532 : vector<1x512xf32> to vector<1x1x512xf32>
    %cst_342 = arith.constant dense<0.000000e+00> : vector<1xf32>
    %534 = vector.multi_reduction <add>, %533, %cst_342 [1, 2] : vector<1x1x512xf32> to vector<1xf32>
    %535 = vector.shape_cast %534 : vector<1xf32> to vector<1x1x1xf32>
    %536 = vector.extract %535[0, 0, 0] : f32 from vector<1x1x1xf32>
    %537 = vector.broadcast %536 : f32 to vector<1x1xf32>
    %cst_343 = arith.constant 1.22070313E-4 : f32
    %538 = vector.broadcast %cst_343 : f32 to vector<1x1xf32>
    %539 = arith.mulf %537, %538 : vector<1x1xf32>
    %540 = vector.broadcast %539 : vector<1x1xf32> to vector<1x512xf32>
    %541 = arith.mulf %540, %531 : vector<1x512xf32>
    %542 = arith.addf %529, %541 : vector<1x512xf32>
    %543 = arith.mulf %515, %515 : vector<1x512xf32>
    %544 = arith.subf %542, %543 : vector<1x512xf32>
    %c3_344 = arith.constant 3 : index
    %c0_345 = arith.constant 0 : index
    %c0_346 = arith.constant 0 : index
    %545 = vector.load %arg6[%c3_344, %c0_345, %c0_346] : memref<4x32x1xf32, #tpu.memory_space<vmem>>, vector<1x32x1xf32>
    %546 = vector.shape_cast %545 : vector<1x32x1xf32> to vector<32x1xf32>
    %cst_347 = arith.constant 9.99999974E-6 : f32
    %547 = vector.broadcast %cst_347 : f32 to vector<1x512xf32>
    %548 = arith.addf %544, %547 : vector<1x512xf32>
    %549 = math.rsqrt %548 : vector<1x512xf32>
    %550 = vector.broadcast %546 : vector<32x1xf32> to vector<32x512xf32>
    %551 = vector.broadcast %549 : vector<1x512xf32> to vector<32x512xf32>
    %552 = arith.mulf %550, %551 : vector<32x512xf32>
    %553 = vector.broadcast %515 : vector<1x512xf32> to vector<32x512xf32>
    %554 = arith.subf %483, %553 : vector<32x512xf32>
    %555 = arith.mulf %554, %552 : vector<32x512xf32>
    %c3_348 = arith.constant 3 : index
    %c0_349 = arith.constant 0 : index
    %c0_350 = arith.constant 0 : index
    %556 = vector.load %arg7[%c3_348, %c0_349, %c0_350] : memref<4x32x1xf32, #tpu.memory_space<vmem>>, vector<1x32x1xf32>
    %557 = vector.shape_cast %556 : vector<1x32x1xf32> to vector<32x1xf32>
    %558 = vector.broadcast %557 : vector<32x1xf32> to vector<32x512xf32>
    %559 = arith.addf %555, %558 : vector<32x512xf32>
    %cst_351 = arith.constant 0.000000e+00 : f32
    %560 = vector.broadcast %cst_351 : f32 to vector<32x512xf32>
    %561 = arith.maximumf %559, %560 : vector<32x512xf32>
    %c17_i32_352 = arith.constant 17 : i32
    %562 = tpu.dynamic_rotate %561 by %c17_i32_352 dim 1 : vector<32x512xf32>, i32 -> vector<32x512xf32>
    %c0_353 = arith.constant 0 : index
    %c0_354 = arith.constant 0 : index
    %c0_355 = arith.constant 0 : index
    %563 = vector.load %arg3[%c0_353, %c0_354, %c0_355] : memref<9x1x512xf32, #tpu.memory_space<vmem>>, vector<1x1x512xf32>
    %564 = vector.shape_cast %563 : vector<1x1x512xf32> to vector<1x512xf32>
    %565 = vector.broadcast %564 : vector<1x512xf32> to vector<32x512xf32>
    %566 = arith.mulf %562, %565 : vector<32x512xf32>
    %c0_356 = arith.constant 0 : index
    %c0_357 = arith.constant 0 : index
    %567 = vector.load %arg12[%c0_356, %c0_357] : memref<288x512xf32, #tpu.memory_space<vmem>>, vector<32x512xf32>
    tpu.vector_store %arg12[%c0_356, %c0_357], %566 {strides = array<i32>} : memref<288x512xf32, #tpu.memory_space<vmem>>, vector<32x512xf32>,
    %c16_i32_358 = arith.constant 16 : i32
    %568 = tpu.dynamic_rotate %561 by %c16_i32_358 dim 1 : vector<32x512xf32>, i32 -> vector<32x512xf32>
    %c1_359 = arith.constant 1 : index
    %c0_360 = arith.constant 0 : index
    %c0_361 = arith.constant 0 : index
    %569 = vector.load %arg3[%c1_359, %c0_360, %c0_361] : memref<9x1x512xf32, #tpu.memory_space<vmem>>, vector<1x1x512xf32>
    %570 = vector.shape_cast %569 : vector<1x1x512xf32> to vector<1x512xf32>
    %571 = vector.broadcast %570 : vector<1x512xf32> to vector<32x512xf32>
    %572 = arith.mulf %568, %571 : vector<32x512xf32>
    %c32_362 = arith.constant 32 : index
    %c0_363 = arith.constant 0 : index
    %573 = vector.load %arg12[%c32_362, %c0_363] : memref<288x512xf32, #tpu.memory_space<vmem>>, vector<32x512xf32>
    tpu.vector_store %arg12[%c32_362, %c0_363], %572 {strides = array<i32>} : memref<288x512xf32, #tpu.memory_space<vmem>>, vector<32x512xf32>,
    %c15_i32_364 = arith.constant 15 : i32
    %574 = tpu.dynamic_rotate %561 by %c15_i32_364 dim 1 : vector<32x512xf32>, i32 -> vector<32x512xf32>
    %c2_365 = arith.constant 2 : index
    %c0_366 = arith.constant 0 : index
    %c0_367 = arith.constant 0 : index
    %575 = vector.load %arg3[%c2_365, %c0_366, %c0_367] : memref<9x1x512xf32, #tpu.memory_space<vmem>>, vector<1x1x512xf32>
    %576 = vector.shape_cast %575 : vector<1x1x512xf32> to vector<1x512xf32>
    %577 = vector.broadcast %576 : vector<1x512xf32> to vector<32x512xf32>
    %578 = arith.mulf %574, %577 : vector<32x512xf32>
    %c64_368 = arith.constant 64 : index
    %c0_369 = arith.constant 0 : index
    %579 = vector.load %arg12[%c64_368, %c0_369] : memref<288x512xf32, #tpu.memory_space<vmem>>, vector<32x512xf32>
    tpu.vector_store %arg12[%c64_368, %c0_369], %578 {strides = array<i32>} : memref<288x512xf32, #tpu.memory_space<vmem>>, vector<32x512xf32>,
    %c1_i32_370 = arith.constant 1 : i32
    %580 = tpu.dynamic_rotate %561 by %c1_i32_370 dim 1 : vector<32x512xf32>, i32 -> vector<32x512xf32>
    %c3_371 = arith.constant 3 : index
    %c0_372 = arith.constant 0 : index
    %c0_373 = arith.constant 0 : index
    %581 = vector.load %arg3[%c3_371, %c0_372, %c0_373] : memref<9x1x512xf32, #tpu.memory_space<vmem>>, vector<1x1x512xf32>
    %582 = vector.shape_cast %581 : vector<1x1x512xf32> to vector<1x512xf32>
    %583 = vector.broadcast %582 : vector<1x512xf32> to vector<32x512xf32>
    %584 = arith.mulf %580, %583 : vector<32x512xf32>
    %c96_374 = arith.constant 96 : index
    %c0_375 = arith.constant 0 : index
    %585 = vector.load %arg12[%c96_374, %c0_375] : memref<288x512xf32, #tpu.memory_space<vmem>>, vector<32x512xf32>
    tpu.vector_store %arg12[%c96_374, %c0_375], %584 {strides = array<i32>} : memref<288x512xf32, #tpu.memory_space<vmem>>, vector<32x512xf32>,
    %c128_376 = arith.constant 128 : index
    %c0_377 = arith.constant 0 : index
    %586 = vector.load %arg12[%c128_376, %c0_377] : memref<288x512xf32, #tpu.memory_space<vmem>>, vector<32x512xf32>
    tpu.vector_store %arg12[%c128_376, %c0_377], %561 {strides = array<i32>} : memref<288x512xf32, #tpu.memory_space<vmem>>, vector<32x512xf32>,
    %c511_i32_378 = arith.constant 511 : i32
    %587 = tpu.dynamic_rotate %561 by %c511_i32_378 dim 1 : vector<32x512xf32>, i32 -> vector<32x512xf32>
    %c5_379 = arith.constant 5 : index
    %c0_380 = arith.constant 0 : index
    %c0_381 = arith.constant 0 : index
    %588 = vector.load %arg3[%c5_379, %c0_380, %c0_381] : memref<9x1x512xf32, #tpu.memory_space<vmem>>, vector<1x1x512xf32>
    %589 = vector.shape_cast %588 : vector<1x1x512xf32> to vector<1x512xf32>
    %590 = vector.broadcast %589 : vector<1x512xf32> to vector<32x512xf32>
    %591 = arith.mulf %587, %590 : vector<32x512xf32>
    %c160_382 = arith.constant 160 : index
    %c0_383 = arith.constant 0 : index
    %592 = vector.load %arg12[%c160_382, %c0_383] : memref<288x512xf32, #tpu.memory_space<vmem>>, vector<32x512xf32>
    tpu.vector_store %arg12[%c160_382, %c0_383], %591 {strides = array<i32>} : memref<288x512xf32, #tpu.memory_space<vmem>>, vector<32x512xf32>,
    %c497_i32_384 = arith.constant 497 : i32
    %593 = tpu.dynamic_rotate %561 by %c497_i32_384 dim 1 : vector<32x512xf32>, i32 -> vector<32x512xf32>
    %c6_385 = arith.constant 6 : index
    %c0_386 = arith.constant 0 : index
    %c0_387 = arith.constant 0 : index
    %594 = vector.load %arg3[%c6_385, %c0_386, %c0_387] : memref<9x1x512xf32, #tpu.memory_space<vmem>>, vector<1x1x512xf32>
    %595 = vector.shape_cast %594 : vector<1x1x512xf32> to vector<1x512xf32>
    %596 = vector.broadcast %595 : vector<1x512xf32> to vector<32x512xf32>
    %597 = arith.mulf %593, %596 : vector<32x512xf32>
    %c192_388 = arith.constant 192 : index
    %c0_389 = arith.constant 0 : index
    %598 = vector.load %arg12[%c192_388, %c0_389] : memref<288x512xf32, #tpu.memory_space<vmem>>, vector<32x512xf32>
    tpu.vector_store %arg12[%c192_388, %c0_389], %597 {strides = array<i32>} : memref<288x512xf32, #tpu.memory_space<vmem>>, vector<32x512xf32>,
    %c496_i32_390 = arith.constant 496 : i32
    %599 = tpu.dynamic_rotate %561 by %c496_i32_390 dim 1 : vector<32x512xf32>, i32 -> vector<32x512xf32>
    %c7_391 = arith.constant 7 : index
    %c0_392 = arith.constant 0 : index
    %c0_393 = arith.constant 0 : index
    %600 = vector.load %arg3[%c7_391, %c0_392, %c0_393] : memref<9x1x512xf32, #tpu.memory_space<vmem>>, vector<1x1x512xf32>
    %601 = vector.shape_cast %600 : vector<1x1x512xf32> to vector<1x512xf32>
    %602 = vector.broadcast %601 : vector<1x512xf32> to vector<32x512xf32>
    %603 = arith.mulf %599, %602 : vector<32x512xf32>
    %c224_394 = arith.constant 224 : index
    %c0_395 = arith.constant 0 : index
    %604 = vector.load %arg12[%c224_394, %c0_395] : memref<288x512xf32, #tpu.memory_space<vmem>>, vector<32x512xf32>
    tpu.vector_store %arg12[%c224_394, %c0_395], %603 {strides = array<i32>} : memref<288x512xf32, #tpu.memory_space<vmem>>, vector<32x512xf32>,
    %c495_i32_396 = arith.constant 495 : i32
    %605 = tpu.dynamic_rotate %561 by %c495_i32_396 dim 1 : vector<32x512xf32>, i32 -> vector<32x512xf32>
    %c8_397 = arith.constant 8 : index
    %c0_398 = arith.constant 0 : index
    %c0_399 = arith.constant 0 : index
    %606 = vector.load %arg3[%c8_397, %c0_398, %c0_399] : memref<9x1x512xf32, #tpu.memory_space<vmem>>, vector<1x1x512xf32>
    %607 = vector.shape_cast %606 : vector<1x1x512xf32> to vector<1x512xf32>
    %608 = vector.broadcast %607 : vector<1x512xf32> to vector<32x512xf32>
    %609 = arith.mulf %605, %608 : vector<32x512xf32>
    %c256_400 = arith.constant 256 : index
    %c0_401 = arith.constant 0 : index
    %610 = vector.load %arg12[%c256_400, %c0_401] : memref<288x512xf32, #tpu.memory_space<vmem>>, vector<32x512xf32>
    tpu.vector_store %arg12[%c256_400, %c0_401], %609 {strides = array<i32>} : memref<288x512xf32, #tpu.memory_space<vmem>>, vector<32x512xf32>,
    %c0_402 = arith.constant 0 : index
    %c0_403 = arith.constant 0 : index
    %611 = vector.load %arg8[%c0_402, %c0_403] : memref<4x288xf32, #tpu.memory_space<vmem>>, vector<4x288xf32>
    %c0_404 = arith.constant 0 : index
    %c0_405 = arith.constant 0 : index
    %612 = vector.load %arg12[%c0_404, %c0_405] : memref<288x512xf32, #tpu.memory_space<vmem>>, vector<288x512xf32>
    %cst_406 = arith.constant dense<0.000000e+00> : vector<4x512xf32>
    %613 = tpu.matmul %611, %612, %cst_406 {dimension_numbers = #tpu.dot_dimension_numbers<[1], [0], [0], [1], [0, 0, 1, 1], [], []>} : vector<4x288xf32>, vector<288x512xf32>, vector<4x512xf32> -> vector<4x512xf32>
    %c0_407 = arith.constant 0 : index
    %c0_408 = arith.constant 0 : index
    %614 = vector.load %arg9[%c0_407, %c0_408] : memref<4x1xf32, #tpu.memory_space<vmem>>, vector<4x1xf32>
    %615 = vector.broadcast %614 : vector<4x1xf32> to vector<4x512xf32>
    %616 = arith.addf %613, %615 : vector<4x512xf32>
    %617 = math.exp %616 : vector<4x512xf32>
    %c0_409 = arith.constant 0 : index
    %c0_410 = arith.constant 0 : index
    %c0_411 = arith.constant 0 : index
    %618 = vector.load %arg11[%c0_409, %c0_410, %c0_411] : memref<1x4x512xf32, #tpu.memory_space<vmem>>, vector<1x4x512xf32>
    %619 = vector.shape_cast %618 : vector<1x4x512xf32> to vector<4x512xf32>
    %620 = vector.shape_cast %617 : vector<4x512xf32> to vector<1x4x512xf32>
    tpu.vector_store %arg11[%c0_409, %c0_410, %c0_411], %620 {strides = array<i32>} : memref<1x4x512xf32, #tpu.memory_space<vmem>>, vector<1x4x512xf32>,
    return
  }
  func.func @transform_0(%arg0: i32) -> (i32, i32, i32) {
    %c0_i32 = arith.constant 0 : i32
    %c0_i32_0 = arith.constant 0 : i32
    %c0_i32_1 = arith.constant 0 : i32
    return %arg0, %c0_i32, %c0_i32_0 : i32, i32, i32
  }
  func.func @transform_1(%arg0: i32) -> (i32, i32, i32) {
    %c0_i32 = arith.constant 0 : i32
    %c0_i32_0 = arith.constant 0 : i32
    %c0_i32_1 = arith.constant 0 : i32
    return %arg0, %c0_i32, %c0_i32_0 : i32, i32, i32
  }
  func.func @transform_2(%arg0: i32) -> (i32, i32, i32) {
    %c0_i32 = arith.constant 0 : i32
    %c0_i32_0 = arith.constant 0 : i32
    %c0_i32_1 = arith.constant 0 : i32
    %c0_i32_2 = arith.constant 0 : i32
    return %c0_i32, %c0_i32_0, %c0_i32_1 : i32, i32, i32
  }
  func.func @transform_3(%arg0: i32) -> (i32, i32, i32) {
    %c0_i32 = arith.constant 0 : i32
    %c0_i32_0 = arith.constant 0 : i32
    %c0_i32_1 = arith.constant 0 : i32
    %c0_i32_2 = arith.constant 0 : i32
    return %c0_i32, %c0_i32_0, %c0_i32_1 : i32, i32, i32
  }
  func.func @transform_4(%arg0: i32) -> (i32, i32, i32) {
    %c0_i32 = arith.constant 0 : i32
    %c0_i32_0 = arith.constant 0 : i32
    %c0_i32_1 = arith.constant 0 : i32
    %c0_i32_2 = arith.constant 0 : i32
    return %c0_i32, %c0_i32_0, %c0_i32_1 : i32, i32, i32
  }
  func.func @transform_5(%arg0: i32) -> (i32, i32, i32) {
    %c0_i32 = arith.constant 0 : i32
    %c0_i32_0 = arith.constant 0 : i32
    %c0_i32_1 = arith.constant 0 : i32
    %c0_i32_2 = arith.constant 0 : i32
    return %c0_i32, %c0_i32_0, %c0_i32_1 : i32, i32, i32
  }
  func.func @transform_6(%arg0: i32) -> (i32, i32, i32) {
    %c0_i32 = arith.constant 0 : i32
    %c0_i32_0 = arith.constant 0 : i32
    %c0_i32_1 = arith.constant 0 : i32
    %c0_i32_2 = arith.constant 0 : i32
    return %c0_i32, %c0_i32_0, %c0_i32_1 : i32, i32, i32
  }
  func.func @transform_7(%arg0: i32) -> (i32, i32) {
    %c0_i32 = arith.constant 0 : i32
    %c0_i32_0 = arith.constant 0 : i32
    %c0_i32_1 = arith.constant 0 : i32
    return %c0_i32, %c0_i32_0 : i32, i32
  }
  func.func @transform_8(%arg0: i32) -> (i32, i32) {
    %c0_i32 = arith.constant 0 : i32
    %c0_i32_0 = arith.constant 0 : i32
    %c0_i32_1 = arith.constant 0 : i32
    return %c0_i32, %c0_i32_0 : i32, i32
  }
  func.func @transform_9(%arg0: i32) -> (i32, i32, i32) {
    %c0_i32 = arith.constant 0 : i32
    %c0_i32_0 = arith.constant 0 : i32
    %c0_i32_1 = arith.constant 0 : i32
    %c0_i32_2 = arith.constant 0 : i32
    return %c0_i32, %c0_i32_0, %c0_i32_1 : i32, i32, i32
  }
  func.func @transform_10(%arg0: i32) -> (i32, i32, i32) {
    %c0_i32 = arith.constant 0 : i32
    %c0_i32_0 = arith.constant 0 : i32
    %c0_i32_1 = arith.constant 0 : i32
    return %arg0, %c0_i32, %c0_i32_0 : i32, i32, i32
  }
}

</mosaic_0001>

<llo_original>
// kernel: tpu_custom_call.1
$region0: #{tpu_custom_call.1}
  #allocation0 [shape = 'u32[]', space=smem, size = 0x4, offset = 0x4, fixed_abs, tag = 'smem constant byte address 0x4 - core index']
  #allocation1 [shape = 'u32[144,128]{1,0:T(1,128)}', space=vmem, size = 0x12000, scoped, tag = 'internal scratch']
  #allocation2 [shape = 'f32[288,512]{1,0:T(8,128)}', space=vmem, size = 0x90000, scoped, tag = 'scratch operand']
  %s0 = inlined_call_operand.hbm [shape: f32[2,32,512], index: 0, kind: input, shape index: {}]
  %s1 = inlined_call_operand.vmem [shape: f32[2,32,2], index: 1, kind: input, shape index: {}]
  %s2 = inlined_call_operand.vmem [shape: f32[9,1,512], index: 2, kind: input, shape index: {}]
  %s3 = inlined_call_operand.vmem [shape: f32[4,32,288], index: 3, kind: input, shape index: {}]
  %s4 = inlined_call_operand.vmem [shape: f32[4,32,1], index: 4, kind: input, shape index: {}]
  %s5 = inlined_call_operand.vmem [shape: f32[4,32,1], index: 5, kind: input, shape index: {}]
  %s6 = inlined_call_operand.vmem [shape: f32[4,32,1], index: 6, kind: input, shape index: {}]
  %s7 = inlined_call_operand.vmem [shape: f32[4,288], index: 7, kind: input, shape index: {}]
  %s8 = inlined_call_operand.vmem [shape: f32[4,1], index: 8, kind: input, shape index: {}]
  %s9 = inlined_call_operand.vmem [shape: f32[2,1,512], index: 9, kind: input, shape index: {}]
  %s10 = inlined_call_operand.hbm [shape: f32[2,4,512], index: 10, kind: output, shape index: {}]
  %s11 = sld [smem:[#allocation0]]
  $region77: #{tpu_custom_call.1} parent=0
    _
  %s13 = ssub.s32 1, %s11
  %s14 = scalar_select 0, %s13, %s11
  $region1: #{tpu_custom_call.1} parent=0
    #allocation3 [shape = 'u8[131072]{0}', space=vmem, size = 0x20000, scoped, tag = 'input window, operand 0']
    #allocation4 [shape = 's32[2]{0}', space=sflag, size = 0x8, scoped, tag = 'scoped memory for tpu_custom_call.1']
    #allocation5 [shape = 's32[2]{0}', space=sflag, size = 0x8, scoped, tag = 'scoped memory for tpu_custom_call.1']
    #allocation6 [shape = 'u8[16384]{0}', space=vmem, size = 0x4000, scoped, tag = 'output window, operand 0']
    %15 = vsyncpa [#allocation4], 0
    %s16 = scalar_lea.sflag [#allocation4], 1
    %17 = vsyncpa %s16, 0
    %18 = vsyncpa [#allocation5], 0
    %s19 = scalar_lea.sflag [#allocation5], 1
    %20 = vsyncpa %s19, 0
    loop: start=0, step=1, limit=4
    $region2: #{tpu_custom_call.1} parent=1 // loop_pre_header
      _
    $region3: #{tpu_custom_call.1} parent=1 // loop_header
      %s22 = sphi 0, %s26
      %p23 = scmp.ge.s32.totalorder %s22, 4
      %s32 = sphi 0, %s34
      %s35 = sphi 0, %s32
      %s36 = sphi 0, %s35
      %s52 = sphi 0, %s36
      %s58 = sphi 0, %s60
      %s61 = sphi 0, %s58
      %s62 = sphi 0, %s61
      %s78 = sphi 0, %s62
      %s82 = sphi 0, %s82
      %s84 = sphi 0, %s82
      %s85 = sphi 0, %s84
      %s99 = sphi 0, %s85
      %s103 = sphi 0, %s103
      %s105 = sphi 0, %s103
      %s106 = sphi 0, %s105
      %s120 = sphi 0, %s106
      %s124 = sphi 0, %s124
      %s126 = sphi 0, %s124
      %s127 = sphi 0, %s126
      %s141 = sphi 0, %s127
      %s145 = sphi 0, %s145
      %s147 = sphi 0, %s145
      %s148 = sphi 0, %s147
      %s162 = sphi 0, %s148
      %s166 = sphi 0, %s166
      %s168 = sphi 0, %s166
      %s169 = sphi 0, %s168
      %s183 = sphi 0, %s169
      %s187 = sphi 0, %s187
      %s189 = sphi 0, %s187
      %s190 = sphi 0, %s189
      %s204 = sphi 0, %s190
      %s208 = sphi 0, %s208
      %s210 = sphi 0, %s208
      %s211 = sphi 0, %s210
      %s225 = sphi 0, %s211
      %s229 = sphi 0, %s229
      %s231 = sphi 0, %s229
      %s232 = sphi 0, %s231
      %s246 = sphi 0, %s232
      %s252 = sphi 0, %s254
      %s255 = sphi 0, %s252
      %s256 = sphi 0, %s255
      %s272 = sphi 0, %s256
    $region4: #{tpu_custom_call.1} parent=1 // loop_header_branch
      %25 = sbr.rel (%p23) target = $region8
    $region5: #{tpu_custom_call.1} parent=1 // loop_body
      %s27 = ssub.s32 %s22, 1
      %s28 = ssub.s32 %s22, 2
      %s29 = sadd.s32 %s22, 1
      %s30 = ssub.s32 %s22, %s29
      %p31 = scmp.eq.s32.totalorder %s30, 0
      %s33 = sadd.s32 %s32, 1
      %s34 = scalar_select %p31, %s32, %s33
      %p37 = pneg %p31
      %p38 = scmp.eq.s32.totalorder %s22, 1
      %p39 = por %p37, %p38
      %p40 = scmp.ne.s32.totalorder %s32, %s35
      %p41 = scmp.eq.s32.totalorder %s22, 0
      %p42 = por %p40, %p41
      %p43 = scmp.ne.s32.totalorder %s32, %s35
      %p44 = scmp.eq.s32.totalorder %s27, 1
      %p45 = por %p43, %p44
      %p46 = scmp.ne.s32.totalorder %s35, %s36
      %p47 = scmp.eq.s32.totalorder %s27, 0
      %p48 = por %p46, %p47
      %p49 = scmp.ne.s32.totalorder %s35, %s36
      %p50 = scmp.eq.s32.totalorder %s28, 1
      %p51 = por %p49, %p50
      %p53 = scmp.ne.s32.totalorder %s36, %s52
      %p54 = scmp.eq.s32.totalorder %s28, 0
      %p55 = por %p53, %p54
      %s56 = ssub.s32 %s22, %s29
      %p57 = scmp.eq.s32.totalorder %s56, 0
      %s59 = sadd.s32 %s58, 1
      %s60 = scalar_select %p57, %s58, %s59
      %p63 = pneg %p57
      %p64 = scmp.eq.s32.totalorder %s22, 1
      %p65 = por %p63, %p64
      %p66 = scmp.ne.s32.totalorder %s58, %s61
      %p67 = scmp.eq.s32.totalorder %s22, 0
      %p68 = por %p66, %p67
      %p69 = scmp.ne.s32.totalorder %s58, %s61
      %p70 = scmp.eq.s32.totalorder %s27, 1
      %p71 = por %p69, %p70
      %p72 = scmp.ne.s32.totalorder %s61, %s62
      %p73 = scmp.eq.s32.totalorder %s27, 0
      %p74 = por %p72, %p73
      %p75 = scmp.ne.s32.totalorder %s61, %s62
      %p76 = scmp.eq.s32.totalorder %s28, 1
      %p77 = por %p75, %p76
      %p79 = scmp.ne.s32.totalorder %s62, %s78
      %p80 = scmp.eq.s32.totalorder %s28, 0
      %p81 = por %p79, %p80
      %s83 = sadd.s32 %s82, 1
      %p86 = scmp.eq.s32.totalorder %s22, 1
      %p87 = scmp.ne.s32.totalorder %s82, %s84
      %p88 = scmp.eq.s32.totalorder %s22, 0
      %p89 = por %p87, %p88
      %p90 = scmp.ne.s32.totalorder %s82, %s84
      %p91 = scmp.eq.s32.totalorder %s27, 1
      %p92 = por %p90, %p91
      %p93 = scmp.ne.s32.totalorder %s84, %s85
      %p94 = scmp.eq.s32.totalorder %s27, 0
      %p95 = por %p93, %p94
      %p96 = scmp.ne.s32.totalorder %s84, %s85
      %p97 = scmp.eq.s32.totalorder %s28, 1
      %p98 = por %p96, %p97
      %p100 = scmp.ne.s32.totalorder %s85, %s99
      %p101 = scmp.eq.s32.totalorder %s28, 0
      %p102 = por %p100, %p101
      %s104 = sadd.s32 %s103, 1
      %p107 = scmp.eq.s32.totalorder %s22, 1
      %p108 = scmp.ne.s32.totalorder %s103, %s105
      %p109 = scmp.eq.s32.totalorder %s22, 0
      %p110 = por %p108, %p109
      %p111 = scmp.ne.s32.totalorder %s103, %s105
      %p112 = scmp.eq.s32.totalorder %s27, 1
      %p113 = por %p111, %p112
      %p114 = scmp.ne.s32.totalorder %s105, %s106
      %p115 = scmp.eq.s32.totalorder %s27, 0
      %p116 = por %p114, %p115
      %p117 = scmp.ne.s32.totalorder %s105, %s106
      %p118 = scmp.eq.s32.totalorder %s28, 1
      %p119 = por %p117, %p118
      %p121 = scmp.ne.s32.totalorder %s106, %s120
      %p122 = scmp.eq.s32.totalorder %s28, 0
      %p123 = por %p121, %p122
      %s125 = sadd.s32 %s124, 1
      %p128 = scmp.eq.s32.totalorder %s22, 1
      %p129 = scmp.ne.s32.totalorder %s124, %s126
      %p130 = scmp.eq.s32.totalorder %s22, 0
      %p131 = por %p129, %p130
      %p132 = scmp.ne.s32.totalorder %s124, %s126
      %p133 = scmp.eq.s32.totalorder %s27, 1
      %p134 = por %p132, %p133
      %p135 = scmp.ne.s32.totalorder %s126, %s127
      %p136 = scmp.eq.s32.totalorder %s27, 0
      %p137 = por %p135, %p136
      %p138 = scmp.ne.s32.totalorder %s126, %s127
      %p139 = scmp.eq.s32.totalorder %s28, 1
      %p140 = por %p138, %p139
      %p142 = scmp.ne.s32.totalorder %s127, %s141
      %p143 = scmp.eq.s32.totalorder %s28, 0
      %p144 = por %p142, %p143
      %s146 = sadd.s32 %s145, 1
      %p149 = scmp.eq.s32.totalorder %s22, 1
      %p150 = scmp.ne.s32.totalorder %s145, %s147
      %p151 = scmp.eq.s32.totalorder %s22, 0
      %p152 = por %p150, %p151
      %p153 = scmp.ne.s32.totalorder %s145, %s147
      %p154 = scmp.eq.s32.totalorder %s27, 1
      %p155 = por %p153, %p154
      %p156 = scmp.ne.s32.totalorder %s147, %s148
      %p157 = scmp.eq.s32.totalorder %s27, 0
      %p158 = por %p156, %p157
      %p159 = scmp.ne.s32.totalorder %s147, %s148
      %p160 = scmp.eq.s32.totalorder %s28, 1
      %p161 = por %p159, %p160
      %p163 = scmp.ne.s32.totalorder %s148, %s162
      %p164 = scmp.eq.s32.totalorder %s28, 0
      %p165 = por %p163, %p164
      %s167 = sadd.s32 %s166, 1
      %p170 = scmp.eq.s32.totalorder %s22, 1
      %p171 = scmp.ne.s32.totalorder %s166, %s168
      %p172 = scmp.eq.s32.totalorder %s22, 0
      %p173 = por %p171, %p172
      %p174 = scmp.ne.s32.totalorder %s166, %s168
      %p175 = scmp.eq.s32.totalorder %s27, 1
      %p176 = por %p174, %p175
      %p177 = scmp.ne.s32.totalorder %s168, %s169
      %p178 = scmp.eq.s32.totalorder %s27, 0
      %p179 = por %p177, %p178
      %p180 = scmp.ne.s32.totalorder %s168, %s169
      %p181 = scmp.eq.s32.totalorder %s28, 1
      %p182 = por %p180, %p181
      %p184 = scmp.ne.s32.totalorder %s169, %s183
      %p185 = scmp.eq.s32.totalorder %s28, 0
      %p186 = por %p184, %p185
      %s188 = sadd.s32 %s187, 1
      %p191 = scmp.eq.s32.totalorder %s22, 1
      %p192 = scmp.ne.s32.totalorder %s187, %s189
      %p193 = scmp.eq.s32.totalorder %s22, 0
      %p194 = por %p192, %p193
      %p195 = scmp.ne.s32.totalorder %s187, %s189
      %p196 = scmp.eq.s32.totalorder %s27, 1
      %p197 = por %p195, %p196
      %p198 = scmp.ne.s32.totalorder %s189, %s190
      %p199 = scmp.eq.s32.totalorder %s27, 0
      %p200 = por %p198, %p199
      %p201 = scmp.ne.s32.totalorder %s189, %s190
      %p202 = scmp.eq.s32.totalorder %s28, 1
      %p203 = por %p201, %p202
      %p205 = scmp.ne.s32.totalorder %s190, %s204
      %p206 = scmp.eq.s32.totalorder %s28, 0
      %p207 = por %p205, %p206
      %s209 = sadd.s32 %s208, 1
      %p212 = scmp.eq.s32.totalorder %s22, 1
      %p213 = scmp.ne.s32.totalorder %s208, %s210
      %p214 = scmp.eq.s32.totalorder %s22, 0
      %p215 = por %p213, %p214
      %p216 = scmp.ne.s32.totalorder %s208, %s210
      %p217 = scmp.eq.s32.totalorder %s27, 1
      %p218 = por %p216, %p217
      %p219 = scmp.ne.s32.totalorder %s210, %s211
      %p220 = scmp.eq.s32.totalorder %s27, 0
      %p221 = por %p219, %p220
      %p222 = scmp.ne.s32.totalorder %s210, %s211
      %p223 = scmp.eq.s32.totalorder %s28, 1
      %p224 = por %p222, %p223
      %p226 = scmp.ne.s32.totalorder %s211, %s225
      %p227 = scmp.eq.s32.totalorder %s28, 0
      %p228 = por %p226, %p227
      %s230 = sadd.s32 %s229, 1
      %p233 = scmp.eq.s32.totalorder %s22, 1
      %p234 = scmp.ne.s32.totalorder %s229, %s231
      %p235 = scmp.eq.s32.totalorder %s22, 0
      %p236 = por %p234, %p235
      %p237 = scmp.ne.s32.totalorder %s229, %s231
      %p238 = scmp.eq.s32.totalorder %s27, 1
      %p239 = por %p237, %p238
      %p240 = scmp.ne.s32.totalorder %s231, %s232
      %p241 = scmp.eq.s32.totalorder %s27, 0
      %p242 = por %p240, %p241
      %p243 = scmp.ne.s32.totalorder %s231, %s232
      %p244 = scmp.eq.s32.totalorder %s28, 1
      %p245 = por %p243, %p244
      %p247 = scmp.ne.s32.totalorder %s232, %s246
      %p248 = scmp.eq.s32.totalorder %s28, 0
      %p249 = por %p247, %p248
      %s250 = ssub.s32 %s22, %s29
      %p251 = scmp.eq.s32.totalorder %s250, 0
      %s253 = sadd.s32 %s252, 1
      %s254 = scalar_select %p251, %s252, %s253
      %p257 = pneg %p251
      %p258 = scmp.eq.s32.totalorder %s22, 1
      %p259 = por %p257, %p258
      %p260 = scmp.ne.s32.totalorder %s252, %s255
      %p261 = scmp.eq.s32.totalorder %s22, 0
      %p262 = por %p260, %p261
      %p263 = scmp.ne.s32.totalorder %s252, %s255
      %p264 = scmp.eq.s32.totalorder %s27, 1
      %p265 = por %p263, %p264
      %p266 = scmp.ne.s32.totalorder %s255, %s256
      %p267 = scmp.eq.s32.totalorder %s27, 0
      %p268 = por %p266, %p267
      %p269 = scmp.ne.s32.totalorder %s255, %s256
      %p270 = scmp.eq.s32.totalorder %s28, 1
      %p271 = por %p269, %p270
      %p273 = scmp.ne.s32.totalorder %s256, %s272
      %p274 = scmp.eq.s32.totalorder %s28, 0
      %p275 = por %p273, %p274
      %p276 = scmp.le.s32.totalorder 1, %s22
      %p277 = scmp.lt.s32.totalorder %s22, 3
      %p278 = pnand %p276, %p277
      %p279 = pneg %p278
      // Predicated region
      $region9: #{tpu_custom_call.1} parent=5 // pred_check
        _
      $region10: #{tpu_custom_call.1} parent=5 // pred_check_branch
        %281 = sbr.rel (%p278) target = $region12
      $region11: #{tpu_custom_call.1} parent=5 // pred_region
        %s282 = ssub.s32 %s22, 1
        // Predicated region
        $region13: #{tpu_custom_call.1} parent=11 // pred_check
          %p283 = pneg %p95
        $region14: #{tpu_custom_call.1} parent=11 // pred_check_branch
          %285 = sbr.rel (%p283) target = $region16
        $region15: #{tpu_custom_call.1} parent=11 // pred_region
          _
        $region16: #{tpu_custom_call.1} parent=11 // pred_fallthru
          _
        // Predicated region
        $region17: #{tpu_custom_call.1} parent=11 // pred_check
          %p286 = pneg %p116
        $region18: #{tpu_custom_call.1} parent=11 // pred_check_branch
          %288 = sbr.rel (%p286) target = $region20
        $region19: #{tpu_custom_call.1} parent=11 // pred_region
          _
        $region20: #{tpu_custom_call.1} parent=11 // pred_fallthru
          _
        // Predicated region
        $region21: #{tpu_custom_call.1} parent=11 // pred_check
          %p289 = pneg %p137
        $region22: #{tpu_custom_call.1} parent=11 // pred_check_branch
          %291 = sbr.rel (%p289) target = $region24
        $region23: #{tpu_custom_call.1} parent=11 // pred_region
          _
        $region24: #{tpu_custom_call.1} parent=11 // pred_fallthru
          _
        // Predicated region
        $region25: #{tpu_custom_call.1} parent=11 // pred_check
          %p292 = pneg %p158
        $region26: #{tpu_custom_call.1} parent=11 // pred_check_branch
          %294 = sbr.rel (%p292) target = $region28
        $region27: #{tpu_custom_call.1} parent=11 // pred_region
          _
        $region28: #{tpu_custom_call.1} parent=11 // pred_fallthru
          _
        // Predicated region
        $region29: #{tpu_custom_call.1} parent=11 // pred_check
          %p295 = pneg %p179
        $region30: #{tpu_custom_call.1} parent=11 // pred_check_branch
          %297 = sbr.rel (%p295) target = $region32
        $region31: #{tpu_custom_call.1} parent=11 // pred_region
          _
        $region32: #{tpu_custom_call.1} parent=11 // pred_fallthru
          _
        // Predicated region
        $region33: #{tpu_custom_call.1} parent=11 // pred_check
          %p298 = pneg %p200
        $region34: #{tpu_custom_call.1} parent=11 // pred_check_branch
          %300 = sbr.rel (%p298) target = $region36
        $region35: #{tpu_custom_call.1} parent=11 // pred_region
          _
        $region36: #{tpu_custom_call.1} parent=11 // pred_fallthru
          _
        // Predicated region
        $region37: #{tpu_custom_call.1} parent=11 // pred_check
          %p301 = pneg %p221
        $region38: #{tpu_custom_call.1} parent=11 // pred_check_branch
          %303 = sbr.rel (%p301) target = $region40
        $region39: #{tpu_custom_call.1} parent=11 // pred_region
          _
        $region40: #{tpu_custom_call.1} parent=11 // pred_fallthru
          _
        // Predicated region
        $region41: #{tpu_custom_call.1} parent=11 // pred_check
          %p304 = pneg %p242
        $region42: #{tpu_custom_call.1} parent=11 // pred_check_branch
          %306 = sbr.rel (%p304) target = $region44
        $region43: #{tpu_custom_call.1} parent=11 // pred_region
          _
        $region44: #{tpu_custom_call.1} parent=11 // pred_fallthru
          _
      $region12: #{tpu_custom_call.1} parent=5 // pred_fallthru
        _
      %p307 = scmp.lt.s32.totalorder %s22, 2
      // Predicated region
      $region45: #{tpu_custom_call.1} parent=5 // pred_check
        %p308 = pneg %p307
      $region46: #{tpu_custom_call.1} parent=5 // pred_check_branch
        %310 = sbr.rel (%p308) target = $region48
      $region47: #{tpu_custom_call.1} parent=5 // pred_region
        // Predicated region
        $region49: #{tpu_custom_call.1} parent=47 // pred_check
          %p311 = pneg %p42
        $region50: #{tpu_custom_call.1} parent=47 // pred_check_branch
          %313 = sbr.rel (%p311) target = $region52
        $region51: #{tpu_custom_call.1} parent=47 // pred_region
          %s314 = sand.u32 %s32, 1
          %s315 = scalar_lea.sflag [#allocation4], %s314
          %s316 = sand.u32 %s32, 1
          %s317 = smul.addr %s316, 128
          %s318 = scalar_lea.vmem [#allocation3], %s317
          %s320 = ssub.s32 2048, 2048
          %321 = vsyncadd %s315, %s320
          %s322 = smul.addr %s22, 16
          %s323 = smul.addr %s322, 128
          %s324 = scalar_lea.hbm %s0, %s323
          %s325 = sshll.u32 %s318, 4
          %s326 = int_to_ptr.vmem [resolvable:$true] %s325
          %331 = dma.hbm_to_vmem [thread:$0]  %s324, 2048, %s326, %s315, 512, 512, 32
        $region52: #{tpu_custom_call.1} parent=47 // pred_fallthru
          _
        // Predicated region
        $region53: #{tpu_custom_call.1} parent=47 // pred_check
          %p332 = pneg %p68
        $region54: #{tpu_custom_call.1} parent=47 // pred_check_branch
          %334 = sbr.rel (%p332) target = $region56
        $region55: #{tpu_custom_call.1} parent=47 // pred_region
          %p335 = scmp.lt.s32.totalorder %s22, 1
          %s336 = scalar_select %p335, %s22, 1
          %s337 = smul.addr %s336, 4
          %s338 = smul.addr %s337, 8
          %s339 = scalar_lea.vmem %s1, %s338
        $region56: #{tpu_custom_call.1} parent=47 // pred_fallthru
          _
      $region48: #{tpu_custom_call.1} parent=5 // pred_fallthru
        _
      %p340 = scmp.le.s32.totalorder 1, %s22
      %p341 = scmp.lt.s32.totalorder %s22, 3
      %p342 = pnand %p340, %p341
      %p343 = pneg %p342
      // Predicated region
      $region57: #{tpu_custom_call.1} parent=5 // pred_check
        _
      $region58: #{tpu_custom_call.1} parent=5 // pred_check_branch
        %345 = sbr.rel (%p342) target = $region60
      $region59: #{tpu_custom_call.1} parent=5 // pred_region
        %s346 = ssub.s32 %s22, 1
        %s347 = sand.u32 %s35, 1
        %s348 = scalar_lea.sflag [#allocation4], %s347
        %s349 = sand.u32 %s35, 1
        %s350 = smul.addr %s349, 128
        %s351 = scalar_lea.vmem [#allocation3], %s350
        // Predicated region
        $region61: #{tpu_custom_call.1} parent=59 // pred_check
          %p352 = pneg %p48
        $region62: #{tpu_custom_call.1} parent=59 // pred_check_branch
          %354 = sbr.rel (%p352) target = $region64
        $region63: #{tpu_custom_call.1} parent=59 // pred_region
          %355 = dma.done %s348, 2048
        $region64: #{tpu_custom_call.1} parent=59 // pred_fallthru
          _
        %s356 = sand.u32 %s35, 1
        %s357 = scalar_lea.sflag [#allocation4], %s356
        %s358 = sand.u32 %s35, 1
        %s359 = smul.addr %s358, 128
        %s360 = scalar_lea.vmem [#allocation3], %s359
        %p361 = pneg %p48
        %p362 = pneg %p45
        %p363 = scmp.lt.s32.totalorder %s27, 1
        %s364 = scalar_select %p363, %s27, 1
        %s365 = smul.addr %s364, 4
        %s366 = smul.addr %s365, 8
        %s367 = scalar_lea.vmem %s1, %s366
        %p368 = pneg %p74
        %p369 = pneg %p71
        %p370 = pneg %p95
        %p371 = pneg %p92
        %p372 = pneg %p116
        %p373 = pneg %p113
        %p374 = pneg %p137
        %p375 = pneg %p134
        %p376 = pneg %p158
        %p377 = pneg %p155
        %p378 = pneg %p179
        %p379 = pneg %p176
        %p380 = pneg %p200
        %p381 = pneg %p197
        %p382 = pneg %p221
        %p383 = pneg %p218
        %p384 = pneg %p242
        %p385 = pneg %p239
        %p386 = pneg %p268
        %p387 = pneg %p265
        %s388 = sand.u32 %s255, 1
        %s389 = scalar_lea.sflag [#allocation5], %s388
        %s390 = sand.u32 %s255, 1
        %s391 = smul.addr %s390, 16
        %s392 = scalar_lea.vmem [#allocation6], %s391
        %p393 = scmp.lt.s32.totalorder %s27, 1
        %s394 = scalar_select %p393, %s27, 1
        %s395 = smul.addr %s394, 4
        %s396 = smul.addr %s395, 8
        %s397 = scalar_lea.vmem %s1, %s396
        %v398 = vld [vmem:[%s351] sm:$0xff]
        %v399 = vld [vmem:[%s351 + $0x8] sm:$0xff]
        %v400 = vld [vmem:[%s351 + $0x10] sm:$0xff]
        %v401 = vld [vmem:[%s351 + $0x18] sm:$0xff]
        %v402 = vld [vmem:[%s351 + $0x20] sm:$0xff]
        %v403 = vld [vmem:[%s351 + $0x28] sm:$0xff]
        %v404 = vld [vmem:[%s351 + $0x30] sm:$0xff]
        %v405 = vld [vmem:[%s351 + $0x38] sm:$0xff]
        %v406 = vld [vmem:[%s351 + $0x40] sm:$0xff]
        %v407 = vld [vmem:[%s351 + $0x48] sm:$0xff]
        %v408 = vld [vmem:[%s351 + $0x50] sm:$0xff]
        %v409 = vld [vmem:[%s351 + $0x58] sm:$0xff]
        %v410 = vld [vmem:[%s351 + $0x60] sm:$0xff]
        %v411 = vld [vmem:[%s351 + $0x68] sm:$0xff]
        %v412 = vld [vmem:[%s351 + $0x70] sm:$0xff]
        %v413 = vld [vmem:[%s351 + $0x78] sm:$0xff]
        %v414 = vld [vmem:[%s397] sm:$0xff]
        %v415 = vld [vmem:[%s397 + $0x8] sm:$0xff]
        %v416 = vld [vmem:[%s397 + $0x10] sm:$0xff]
        %v417 = vld [vmem:[%s397 + $0x18] sm:$0xff]
        %v418 = vld [vmem:[%s9] sm:$0xf]
        %420 = vset.pattern.permute.xlu0 0
        %421 = vperm.xlu0 %420, %v414
        %v422 = vpop.permute.xlu0 %421
        %425 = vset.pattern.permute.xlu0 0
        %426 = vperm.xlu0 %425, %v415
        %v427 = vpop.permute.xlu0 %426
        %430 = vset.pattern.permute.xlu0 0
        %431 = vperm.xlu0 %430, %v416
        %v432 = vpop.permute.xlu0 %431
        %435 = vset.pattern.permute.xlu0 0
        %436 = vperm.xlu0 %435, %v417
        %v437 = vpop.permute.xlu0 %436
        %v440 = vlaneseq
        %v441 = vshrl.u32 %v440, 7
        %v442 = vsub.s32 0, %v441
        %v443 = vrot.slane %v418, %v442
        %v444 = vlaneseq
        %v445 = vshrl.u32 %v444, 7
        %v446 = vsub.s32 1, %v445
        %v447 = vrot.slane %v418, %v446
        %v448 = vlaneseq
        %v449 = vshrl.u32 %v448, 7
        %v450 = vsub.s32 2, %v449
        %v451 = vrot.slane %v418, %v450
        %v452 = vlaneseq
        %v453 = vshrl.u32 %v452, 7
        %v454 = vsub.s32 3, %v453
        %v455 = vrot.slane %v418, %v454
        %v460 = vmul.f32 %v422, %v443
        %v461 = vmul.f32 %v422, %v447
        %v462 = vmul.f32 %v422, %v451
        %v463 = vmul.f32 %v422, %v455
        %v464 = vmul.f32 %v427, %v443
        %v465 = vmul.f32 %v427, %v447
        %v466 = vmul.f32 %v427, %v451
        %v467 = vmul.f32 %v427, %v455
        %v468 = vmul.f32 %v432, %v443
        %v469 = vmul.f32 %v432, %v447
        %v470 = vmul.f32 %v432, %v451
        %v471 = vmul.f32 %v432, %v455
        %v472 = vmul.f32 %v437, %v443
        %v473 = vmul.f32 %v437, %v447
        %v474 = vmul.f32 %v437, %v451
        %v475 = vmul.f32 %v437, %v455
        %s476 = scalar_lea.vmem %s9, 4
        %v477 = vld [vmem:[%s476] sm:$0xf]
        %478 = vset.pattern.permute.xlu0 1
        %479 = vperm.xlu0 %478, %v414
        %v480 = vpop.permute.xlu0 %479
        %482 = vset.pattern.permute.xlu0 1
        %483 = vperm.xlu0 %482, %v415
        %v484 = vpop.permute.xlu0 %483
        %486 = vset.pattern.permute.xlu0 1
        %487 = vperm.xlu0 %486, %v416
        %v488 = vpop.permute.xlu0 %487
        %490 = vset.pattern.permute.xlu0 1
        %491 = vperm.xlu0 %490, %v417
        %v492 = vpop.permute.xlu0 %491
        %v495 = vlaneseq
        %v496 = vshrl.u32 %v495, 7
        %v497 = vsub.s32 0, %v496
        %v498 = vrot.slane %v477, %v497
        %v499 = vlaneseq
        %v500 = vshrl.u32 %v499, 7
        %v501 = vsub.s32 1, %v500
        %v502 = vrot.slane %v477, %v501
        %v503 = vlaneseq
        %v504 = vshrl.u32 %v503, 7
        %v505 = vsub.s32 2, %v504
        %v506 = vrot.slane %v477, %v505
        %v507 = vlaneseq
        %v508 = vshrl.u32 %v507, 7
        %v509 = vsub.s32 3, %v508
        %v510 = vrot.slane %v477, %v509
        %v515 = vmul.f32 %v480, %v498
        %v516 = vmul.f32 %v480, %v502
        %v517 = vmul.f32 %v480, %v506
        %v518 = vmul.f32 %v480, %v510
        %v519 = vmul.f32 %v484, %v498
        %v520 = vmul.f32 %v484, %v502
        %v521 = vmul.f32 %v484, %v506
        %v522 = vmul.f32 %v484, %v510
        %v523 = vmul.f32 %v488, %v498
        %v524 = vmul.f32 %v488, %v502
        %v525 = vmul.f32 %v488, %v506
        %v526 = vmul.f32 %v488, %v510
        %v527 = vmul.f32 %v492, %v498
        %v528 = vmul.f32 %v492, %v502
        %v529 = vmul.f32 %v492, %v506
        %v530 = vmul.f32 %v492, %v510
        %v531 = vadd.f32 %v460, %v515
        %v532 = vadd.f32 %v461, %v516
        %v533 = vadd.f32 %v462, %v517
        %v534 = vadd.f32 %v463, %v518
        %v535 = vadd.f32 %v464, %v519
        %v536 = vadd.f32 %v465, %v520
        %v537 = vadd.f32 %v466, %v521
        %v538 = vadd.f32 %v467, %v522
        %v539 = vadd.f32 %v468, %v523
        %v540 = vadd.f32 %v469, %v524
        %v541 = vadd.f32 %v470, %v525
        %v542 = vadd.f32 %v471, %v526
        %v543 = vadd.f32 %v472, %v527
        %v544 = vadd.f32 %v473, %v528
        %v545 = vadd.f32 %v474, %v529
        %v546 = vadd.f32 %v475, %v530
        %v547 = vmul.f32 %v531, %v398
        %v548 = vmul.f32 %v532, %v399
        %v549 = vmul.f32 %v533, %v400
        %v550 = vmul.f32 %v534, %v401
        %v551 = vmul.f32 %v535, %v402
        %v552 = vmul.f32 %v536, %v403
        %v553 = vmul.f32 %v537, %v404
        %v554 = vmul.f32 %v538, %v405
        %v555 = vmul.f32 %v539, %v406
        %v556 = vmul.f32 %v540, %v407
        %v557 = vmul.f32 %v541, %v408
        %v558 = vmul.f32 %v542, %v409
        %v559 = vmul.f32 %v543, %v410
        %v560 = vmul.f32 %v544, %v411
        %v561 = vmul.f32 %v545, %v412
        %v562 = vmul.f32 %v546, %v413
        %v563 = vadd.f32 %v547, %v551
        %v564 = vadd.f32 %v563, %v555
        %v565 = vadd.f32 %v564, %v559
        %v566 = vrot.slane %v565, 4
        %v567 = vadd.f32 %v565, %v566
        %v568 = vrot.slane %v567, 2
        %v569 = vadd.f32 %v567, %v568
        %v570 = vrot.slane %v569, 1
        %v571 = vadd.f32 %v569, %v570
        %v572 = vadd.f32 %v548, %v552
        %v573 = vadd.f32 %v572, %v556
        %v574 = vadd.f32 %v573, %v560
        %v575 = vrot.slane %v574, 4
        %v576 = vadd.f32 %v574, %v575
        %v577 = vrot.slane %v576, 2
        %v578 = vadd.f32 %v576, %v577
        %v579 = vrot.slane %v578, 1
        %v580 = vadd.f32 %v578, %v579
        %v581 = vadd.f32 %v549, %v553
        %v582 = vadd.f32 %v581, %v557
        %v583 = vadd.f32 %v582, %v561
        %v584 = vrot.slane %v583, 4
        %v585 = vadd.f32 %v583, %v584
        %v586 = vrot.slane %v585, 2
        %v587 = vadd.f32 %v585, %v586
        %v588 = vrot.slane %v587, 1
        %v589 = vadd.f32 %v587, %v588
        %v590 = vadd.f32 %v550, %v554
        %v591 = vadd.f32 %v590, %v558
        %v592 = vadd.f32 %v591, %v562
        %v593 = vrot.slane %v592, 4
        %v594 = vadd.f32 %v592, %v593
        %v595 = vrot.slane %v594, 2
        %v596 = vadd.f32 %v594, %v595
        %v597 = vrot.slane %v596, 1
        %v598 = vadd.f32 %v596, %v597
        %v599 = vmul.f32 %v398, %v571
        %v600 = vmul.f32 %v399, %v580
        %v601 = vmul.f32 %v400, %v589
        %v602 = vmul.f32 %v401, %v598
        %v603 = vmul.f32 %v402, %v571
        %v604 = vmul.f32 %v403, %v580
        %v605 = vmul.f32 %v404, %v589
        %v606 = vmul.f32 %v405, %v598
        %v607 = vmul.f32 %v406, %v571
        %v608 = vmul.f32 %v407, %v580
        %v609 = vmul.f32 %v408, %v589
        %v610 = vmul.f32 %v409, %v598
        %v611 = vmul.f32 %v410, %v571
        %v612 = vmul.f32 %v411, %v580
        %v613 = vmul.f32 %v412, %v589
        %v614 = vmul.f32 %v413, %v598
        %615 = vrot.lane.b32.xlu0 %v599, 17
        %v616 = vpop.permute.xlu0 %615
        %617 = vrot.lane.b32.xlu0 %v603, 17
        %v618 = vpop.permute.xlu0 %617
        %619 = vrot.lane.b32.xlu0 %v607, 17
        %v620 = vpop.permute.xlu0 %619
        %621 = vrot.lane.b32.xlu0 %v611, 17
        %v622 = vpop.permute.xlu0 %621
        %623 = vrot.lane.b32.xlu0 %v600, 17
        %v624 = vpop.permute.xlu0 %623
        %625 = vrot.lane.b32.xlu0 %v604, 17
        %v626 = vpop.permute.xlu0 %625
        %627 = vrot.lane.b32.xlu0 %v608, 17
        %v628 = vpop.permute.xlu0 %627
        %629 = vrot.lane.b32.xlu0 %v612, 17
        %v630 = vpop.permute.xlu0 %629
        %631 = vrot.lane.b32.xlu0 %v601, 17
        %v632 = vpop.permute.xlu0 %631
        %633 = vrot.lane.b32.xlu0 %v605, 17
        %v634 = vpop.permute.xlu0 %633
        %635 = vrot.lane.b32.xlu0 %v609, 17
        %v636 = vpop.permute.xlu0 %635
        %637 = vrot.lane.b32.xlu0 %v613, 17
        %v638 = vpop.permute.xlu0 %637
        %639 = vrot.lane.b32.xlu0 %v602, 17
        %v640 = vpop.permute.xlu0 %639
        %641 = vrot.lane.b32.xlu0 %v606, 17
        %v642 = vpop.permute.xlu0 %641
        %643 = vrot.lane.b32.xlu0 %v610, 17
        %v644 = vpop.permute.xlu0 %643
        %645 = vrot.lane.b32.xlu0 %v614, 17
        %v646 = vpop.permute.xlu0 %645
        %v647 = vlaneseq
        %v648 = vand.u32 %v647, 127
        %vm649 = vcmp.lt.s32.totalorder %v648, 17
        %v650 = vsel %vm649, %v632, %v640
        %v651 = vsel %vm649, %v634, %v642
        %v652 = vsel %vm649, %v636, %v644
        %v653 = vsel %vm649, %v638, %v646
        %v654 = vsel %vm649, %v624, %v632
        %v655 = vsel %vm649, %v626, %v634
        %v656 = vsel %vm649, %v628, %v636
        %v657 = vsel %vm649, %v630, %v638
        %v658 = vsel %vm649, %v616, %v624
        %v659 = vsel %vm649, %v618, %v626
        %v660 = vsel %vm649, %v620, %v628
        %v661 = vsel %vm649, %v622, %v630
        %v662 = vsel %vm649, %v640, %v616
        %v663 = vsel %vm649, %v642, %v618
        %v664 = vsel %vm649, %v644, %v620
        %v665 = vsel %vm649, %v646, %v622
        %v666 = vld [vmem:[%s2] sm:$0xf]
        %v668 = vlaneseq
        %v669 = vshrl.u32 %v668, 7
        %v670 = vsub.s32 0, %v669
        %v671 = vrot.slane %v666, %v670
        %v672 = vlaneseq
        %v673 = vshrl.u32 %v672, 7
        %v674 = vsub.s32 1, %v673
        %v675 = vrot.slane %v666, %v674
        %v676 = vlaneseq
        %v677 = vshrl.u32 %v676, 7
        %v678 = vsub.s32 2, %v677
        %v679 = vrot.slane %v666, %v678
        %v680 = vlaneseq
        %v681 = vshrl.u32 %v680, 7
        %v682 = vsub.s32 3, %v681
        %v683 = vrot.slane %v666, %v682
        %v688 = vmul.f32 %v662, %v671
        %v689 = vmul.f32 %v658, %v675
        %v690 = vmul.f32 %v654, %v679
        %v691 = vmul.f32 %v650, %v683
        %v692 = vmul.f32 %v663, %v671
        %v693 = vmul.f32 %v659, %v675
        %v694 = vmul.f32 %v655, %v679
        %v695 = vmul.f32 %v651, %v683
        %v696 = vmul.f32 %v664, %v671
        %v697 = vmul.f32 %v660, %v675
        %v698 = vmul.f32 %v656, %v679
        %v699 = vmul.f32 %v652, %v683
        %v700 = vmul.f32 %v665, %v671
        %v701 = vmul.f32 %v661, %v675
        %v702 = vmul.f32 %v657, %v679
        %v703 = vmul.f32 %v653, %v683
        %704 = vst [vmem:[#allocation2] sm:$0xff] %v688
        %705 = vst [vmem:[#allocation2 + $0x8] sm:$0xff] %v689
        %706 = vst [vmem:[#allocation2 + $0x10] sm:$0xff] %v690
        %707 = vst [vmem:[#allocation2 + $0x18] sm:$0xff] %v691
        %708 = vst [vmem:[#allocation2 + $0x20] sm:$0xff] %v692
        %709 = vst [vmem:[#allocation2 + $0x28] sm:$0xff] %v693
        %710 = vst [vmem:[#allocation2 + $0x30] sm:$0xff] %v694
        %711 = vst [vmem:[#allocation2 + $0x38] sm:$0xff] %v695
        %712 = vst [vmem:[#allocation2 + $0x40] sm:$0xff] %v696
        %713 = vst [vmem:[#allocation2 + $0x48] sm:$0xff] %v697
        %714 = vst [vmem:[#allocation2 + $0x50] sm:$0xff] %v698
        %715 = vst [vmem:[#allocation2 + $0x58] sm:$0xff] %v699
        %716 = vst [vmem:[#allocation2 + $0x60] sm:$0xff] %v700
        %717 = vst [vmem:[#allocation2 + $0x68] sm:$0xff] %v701
        %718 = vst [vmem:[#allocation2 + $0x70] sm:$0xff] %v702
        %719 = vst [vmem:[#allocation2 + $0x78] sm:$0xff] %v703
        %720 = vrot.lane.b32.xlu0 %v599, 16
        %v721 = vpop.permute.xlu0 %720
        %722 = vrot.lane.b32.xlu0 %v603, 16
        %v723 = vpop.permute.xlu0 %722
        %724 = vrot.lane.b32.xlu0 %v607, 16
        %v725 = vpop.permute.xlu0 %724
        %726 = vrot.lane.b32.xlu0 %v611, 16
        %v727 = vpop.permute.xlu0 %726
        %728 = vrot.lane.b32.xlu0 %v600, 16
        %v729 = vpop.permute.xlu0 %728
        %730 = vrot.lane.b32.xlu0 %v604, 16
        %v731 = vpop.permute.xlu0 %730
        %732 = vrot.lane.b32.xlu0 %v608, 16
        %v733 = vpop.permute.xlu0 %732
        %734 = vrot.lane.b32.xlu0 %v612, 16
        %v735 = vpop.permute.xlu0 %734
        %736 = vrot.lane.b32.xlu0 %v601, 16
        %v737 = vpop.permute.xlu0 %736
        %738 = vrot.lane.b32.xlu0 %v605, 16
        %v739 = vpop.permute.xlu0 %738
        %740 = vrot.lane.b32.xlu0 %v609, 16
        %v741 = vpop.permute.xlu0 %740
        %742 = vrot.lane.b32.xlu0 %v613, 16
        %v743 = vpop.permute.xlu0 %742
        %744 = vrot.lane.b32.xlu0 %v602, 16
        %v745 = vpop.permute.xlu0 %744
        %746 = vrot.lane.b32.xlu0 %v606, 16
        %v747 = vpop.permute.xlu0 %746
        %748 = vrot.lane.b32.xlu0 %v610, 16
        %v749 = vpop.permute.xlu0 %748
        %750 = vrot.lane.b32.xlu0 %v614, 16
        %v751 = vpop.permute.xlu0 %750
        %vm752 = vcmp.lt.s32.totalorder %v648, 16
        %v753 = vsel %vm752, %v737, %v745
        %v754 = vsel %vm752, %v739, %v747
        %v755 = vsel %vm752, %v741, %v749
        %v756 = vsel %vm752, %v743, %v751
        %v757 = vsel %vm752, %v729, %v737
        %v758 = vsel %vm752, %v731, %v739
        %v759 = vsel %vm752, %v733, %v741
        %v760 = vsel %vm752, %v735, %v743
        %v761 = vsel %vm752, %v721, %v729
        %v762 = vsel %vm752, %v723, %v731
        %v763 = vsel %vm752, %v725, %v733
        %v764 = vsel %vm752, %v727, %v735
        %v765 = vsel %vm752, %v745, %v721
        %v766 = vsel %vm752, %v747, %v723
        %v767 = vsel %vm752, %v749, %v725
        %v768 = vsel %vm752, %v751, %v727
        %s769 = scalar_lea.vmem %s2, 4
        %v770 = vld [vmem:[%s769] sm:$0xf]
        %v772 = vlaneseq
        %v773 = vshrl.u32 %v772, 7
        %v774 = vsub.s32 0, %v773
        %v775 = vrot.slane %v770, %v774
        %v776 = vlaneseq
        %v777 = vshrl.u32 %v776, 7
        %v778 = vsub.s32 1, %v777
        %v779 = vrot.slane %v770, %v778
        %v780 = vlaneseq
        %v781 = vshrl.u32 %v780, 7
        %v782 = vsub.s32 2, %v781
        %v783 = vrot.slane %v770, %v782
        %v784 = vlaneseq
        %v785 = vshrl.u32 %v784, 7
        %v786 = vsub.s32 3, %v785
        %v787 = vrot.slane %v770, %v786
        %v792 = vmul.f32 %v765, %v775
        %v793 = vmul.f32 %v761, %v779
        %v794 = vmul.f32 %v757, %v783
        %v795 = vmul.f32 %v753, %v787
        %v796 = vmul.f32 %v766, %v775
        %v797 = vmul.f32 %v762, %v779
        %v798 = vmul.f32 %v758, %v783
        %v799 = vmul.f32 %v754, %v787
        %v800 = vmul.f32 %v767, %v775
        %v801 = vmul.f32 %v763, %v779
        %v802 = vmul.f32 %v759, %v783
        %v803 = vmul.f32 %v755, %v787
        %v804 = vmul.f32 %v768, %v775
        %v805 = vmul.f32 %v764, %v779
        %v806 = vmul.f32 %v760, %v783
        %v807 = vmul.f32 %v756, %v787
        %808 = vst [vmem:[#allocation2 + $0x80] sm:$0xff] %v792
        %809 = vst [vmem:[#allocation2 + $0x88] sm:$0xff] %v793
        %810 = vst [vmem:[#allocation2 + $0x90] sm:$0xff] %v794
        %811 = vst [vmem:[#allocation2 + $0x98] sm:$0xff] %v795
        %812 = vst [vmem:[#allocation2 + $0xa0] sm:$0xff] %v796
        %813 = vst [vmem:[#allocation2 + $0xa8] sm:$0xff] %v797
        %814 = vst [vmem:[#allocation2 + $0xb0] sm:$0xff] %v798
        %815 = vst [vmem:[#allocation2 + $0xb8] sm:$0xff] %v799
        %816 = vst [vmem:[#allocation2 + $0xc0] sm:$0xff] %v800
        %817 = vst [vmem:[#allocation2 + $0xc8] sm:$0xff] %v801
        %818 = vst [vmem:[#allocation2 + $0xd0] sm:$0xff] %v802
        %819 = vst [vmem:[#allocation2 + $0xd8] sm:$0xff] %v803
        %820 = vst [vmem:[#allocation2 + $0xe0] sm:$0xff] %v804
        %821 = vst [vmem:[#allocation2 + $0xe8] sm:$0xff] %v805
        %822 = vst [vmem:[#allocation2 + $0xf0] sm:$0xff] %v806
        %823 = vst [vmem:[#allocation2 + $0xf8] sm:$0xff] %v807
        %824 = vrot.lane.b32.xlu0 %v599, 15
        %v825 = vpop.permute.xlu0 %824
        %826 = vrot.lane.b32.xlu0 %v603, 15
        %v827 = vpop.permute.xlu0 %826
        %828 = vrot.lane.b32.xlu0 %v607, 15
        %v829 = vpop.permute.xlu0 %828
        %830 = vrot.lane.b32.xlu0 %v611, 15
        %v831 = vpop.permute.xlu0 %830
        %832 = vrot.lane.b32.xlu0 %v600, 15
        %v833 = vpop.permute.xlu0 %832
        %834 = vrot.lane.b32.xlu0 %v604, 15
        %v835 = vpop.permute.xlu0 %834
        %836 = vrot.lane.b32.xlu0 %v608, 15
        %v837 = vpop.permute.xlu0 %836
        %838 = vrot.lane.b32.xlu0 %v612, 15
        %v839 = vpop.permute.xlu0 %838
        %840 = vrot.lane.b32.xlu0 %v601, 15
        %v841 = vpop.permute.xlu0 %840
        %842 = vrot.lane.b32.xlu0 %v605, 15
        %v843 = vpop.permute.xlu0 %842
        %844 = vrot.lane.b32.xlu0 %v609, 15
        %v845 = vpop.permute.xlu0 %844
        %846 = vrot.lane.b32.xlu0 %v613, 15
        %v847 = vpop.permute.xlu0 %846
        %848 = vrot.lane.b32.xlu0 %v602, 15
        %v849 = vpop.permute.xlu0 %848
        %850 = vrot.lane.b32.xlu0 %v606, 15
        %v851 = vpop.permute.xlu0 %850
        %852 = vrot.lane.b32.xlu0 %v610, 15
        %v853 = vpop.permute.xlu0 %852
        %854 = vrot.lane.b32.xlu0 %v614, 15
        %v855 = vpop.permute.xlu0 %854
        %vm856 = vcmp.lt.s32.totalorder %v648, 15
        %v857 = vsel %vm856, %v841, %v849
        %v858 = vsel %vm856, %v843, %v851
        %v859 = vsel %vm856, %v845, %v853
        %v860 = vsel %vm856, %v847, %v855
        %v861 = vsel %vm856, %v833, %v841
        %v862 = vsel %vm856, %v835, %v843
        %v863 = vsel %vm856, %v837, %v845
        %v864 = vsel %vm856, %v839, %v847
        %v865 = vsel %vm856, %v825, %v833
        %v866 = vsel %vm856, %v827, %v835
        %v867 = vsel %vm856, %v829, %v837
        %v868 = vsel %vm856, %v831, %v839
        %v869 = vsel %vm856, %v849, %v825
        %v870 = vsel %vm856, %v851, %v827
        %v871 = vsel %vm856, %v853, %v829
        %v872 = vsel %vm856, %v855, %v831
        %s873 = scalar_lea.vmem %s2, 8
        %v874 = vld [vmem:[%s873] sm:$0xf]
        %v876 = vlaneseq
        %v877 = vshrl.u32 %v876, 7
        %v878 = vsub.s32 0, %v877
        %v879 = vrot.slane %v874, %v878
        %v880 = vlaneseq
        %v881 = vshrl.u32 %v880, 7
        %v882 = vsub.s32 1, %v881
        %v883 = vrot.slane %v874, %v882
        %v884 = vlaneseq
        %v885 = vshrl.u32 %v884, 7
        %v886 = vsub.s32 2, %v885
        %v887 = vrot.slane %v874, %v886
        %v888 = vlaneseq
        %v889 = vshrl.u32 %v888, 7
        %v890 = vsub.s32 3, %v889
        %v891 = vrot.slane %v874, %v890
        %v896 = vmul.f32 %v869, %v879
        %v897 = vmul.f32 %v865, %v883
        %v898 = vmul.f32 %v861, %v887
        %v899 = vmul.f32 %v857, %v891
        %v900 = vmul.f32 %v870, %v879
        %v901 = vmul.f32 %v866, %v883
        %v902 = vmul.f32 %v862, %v887
        %v903 = vmul.f32 %v858, %v891
        %v904 = vmul.f32 %v871, %v879
        %v905 = vmul.f32 %v867, %v883
        %v906 = vmul.f32 %v863, %v887
        %v907 = vmul.f32 %v859, %v891
        %v908 = vmul.f32 %v872, %v879
        %v909 = vmul.f32 %v868, %v883
        %v910 = vmul.f32 %v864, %v887
        %v911 = vmul.f32 %v860, %v891
        %912 = vst [vmem:[#allocation2 + $0x100] sm:$0xff] %v896
        %913 = vst [vmem:[#allocation2 + $0x108] sm:$0xff] %v897
        %914 = vst [vmem:[#allocation2 + $0x110] sm:$0xff] %v898
        %915 = vst [vmem:[#allocation2 + $0x118] sm:$0xff] %v899
        %916 = vst [vmem:[#allocation2 + $0x120] sm:$0xff] %v900
        %917 = vst [vmem:[#allocation2 + $0x128] sm:$0xff] %v901
        %918 = vst [vmem:[#allocation2 + $0x130] sm:$0xff] %v902
        %919 = vst [vmem:[#allocation2 + $0x138] sm:$0xff] %v903
        %920 = vst [vmem:[#allocation2 + $0x140] sm:$0xff] %v904
        %921 = vst [vmem:[#allocation2 + $0x148] sm:$0xff] %v905
        %922 = vst [vmem:[#allocation2 + $0x150] sm:$0xff] %v906
        %923 = vst [vmem:[#allocation2 + $0x158] sm:$0xff] %v907
        %924 = vst [vmem:[#allocation2 + $0x160] sm:$0xff] %v908
        %925 = vst [vmem:[#allocation2 + $0x168] sm:$0xff] %v909
        %926 = vst [vmem:[#allocation2 + $0x170] sm:$0xff] %v910
        %927 = vst [vmem:[#allocation2 + $0x178] sm:$0xff] %v911
        %928 = vrot.lane.b32.xlu0 %v599, 1
        %v929 = vpop.permute.xlu0 %928
        %930 = vrot.lane.b32.xlu0 %v603, 1
        %v931 = vpop.permute.xlu0 %930
        %932 = vrot.lane.b32.xlu0 %v607, 1
        %v933 = vpop.permute.xlu0 %932
        %934 = vrot.lane.b32.xlu0 %v611, 1
        %v935 = vpop.permute.xlu0 %934
        %936 = vrot.lane.b32.xlu0 %v600, 1
        %v937 = vpop.permute.xlu0 %936
        %938 = vrot.lane.b32.xlu0 %v604, 1
        %v939 = vpop.permute.xlu0 %938
        %940 = vrot.lane.b32.xlu0 %v608, 1
        %v941 = vpop.permute.xlu0 %940
        %942 = vrot.lane.b32.xlu0 %v612, 1
        %v943 = vpop.permute.xlu0 %942
        %944 = vrot.lane.b32.xlu0 %v601, 1
        %v945 = vpop.permute.xlu0 %944
        %946 = vrot.lane.b32.xlu0 %v605, 1
        %v947 = vpop.permute.xlu0 %946
        %948 = vrot.lane.b32.xlu0 %v609, 1
        %v949 = vpop.permute.xlu0 %948
        %950 = vrot.lane.b32.xlu0 %v613, 1
        %v951 = vpop.permute.xlu0 %950
        %952 = vrot.lane.b32.xlu0 %v602, 1
        %v953 = vpop.permute.xlu0 %952
        %954 = vrot.lane.b32.xlu0 %v606, 1
        %v955 = vpop.permute.xlu0 %954
        %956 = vrot.lane.b32.xlu0 %v610, 1
        %v957 = vpop.permute.xlu0 %956
        %958 = vrot.lane.b32.xlu0 %v614, 1
        %v959 = vpop.permute.xlu0 %958
        %vm960 = vcmp.lt.s32.totalorder %v648, 1
        %v961 = vsel %vm960, %v945, %v953
        %v962 = vsel %vm960, %v947, %v955
        %v963 = vsel %vm960, %v949, %v957
        %v964 = vsel %vm960, %v951, %v959
        %v965 = vsel %vm960, %v937, %v945
        %v966 = vsel %vm960, %v939, %v947
        %v967 = vsel %vm960, %v941, %v949
        %v968 = vsel %vm960, %v943, %v951
        %v969 = vsel %vm960, %v929, %v937
        %v970 = vsel %vm960, %v931, %v939
        %v971 = vsel %vm960, %v933, %v941
        %v972 = vsel %vm960, %v935, %v943
        %v973 = vsel %vm960, %v953, %v929
        %v974 = vsel %vm960, %v955, %v931
        %v975 = vsel %vm960, %v957, %v933
        %v976 = vsel %vm960, %v959, %v935
        %s977 = scalar_lea.vmem %s2, 12
        %v978 = vld [vmem:[%s977] sm:$0xf]
        %v980 = vlaneseq
        %v981 = vshrl.u32 %v980, 7
        %v982 = vsub.s32 0, %v981
        %v983 = vrot.slane %v978, %v982
        %v984 = vlaneseq
        %v985 = vshrl.u32 %v984, 7
        %v986 = vsub.s32 1, %v985
        %v987 = vrot.slane %v978, %v986
        %v988 = vlaneseq
        %v989 = vshrl.u32 %v988, 7
        %v990 = vsub.s32 2, %v989
        %v991 = vrot.slane %v978, %v990
        %v992 = vlaneseq
        %v993 = vshrl.u32 %v992, 7
        %v994 = vsub.s32 3, %v993
        %v995 = vrot.slane %v978, %v994
        %v1000 = vmul.f32 %v973, %v983
        %v1001 = vmul.f32 %v969, %v987
        %v1002 = vmul.f32 %v965, %v991
        %v1003 = vmul.f32 %v961, %v995
        %v1004 = vmul.f32 %v974, %v983
        %v1005 = vmul.f32 %v970, %v987
        %v1006 = vmul.f32 %v966, %v991
        %v1007 = vmul.f32 %v962, %v995
        %v1008 = vmul.f32 %v975, %v983
        %v1009 = vmul.f32 %v971, %v987
        %v1010 = vmul.f32 %v967, %v991
        %v1011 = vmul.f32 %v963, %v995
        %v1012 = vmul.f32 %v976, %v983
        %v1013 = vmul.f32 %v972, %v987
        %v1014 = vmul.f32 %v968, %v991
        %v1015 = vmul.f32 %v964, %v995
        %1016 = vst [vmem:[#allocation2 + $0x180] sm:$0xff] %v1000
        %1017 = vst [vmem:[#allocation2 + $0x188] sm:$0xff] %v1001
        %1018 = vst [vmem:[#allocation2 + $0x190] sm:$0xff] %v1002
        %1019 = vst [vmem:[#allocation2 + $0x198] sm:$0xff] %v1003
        %1020 = vst [vmem:[#allocation2 + $0x1a0] sm:$0xff] %v1004
        %1021 = vst [vmem:[#allocation2 + $0x1a8] sm:$0xff] %v1005
        %1022 = vst [vmem:[#allocation2 + $0x1b0] sm:$0xff] %v1006
        %1023 = vst [vmem:[#allocation2 + $0x1b8] sm:$0xff] %v1007
        %1024 = vst [vmem:[#allocation2 + $0x1c0] sm:$0xff] %v1008
        %1025 = vst [vmem:[#allocation2 + $0x1c8] sm:$0xff] %v1009
        %1026 = vst [vmem:[#allocation2 + $0x1d0] sm:$0xff] %v1010
        %1027 = vst [vmem:[#allocation2 + $0x1d8] sm:$0xff] %v1011
        %1028 = vst [vmem:[#allocation2 + $0x1e0] sm:$0xff] %v1012
        %1029 = vst [vmem:[#allocation2 + $0x1e8] sm:$0xff] %v1013
        %1030 = vst [vmem:[#allocation2 + $0x1f0] sm:$0xff] %v1014
        %1031 = vst [vmem:[#allocation2 + $0x1f8] sm:$0xff] %v1015
        %1032 = vst [vmem:[#allocation2 + $0x200] sm:$0xff] %v599
        %1033 = vst [vmem:[#allocation2 + $0x208] sm:$0xff] %v600
        %1034 = vst [vmem:[#allocation2 + $0x210] sm:$0xff] %v601
        %1035 = vst [vmem:[#allocation2 + $0x218] sm:$0xff] %v602
        %1036 = vst [vmem:[#allocation2 + $0x220] sm:$0xff] %v603
        %1037 = vst [vmem:[#allocation2 + $0x228] sm:$0xff] %v604
        %1038 = vst [vmem:[#allocation2 + $0x230] sm:$0xff] %v605
        %1039 = vst [vmem:[#allocation2 + $0x238] sm:$0xff] %v606
        %1040 = vst [vmem:[#allocation2 + $0x240] sm:$0xff] %v607
        %1041 = vst [vmem:[#allocation2 + $0x248] sm:$0xff] %v608
        %1042 = vst [vmem:[#allocation2 + $0x250] sm:$0xff] %v609
        %1043 = vst [vmem:[#allocation2 + $0x258] sm:$0xff] %v610
        %1044 = vst [vmem:[#allocation2 + $0x260] sm:$0xff] %v611
        %1045 = vst [vmem:[#allocation2 + $0x268] sm:$0xff] %v612
        %1046 = vst [vmem:[#allocation2 + $0x270] sm:$0xff] %v613
        %1047 = vst [vmem:[#allocation2 + $0x278] sm:$0xff] %v614
        %1048 = vrot.lane.b32.xlu0 %v599, 127
        %v1049 = vpop.permute.xlu0 %1048
        %1050 = vrot.lane.b32.xlu0 %v603, 127
        %v1051 = vpop.permute.xlu0 %1050
        %1052 = vrot.lane.b32.xlu0 %v607, 127
        %v1053 = vpop.permute.xlu0 %1052
        %1054 = vrot.lane.b32.xlu0 %v611, 127
        %v1055 = vpop.permute.xlu0 %1054
        %1056 = vrot.lane.b32.xlu0 %v600, 127
        %v1057 = vpop.permute.xlu0 %1056
        %1058 = vrot.lane.b32.xlu0 %v604, 127
        %v1059 = vpop.permute.xlu0 %1058
        %1060 = vrot.lane.b32.xlu0 %v608, 127
        %v1061 = vpop.permute.xlu0 %1060
        %1062 = vrot.lane.b32.xlu0 %v612, 127
        %v1063 = vpop.permute.xlu0 %1062
        %1064 = vrot.lane.b32.xlu0 %v601, 127
        %v1065 = vpop.permute.xlu0 %1064
        %1066 = vrot.lane.b32.xlu0 %v605, 127
        %v1067 = vpop.permute.xlu0 %1066
        %1068 = vrot.lane.b32.xlu0 %v609, 127
        %v1069 = vpop.permute.xlu0 %1068
        %1070 = vrot.lane.b32.xlu0 %v613, 127
        %v1071 = vpop.permute.xlu0 %1070
        %1072 = vrot.lane.b32.xlu0 %v602, 127
        %v1073 = vpop.permute.xlu0 %1072
        %1074 = vrot.lane.b32.xlu0 %v606, 127
        %v1075 = vpop.permute.xlu0 %1074
        %1076 = vrot.lane.b32.xlu0 %v610, 127
        %v1077 = vpop.permute.xlu0 %1076
        %1078 = vrot.lane.b32.xlu0 %v614, 127
        %v1079 = vpop.permute.xlu0 %1078
        %vm1080 = vcmp.lt.s32.totalorder %v648, 127
        %v1081 = vsel %vm1080, %v1065, %v1073
        %v1082 = vsel %vm1080, %v1067, %v1075
        %v1083 = vsel %vm1080, %v1069, %v1077
        %v1084 = vsel %vm1080, %v1071, %v1079
        %v1085 = vsel %vm1080, %v1057, %v1065
        %v1086 = vsel %vm1080, %v1059, %v1067
        %v1087 = vsel %vm1080, %v1061, %v1069
        %v1088 = vsel %vm1080, %v1063, %v1071
        %v1089 = vsel %vm1080, %v1049, %v1057
        %v1090 = vsel %vm1080, %v1051, %v1059
        %v1091 = vsel %vm1080, %v1053, %v1061
        %v1092 = vsel %vm1080, %v1055, %v1063
        %v1093 = vsel %vm1080, %v1073, %v1049
        %v1094 = vsel %vm1080, %v1075, %v1051
        %v1095 = vsel %vm1080, %v1077, %v1053
        %v1096 = vsel %vm1080, %v1079, %v1055
        %s1097 = scalar_lea.vmem %s2, 20
        %v1098 = vld [vmem:[%s1097] sm:$0xf]
        %v1100 = vlaneseq
        %v1101 = vshrl.u32 %v1100, 7
        %v1102 = vsub.s32 0, %v1101
        %v1103 = vrot.slane %v1098, %v1102
        %v1104 = vlaneseq
        %v1105 = vshrl.u32 %v1104, 7
        %v1106 = vsub.s32 1, %v1105
        %v1107 = vrot.slane %v1098, %v1106
        %v1108 = vlaneseq
        %v1109 = vshrl.u32 %v1108, 7
        %v1110 = vsub.s32 2, %v1109
        %v1111 = vrot.slane %v1098, %v1110
        %v1112 = vlaneseq
        %v1113 = vshrl.u32 %v1112, 7
        %v1114 = vsub.s32 3, %v1113
        %v1115 = vrot.slane %v1098, %v1114
        %v1120 = vmul.f32 %v1089, %v1103
        %v1121 = vmul.f32 %v1085, %v1107
        %v1122 = vmul.f32 %v1081, %v1111
        %v1123 = vmul.f32 %v1093, %v1115
        %v1124 = vmul.f32 %v1090, %v1103
        %v1125 = vmul.f32 %v1086, %v1107
        %v1126 = vmul.f32 %v1082, %v1111
        %v1127 = vmul.f32 %v1094, %v1115
        %v1128 = vmul.f32 %v1091, %v1103
        %v1129 = vmul.f32 %v1087, %v1107
        %v1130 = vmul.f32 %v1083, %v1111
        %v1131 = vmul.f32 %v1095, %v1115
        %v1132 = vmul.f32 %v1092, %v1103
        %v1133 = vmul.f32 %v1088, %v1107
        %v1134 = vmul.f32 %v1084, %v1111
        %v1135 = vmul.f32 %v1096, %v1115
        %1136 = vst [vmem:[#allocation2 + $0x280] sm:$0xff] %v1120
        %1137 = vst [vmem:[#allocation2 + $0x288] sm:$0xff] %v1121
        %1138 = vst [vmem:[#allocation2 + $0x290] sm:$0xff] %v1122
        %1139 = vst [vmem:[#allocation2 + $0x298] sm:$0xff] %v1123
        %1140 = vst [vmem:[#allocation2 + $0x2a0] sm:$0xff] %v1124
        %1141 = vst [vmem:[#allocation2 + $0x2a8] sm:$0xff] %v1125
        %1142 = vst [vmem:[#allocation2 + $0x2b0] sm:$0xff] %v1126
        %1143 = vst [vmem:[#allocation2 + $0x2b8] sm:$0xff] %v1127
        %1144 = vst [vmem:[#allocation2 + $0x2c0] sm:$0xff] %v1128
        %1145 = vst [vmem:[#allocation2 + $0x2c8] sm:$0xff] %v1129
        %1146 = vst [vmem:[#allocation2 + $0x2d0] sm:$0xff] %v1130
        %1147 = vst [vmem:[#allocation2 + $0x2d8] sm:$0xff] %v1131
        %1148 = vst [vmem:[#allocation2 + $0x2e0] sm:$0xff] %v1132
        %1149 = vst [vmem:[#allocation2 + $0x2e8] sm:$0xff] %v1133
        %1150 = vst [vmem:[#allocation2 + $0x2f0] sm:$0xff] %v1134
        %1151 = vst [vmem:[#allocation2 + $0x2f8] sm:$0xff] %v1135
        %1152 = vrot.lane.b32.xlu0 %v599, 113
        %v1153 = vpop.permute.xlu0 %1152
        %1154 = vrot.lane.b32.xlu0 %v603, 113
        %v1155 = vpop.permute.xlu0 %1154
        %1156 = vrot.lane.b32.xlu0 %v607, 113
        %v1157 = vpop.permute.xlu0 %1156
        %1158 = vrot.lane.b32.xlu0 %v611, 113
        %v1159 = vpop.permute.xlu0 %1158
        %1160 = vrot.lane.b32.xlu0 %v600, 113
        %v1161 = vpop.permute.xlu0 %1160
        %1162 = vrot.lane.b32.xlu0 %v604, 113
        %v1163 = vpop.permute.xlu0 %1162
        %1164 = vrot.lane.b32.xlu0 %v608, 113
        %v1165 = vpop.permute.xlu0 %1164
        %1166 = vrot.lane.b32.xlu0 %v612, 113
        %v1167 = vpop.permute.xlu0 %1166
        %1168 = vrot.lane.b32.xlu0 %v601, 113
        %v1169 = vpop.permute.xlu0 %1168
        %1170 = vrot.lane.b32.xlu0 %v605, 113
        %v1171 = vpop.permute.xlu0 %1170
        %1172 = vrot.lane.b32.xlu0 %v609, 113
        %v1173 = vpop.permute.xlu0 %1172
        %1174 = vrot.lane.b32.xlu0 %v613, 113
        %v1175 = vpop.permute.xlu0 %1174
        %1176 = vrot.lane.b32.xlu0 %v602, 113
        %v1177 = vpop.permute.xlu0 %1176
        %1178 = vrot.lane.b32.xlu0 %v606, 113
        %v1179 = vpop.permute.xlu0 %1178
        %1180 = vrot.lane.b32.xlu0 %v610, 113
        %v1181 = vpop.permute.xlu0 %1180
        %1182 = vrot.lane.b32.xlu0 %v614, 113
        %v1183 = vpop.permute.xlu0 %1182
        %vm1184 = vcmp.lt.s32.totalorder %v648, 113
        %v1185 = vsel %vm1184, %v1169, %v1177
        %v1186 = vsel %vm1184, %v1171, %v1179
        %v1187 = vsel %vm1184, %v1173, %v1181
        %v1188 = vsel %vm1184, %v1175, %v1183
        %v1189 = vsel %vm1184, %v1161, %v1169
        %v1190 = vsel %vm1184, %v1163, %v1171
        %v1191 = vsel %vm1184, %v1165, %v1173
        %v1192 = vsel %vm1184, %v1167, %v1175
        %v1193 = vsel %vm1184, %v1153, %v1161
        %v1194 = vsel %vm1184, %v1155, %v1163
        %v1195 = vsel %vm1184, %v1157, %v1165
        %v1196 = vsel %vm1184, %v1159, %v1167
        %v1197 = vsel %vm1184, %v1177, %v1153
        %v1198 = vsel %vm1184, %v1179, %v1155
        %v1199 = vsel %vm1184, %v1181, %v1157
        %v1200 = vsel %vm1184, %v1183, %v1159
        %s1201 = scalar_lea.vmem %s2, 24
        %v1202 = vld [vmem:[%s1201] sm:$0xf]
        %v1204 = vlaneseq
        %v1205 = vshrl.u32 %v1204, 7
        %v1206 = vsub.s32 0, %v1205
        %v1207 = vrot.slane %v1202, %v1206
        %v1208 = vlaneseq
        %v1209 = vshrl.u32 %v1208, 7
        %v1210 = vsub.s32 1, %v1209
        %v1211 = vrot.slane %v1202, %v1210
        %v1212 = vlaneseq
        %v1213 = vshrl.u32 %v1212, 7
        %v1214 = vsub.s32 2, %v1213
        %v1215 = vrot.slane %v1202, %v1214
        %v1216 = vlaneseq
        %v1217 = vshrl.u32 %v1216, 7
        %v1218 = vsub.s32 3, %v1217
        %v1219 = vrot.slane %v1202, %v1218
        %v1224 = vmul.f32 %v1193, %v1207
        %v1225 = vmul.f32 %v1189, %v1211
        %v1226 = vmul.f32 %v1185, %v1215
        %v1227 = vmul.f32 %v1197, %v1219
        %v1228 = vmul.f32 %v1194, %v1207
        %v1229 = vmul.f32 %v1190, %v1211
        %v1230 = vmul.f32 %v1186, %v1215
        %v1231 = vmul.f32 %v1198, %v1219
        %v1232 = vmul.f32 %v1195, %v1207
        %v1233 = vmul.f32 %v1191, %v1211
        %v1234 = vmul.f32 %v1187, %v1215
        %v1235 = vmul.f32 %v1199, %v1219
        %v1236 = vmul.f32 %v1196, %v1207
        %v1237 = vmul.f32 %v1192, %v1211
        %v1238 = vmul.f32 %v1188, %v1215
        %v1239 = vmul.f32 %v1200, %v1219
        %1240 = vst [vmem:[#allocation2 + $0x300] sm:$0xff] %v1224
        %1241 = vst [vmem:[#allocation2 + $0x308] sm:$0xff] %v1225
        %1242 = vst [vmem:[#allocation2 + $0x310] sm:$0xff] %v1226
        %1243 = vst [vmem:[#allocation2 + $0x318] sm:$0xff] %v1227
        %1244 = vst [vmem:[#allocation2 + $0x320] sm:$0xff] %v1228
        %1245 = vst [vmem:[#allocation2 + $0x328] sm:$0xff] %v1229
        %1246 = vst [vmem:[#allocation2 + $0x330] sm:$0xff] %v1230
        %1247 = vst [vmem:[#allocation2 + $0x338] sm:$0xff] %v1231
        %1248 = vst [vmem:[#allocation2 + $0x340] sm:$0xff] %v1232
        %1249 = vst [vmem:[#allocation2 + $0x348] sm:$0xff] %v1233
        %1250 = vst [vmem:[#allocation2 + $0x350] sm:$0xff] %v1234
        %1251 = vst [vmem:[#allocation2 + $0x358] sm:$0xff] %v1235
        %1252 = vst [vmem:[#allocation2 + $0x360] sm:$0xff] %v1236
        %1253 = vst [vmem:[#allocation2 + $0x368] sm:$0xff] %v1237
        %1254 = vst [vmem:[#allocation2 + $0x370] sm:$0xff] %v1238
        %1255 = vst [vmem:[#allocation2 + $0x378] sm:$0xff] %v1239
        %1256 = vrot.lane.b32.xlu0 %v599, 112
        %v1257 = vpop.permute.xlu0 %1256
        %1258 = vrot.lane.b32.xlu0 %v603, 112
        %v1259 = vpop.permute.xlu0 %1258
        %1260 = vrot.lane.b32.xlu0 %v607, 112
        %v1261 = vpop.permute.xlu0 %1260
        %1262 = vrot.lane.b32.xlu0 %v611, 112
        %v1263 = vpop.permute.xlu0 %1262
        %1264 = vrot.lane.b32.xlu0 %v600, 112
        %v1265 = vpop.permute.xlu0 %1264
        %1266 = vrot.lane.b32.xlu0 %v604, 112
        %v1267 = vpop.permute.xlu0 %1266
        %1268 = vrot.lane.b32.xlu0 %v608, 112
        %v1269 = vpop.permute.xlu0 %1268
        %1270 = vrot.lane.b32.xlu0 %v612, 112
        %v1271 = vpop.permute.xlu0 %1270
        %1272 = vrot.lane.b32.xlu0 %v601, 112
        %v1273 = vpop.permute.xlu0 %1272
        %1274 = vrot.lane.b32.xlu0 %v605, 112
        %v1275 = vpop.permute.xlu0 %1274
        %1276 = vrot.lane.b32.xlu0 %v609, 112
        %v1277 = vpop.permute.xlu0 %1276
        %1278 = vrot.lane.b32.xlu0 %v613, 112
        %v1279 = vpop.permute.xlu0 %1278
        %1280 = vrot.lane.b32.xlu0 %v602, 112
        %v1281 = vpop.permute.xlu0 %1280
        %1282 = vrot.lane.b32.xlu0 %v606, 112
        %v1283 = vpop.permute.xlu0 %1282
        %1284 = vrot.lane.b32.xlu0 %v610, 112
        %v1285 = vpop.permute.xlu0 %1284
        %1286 = vrot.lane.b32.xlu0 %v614, 112
        %v1287 = vpop.permute.xlu0 %1286
        %vm1288 = vcmp.lt.s32.totalorder %v648, 112
        %v1289 = vsel %vm1288, %v1273, %v1281
        %v1290 = vsel %vm1288, %v1275, %v1283
        %v1291 = vsel %vm1288, %v1277, %v1285
        %v1292 = vsel %vm1288, %v1279, %v1287
        %v1293 = vsel %vm1288, %v1265, %v1273
        %v1294 = vsel %vm1288, %v1267, %v1275
        %v1295 = vsel %vm1288, %v1269, %v1277
        %v1296 = vsel %vm1288, %v1271, %v1279
        %v1297 = vsel %vm1288, %v1257, %v1265
        %v1298 = vsel %vm1288, %v1259, %v1267
        %v1299 = vsel %vm1288, %v1261, %v1269
        %v1300 = vsel %vm1288, %v1263, %v1271
        %v1301 = vsel %vm1288, %v1281, %v1257
        %v1302 = vsel %vm1288, %v1283, %v1259
        %v1303 = vsel %vm1288, %v1285, %v1261
        %v1304 = vsel %vm1288, %v1287, %v1263
        %s1305 = scalar_lea.vmem %s2, 28
        %v1306 = vld [vmem:[%s1305] sm:$0xf]
        %v1308 = vlaneseq
        %v1309 = vshrl.u32 %v1308, 7
        %v1310 = vsub.s32 0, %v1309
        %v1311 = vrot.slane %v1306, %v1310
        %v1312 = vlaneseq
        %v1313 = vshrl.u32 %v1312, 7
        %v1314 = vsub.s32 1, %v1313
        %v1315 = vrot.slane %v1306, %v1314
        %v1316 = vlaneseq
        %v1317 = vshrl.u32 %v1316, 7
        %v1318 = vsub.s32 2, %v1317
        %v1319 = vrot.slane %v1306, %v1318
        %v1320 = vlaneseq
        %v1321 = vshrl.u32 %v1320, 7
        %v1322 = vsub.s32 3, %v1321
        %v1323 = vrot.slane %v1306, %v1322
        %v1328 = vmul.f32 %v1297, %v1311
        %v1329 = vmul.f32 %v1293, %v1315
        %v1330 = vmul.f32 %v1289, %v1319
        %v1331 = vmul.f32 %v1301, %v1323
        %v1332 = vmul.f32 %v1298, %v1311
        %v1333 = vmul.f32 %v1294, %v1315
        %v1334 = vmul.f32 %v1290, %v1319
        %v1335 = vmul.f32 %v1302, %v1323
        %v1336 = vmul.f32 %v1299, %v1311
        %v1337 = vmul.f32 %v1295, %v1315
        %v1338 = vmul.f32 %v1291, %v1319
        %v1339 = vmul.f32 %v1303, %v1323
        %v1340 = vmul.f32 %v1300, %v1311
        %v1341 = vmul.f32 %v1296, %v1315
        %v1342 = vmul.f32 %v1292, %v1319
        %v1343 = vmul.f32 %v1304, %v1323
        %1344 = vst [vmem:[#allocation2 + $0x380] sm:$0xff] %v1328
        %1345 = vst [vmem:[#allocation2 + $0x388] sm:$0xff] %v1329
        %1346 = vst [vmem:[#allocation2 + $0x390] sm:$0xff] %v1330
        %1347 = vst [vmem:[#allocation2 + $0x398] sm:$0xff] %v1331
        %1348 = vst [vmem:[#allocation2 + $0x3a0] sm:$0xff] %v1332
        %1349 = vst [vmem:[#allocation2 + $0x3a8] sm:$0xff] %v1333
        %1350 = vst [vmem:[#allocation2 + $0x3b0] sm:$0xff] %v1334
        %1351 = vst [vmem:[#allocation2 + $0x3b8] sm:$0xff] %v1335
        %1352 = vst [vmem:[#allocation2 + $0x3c0] sm:$0xff] %v1336
        %1353 = vst [vmem:[#allocation2 + $0x3c8] sm:$0xff] %v1337
        %1354 = vst [vmem:[#allocation2 + $0x3d0] sm:$0xff] %v1338
        %1355 = vst [vmem:[#allocation2 + $0x3d8] sm:$0xff] %v1339
        %1356 = vst [vmem:[#allocation2 + $0x3e0] sm:$0xff] %v1340
        %1357 = vst [vmem:[#allocation2 + $0x3e8] sm:$0xff] %v1341
        %1358 = vst [vmem:[#allocation2 + $0x3f0] sm:$0xff] %v1342
        %1359 = vst [vmem:[#allocation2 + $0x3f8] sm:$0xff] %v1343
        %1360 = vrot.lane.b32.xlu0 %v599, 111
        %v1361 = vpop.permute.xlu0 %1360
        %1362 = vrot.lane.b32.xlu0 %v603, 111
        %v1363 = vpop.permute.xlu0 %1362
        %1364 = vrot.lane.b32.xlu0 %v607, 111
        %v1365 = vpop.permute.xlu0 %1364
        %1366 = vrot.lane.b32.xlu0 %v611, 111
        %v1367 = vpop.permute.xlu0 %1366
        %1368 = vrot.lane.b32.xlu0 %v600, 111
        %v1369 = vpop.permute.xlu0 %1368
        %1370 = vrot.lane.b32.xlu0 %v604, 111
        %v1371 = vpop.permute.xlu0 %1370
        %1372 = vrot.lane.b32.xlu0 %v608, 111
        %v1373 = vpop.permute.xlu0 %1372
        %1374 = vrot.lane.b32.xlu0 %v612, 111
        %v1375 = vpop.permute.xlu0 %1374
        %1376 = vrot.lane.b32.xlu0 %v601, 111
        %v1377 = vpop.permute.xlu0 %1376
        %1378 = vrot.lane.b32.xlu0 %v605, 111
        %v1379 = vpop.permute.xlu0 %1378
        %1380 = vrot.lane.b32.xlu0 %v609, 111
        %v1381 = vpop.permute.xlu0 %1380
        %1382 = vrot.lane.b32.xlu0 %v613, 111
        %v1383 = vpop.permute.xlu0 %1382
        %1384 = vrot.lane.b32.xlu0 %v602, 111
        %v1385 = vpop.permute.xlu0 %1384
        %1386 = vrot.lane.b32.xlu0 %v606, 111
        %v1387 = vpop.permute.xlu0 %1386
        %1388 = vrot.lane.b32.xlu0 %v610, 111
        %v1389 = vpop.permute.xlu0 %1388
        %1390 = vrot.lane.b32.xlu0 %v614, 111
        %v1391 = vpop.permute.xlu0 %1390
        %vm1392 = vcmp.lt.s32.totalorder %v648, 111
        %v1393 = vsel %vm1392, %v1377, %v1385
        %v1394 = vsel %vm1392, %v1379, %v1387
        %v1395 = vsel %vm1392, %v1381, %v1389
        %v1396 = vsel %vm1392, %v1383, %v1391
        %v1397 = vsel %vm1392, %v1369, %v1377
        %v1398 = vsel %vm1392, %v1371, %v1379
        %v1399 = vsel %vm1392, %v1373, %v1381
        %v1400 = vsel %vm1392, %v1375, %v1383
        %v1401 = vsel %vm1392, %v1361, %v1369
        %v1402 = vsel %vm1392, %v1363, %v1371
        %v1403 = vsel %vm1392, %v1365, %v1373
        %v1404 = vsel %vm1392, %v1367, %v1375
        %v1405 = vsel %vm1392, %v1385, %v1361
        %v1406 = vsel %vm1392, %v1387, %v1363
        %v1407 = vsel %vm1392, %v1389, %v1365
        %v1408 = vsel %vm1392, %v1391, %v1367
        %s1409 = scalar_lea.vmem %s2, 32
        %v1410 = vld [vmem:[%s1409] sm:$0xf]
        %v1412 = vlaneseq
        %v1413 = vshrl.u32 %v1412, 7
        %v1414 = vsub.s32 0, %v1413
        %v1415 = vrot.slane %v1410, %v1414
        %v1416 = vlaneseq
        %v1417 = vshrl.u32 %v1416, 7
        %v1418 = vsub.s32 1, %v1417
        %v1419 = vrot.slane %v1410, %v1418
        %v1420 = vlaneseq
        %v1421 = vshrl.u32 %v1420, 7
        %v1422 = vsub.s32 2, %v1421
        %v1423 = vrot.slane %v1410, %v1422
        %v1424 = vlaneseq
        %v1425 = vshrl.u32 %v1424, 7
        %v1426 = vsub.s32 3, %v1425
        %v1427 = vrot.slane %v1410, %v1426
        %v1432 = vmul.f32 %v1401, %v1415
        %v1433 = vmul.f32 %v1397, %v1419
        %v1434 = vmul.f32 %v1393, %v1423
        %v1435 = vmul.f32 %v1405, %v1427
        %v1436 = vmul.f32 %v1402, %v1415
        %v1437 = vmul.f32 %v1398, %v1419
        %v1438 = vmul.f32 %v1394, %v1423
        %v1439 = vmul.f32 %v1406, %v1427
        %v1440 = vmul.f32 %v1403, %v1415
        %v1441 = vmul.f32 %v1399, %v1419
        %v1442 = vmul.f32 %v1395, %v1423
        %v1443 = vmul.f32 %v1407, %v1427
        %v1444 = vmul.f32 %v1404, %v1415
        %v1445 = vmul.f32 %v1400, %v1419
        %v1446 = vmul.f32 %v1396, %v1423
        %v1447 = vmul.f32 %v1408, %v1427
        %1448 = vst [vmem:[#allocation2 + $0x400] sm:$0xff] %v1432
        %1449 = vst [vmem:[#allocation2 + $0x408] sm:$0xff] %v1433
        %1450 = vst [vmem:[#allocation2 + $0x410] sm:$0xff] %v1434
        %1451 = vst [vmem:[#allocation2 + $0x418] sm:$0xff] %v1435
        %1452 = vst [vmem:[#allocation2 + $0x420] sm:$0xff] %v1436
        %1453 = vst [vmem:[#allocation2 + $0x428] sm:$0xff] %v1437
        %1454 = vst [vmem:[#allocation2 + $0x430] sm:$0xff] %v1438
        %1455 = vst [vmem:[#allocation2 + $0x438] sm:$0xff] %v1439
        %1456 = vst [vmem:[#allocation2 + $0x440] sm:$0xff] %v1440
        %1457 = vst [vmem:[#allocation2 + $0x448] sm:$0xff] %v1441
        %1458 = vst [vmem:[#allocation2 + $0x450] sm:$0xff] %v1442
        %1459 = vst [vmem:[#allocation2 + $0x458] sm:$0xff] %v1443
        %1460 = vst [vmem:[#allocation2 + $0x460] sm:$0xff] %v1444
        %1461 = vst [vmem:[#allocation2 + $0x468] sm:$0xff] %v1445
        %1462 = vst [vmem:[#allocation2 + $0x470] sm:$0xff] %v1446
        %1463 = vst [vmem:[#allocation2 + $0x478] sm:$0xff] %v1447
        %v1464 = vld [vmem:[%s3] sm:$0xff]
        %v1465 = vld [vmem:[%s3 + $0x8] sm:$0xff]
        %v1466 = vld [vmem:[%s3 + $0x10] sm:$0xff]
        %v1467 = vld [vmem:[%s3 + $0x18] sm:$0xff]
        %v1468 = vld [vmem:[%s3 + $0x20] sm:$0xff]
        %v1469 = vld [vmem:[%s3 + $0x28] sm:$0xff]
        %v1470 = vld [vmem:[%s3 + $0x30] sm:$0xff]
        %v1471 = vld [vmem:[%s3 + $0x38] sm:$0xff]
        %v1472 = vld [vmem:[%s3 + $0x40] sm:$0xff]
        %v1473 = vld [vmem:[%s3 + $0x48] sm:$0xff]
        %v1474 = vld [vmem:[%s3 + $0x50] sm:$0xff]
        %v1475 = vld [vmem:[%s3 + $0x58] sm:$0xff]
        %v1476 = vld [vmem:[#allocation2] sm:$0xff]
        %v1477 = vld [vmem:[#allocation2 + $0x8] sm:$0xff]
        %v1478 = vld [vmem:[#allocation2 + $0x10] sm:$0xff]
        %v1479 = vld [vmem:[#allocation2 + $0x18] sm:$0xff]
        %v1480 = vld [vmem:[#allocation2 + $0x20] sm:$0xff]
        %v1481 = vld [vmem:[#allocation2 + $0x28] sm:$0xff]
        %v1482 = vld [vmem:[#allocation2 + $0x30] sm:$0xff]
        %v1483 = vld [vmem:[#allocation2 + $0x38] sm:$0xff]
        %v1484 = vld [vmem:[#allocation2 + $0x40] sm:$0xff]
        %v1485 = vld [vmem:[#allocation2 + $0x48] sm:$0xff]
        %v1486 = vld [vmem:[#allocation2 + $0x50] sm:$0xff]
        %v1487 = vld [vmem:[#allocation2 + $0x58] sm:$0xff]
        %v1488 = vld [vmem:[#allocation2 + $0x60] sm:$0xff]
        %v1489 = vld [vmem:[#allocation2 + $0x68] sm:$0xff]
        %v1490 = vld [vmem:[#allocation2 + $0x70] sm:$0xff]
        %v1491 = vld [vmem:[#allocation2 + $0x78] sm:$0xff]
        %v1492 = vld [vmem:[#allocation2 + $0x80] sm:$0xff]
        %v1493 = vld [vmem:[#allocation2 + $0x88] sm:$0xff]
        %v1494 = vld [vmem:[#allocation2 + $0x90] sm:$0xff]
        %v1495 = vld [vmem:[#allocation2 + $0x98] sm:$0xff]
        %v1496 = vld [vmem:[#allocation2 + $0xa0] sm:$0xff]
        %v1497 = vld [vmem:[#allocation2 + $0xa8] sm:$0xff]
        %v1498 = vld [vmem:[#allocation2 + $0xb0] sm:$0xff]
        %v1499 = vld [vmem:[#allocation2 + $0xb8] sm:$0xff]
        %v1500 = vld [vmem:[#allocation2 + $0xc0] sm:$0xff]
        %v1501 = vld [vmem:[#allocation2 + $0xc8] sm:$0xff]
        %v1502 = vld [vmem:[#allocation2 + $0xd0] sm:$0xff]
        %v1503 = vld [vmem:[#allocation2 + $0xd8] sm:$0xff]
        %v1504 = vld [vmem:[#allocation2 + $0xe0] sm:$0xff]
        %v1505 = vld [vmem:[#allocation2 + $0xe8] sm:$0xff]
        %v1506 = vld [vmem:[#allocation2 + $0xf0] sm:$0xff]
        %v1507 = vld [vmem:[#allocation2 + $0xf8] sm:$0xff]
        %v1508 = vld [vmem:[#allocation2 + $0x100] sm:$0xff]
        %v1509 = vld [vmem:[#allocation2 + $0x108] sm:$0xff]
        %v1510 = vld [vmem:[#allocation2 + $0x110] sm:$0xff]
        %v1511 = vld [vmem:[#allocation2 + $0x118] sm:$0xff]
        %v1512 = vld [vmem:[#allocation2 + $0x120] sm:$0xff]
        %v1513 = vld [vmem:[#allocation2 + $0x128] sm:$0xff]
        %v1514 = vld [vmem:[#allocation2 + $0x130] sm:$0xff]
        %v1515 = vld [vmem:[#allocation2 + $0x138] sm:$0xff]
        %v1516 = vld [vmem:[#allocation2 + $0x140] sm:$0xff]
        %v1517 = vld [vmem:[#allocation2 + $0x148] sm:$0xff]
        %v1518 = vld [vmem:[#allocation2 + $0x150] sm:$0xff]
        %v1519 = vld [vmem:[#allocation2 + $0x158] sm:$0xff]
        %v1520 = vld [vmem:[#allocation2 + $0x160] sm:$0xff]
        %v1521 = vld [vmem:[#allocation2 + $0x168] sm:$0xff]
        %v1522 = vld [vmem:[#allocation2 + $0x170] sm:$0xff]
        %v1523 = vld [vmem:[#allocation2 + $0x178] sm:$0xff]
        %v1524 = vld [vmem:[#allocation2 + $0x180] sm:$0xff]
        %v1525 = vld [vmem:[#allocation2 + $0x188] sm:$0xff]
        %v1526 = vld [vmem:[#allocation2 + $0x190] sm:$0xff]
        %v1527 = vld [vmem:[#allocation2 + $0x198] sm:$0xff]
        %v1528 = vld [vmem:[#allocation2 + $0x1a0] sm:$0xff]
        %v1529 = vld [vmem:[#allocation2 + $0x1a8] sm:$0xff]
        %v1530 = vld [vmem:[#allocation2 + $0x1b0] sm:$0xff]
        %v1531 = vld [vmem:[#allocation2 + $0x1b8] sm:$0xff]
        %v1532 = vld [vmem:[#allocation2 + $0x1c0] sm:$0xff]
        %v1533 = vld [vmem:[#allocation2 + $0x1c8] sm:$0xff]
        %v1534 = vld [vmem:[#allocation2 + $0x1d0] sm:$0xff]
        %v1535 = vld [vmem:[#allocation2 + $0x1d8] sm:$0xff]
        %v1536 = vld [vmem:[#allocation2 + $0x1e0] sm:$0xff]
        %v1537 = vld [vmem:[#allocation2 + $0x1e8] sm:$0xff]
        %v1538 = vld [vmem:[#allocation2 + $0x1f0] sm:$0xff]
        %v1539 = vld [vmem:[#allocation2 + $0x1f8] sm:$0xff]
        %v1540 = vld [vmem:[#allocation2 + $0x200] sm:$0xff]
        %v1541 = vld [vmem:[#allocation2 + $0x208] sm:$0xff]
        %v1542 = vld [vmem:[#allocation2 + $0x210] sm:$0xff]
        %v1543 = vld [vmem:[#allocation2 + $0x218] sm:$0xff]
        %v1544 = vld [vmem:[#allocation2 + $0x220] sm:$0xff]
        %v1545 = vld [vmem:[#allocation2 + $0x228] sm:$0xff]
        %v1546 = vld [vmem:[#allocation2 + $0x230] sm:$0xff]
        %v1547 = vld [vmem:[#allocation2 + $0x238] sm:$0xff]
        %v1548 = vld [vmem:[#allocation2 + $0x240] sm:$0xff]
        %v1549 = vld [vmem:[#allocation2 + $0x248] sm:$0xff]
        %v1550 = vld [vmem:[#allocation2 + $0x250] sm:$0xff]
        %v1551 = vld [vmem:[#allocation2 + $0x258] sm:$0xff]
        %v1552 = vld [vmem:[#allocation2 + $0x260] sm:$0xff]
        %v1553 = vld [vmem:[#allocation2 + $0x268] sm:$0xff]
        %v1554 = vld [vmem:[#allocation2 + $0x270] sm:$0xff]
        %v1555 = vld [vmem:[#allocation2 + $0x278] sm:$0xff]
        %v1556 = vld [vmem:[#allocation2 + $0x280] sm:$0xff]
        %v1557 = vld [vmem:[#allocation2 + $0x288] sm:$0xff]
        %v1558 = vld [vmem:[#allocation2 + $0x290] sm:$0xff]
        %v1559 = vld [vmem:[#allocation2 + $0x298] sm:$0xff]
        %v1560 = vld [vmem:[#allocation2 + $0x2a0] sm:$0xff]
        %v1561 = vld [vmem:[#allocation2 + $0x2a8] sm:$0xff]
        %v1562 = vld [vmem:[#allocation2 + $0x2b0] sm:$0xff]
        %v1563 = vld [vmem:[#allocation2 + $0x2b8] sm:$0xff]
        %v1564 = vld [vmem:[#allocation2 + $0x2c0] sm:$0xff]
        %v1565 = vld [vmem:[#allocation2 + $0x2c8] sm:$0xff]
        %v1566 = vld [vmem:[#allocation2 + $0x2d0] sm:$0xff]
        %v1567 = vld [vmem:[#allocation2 + $0x2d8] sm:$0xff]
        %v1568 = vld [vmem:[#allocation2 + $0x2e0] sm:$0xff]
        %v1569 = vld [vmem:[#allocation2 + $0x2e8] sm:$0xff]
        %v1570 = vld [vmem:[#allocation2 + $0x2f0] sm:$0xff]
        %v1571 = vld [vmem:[#allocation2 + $0x2f8] sm:$0xff]
        %v1572 = vld [vmem:[#allocation2 + $0x300] sm:$0xff]
        %v1573 = vld [vmem:[#allocation2 + $0x308] sm:$0xff]
        %v1574 = vld [vmem:[#allocation2 + $0x310] sm:$0xff]
        %v1575 = vld [vmem:[#allocation2 + $0x318] sm:$0xff]
        %v1576 = vld [vmem:[#allocation2 + $0x320] sm:$0xff]
        %v1577 = vld [vmem:[#allocation2 + $0x328] sm:$0xff]
        %v1578 = vld [vmem:[#allocation2 + $0x330] sm:$0xff]
        %v1579 = vld [vmem:[#allocation2 + $0x338] sm:$0xff]
        %v1580 = vld [vmem:[#allocation2 + $0x340] sm:$0xff]
        %v1581 = vld [vmem:[#allocation2 + $0x348] sm:$0xff]
        %v1582 = vld [vmem:[#allocation2 + $0x350] sm:$0xff]
        %v1583 = vld [vmem:[#allocation2 + $0x358] sm:$0xff]
        %v1584 = vld [vmem:[#allocation2 + $0x360] sm:$0xff]
        %v1585 = vld [vmem:[#allocation2 + $0x368] sm:$0xff]
        %v1586 = vld [vmem:[#allocation2 + $0x370] sm:$0xff]
        %v1587 = vld [vmem:[#allocation2 + $0x378] sm:$0xff]
        %v1588 = vld [vmem:[#allocation2 + $0x380] sm:$0xff]
        %v1589 = vld [vmem:[#allocation2 + $0x388] sm:$0xff]
        %v1590 = vld [vmem:[#allocation2 + $0x390] sm:$0xff]
        %v1591 = vld [vmem:[#allocation2 + $0x398] sm:$0xff]
        %v1592 = vld [vmem:[#allocation2 + $0x3a0] sm:$0xff]
        %v1593 = vld [vmem:[#allocation2 + $0x3a8] sm:$0xff]
        %v1594 = vld [vmem:[#allocation2 + $0x3b0] sm:$0xff]
        %v1595 = vld [vmem:[#allocation2 + $0x3b8] sm:$0xff]
        %v1596 = vld [vmem:[#allocation2 + $0x3c0] sm:$0xff]
        %v1597 = vld [vmem:[#allocation2 + $0x3c8] sm:$0xff]
        %v1598 = vld [vmem:[#allocation2 + $0x3d0] sm:$0xff]
        %v1599 = vld [vmem:[#allocation2 + $0x3d8] sm:$0xff]
        %v1600 = vld [vmem:[#allocation2 + $0x3e0] sm:$0xff]
        %v1601 = vld [vmem:[#allocation2 + $0x3e8] sm:$0xff]
        %v1602 = vld [vmem:[#allocation2 + $0x3f0] sm:$0xff]
        %v1603 = vld [vmem:[#allocation2 + $0x3f8] sm:$0xff]
        %v1604 = vld [vmem:[#allocation2 + $0x400] sm:$0xff]
        %v1605 = vld [vmem:[#allocation2 + $0x408] sm:$0xff]
        %v1606 = vld [vmem:[#allocation2 + $0x410] sm:$0xff]
        %v1607 = vld [vmem:[#allocation2 + $0x418] sm:$0xff]
        %v1608 = vld [vmem:[#allocation2 + $0x420] sm:$0xff]
        %v1609 = vld [vmem:[#allocation2 + $0x428] sm:$0xff]
        %v1610 = vld [vmem:[#allocation2 + $0x430] sm:$0xff]
        %v1611 = vld [vmem:[#allocation2 + $0x438] sm:$0xff]
        %v1612 = vld [vmem:[#allocation2 + $0x440] sm:$0xff]
        %v1613 = vld [vmem:[#allocation2 + $0x448] sm:$0xff]
        %v1614 = vld [vmem:[#allocation2 + $0x450] sm:$0xff]
        %v1615 = vld [vmem:[#allocation2 + $0x458] sm:$0xff]
        %v1616 = vld [vmem:[#allocation2 + $0x460] sm:$0xff]
        %v1617 = vld [vmem:[#allocation2 + $0x468] sm:$0xff]
        %v1618 = vld [vmem:[#allocation2 + $0x470] sm:$0xff]
        %v1619 = vld [vmem:[#allocation2 + $0x478] sm:$0xff]
        %v1620 = vld [vmem:[%s4] sm:$0xff]
        %v1621 = vld [vmem:[%s4 + $0x8] sm:$0xff]
        %v1622 = vld [vmem:[%s4 + $0x10] sm:$0xff]
        %v1623 = vld [vmem:[%s4 + $0x18] sm:$0xff]
        %1625 = vset.pattern.permute.xlu0 0
        %1626 = vperm.xlu0 %1625, %v1620
        %v1627 = vpop.permute.xlu0 %1626
        %1630 = vset.pattern.permute.xlu0 0
        %1631 = vperm.xlu0 %1630, %v1621
        %v1632 = vpop.permute.xlu0 %1631
        %1635 = vset.pattern.permute.xlu0 0
        %1636 = vperm.xlu0 %1635, %v1622
        %v1637 = vpop.permute.xlu0 %1636
        %1640 = vset.pattern.permute.xlu0 0
        %1641 = vperm.xlu0 %1640, %v1623
        %v1642 = vpop.permute.xlu0 %1641
        %vm1644 = vcmask 261120
        %v1646 = vsel %vm1644, %v1466, 0
        %v1649 = vsel %vm1644, %v1469, 0
        %v1652 = vsel %vm1644, %v1472, 0
        %v1655 = vsel %vm1644, %v1475, 0
        %1657 = vmatprep.subr.mxu0 %v1537
        %1658 = vmatpush1.msra.mxu0 %v1536
        %1659 = vmatprep.subr.mxu0 %v1533
        %1660 = vmatpush1.msra.mxu0 %v1532
        %1661 = vmatprep.subr.mxu0 %v1529
        %1662 = vmatpush1.msra.mxu0 %v1528
        %1663 = vmatprep.subr.mxu0 %v1525
        %1664 = vmatpush1.msra.mxu0 %v1524
        %1665 = vmatprep.subr.mxu0 %v1521
        %1666 = vmatpush1.msra.mxu0 %v1520
        %1667 = vmatprep.subr.mxu0 %v1517
        %1668 = vmatpush1.msra.mxu0 %v1516
        %1669 = vmatprep.subr.mxu0 %v1513
        %1670 = vmatpush1.msra.mxu0 %v1512
        %1671 = vmatprep.subr.mxu0 %v1509
        %1672 = vmatpush1.msra.mxu0 %v1508
        %1673 = vmatprep.subr.mxu0 %v1505
        %1674 = vmatpush1.msra.mxu0 %v1504
        %1675 = vmatprep.subr.mxu0 %v1501
        %1676 = vmatpush1.msra.mxu0 %v1500
        %1677 = vmatprep.subr.mxu0 %v1497
        %1678 = vmatpush1.msra.mxu0 %v1496
        %1679 = vmatprep.subr.mxu0 %v1493
        %1680 = vmatpush1.msra.mxu0 %v1492
        %1681 = vmatprep.subr.mxu0 %v1489
        %1682 = vmatpush1.msra.mxu0 %v1488
        %1683 = vmatprep.subr.mxu0 %v1485
        %1684 = vmatpush1.msra.mxu0 %v1484
        %1685 = vmatprep.subr.mxu0 %v1481
        %1686 = vmatpush1.msra.mxu0 %v1480
        %1687 = vmatprep.subr.mxu0 %v1477
        %1688 = vmatpush1.msra.mxu0 %v1476
        %1689 = vmatprep.subr.mxu0 %v1601
        %1690 = vmatpush2.msra.mxu0 %v1600
        %1691 = vmatprep.subr.mxu0 %v1597
        %1692 = vmatpush2.msra.mxu0 %v1596
        %1693 = vmatprep.subr.mxu0 %v1593
        %1694 = vmatpush2.msra.mxu0 %v1592
        %1695 = vmatprep.subr.mxu0 %v1589
        %1696 = vmatpush2.msra.mxu0 %v1588
        %1697 = vmatprep.subr.mxu0 %v1585
        %1698 = vmatpush2.msra.mxu0 %v1584
        %1699 = vmatprep.subr.mxu0 %v1581
        %1700 = vmatpush2.msra.mxu0 %v1580
        %1701 = vmatprep.subr.mxu0 %v1577
        %1702 = vmatpush2.msra.mxu0 %v1576
        %1703 = vmatprep.subr.mxu0 %v1573
        %1704 = vmatpush2.msra.mxu0 %v1572
        %1705 = vmatprep.subr.mxu0 %v1569
        %1706 = vmatpush2.msra.mxu0 %v1568
        %1707 = vmatprep.subr.mxu0 %v1565
        %1708 = vmatpush2.msra.mxu0 %v1564
        %1709 = vmatprep.subr.mxu0 %v1561
        %1710 = vmatpush2.msra.mxu0 %v1560
        %1711 = vmatprep.subr.mxu0 %v1557
        %1712 = vmatpush2.msra.mxu0 %v1556
        %1713 = vmatprep.subr.mxu0 %v1553
        %1714 = vmatpush2.msra.mxu0 %v1552
        %1715 = vmatprep.subr.mxu0 %v1549
        %1716 = vmatpush2.msra.mxu0 %v1548
        %1717 = vmatprep.subr.mxu0 %v1545
        %1718 = vmatpush2.msra.mxu0 %v1544
        %1719 = vmatprep.subr.mxu0 %v1541
        %1720 = vmatpush2.msra.mxu0 %v1540
        %1721 = vmatprep.mubr.f32.mxu0 %v1465
        %1722 = vmatmul.mubr.f32.gmra.mxu0 %v1464
        %v1723 = vpop.f32.mrf.mxu0
        %v1724 = vadd.f32 %v1627, %v1723
        %v1725 = vpop.f32.mrf.mxu0
        %v1726 = vadd.f32 %v1627, %v1725
        %1727 = vmatprep.mubr.f32.mxu0 %v1468
        %1728 = vmatmul.mubr.f32.gmra.mxu0 %v1467
        %v1729 = vpop.f32.mrf.mxu0
        %v1730 = vadd.f32 %v1632, %v1729
        %v1731 = vpop.f32.mrf.mxu0
        %v1732 = vadd.f32 %v1632, %v1731
        %1733 = vmatprep.mubr.f32.mxu0 %v1471
        %1734 = vmatmul.mubr.f32.gmra.mxu0 %v1470
        %v1735 = vpop.f32.mrf.mxu0
        %v1736 = vadd.f32 %v1637, %v1735
        %v1737 = vpop.f32.mrf.mxu0
        %v1738 = vadd.f32 %v1637, %v1737
        %1739 = vmatprep.mubr.f32.mxu0 %v1474
        %1740 = vmatmul.mubr.f32.gmra.mxu0 %v1473
        %v1741 = vpop.f32.mrf.mxu0
        %v1742 = vadd.f32 %v1642, %v1741
        %v1743 = vpop.f32.mrf.mxu0
        %v1744 = vadd.f32 %v1642, %v1743
        %1745 = vdwg.mxu0
        %1746 = vmatprep.subr.mxu0 0.0
        %1747 = vmatpush1.msra.mxu0 0.0
        %1748 = vmatprep.subr.mxu0 0.0
        %1749 = vmatpush1.msra.mxu0 0.0
        %1750 = vmatprep.subr.mxu0 0.0
        %1751 = vmatpush1.msra.mxu0 0.0
        %1752 = vmatprep.subr.mxu0 0.0
        %1753 = vmatpush1.msra.mxu0 0.0
        %1754 = vmatprep.subr.mxu0 0.0
        %1755 = vmatpush1.msra.mxu0 0.0
        %1756 = vmatprep.subr.mxu0 0.0
        %1757 = vmatpush1.msra.mxu0 0.0
        %1758 = vmatprep.subr.mxu0 0.0
        %1759 = vmatpush1.msra.mxu0 0.0
        %1760 = vmatprep.subr.mxu0 0.0
        %1761 = vmatpush1.msra.mxu0 0.0
        %1762 = vmatprep.subr.mxu0 0.0
        %1763 = vmatpush1.msra.mxu0 0.0
        %1764 = vmatprep.subr.mxu0 0.0
        %1765 = vmatpush1.msra.mxu0 0.0
        %1766 = vmatprep.subr.mxu0 0.0
        %1767 = vmatpush1.msra.mxu0 0.0
        %1768 = vmatprep.subr.mxu0 0.0
        %1769 = vmatpush1.msra.mxu0 0.0
        %1770 = vmatprep.subr.mxu0 %v1617
        %1771 = vmatpush1.msra.mxu0 %v1616
        %1772 = vmatprep.subr.mxu0 %v1613
        %1773 = vmatpush1.msra.mxu0 %v1612
        %1774 = vmatprep.subr.mxu0 %v1609
        %1775 = vmatpush1.msra.mxu0 %v1608
        %1776 = vmatprep.subr.mxu0 %v1605
        %1777 = vmatpush1.msra.mxu0 %v1604
        %1778 = vmatprep.subr.mxu0 0.0
        %1779 = vmatpush2.msra.mxu0 0.0
        %1780 = vmatprep.subr.mxu0 0.0
        %1781 = vmatpush2.msra.mxu0 0.0
        %1782 = vmatprep.subr.mxu0 0.0
        %1783 = vmatpush2.msra.mxu0 0.0
        %1784 = vmatprep.subr.mxu0 0.0
        %1785 = vmatpush2.msra.mxu0 0.0
        %1786 = vmatprep.subr.mxu0 0.0
        %1787 = vmatpush2.msra.mxu0 0.0
        %1788 = vmatprep.subr.mxu0 0.0
        %1789 = vmatpush2.msra.mxu0 0.0
        %1790 = vmatprep.subr.mxu0 0.0
        %1791 = vmatpush2.msra.mxu0 0.0
        %1792 = vmatprep.subr.mxu0 0.0
        %1793 = vmatpush2.msra.mxu0 0.0
        %1794 = vmatprep.subr.mxu0 0.0
        %1795 = vmatpush2.msra.mxu0 0.0
        %1796 = vmatprep.subr.mxu0 0.0
        %1797 = vmatpush2.msra.mxu0 0.0
        %1798 = vmatprep.subr.mxu0 0.0
        %1799 = vmatpush2.msra.mxu0 0.0
        %1800 = vmatprep.subr.mxu0 0.0
        %1801 = vmatpush2.msra.mxu0 0.0
        %1802 = vmatprep.subr.mxu0 0.0
        %1803 = vmatpush2.msra.mxu0 0.0
        %1804 = vmatprep.subr.mxu0 0.0
        %1805 = vmatpush2.msra.mxu0 0.0
        %1806 = vmatprep.subr.mxu0 0.0
        %1807 = vmatpush2.msra.mxu0 0.0
        %1808 = vmatprep.subr.mxu0 0.0
        %1809 = vmatpush2.msra.mxu0 0.0
        %1810 = vmatprep.mubr.f32.mxu0 0.0
        %1811 = vmatmul.mubr.f32.gmra.mxu0 %v1646
        %v1812 = vpop.f32.mrf.mxu0
        %v1813 = vadd.f32 %v1724, %v1812
        %v1814 = vpop.f32.mrf.mxu0
        %v1815 = vadd.f32 %v1726, %v1814
        %1816 = vmatprep.mubr.f32.mxu0 0.0
        %1817 = vmatmul.mubr.f32.gmra.mxu0 %v1649
        %v1818 = vpop.f32.mrf.mxu0
        %v1819 = vadd.f32 %v1730, %v1818
        %v1820 = vpop.f32.mrf.mxu0
        %v1821 = vadd.f32 %v1732, %v1820
        %1822 = vmatprep.mubr.f32.mxu0 0.0
        %1823 = vmatmul.mubr.f32.gmra.mxu0 %v1652
        %v1824 = vpop.f32.mrf.mxu0
        %v1825 = vadd.f32 %v1736, %v1824
        %v1826 = vpop.f32.mrf.mxu0
        %v1827 = vadd.f32 %v1738, %v1826
        %1828 = vmatprep.mubr.f32.mxu0 0.0
        %1829 = vmatmul.mubr.f32.gmra.mxu0 %v1655
        %v1830 = vpop.f32.mrf.mxu0
        %v1831 = vadd.f32 %v1742, %v1830
        %v1832 = vpop.f32.mrf.mxu0
        %v1833 = vadd.f32 %v1744, %v1832
        %1834 = vdwg.mxu0
        %1835 = vmatprep.subr.mxu0 %v1539
        %1836 = vmatpush1.msra.mxu0 %v1538
        %1837 = vmatprep.subr.mxu0 %v1535
        %1838 = vmatpush1.msra.mxu0 %v1534
        %1839 = vmatprep.subr.mxu0 %v1531
        %1840 = vmatpush1.msra.mxu0 %v1530
        %1841 = vmatprep.subr.mxu0 %v1527
        %1842 = vmatpush1.msra.mxu0 %v1526
        %1843 = vmatprep.subr.mxu0 %v1523
        %1844 = vmatpush1.msra.mxu0 %v1522
        %1845 = vmatprep.subr.mxu0 %v1519
        %1846 = vmatpush1.msra.mxu0 %v1518
        %1847 = vmatprep.subr.mxu0 %v1515
        %1848 = vmatpush1.msra.mxu0 %v1514
        %1849 = vmatprep.subr.mxu0 %v1511
        %1850 = vmatpush1.msra.mxu0 %v1510
        %1851 = vmatprep.subr.mxu0 %v1507
        %1852 = vmatpush1.msra.mxu0 %v1506
        %1853 = vmatprep.subr.mxu0 %v1503
        %1854 = vmatpush1.msra.mxu0 %v1502
        %1855 = vmatprep.subr.mxu0 %v1499
        %1856 = vmatpush1.msra.mxu0 %v1498
        %1857 = vmatprep.subr.mxu0 %v1495
        %1858 = vmatpush1.msra.mxu0 %v1494
        %1859 = vmatprep.subr.mxu0 %v1491
        %1860 = vmatpush1.msra.mxu0 %v1490
        %1861 = vmatprep.subr.mxu0 %v1487
        %1862 = vmatpush1.msra.mxu0 %v1486
        %1863 = vmatprep.subr.mxu0 %v1483
        %1864 = vmatpush1.msra.mxu0 %v1482
        %1865 = vmatprep.subr.mxu0 %v1479
        %1866 = vmatpush1.msra.mxu0 %v1478
        %1867 = vmatprep.subr.mxu0 %v1603
        %1868 = vmatpush2.msra.mxu0 %v1602
        %1869 = vmatprep.subr.mxu0 %v1599
        %1870 = vmatpush2.msra.mxu0 %v1598
        %1871 = vmatprep.subr.mxu0 %v1595
        %1872 = vmatpush2.msra.mxu0 %v1594
        %1873 = vmatprep.subr.mxu0 %v1591
        %1874 = vmatpush2.msra.mxu0 %v1590
        %1875 = vmatprep.subr.mxu0 %v1587
        %1876 = vmatpush2.msra.mxu0 %v1586
        %1877 = vmatprep.subr.mxu0 %v1583
        %1878 = vmatpush2.msra.mxu0 %v1582
        %1879 = vmatprep.subr.mxu0 %v1579
        %1880 = vmatpush2.msra.mxu0 %v1578
        %1881 = vmatprep.subr.mxu0 %v1575
        %1882 = vmatpush2.msra.mxu0 %v1574
        %1883 = vmatprep.subr.mxu0 %v1571
        %1884 = vmatpush2.msra.mxu0 %v1570
        %1885 = vmatprep.subr.mxu0 %v1567
        %1886 = vmatpush2.msra.mxu0 %v1566
        %1887 = vmatprep.subr.mxu0 %v1563
        %1888 = vmatpush2.msra.mxu0 %v1562
        %1889 = vmatprep.subr.mxu0 %v1559
        %1890 = vmatpush2.msra.mxu0 %v1558
        %1891 = vmatprep.subr.mxu0 %v1555
        %1892 = vmatpush2.msra.mxu0 %v1554
        %1893 = vmatprep.subr.mxu0 %v1551
        %1894 = vmatpush2.msra.mxu0 %v1550
        %1895 = vmatprep.subr.mxu0 %v1547
        %1896 = vmatpush2.msra.mxu0 %v1546
        %1897 = vmatprep.subr.mxu0 %v1543
        %1898 = vmatpush2.msra.mxu0 %v1542
        %1899 = vmatprep.mubr.f32.mxu0 %v1465
        %1900 = vmatmul.mubr.f32.gmra.mxu0 %v1464
        %v1901 = vpop.f32.mrf.mxu0
        %v1902 = vadd.f32 %v1627, %v1901
        %v1903 = vpop.f32.mrf.mxu0
        %v1904 = vadd.f32 %v1627, %v1903
        %1905 = vmatprep.mubr.f32.mxu0 %v1468
        %1906 = vmatmul.mubr.f32.gmra.mxu0 %v1467
        %v1907 = vpop.f32.mrf.mxu0
        %v1908 = vadd.f32 %v1632, %v1907
        %v1909 = vpop.f32.mrf.mxu0
        %v1910 = vadd.f32 %v1632, %v1909
        %1911 = vmatprep.mubr.f32.mxu0 %v1471
        %1912 = vmatmul.mubr.f32.gmra.mxu0 %v1470
        %v1913 = vpop.f32.mrf.mxu0
        %v1914 = vadd.f32 %v1637, %v1913
        %v1915 = vpop.f32.mrf.mxu0
        %v1916 = vadd.f32 %v1637, %v1915
        %1917 = vmatprep.mubr.f32.mxu0 %v1474
        %1918 = vmatmul.mubr.f32.gmra.mxu0 %v1473
        %v1919 = vpop.f32.mrf.mxu0
        %v1920 = vadd.f32 %v1642, %v1919
        %v1921 = vpop.f32.mrf.mxu0
        %v1922 = vadd.f32 %v1642, %v1921
        %1923 = vdwg.mxu0
        %1924 = vmatprep.subr.mxu0 0.0
        %1925 = vmatpush1.msra.mxu0 0.0
        %1926 = vmatprep.subr.mxu0 0.0
        %1927 = vmatpush1.msra.mxu0 0.0
        %1928 = vmatprep.subr.mxu0 0.0
        %1929 = vmatpush1.msra.mxu0 0.0
        %1930 = vmatprep.subr.mxu0 0.0
        %1931 = vmatpush1.msra.mxu0 0.0
        %1932 = vmatprep.subr.mxu0 0.0
        %1933 = vmatpush1.msra.mxu0 0.0
        %1934 = vmatprep.subr.mxu0 0.0
        %1935 = vmatpush1.msra.mxu0 0.0
        %1936 = vmatprep.subr.mxu0 0.0
        %1937 = vmatpush1.msra.mxu0 0.0
        %1938 = vmatprep.subr.mxu0 0.0
        %1939 = vmatpush1.msra.mxu0 0.0
        %1940 = vmatprep.subr.mxu0 0.0
        %1941 = vmatpush1.msra.mxu0 0.0
        %1942 = vmatprep.subr.mxu0 0.0
        %1943 = vmatpush1.msra.mxu0 0.0
        %1944 = vmatprep.subr.mxu0 0.0
        %1945 = vmatpush1.msra.mxu0 0.0
        %1946 = vmatprep.subr.mxu0 0.0
        %1947 = vmatpush1.msra.mxu0 0.0
        %1948 = vmatprep.subr.mxu0 %v1619
        %1949 = vmatpush1.msra.mxu0 %v1618
        %1950 = vmatprep.subr.mxu0 %v1615
        %1951 = vmatpush1.msra.mxu0 %v1614
        %1952 = vmatprep.subr.mxu0 %v1611
        %1953 = vmatpush1.msra.mxu0 %v1610
        %1954 = vmatprep.subr.mxu0 %v1607
        %1955 = vmatpush1.msra.mxu0 %v1606
        %1956 = vmatprep.subr.mxu0 0.0
        %1957 = vmatpush2.msra.mxu0 0.0
        %1958 = vmatprep.subr.mxu0 0.0
        %1959 = vmatpush2.msra.mxu0 0.0
        %1960 = vmatprep.subr.mxu0 0.0
        %1961 = vmatpush2.msra.mxu0 0.0
        %1962 = vmatprep.subr.mxu0 0.0
        %1963 = vmatpush2.msra.mxu0 0.0
        %1964 = vmatprep.subr.mxu0 0.0
        %1965 = vmatpush2.msra.mxu0 0.0
        %1966 = vmatprep.subr.mxu0 0.0
        %1967 = vmatpush2.msra.mxu0 0.0
        %1968 = vmatprep.subr.mxu0 0.0
        %1969 = vmatpush2.msra.mxu0 0.0
        %1970 = vmatprep.subr.mxu0 0.0
        %1971 = vmatpush2.msra.mxu0 0.0
        %1972 = vmatprep.subr.mxu0 0.0
        %1973 = vmatpush2.msra.mxu0 0.0
        %1974 = vmatprep.subr.mxu0 0.0
        %1975 = vmatpush2.msra.mxu0 0.0
        %1976 = vmatprep.subr.mxu0 0.0
        %1977 = vmatpush2.msra.mxu0 0.0
        %1978 = vmatprep.subr.mxu0 0.0
        %1979 = vmatpush2.msra.mxu0 0.0
        %1980 = vmatprep.subr.mxu0 0.0
        %1981 = vmatpush2.msra.mxu0 0.0
        %1982 = vmatprep.subr.mxu0 0.0
        %1983 = vmatpush2.msra.mxu0 0.0
        %1984 = vmatprep.subr.mxu0 0.0
        %1985 = vmatpush2.msra.mxu0 0.0
        %1986 = vmatprep.subr.mxu0 0.0
        %1987 = vmatpush2.msra.mxu0 0.0
        %1988 = vmatprep.mubr.f32.mxu0 0.0
        %1989 = vmatmul.mubr.f32.gmra.mxu0 %v1646
        %v1990 = vpop.f32.mrf.mxu0
        %v1991 = vadd.f32 %v1902, %v1990
        %v1992 = vpop.f32.mrf.mxu0
        %v1993 = vadd.f32 %v1904, %v1992
        %1994 = vmatprep.mubr.f32.mxu0 0.0
        %1995 = vmatmul.mubr.f32.gmra.mxu0 %v1649
        %v1996 = vpop.f32.mrf.mxu0
        %v1997 = vadd.f32 %v1908, %v1996
        %v1998 = vpop.f32.mrf.mxu0
        %v1999 = vadd.f32 %v1910, %v1998
        %2000 = vmatprep.mubr.f32.mxu0 0.0
        %2001 = vmatmul.mubr.f32.gmra.mxu0 %v1652
        %v2002 = vpop.f32.mrf.mxu0
        %v2003 = vadd.f32 %v1914, %v2002
        %v2004 = vpop.f32.mrf.mxu0
        %v2005 = vadd.f32 %v1916, %v2004
        %2006 = vmatprep.mubr.f32.mxu0 0.0
        %2007 = vmatmul.mubr.f32.gmra.mxu0 %v1655
        %v2008 = vpop.f32.mrf.mxu0
        %v2009 = vadd.f32 %v1920, %v2008
        %v2010 = vpop.f32.mrf.mxu0
        %v2011 = vadd.f32 %v1922, %v2010
        %2012 = vdwg.mxu0
        %v2013 = vadd.f32 %v1813, %v1819
        %v2014 = vadd.f32 %v2013, %v1825
        %v2015 = vadd.f32 %v2014, %v1831
        %v2016 = vrot.slane %v2015, 4
        %v2017 = vadd.f32 %v2015, %v2016
        %v2018 = vrot.slane %v2017, 2
        %v2019 = vadd.f32 %v2017, %v2018
        %v2020 = vrot.slane %v2019, 1
        %v2021 = vadd.f32 %v2019, %v2020
        %v2022 = vadd.f32 %v1815, %v1821
        %v2023 = vadd.f32 %v2022, %v1827
        %v2024 = vadd.f32 %v2023, %v1833
        %v2025 = vrot.slane %v2024, 4
        %v2026 = vadd.f32 %v2024, %v2025
        %v2027 = vrot.slane %v2026, 2
        %v2028 = vadd.f32 %v2026, %v2027
        %v2029 = vrot.slane %v2028, 1
        %v2030 = vadd.f32 %v2028, %v2029
        %v2031 = vadd.f32 %v1991, %v1997
        %v2032 = vadd.f32 %v2031, %v2003
        %v2033 = vadd.f32 %v2032, %v2009
        %v2034 = vrot.slane %v2033, 4
        %v2035 = vadd.f32 %v2033, %v2034
        %v2036 = vrot.slane %v2035, 2
        %v2037 = vadd.f32 %v2035, %v2036
        %v2038 = vrot.slane %v2037, 1
        %v2039 = vadd.f32 %v2037, %v2038
        %v2040 = vadd.f32 %v1993, %v1999
        %v2041 = vadd.f32 %v2040, %v2005
        %v2042 = vadd.f32 %v2041, %v2011
        %v2043 = vrot.slane %v2042, 4
        %v2044 = vadd.f32 %v2042, %v2043
        %v2045 = vrot.slane %v2044, 2
        %v2046 = vadd.f32 %v2044, %v2045
        %v2047 = vrot.slane %v2046, 1
        %v2048 = vadd.f32 %v2046, %v2047
        %v2049 = vmul.f32 %v1813, %v1813
        %v2050 = vmul.f32 %v1815, %v1815
        %v2051 = vmul.f32 %v1991, %v1991
        %v2052 = vmul.f32 %v1993, %v1993
        %v2053 = vmul.f32 %v1819, %v1819
        %v2054 = vmul.f32 %v1821, %v1821
        %v2055 = vmul.f32 %v1997, %v1997
        %v2056 = vmul.f32 %v1999, %v1999
        %v2057 = vmul.f32 %v1825, %v1825
        %v2058 = vmul.f32 %v1827, %v1827
        %v2059 = vmul.f32 %v2003, %v2003
        %v2060 = vmul.f32 %v2005, %v2005
        %v2061 = vmul.f32 %v1831, %v1831
        %v2062 = vmul.f32 %v1833, %v1833
        %v2063 = vmul.f32 %v2009, %v2009
        %v2064 = vmul.f32 %v2011, %v2011
        %v2065 = vadd.f32 %v2049, %v2053
        %v2066 = vadd.f32 %v2065, %v2057
        %v2067 = vadd.f32 %v2066, %v2061
        %v2068 = vrot.slane %v2067, 4
        %v2069 = vadd.f32 %v2067, %v2068
        %v2070 = vrot.slane %v2069, 2
        %v2071 = vadd.f32 %v2069, %v2070
        %v2072 = vrot.slane %v2071, 1
        %v2073 = vadd.f32 %v2071, %v2072
        %v2074 = vadd.f32 %v2050, %v2054
        %v2075 = vadd.f32 %v2074, %v2058
        %v2076 = vadd.f32 %v2075, %v2062
        %v2077 = vrot.slane %v2076, 4
        %v2078 = vadd.f32 %v2076, %v2077
        %v2079 = vrot.slane %v2078, 2
        %v2080 = vadd.f32 %v2078, %v2079
        %v2081 = vrot.slane %v2080, 1
        %v2082 = vadd.f32 %v2080, %v2081
        %v2083 = vadd.f32 %v2051, %v2055
        %v2084 = vadd.f32 %v2083, %v2059
        %v2085 = vadd.f32 %v2084, %v2063
        %v2086 = vrot.slane %v2085, 4
        %v2087 = vadd.f32 %v2085, %v2086
        %v2088 = vrot.slane %v2087, 2
        %v2089 = vadd.f32 %v2087, %v2088
        %v2090 = vrot.slane %v2089, 1
        %v2091 = vadd.f32 %v2089, %v2090
        %v2092 = vadd.f32 %v2052, %v2056
        %v2093 = vadd.f32 %v2092, %v2060
        %v2094 = vadd.f32 %v2093, %v2064
        %v2095 = vrot.slane %v2094, 4
        %v2096 = vadd.f32 %v2094, %v2095
        %v2097 = vrot.slane %v2096, 2
        %v2098 = vadd.f32 %v2096, %v2097
        %v2099 = vrot.slane %v2098, 1
        %v2100 = vadd.f32 %v2098, %v2099
        %v2101 = vld [vmem:[%s9] sm:$0xf]
        %v2103 = vlaneseq
        %v2104 = vshrl.u32 %v2103, 7
        %v2105 = vsub.s32 0, %v2104
        %v2106 = vrot.slane %v2101, %v2105
        %v2107 = vlaneseq
        %v2108 = vshrl.u32 %v2107, 7
        %v2109 = vsub.s32 1, %v2108
        %v2110 = vrot.slane %v2101, %v2109
        %v2111 = vlaneseq
        %v2112 = vshrl.u32 %v2111, 7
        %v2113 = vsub.s32 2, %v2112
        %v2114 = vrot.slane %v2101, %v2113
        %v2115 = vlaneseq
        %v2116 = vshrl.u32 %v2115, 7
        %v2117 = vsub.s32 3, %v2116
        %v2118 = vrot.slane %v2101, %v2117
        %v2123 = vmul.f32 %v2021, %v2106
        %v2124 = vmul.f32 %v2030, %v2110
        %v2125 = vmul.f32 %v2039, %v2114
        %v2126 = vmul.f32 %v2048, %v2118
        %vm2127 = vcmask 1040384
        %v2128 = vsel %vm2127, %v2123, 0.0
        %v2129 = vsel %vm2127, %v2124, 0.0
        %v2130 = vadd.f32 %v2128, %v2129
        %v2131 = vsel %vm2127, %v2125, 0.0
        %v2132 = vadd.f32 %v2130, %v2131
        %v2133 = vsel %vm2127, %v2126, 0.0
        %v2134 = vadd.f32 %v2132, %v2133
        %2135 = vadd.xlane.f32.xlu0 %v2134
        %v2136 = vpop.xlane.xlu0 %2135
        %v2137 = vrot.slane %v2136, 4
        %v2138 = vadd.f32 %v2136, %v2137
        %v2139 = vrot.slane %v2138, 2
        %v2140 = vadd.f32 %v2138, %v2139
        %v2141 = vrot.slane %v2140, 1
        %v2142 = vadd.f32 %v2140, %v2141
        %s2143 = vtos %v2142
        %v2144 = vstv %s2143
        %v2145 = vmul.f32 %v2144, 0.00012207031
        %v2146 = vmul.f32 %v2145, %v2101
        %v2147 = vadd.f32 %v2146, 0.0
        %v2148 = vld [vmem:[%s476] sm:$0xf]
        %v2150 = vlaneseq
        %v2151 = vshrl.u32 %v2150, 7
        %v2152 = vsub.s32 0, %v2151
        %v2153 = vrot.slane %v2148, %v2152
        %v2154 = vlaneseq
        %v2155 = vshrl.u32 %v2154, 7
        %v2156 = vsub.s32 1, %v2155
        %v2157 = vrot.slane %v2148, %v2156
        %v2158 = vlaneseq
        %v2159 = vshrl.u32 %v2158, 7
        %v2160 = vsub.s32 2, %v2159
        %v2161 = vrot.slane %v2148, %v2160
        %v2162 = vlaneseq
        %v2163 = vshrl.u32 %v2162, 7
        %v2164 = vsub.s32 3, %v2163
        %v2165 = vrot.slane %v2148, %v2164
        %v2170 = vmul.f32 %v2021, %v2153
        %v2171 = vmul.f32 %v2030, %v2157
        %v2172 = vmul.f32 %v2039, %v2161
        %v2173 = vmul.f32 %v2048, %v2165
        %v2174 = vsel %vm2127, %v2170, 0.0
        %v2175 = vsel %vm2127, %v2171, 0.0
        %v2176 = vadd.f32 %v2174, %v2175
        %v2177 = vsel %vm2127, %v2172, 0.0
        %v2178 = vadd.f32 %v2176, %v2177
        %v2179 = vsel %vm2127, %v2173, 0.0
        %v2180 = vadd.f32 %v2178, %v2179
        %2181 = vadd.xlane.f32.xlu0 %v2180
        %v2182 = vpop.xlane.xlu0 %2181
        %v2183 = vrot.slane %v2182, 4
        %v2184 = vadd.f32 %v2182, %v2183
        %v2185 = vrot.slane %v2184, 2
        %v2186 = vadd.f32 %v2184, %v2185
        %v2187 = vrot.slane %v2186, 1
        %v2188 = vadd.f32 %v2186, %v2187
        %s2189 = vtos %v2188
        %v2190 = vstv %s2189
        %v2191 = vmul.f32 %v2190, 0.00012207031
        %v2192 = vmul.f32 %v2191, %v2148
        %v2193 = vadd.f32 %v2147, %v2192
        %v2194 = vmul.f32 %v2073, %v2106
        %v2195 = vmul.f32 %v2082, %v2110
        %v2196 = vmul.f32 %v2091, %v2114
        %v2197 = vmul.f32 %v2100, %v2118
        %v2198 = vsel %vm2127, %v2194, 0.0
        %v2199 = vsel %vm2127, %v2195, 0.0
        %v2200 = vadd.f32 %v2198, %v2199
        %v2201 = vsel %vm2127, %v2196, 0.0
        %v2202 = vadd.f32 %v2200, %v2201
        %v2203 = vsel %vm2127, %v2197, 0.0
        %v2204 = vadd.f32 %v2202, %v2203
        %2205 = vadd.xlane.f32.xlu0 %v2204
        %v2206 = vpop.xlane.xlu0 %2205
        %v2207 = vrot.slane %v2206, 4
        %v2208 = vadd.f32 %v2206, %v2207
        %v2209 = vrot.slane %v2208, 2
        %v2210 = vadd.f32 %v2208, %v2209
        %v2211 = vrot.slane %v2210, 1
        %v2212 = vadd.f32 %v2210, %v2211
        %s2213 = vtos %v2212
        %v2214 = vstv %s2213
        %v2215 = vmul.f32 %v2214, 0.00012207031
        %v2216 = vmul.f32 %v2215, %v2101
        %v2217 = vadd.f32 %v2216, 0.0
        %v2218 = vmul.f32 %v2073, %v2153
        %v2219 = vmul.f32 %v2082, %v2157
        %v2220 = vmul.f32 %v2091, %v2161
        %v2221 = vmul.f32 %v2100, %v2165
        %v2222 = vsel %vm2127, %v2218, 0.0
        %v2223 = vsel %vm2127, %v2219, 0.0
        %v2224 = vadd.f32 %v2222, %v2223
        %v2225 = vsel %vm2127, %v2220, 0.0
        %v2226 = vadd.f32 %v2224, %v2225
        %v2227 = vsel %vm2127, %v2221, 0.0
        %v2228 = vadd.f32 %v2226, %v2227
        %2229 = vadd.xlane.f32.xlu0 %v2228
        %v2230 = vpop.xlane.xlu0 %2229
        %v2231 = vrot.slane %v2230, 4
        %v2232 = vadd.f32 %v2230, %v2231
        %v2233 = vrot.slane %v2232, 2
        %v2234 = vadd.f32 %v2232, %v2233
        %v2235 = vrot.slane %v2234, 1
        %v2236 = vadd.f32 %v2234, %v2235
        %s2237 = vtos %v2236
        %v2238 = vstv %s2237
        %v2239 = vmul.f32 %v2238, 0.00012207031
        %v2240 = vmul.f32 %v2239, %v2148
        %v2241 = vadd.f32 %v2217, %v2240
        %v2242 = vmul.f32 %v2193, %v2193
        %v2243 = vsub.f32 %v2241, %v2242
        %v2244 = vld [vmem:[%s5] sm:$0xff]
        %v2245 = vld [vmem:[%s5 + $0x8] sm:$0xff]
        %v2246 = vld [vmem:[%s5 + $0x10] sm:$0xff]
        %v2247 = vld [vmem:[%s5 + $0x18] sm:$0xff]
        %v2248 = vadd.f32 %v2243, 1e-05
        %v2249 = vrsqrt.pop %v2248
        %2251 = vset.pattern.permute.xlu0 0
        %2252 = vperm.xlu0 %2251, %v2244
        %v2253 = vpop.permute.xlu0 %2252
        %2256 = vset.pattern.permute.xlu0 0
        %2257 = vperm.xlu0 %2256, %v2245
        %v2258 = vpop.permute.xlu0 %2257
        %2261 = vset.pattern.permute.xlu0 0
        %2262 = vperm.xlu0 %2261, %v2246
        %v2263 = vpop.permute.xlu0 %2262
        %2266 = vset.pattern.permute.xlu0 0
        %2267 = vperm.xlu0 %2266, %v2247
        %v2268 = vpop.permute.xlu0 %2267
        %v2271 = vlaneseq
        %v2272 = vshrl.u32 %v2271, 7
        %v2273 = vsub.s32 0, %v2272
        %v2274 = vrot.slane %v2249, %v2273
        %v2275 = vlaneseq
        %v2276 = vshrl.u32 %v2275, 7
        %v2277 = vsub.s32 1, %v2276
        %v2278 = vrot.slane %v2249, %v2277
        %v2279 = vlaneseq
        %v2280 = vshrl.u32 %v2279, 7
        %v2281 = vsub.s32 2, %v2280
        %v2282 = vrot.slane %v2249, %v2281
        %v2283 = vlaneseq
        %v2284 = vshrl.u32 %v2283, 7
        %v2285 = vsub.s32 3, %v2284
        %v2286 = vrot.slane %v2249, %v2285
        %v2291 = vmul.f32 %v2253, %v2274
        %v2292 = vmul.f32 %v2253, %v2278
        %v2293 = vmul.f32 %v2253, %v2282
        %v2294 = vmul.f32 %v2253, %v2286
        %v2295 = vmul.f32 %v2258, %v2274
        %v2296 = vmul.f32 %v2258, %v2278
        %v2297 = vmul.f32 %v2258, %v2282
        %v2298 = vmul.f32 %v2258, %v2286
        %v2299 = vmul.f32 %v2263, %v2274
        %v2300 = vmul.f32 %v2263, %v2278
        %v2301 = vmul.f32 %v2263, %v2282
        %v2302 = vmul.f32 %v2263, %v2286
        %v2303 = vmul.f32 %v2268, %v2274
        %v2304 = vmul.f32 %v2268, %v2278
        %v2305 = vmul.f32 %v2268, %v2282
        %v2306 = vmul.f32 %v2268, %v2286
        %v2308 = vlaneseq
        %v2309 = vshrl.u32 %v2308, 7
        %v2310 = vsub.s32 0, %v2309
        %v2311 = vrot.slane %v2193, %v2310
        %v2312 = vlaneseq
        %v2313 = vshrl.u32 %v2312, 7
        %v2314 = vsub.s32 1, %v2313
        %v2315 = vrot.slane %v2193, %v2314
        %v2316 = vlaneseq
        %v2317 = vshrl.u32 %v2316, 7
        %v2318 = vsub.s32 2, %v2317
        %v2319 = vrot.slane %v2193, %v2318
        %v2320 = vlaneseq
        %v2321 = vshrl.u32 %v2320, 7
        %v2322 = vsub.s32 3, %v2321
        %v2323 = vrot.slane %v2193, %v2322
        %v2328 = vsub.f32 %v1813, %v2311
        %v2329 = vsub.f32 %v1815, %v2315
        %v2330 = vsub.f32 %v1991, %v2319
        %v2331 = vsub.f32 %v1993, %v2323
        %v2332 = vsub.f32 %v1819, %v2311
        %v2333 = vsub.f32 %v1821, %v2315
        %v2334 = vsub.f32 %v1997, %v2319
        %v2335 = vsub.f32 %v1999, %v2323
        %v2336 = vsub.f32 %v1825, %v2311
        %v2337 = vsub.f32 %v1827, %v2315
        %v2338 = vsub.f32 %v2003, %v2319
        %v2339 = vsub.f32 %v2005, %v2323
        %v2340 = vsub.f32 %v1831, %v2311
        %v2341 = vsub.f32 %v1833, %v2315
        %v2342 = vsub.f32 %v2009, %v2319
        %v2343 = vsub.f32 %v2011, %v2323
        %v2344 = vmul.f32 %v2328, %v2291
        %v2345 = vmul.f32 %v2329, %v2292
        %v2346 = vmul.f32 %v2330, %v2293
        %v2347 = vmul.f32 %v2331, %v2294
        %v2348 = vmul.f32 %v2332, %v2295
        %v2349 = vmul.f32 %v2333, %v2296
        %v2350 = vmul.f32 %v2334, %v2297
        %v2351 = vmul.f32 %v2335, %v2298
        %v2352 = vmul.f32 %v2336, %v2299
        %v2353 = vmul.f32 %v2337, %v2300
        %v2354 = vmul.f32 %v2338, %v2301
        %v2355 = vmul.f32 %v2339, %v2302
        %v2356 = vmul.f32 %v2340, %v2303
        %v2357 = vmul.f32 %v2341, %v2304
        %v2358 = vmul.f32 %v2342, %v2305
        %v2359 = vmul.f32 %v2343, %v2306
        %v2360 = vld [vmem:[%s6] sm:$0xff]
        %v2361 = vld [vmem:[%s6 + $0x8] sm:$0xff]
        %v2362 = vld [vmem:[%s6 + $0x10] sm:$0xff]
        %v2363 = vld [vmem:[%s6 + $0x18] sm:$0xff]
        %2365 = vset.pattern.permute.xlu0 0
        %2366 = vperm.xlu0 %2365, %v2360
        %v2367 = vpop.permute.xlu0 %2366
        %2370 = vset.pattern.permute.xlu0 0
        %2371 = vperm.xlu0 %2370, %v2361
        %v2372 = vpop.permute.xlu0 %2371
        %2375 = vset.pattern.permute.xlu0 0
        %2376 = vperm.xlu0 %2375, %v2362
        %v2377 = vpop.permute.xlu0 %2376
        %2380 = vset.pattern.permute.xlu0 0
        %2381 = vperm.xlu0 %2380, %v2363
        %v2382 = vpop.permute.xlu0 %2381
        %v2384 = vadd.f32 %v2344, %v2367
        %v2385 = vadd.f32 %v2345, %v2367
        %v2386 = vadd.f32 %v2346, %v2367
        %v2387 = vadd.f32 %v2347, %v2367
        %v2388 = vadd.f32 %v2348, %v2372
        %v2389 = vadd.f32 %v2349, %v2372
        %v2390 = vadd.f32 %v2350, %v2372
        %v2391 = vadd.f32 %v2351, %v2372
        %v2392 = vadd.f32 %v2352, %v2377
        %v2393 = vadd.f32 %v2353, %v2377
        %v2394 = vadd.f32 %v2354, %v2377
        %v2395 = vadd.f32 %v2355, %v2377
        %v2396 = vadd.f32 %v2356, %v2382
        %v2397 = vadd.f32 %v2357, %v2382
        %v2398 = vadd.f32 %v2358, %v2382
        %v2399 = vadd.f32 %v2359, %v2382
        %v2400 = vmax.f32 %v2384, 0.0
        %v2401 = vmax.f32 %v2385, 0.0
        %v2402 = vmax.f32 %v2386, 0.0
        %v2403 = vmax.f32 %v2387, 0.0
        %v2404 = vmax.f32 %v2388, 0.0
        %v2405 = vmax.f32 %v2389, 0.0
        %v2406 = vmax.f32 %v2390, 0.0
        %v2407 = vmax.f32 %v2391, 0.0
        %v2408 = vmax.f32 %v2392, 0.0
        %v2409 = vmax.f32 %v2393, 0.0
        %v2410 = vmax.f32 %v2394, 0.0
        %v2411 = vmax.f32 %v2395, 0.0
        %v2412 = vmax.f32 %v2396, 0.0
        %v2413 = vmax.f32 %v2397, 0.0
        %v2414 = vmax.f32 %v2398, 0.0
        %v2415 = vmax.f32 %v2399, 0.0
        %2416 = vrot.lane.b32.xlu0 %v2400, 17
        %v2417 = vpop.permute.xlu0 %2416
        %2418 = vrot.lane.b32.xlu0 %v2404, 17
        %v2419 = vpop.permute.xlu0 %2418
        %2420 = vrot.lane.b32.xlu0 %v2408, 17
        %v2421 = vpop.permute.xlu0 %2420
        %2422 = vrot.lane.b32.xlu0 %v2412, 17
        %v2423 = vpop.permute.xlu0 %2422
        %2424 = vrot.lane.b32.xlu0 %v2401, 17
        %v2425 = vpop.permute.xlu0 %2424
        %2426 = vrot.lane.b32.xlu0 %v2405, 17
        %v2427 = vpop.permute.xlu0 %2426
        %2428 = vrot.lane.b32.xlu0 %v2409, 17
        %v2429 = vpop.permute.xlu0 %2428
        %2430 = vrot.lane.b32.xlu0 %v2413, 17
        %v2431 = vpop.permute.xlu0 %2430
        %2432 = vrot.lane.b32.xlu0 %v2402, 17
        %v2433 = vpop.permute.xlu0 %2432
        %2434 = vrot.lane.b32.xlu0 %v2406, 17
        %v2435 = vpop.permute.xlu0 %2434
        %2436 = vrot.lane.b32.xlu0 %v2410, 17
        %v2437 = vpop.permute.xlu0 %2436
        %2438 = vrot.lane.b32.xlu0 %v2414, 17
        %v2439 = vpop.permute.xlu0 %2438
        %2440 = vrot.lane.b32.xlu0 %v2403, 17
        %v2441 = vpop.permute.xlu0 %2440
        %2442 = vrot.lane.b32.xlu0 %v2407, 17
        %v2443 = vpop.permute.xlu0 %2442
        %2444 = vrot.lane.b32.xlu0 %v2411, 17
        %v2445 = vpop.permute.xlu0 %2444
        %2446 = vrot.lane.b32.xlu0 %v2415, 17
        %v2447 = vpop.permute.xlu0 %2446
        %v2448 = vsel %vm649, %v2433, %v2441
        %v2449 = vsel %vm649, %v2435, %v2443
        %v2450 = vsel %vm649, %v2437, %v2445
        %v2451 = vsel %vm649, %v2439, %v2447
        %v2452 = vsel %vm649, %v2425, %v2433
        %v2453 = vsel %vm649, %v2427, %v2435
        %v2454 = vsel %vm649, %v2429, %v2437
        %v2455 = vsel %vm649, %v2431, %v2439
        %v2456 = vsel %vm649, %v2417, %v2425
        %v2457 = vsel %vm649, %v2419, %v2427
        %v2458 = vsel %vm649, %v2421, %v2429
        %v2459 = vsel %vm649, %v2423, %v2431
        %v2460 = vsel %vm649, %v2441, %v2417
        %v2461 = vsel %vm649, %v2443, %v2419
        %v2462 = vsel %vm649, %v2445, %v2421
        %v2463 = vsel %vm649, %v2447, %v2423
        %v2464 = vld [vmem:[%s2] sm:$0xf]
        %v2466 = vlaneseq
        %v2467 = vshrl.u32 %v2466, 7
        %v2468 = vsub.s32 0, %v2467
        %v2469 = vrot.slane %v2464, %v2468
        %v2470 = vlaneseq
        %v2471 = vshrl.u32 %v2470, 7
        %v2472 = vsub.s32 1, %v2471
        %v2473 = vrot.slane %v2464, %v2472
        %v2474 = vlaneseq
        %v2475 = vshrl.u32 %v2474, 7
        %v2476 = vsub.s32 2, %v2475
        %v2477 = vrot.slane %v2464, %v2476
        %v2478 = vlaneseq
        %v2479 = vshrl.u32 %v2478, 7
        %v2480 = vsub.s32 3, %v2479
        %v2481 = vrot.slane %v2464, %v2480
        %v2486 = vmul.f32 %v2460, %v2469
        %v2487 = vmul.f32 %v2456, %v2473
        %v2488 = vmul.f32 %v2452, %v2477
        %v2489 = vmul.f32 %v2448, %v2481
        %v2490 = vmul.f32 %v2461, %v2469
        %v2491 = vmul.f32 %v2457, %v2473
        %v2492 = vmul.f32 %v2453, %v2477
        %v2493 = vmul.f32 %v2449, %v2481
        %v2494 = vmul.f32 %v2462, %v2469
        %v2495 = vmul.f32 %v2458, %v2473
        %v2496 = vmul.f32 %v2454, %v2477
        %v2497 = vmul.f32 %v2450, %v2481
        %v2498 = vmul.f32 %v2463, %v2469
        %v2499 = vmul.f32 %v2459, %v2473
        %v2500 = vmul.f32 %v2455, %v2477
        %v2501 = vmul.f32 %v2451, %v2481
        %2502 = vst [vmem:[#allocation2] sm:$0xff] %v2486
        %2503 = vst [vmem:[#allocation2 + $0x8] sm:$0xff] %v2487
        %2504 = vst [vmem:[#allocation2 + $0x10] sm:$0xff] %v2488
        %2505 = vst [vmem:[#allocation2 + $0x18] sm:$0xff] %v2489
        %2506 = vst [vmem:[#allocation2 + $0x20] sm:$0xff] %v2490
        %2507 = vst [vmem:[#allocation2 + $0x28] sm:$0xff] %v2491
        %2508 = vst [vmem:[#allocation2 + $0x30] sm:$0xff] %v2492
        %2509 = vst [vmem:[#allocation2 + $0x38] sm:$0xff] %v2493
        %2510 = vst [vmem:[#allocation2 + $0x40] sm:$0xff] %v2494
        %2511 = vst [vmem:[#allocation2 + $0x48] sm:$0xff] %v2495
        %2512 = vst [vmem:[#allocation2 + $0x50] sm:$0xff] %v2496
        %2513 = vst [vmem:[#allocation2 + $0x58] sm:$0xff] %v2497
        %2514 = vst [vmem:[#allocation2 + $0x60] sm:$0xff] %v2498
        %2515 = vst [vmem:[#allocation2 + $0x68] sm:$0xff] %v2499
        %2516 = vst [vmem:[#allocation2 + $0x70] sm:$0xff] %v2500
        %2517 = vst [vmem:[#allocation2 + $0x78] sm:$0xff] %v2501
        %2518 = vrot.lane.b32.xlu0 %v2400, 16
        %v2519 = vpop.permute.xlu0 %2518
        %2520 = vrot.lane.b32.xlu0 %v2404, 16
        %v2521 = vpop.permute.xlu0 %2520
        %2522 = vrot.lane.b32.xlu0 %v2408, 16
        %v2523 = vpop.permute.xlu0 %2522
        %2524 = vrot.lane.b32.xlu0 %v2412, 16
        %v2525 = vpop.permute.xlu0 %2524
        %2526 = vrot.lane.b32.xlu0 %v2401, 16
        %v2527 = vpop.permute.xlu0 %2526
        %2528 = vrot.lane.b32.xlu0 %v2405, 16
        %v2529 = vpop.permute.xlu0 %2528
        %2530 = vrot.lane.b32.xlu0 %v2409, 16
        %v2531 = vpop.permute.xlu0 %2530
        %2532 = vrot.lane.b32.xlu0 %v2413, 16
        %v2533 = vpop.permute.xlu0 %2532
        %2534 = vrot.lane.b32.xlu0 %v2402, 16
        %v2535 = vpop.permute.xlu0 %2534
        %2536 = vrot.lane.b32.xlu0 %v2406, 16
        %v2537 = vpop.permute.xlu0 %2536
        %2538 = vrot.lane.b32.xlu0 %v2410, 16
        %v2539 = vpop.permute.xlu0 %2538
        %2540 = vrot.lane.b32.xlu0 %v2414, 16
        %v2541 = vpop.permute.xlu0 %2540
        %2542 = vrot.lane.b32.xlu0 %v2403, 16
        %v2543 = vpop.permute.xlu0 %2542
        %2544 = vrot.lane.b32.xlu0 %v2407, 16
        %v2545 = vpop.permute.xlu0 %2544
        %2546 = vrot.lane.b32.xlu0 %v2411, 16
        %v2547 = vpop.permute.xlu0 %2546
        %2548 = vrot.lane.b32.xlu0 %v2415, 16
        %v2549 = vpop.permute.xlu0 %2548
        %v2550 = vsel %vm752, %v2535, %v2543
        %v2551 = vsel %vm752, %v2537, %v2545
        %v2552 = vsel %vm752, %v2539, %v2547
        %v2553 = vsel %vm752, %v2541, %v2549
        %v2554 = vsel %vm752, %v2527, %v2535
        %v2555 = vsel %vm752, %v2529, %v2537
        %v2556 = vsel %vm752, %v2531, %v2539
        %v2557 = vsel %vm752, %v2533, %v2541
        %v2558 = vsel %vm752, %v2519, %v2527
        %v2559 = vsel %vm752, %v2521, %v2529
        %v2560 = vsel %vm752, %v2523, %v2531
        %v2561 = vsel %vm752, %v2525, %v2533
        %v2562 = vsel %vm752, %v2543, %v2519
        %v2563 = vsel %vm752, %v2545, %v2521
        %v2564 = vsel %vm752, %v2547, %v2523
        %v2565 = vsel %vm752, %v2549, %v2525
        %v2566 = vld [vmem:[%s769] sm:$0xf]
        %v2568 = vlaneseq
        %v2569 = vshrl.u32 %v2568, 7
        %v2570 = vsub.s32 0, %v2569
        %v2571 = vrot.slane %v2566, %v2570
        %v2572 = vlaneseq
        %v2573 = vshrl.u32 %v2572, 7
        %v2574 = vsub.s32 1, %v2573
        %v2575 = vrot.slane %v2566, %v2574
        %v2576 = vlaneseq
        %v2577 = vshrl.u32 %v2576, 7
        %v2578 = vsub.s32 2, %v2577
        %v2579 = vrot.slane %v2566, %v2578
        %v2580 = vlaneseq
        %v2581 = vshrl.u32 %v2580, 7
        %v2582 = vsub.s32 3, %v2581
        %v2583 = vrot.slane %v2566, %v2582
        %v2588 = vmul.f32 %v2562, %v2571
        %v2589 = vmul.f32 %v2558, %v2575
        %v2590 = vmul.f32 %v2554, %v2579
        %v2591 = vmul.f32 %v2550, %v2583
        %v2592 = vmul.f32 %v2563, %v2571
        %v2593 = vmul.f32 %v2559, %v2575
        %v2594 = vmul.f32 %v2555, %v2579
        %v2595 = vmul.f32 %v2551, %v2583
        %v2596 = vmul.f32 %v2564, %v2571
        %v2597 = vmul.f32 %v2560, %v2575
        %v2598 = vmul.f32 %v2556, %v2579
        %v2599 = vmul.f32 %v2552, %v2583
        %v2600 = vmul.f32 %v2565, %v2571
        %v2601 = vmul.f32 %v2561, %v2575
        %v2602 = vmul.f32 %v2557, %v2579
        %v2603 = vmul.f32 %v2553, %v2583
        %2604 = vst [vmem:[#allocation2 + $0x80] sm:$0xff] %v2588
        %2605 = vst [vmem:[#allocation2 + $0x88] sm:$0xff] %v2589
        %2606 = vst [vmem:[#allocation2 + $0x90] sm:$0xff] %v2590
        %2607 = vst [vmem:[#allocation2 + $0x98] sm:$0xff] %v2591
        %2608 = vst [vmem:[#allocation2 + $0xa0] sm:$0xff] %v2592
        %2609 = vst [vmem:[#allocation2 + $0xa8] sm:$0xff] %v2593
        %2610 = vst [vmem:[#allocation2 + $0xb0] sm:$0xff] %v2594
        %2611 = vst [vmem:[#allocation2 + $0xb8] sm:$0xff] %v2595
        %2612 = vst [vmem:[#allocation2 + $0xc0] sm:$0xff] %v2596
        %2613 = vst [vmem:[#allocation2 + $0xc8] sm:$0xff] %v2597
        %2614 = vst [vmem:[#allocation2 + $0xd0] sm:$0xff] %v2598
        %2615 = vst [vmem:[#allocation2 + $0xd8] sm:$0xff] %v2599
        %2616 = vst [vmem:[#allocation2 + $0xe0] sm:$0xff] %v2600
        %2617 = vst [vmem:[#allocation2 + $0xe8] sm:$0xff] %v2601
        %2618 = vst [vmem:[#allocation2 + $0xf0] sm:$0xff] %v2602
        %2619 = vst [vmem:[#allocation2 + $0xf8] sm:$0xff] %v2603
        %2620 = vrot.lane.b32.xlu0 %v2400, 15
        %v2621 = vpop.permute.xlu0 %2620
        %2622 = vrot.lane.b32.xlu0 %v2404, 15
        %v2623 = vpop.permute.xlu0 %2622
        %2624 = vrot.lane.b32.xlu0 %v2408, 15
        %v2625 = vpop.permute.xlu0 %2624
        %2626 = vrot.lane.b32.xlu0 %v2412, 15
        %v2627 = vpop.permute.xlu0 %2626
        %2628 = vrot.lane.b32.xlu0 %v2401, 15
        %v2629 = vpop.permute.xlu0 %2628
        %2630 = vrot.lane.b32.xlu0 %v2405, 15
        %v2631 = vpop.permute.xlu0 %2630
        %2632 = vrot.lane.b32.xlu0 %v2409, 15
        %v2633 = vpop.permute.xlu0 %2632
        %2634 = vrot.lane.b32.xlu0 %v2413, 15
        %v2635 = vpop.permute.xlu0 %2634
        %2636 = vrot.lane.b32.xlu0 %v2402, 15
        %v2637 = vpop.permute.xlu0 %2636
        %2638 = vrot.lane.b32.xlu0 %v2406, 15
        %v2639 = vpop.permute.xlu0 %2638
        %2640 = vrot.lane.b32.xlu0 %v2410, 15
        %v2641 = vpop.permute.xlu0 %2640
        %2642 = vrot.lane.b32.xlu0 %v2414, 15
        %v2643 = vpop.permute.xlu0 %2642
        %2644 = vrot.lane.b32.xlu0 %v2403, 15
        %v2645 = vpop.permute.xlu0 %2644
        %2646 = vrot.lane.b32.xlu0 %v2407, 15
        %v2647 = vpop.permute.xlu0 %2646
        %2648 = vrot.lane.b32.xlu0 %v2411, 15
        %v2649 = vpop.permute.xlu0 %2648
        %2650 = vrot.lane.b32.xlu0 %v2415, 15
        %v2651 = vpop.permute.xlu0 %2650
        %v2652 = vsel %vm856, %v2637, %v2645
        %v2653 = vsel %vm856, %v2639, %v2647
        %v2654 = vsel %vm856, %v2641, %v2649
        %v2655 = vsel %vm856, %v2643, %v2651
        %v2656 = vsel %vm856, %v2629, %v2637
        %v2657 = vsel %vm856, %v2631, %v2639
        %v2658 = vsel %vm856, %v2633, %v2641
        %v2659 = vsel %vm856, %v2635, %v2643
        %v2660 = vsel %vm856, %v2621, %v2629
        %v2661 = vsel %vm856, %v2623, %v2631
        %v2662 = vsel %vm856, %v2625, %v2633
        %v2663 = vsel %vm856, %v2627, %v2635
        %v2664 = vsel %vm856, %v2645, %v2621
        %v2665 = vsel %vm856, %v2647, %v2623
        %v2666 = vsel %vm856, %v2649, %v2625
        %v2667 = vsel %vm856, %v2651, %v2627
        %v2668 = vld [vmem:[%s873] sm:$0xf]
        %v2670 = vlaneseq
        %v2671 = vshrl.u32 %v2670, 7
        %v2672 = vsub.s32 0, %v2671
        %v2673 = vrot.slane %v2668, %v2672
        %v2674 = vlaneseq
        %v2675 = vshrl.u32 %v2674, 7
        %v2676 = vsub.s32 1, %v2675
        %v2677 = vrot.slane %v2668, %v2676
        %v2678 = vlaneseq
        %v2679 = vshrl.u32 %v2678, 7
        %v2680 = vsub.s32 2, %v2679
        %v2681 = vrot.slane %v2668, %v2680
        %v2682 = vlaneseq
        %v2683 = vshrl.u32 %v2682, 7
        %v2684 = vsub.s32 3, %v2683
        %v2685 = vrot.slane %v2668, %v2684
        %v2690 = vmul.f32 %v2664, %v2673
        %v2691 = vmul.f32 %v2660, %v2677
        %v2692 = vmul.f32 %v2656, %v2681
        %v2693 = vmul.f32 %v2652, %v2685
        %v2694 = vmul.f32 %v2665, %v2673
        %v2695 = vmul.f32 %v2661, %v2677
        %v2696 = vmul.f32 %v2657, %v2681
        %v2697 = vmul.f32 %v2653, %v2685
        %v2698 = vmul.f32 %v2666, %v2673
        %v2699 = vmul.f32 %v2662, %v2677
        %v2700 = vmul.f32 %v2658, %v2681
        %v2701 = vmul.f32 %v2654, %v2685
        %v2702 = vmul.f32 %v2667, %v2673
        %v2703 = vmul.f32 %v2663, %v2677
        %v2704 = vmul.f32 %v2659, %v2681
        %v2705 = vmul.f32 %v2655, %v2685
        %2706 = vst [vmem:[#allocation2 + $0x100] sm:$0xff] %v2690
        %2707 = vst [vmem:[#allocation2 + $0x108] sm:$0xff] %v2691
        %2708 = vst [vmem:[#allocation2 + $0x110] sm:$0xff] %v2692
        %2709 = vst [vmem:[#allocation2 + $0x118] sm:$0xff] %v2693
        %2710 = vst [vmem:[#allocation2 + $0x120] sm:$0xff] %v2694
        %2711 = vst [vmem:[#allocation2 + $0x128] sm:$0xff] %v2695
        %2712 = vst [vmem:[#allocation2 + $0x130] sm:$0xff] %v2696
        %2713 = vst [vmem:[#allocation2 + $0x138] sm:$0xff] %v2697
        %2714 = vst [vmem:[#allocation2 + $0x140] sm:$0xff] %v2698
        %2715 = vst [vmem:[#allocation2 + $0x148] sm:$0xff] %v2699
        %2716 = vst [vmem:[#allocation2 + $0x150] sm:$0xff] %v2700
        %2717 = vst [vmem:[#allocation2 + $0x158] sm:$0xff] %v2701
        %2718 = vst [vmem:[#allocation2 + $0x160] sm:$0xff] %v2702
        %2719 = vst [vmem:[#allocation2 + $0x168] sm:$0xff] %v2703
        %2720 = vst [vmem:[#allocation2 + $0x170] sm:$0xff] %v2704
        %2721 = vst [vmem:[#allocation2 + $0x178] sm:$0xff] %v2705
        %2722 = vrot.lane.b32.xlu0 %v2400, 1
        %v2723 = vpop.permute.xlu0 %2722
        %2724 = vrot.lane.b32.xlu0 %v2404, 1
        %v2725 = vpop.permute.xlu0 %2724
        %2726 = vrot.lane.b32.xlu0 %v2408, 1
        %v2727 = vpop.permute.xlu0 %2726
        %2728 = vrot.lane.b32.xlu0 %v2412, 1
        %v2729 = vpop.permute.xlu0 %2728
        %2730 = vrot.lane.b32.xlu0 %v2401, 1
        %v2731 = vpop.permute.xlu0 %2730
        %2732 = vrot.lane.b32.xlu0 %v2405, 1
        %v2733 = vpop.permute.xlu0 %2732
        %2734 = vrot.lane.b32.xlu0 %v2409, 1
        %v2735 = vpop.permute.xlu0 %2734
        %2736 = vrot.lane.b32.xlu0 %v2413, 1
        %v2737 = vpop.permute.xlu0 %2736
        %2738 = vrot.lane.b32.xlu0 %v2402, 1
        %v2739 = vpop.permute.xlu0 %2738
        %2740 = vrot.lane.b32.xlu0 %v2406, 1
        %v2741 = vpop.permute.xlu0 %2740
        %2742 = vrot.lane.b32.xlu0 %v2410, 1
        %v2743 = vpop.permute.xlu0 %2742
        %2744 = vrot.lane.b32.xlu0 %v2414, 1
        %v2745 = vpop.permute.xlu0 %2744
        %2746 = vrot.lane.b32.xlu0 %v2403, 1
        %v2747 = vpop.permute.xlu0 %2746
        %2748 = vrot.lane.b32.xlu0 %v2407, 1
        %v2749 = vpop.permute.xlu0 %2748
        %2750 = vrot.lane.b32.xlu0 %v2411, 1
        %v2751 = vpop.permute.xlu0 %2750
        %2752 = vrot.lane.b32.xlu0 %v2415, 1
        %v2753 = vpop.permute.xlu0 %2752
        %v2754 = vsel %vm960, %v2739, %v2747
        %v2755 = vsel %vm960, %v2741, %v2749
        %v2756 = vsel %vm960, %v2743, %v2751
        %v2757 = vsel %vm960, %v2745, %v2753
        %v2758 = vsel %vm960, %v2731, %v2739
        %v2759 = vsel %vm960, %v2733, %v2741
        %v2760 = vsel %vm960, %v2735, %v2743
        %v2761 = vsel %vm960, %v2737, %v2745
        %v2762 = vsel %vm960, %v2723, %v2731
        %v2763 = vsel %vm960, %v2725, %v2733
        %v2764 = vsel %vm960, %v2727, %v2735
        %v2765 = vsel %vm960, %v2729, %v2737
        %v2766 = vsel %vm960, %v2747, %v2723
        %v2767 = vsel %vm960, %v2749, %v2725
        %v2768 = vsel %vm960, %v2751, %v2727
        %v2769 = vsel %vm960, %v2753, %v2729
        %v2770 = vld [vmem:[%s977] sm:$0xf]
        %v2772 = vlaneseq
        %v2773 = vshrl.u32 %v2772, 7
        %v2774 = vsub.s32 0, %v2773
        %v2775 = vrot.slane %v2770, %v2774
        %v2776 = vlaneseq
        %v2777 = vshrl.u32 %v2776, 7
        %v2778 = vsub.s32 1, %v2777
        %v2779 = vrot.slane %v2770, %v2778
        %v2780 = vlaneseq
        %v2781 = vshrl.u32 %v2780, 7
        %v2782 = vsub.s32 2, %v2781
        %v2783 = vrot.slane %v2770, %v2782
        %v2784 = vlaneseq
        %v2785 = vshrl.u32 %v2784, 7
        %v2786 = vsub.s32 3, %v2785
        %v2787 = vrot.slane %v2770, %v2786
        %v2792 = vmul.f32 %v2766, %v2775
        %v2793 = vmul.f32 %v2762, %v2779
        %v2794 = vmul.f32 %v2758, %v2783
        %v2795 = vmul.f32 %v2754, %v2787
        %v2796 = vmul.f32 %v2767, %v2775
        %v2797 = vmul.f32 %v2763, %v2779
        %v2798 = vmul.f32 %v2759, %v2783
        %v2799 = vmul.f32 %v2755, %v2787
        %v2800 = vmul.f32 %v2768, %v2775
        %v2801 = vmul.f32 %v2764, %v2779
        %v2802 = vmul.f32 %v2760, %v2783
        %v2803 = vmul.f32 %v2756, %v2787
        %v2804 = vmul.f32 %v2769, %v2775
        %v2805 = vmul.f32 %v2765, %v2779
        %v2806 = vmul.f32 %v2761, %v2783
        %v2807 = vmul.f32 %v2757, %v2787
        %2808 = vst [vmem:[#allocation2 + $0x180] sm:$0xff] %v2792
        %2809 = vst [vmem:[#allocation2 + $0x188] sm:$0xff] %v2793
        %2810 = vst [vmem:[#allocation2 + $0x190] sm:$0xff] %v2794
        %2811 = vst [vmem:[#allocation2 + $0x198] sm:$0xff] %v2795
        %2812 = vst [vmem:[#allocation2 + $0x1a0] sm:$0xff] %v2796
        %2813 = vst [vmem:[#allocation2 + $0x1a8] sm:$0xff] %v2797
        %2814 = vst [vmem:[#allocation2 + $0x1b0] sm:$0xff] %v2798
        %2815 = vst [vmem:[#allocation2 + $0x1b8] sm:$0xff] %v2799
        %2816 = vst [vmem:[#allocation2 + $0x1c0] sm:$0xff] %v2800
        %2817 = vst [vmem:[#allocation2 + $0x1c8] sm:$0xff] %v2801
        %2818 = vst [vmem:[#allocation2 + $0x1d0] sm:$0xff] %v2802
        %2819 = vst [vmem:[#allocation2 + $0x1d8] sm:$0xff] %v2803
        %2820 = vst [vmem:[#allocation2 + $0x1e0] sm:$0xff] %v2804
        %2821 = vst [vmem:[#allocation2 + $0x1e8] sm:$0xff] %v2805
        %2822 = vst [vmem:[#allocation2 + $0x1f0] sm:$0xff] %v2806
        %2823 = vst [vmem:[#allocation2 + $0x1f8] sm:$0xff] %v2807
        %2824 = vst [vmem:[#allocation2 + $0x200] sm:$0xff] %v2400
        %2825 = vst [vmem:[#allocation2 + $0x208] sm:$0xff] %v2401
        %2826 = vst [vmem:[#allocation2 + $0x210] sm:$0xff] %v2402
        %2827 = vst [vmem:[#allocation2 + $0x218] sm:$0xff] %v2403
        %2828 = vst [vmem:[#allocation2 + $0x220] sm:$0xff] %v2404
        %2829 = vst [vmem:[#allocation2 + $0x228] sm:$0xff] %v2405
        %2830 = vst [vmem:[#allocation2 + $0x230] sm:$0xff] %v2406
        %2831 = vst [vmem:[#allocation2 + $0x238] sm:$0xff] %v2407
        %2832 = vst [vmem:[#allocation2 + $0x240] sm:$0xff] %v2408
        %2833 = vst [vmem:[#allocation2 + $0x248] sm:$0xff] %v2409
        %2834 = vst [vmem:[#allocation2 + $0x250] sm:$0xff] %v2410
        %2835 = vst [vmem:[#allocation2 + $0x258] sm:$0xff] %v2411
        %2836 = vst [vmem:[#allocation2 + $0x260] sm:$0xff] %v2412
        %2837 = vst [vmem:[#allocation2 + $0x268] sm:$0xff] %v2413
        %2838 = vst [vmem:[#allocation2 + $0x270] sm:$0xff] %v2414
        %2839 = vst [vmem:[#allocation2 + $0x278] sm:$0xff] %v2415
        %2840 = vrot.lane.b32.xlu0 %v2400, 127
        %v2841 = vpop.permute.xlu0 %2840
        %2842 = vrot.lane.b32.xlu0 %v2404, 127
        %v2843 = vpop.permute.xlu0 %2842
        %2844 = vrot.lane.b32.xlu0 %v2408, 127
        %v2845 = vpop.permute.xlu0 %2844
        %2846 = vrot.lane.b32.xlu0 %v2412, 127
        %v2847 = vpop.permute.xlu0 %2846
        %2848 = vrot.lane.b32.xlu0 %v2401, 127
        %v2849 = vpop.permute.xlu0 %2848
        %2850 = vrot.lane.b32.xlu0 %v2405, 127
        %v2851 = vpop.permute.xlu0 %2850
        %2852 = vrot.lane.b32.xlu0 %v2409, 127
        %v2853 = vpop.permute.xlu0 %2852
        %2854 = vrot.lane.b32.xlu0 %v2413, 127
        %v2855 = vpop.permute.xlu0 %2854
        %2856 = vrot.lane.b32.xlu0 %v2402, 127
        %v2857 = vpop.permute.xlu0 %2856
        %2858 = vrot.lane.b32.xlu0 %v2406, 127
        %v2859 = vpop.permute.xlu0 %2858
        %2860 = vrot.lane.b32.xlu0 %v2410, 127
        %v2861 = vpop.permute.xlu0 %2860
        %2862 = vrot.lane.b32.xlu0 %v2414, 127
        %v2863 = vpop.permute.xlu0 %2862
        %2864 = vrot.lane.b32.xlu0 %v2403, 127
        %v2865 = vpop.permute.xlu0 %2864
        %2866 = vrot.lane.b32.xlu0 %v2407, 127
        %v2867 = vpop.permute.xlu0 %2866
        %2868 = vrot.lane.b32.xlu0 %v2411, 127
        %v2869 = vpop.permute.xlu0 %2868
        %2870 = vrot.lane.b32.xlu0 %v2415, 127
        %v2871 = vpop.permute.xlu0 %2870
        %v2872 = vsel %vm1080, %v2857, %v2865
        %v2873 = vsel %vm1080, %v2859, %v2867
        %v2874 = vsel %vm1080, %v2861, %v2869
        %v2875 = vsel %vm1080, %v2863, %v2871
        %v2876 = vsel %vm1080, %v2849, %v2857
        %v2877 = vsel %vm1080, %v2851, %v2859
        %v2878 = vsel %vm1080, %v2853, %v2861
        %v2879 = vsel %vm1080, %v2855, %v2863
        %v2880 = vsel %vm1080, %v2841, %v2849
        %v2881 = vsel %vm1080, %v2843, %v2851
        %v2882 = vsel %vm1080, %v2845, %v2853
        %v2883 = vsel %vm1080, %v2847, %v2855
        %v2884 = vsel %vm1080, %v2865, %v2841
        %v2885 = vsel %vm1080, %v2867, %v2843
        %v2886 = vsel %vm1080, %v2869, %v2845
        %v2887 = vsel %vm1080, %v2871, %v2847
        %v2888 = vld [vmem:[%s1097] sm:$0xf]
        %v2890 = vlaneseq
        %v2891 = vshrl.u32 %v2890, 7
        %v2892 = vsub.s32 0, %v2891
        %v2893 = vrot.slane %v2888, %v2892
        %v2894 = vlaneseq
        %v2895 = vshrl.u32 %v2894, 7
        %v2896 = vsub.s32 1, %v2895
        %v2897 = vrot.slane %v2888, %v2896
        %v2898 = vlaneseq
        %v2899 = vshrl.u32 %v2898, 7
        %v2900 = vsub.s32 2, %v2899
        %v2901 = vrot.slane %v2888, %v2900
        %v2902 = vlaneseq
        %v2903 = vshrl.u32 %v2902, 7
        %v2904 = vsub.s32 3, %v2903
        %v2905 = vrot.slane %v2888, %v2904
        %v2910 = vmul.f32 %v2880, %v2893
        %v2911 = vmul.f32 %v2876, %v2897
        %v2912 = vmul.f32 %v2872, %v2901
        %v2913 = vmul.f32 %v2884, %v2905
        %v2914 = vmul.f32 %v2881, %v2893
        %v2915 = vmul.f32 %v2877, %v2897
        %v2916 = vmul.f32 %v2873, %v2901
        %v2917 = vmul.f32 %v2885, %v2905
        %v2918 = vmul.f32 %v2882, %v2893
        %v2919 = vmul.f32 %v2878, %v2897
        %v2920 = vmul.f32 %v2874, %v2901
        %v2921 = vmul.f32 %v2886, %v2905
        %v2922 = vmul.f32 %v2883, %v2893
        %v2923 = vmul.f32 %v2879, %v2897
        %v2924 = vmul.f32 %v2875, %v2901
        %v2925 = vmul.f32 %v2887, %v2905
        %2926 = vst [vmem:[#allocation2 + $0x280] sm:$0xff] %v2910
        %2927 = vst [vmem:[#allocation2 + $0x288] sm:$0xff] %v2911
        %2928 = vst [vmem:[#allocation2 + $0x290] sm:$0xff] %v2912
        %2929 = vst [vmem:[#allocation2 + $0x298] sm:$0xff] %v2913
        %2930 = vst [vmem:[#allocation2 + $0x2a0] sm:$0xff] %v2914
        %2931 = vst [vmem:[#allocation2 + $0x2a8] sm:$0xff] %v2915
        %2932 = vst [vmem:[#allocation2 + $0x2b0] sm:$0xff] %v2916
        %2933 = vst [vmem:[#allocation2 + $0x2b8] sm:$0xff] %v2917
        %2934 = vst [vmem:[#allocation2 + $0x2c0] sm:$0xff] %v2918
        %2935 = vst [vmem:[#allocation2 + $0x2c8] sm:$0xff] %v2919
        %2936 = vst [vmem:[#allocation2 + $0x2d0] sm:$0xff] %v2920
        %2937 = vst [vmem:[#allocation2 + $0x2d8] sm:$0xff] %v2921
        %2938 = vst [vmem:[#allocation2 + $0x2e0] sm:$0xff] %v2922
        %2939 = vst [vmem:[#allocation2 + $0x2e8] sm:$0xff] %v2923
        %2940 = vst [vmem:[#allocation2 + $0x2f0] sm:$0xff] %v2924
        %2941 = vst [vmem:[#allocation2 + $0x2f8] sm:$0xff] %v2925
        %2942 = vrot.lane.b32.xlu0 %v2400, 113
        %v2943 = vpop.permute.xlu0 %2942
        %2944 = vrot.lane.b32.xlu0 %v2404, 113
        %v2945 = vpop.permute.xlu0 %2944
        %2946 = vrot.lane.b32.xlu0 %v2408, 113
        %v2947 = vpop.permute.xlu0 %2946
        %2948 = vrot.lane.b32.xlu0 %v2412, 113
        %v2949 = vpop.permute.xlu0 %2948
        %2950 = vrot.lane.b32.xlu0 %v2401, 113
        %v2951 = vpop.permute.xlu0 %2950
        %2952 = vrot.lane.b32.xlu0 %v2405, 113
        %v2953 = vpop.permute.xlu0 %2952
        %2954 = vrot.lane.b32.xlu0 %v2409, 113
        %v2955 = vpop.permute.xlu0 %2954
        %2956 = vrot.lane.b32.xlu0 %v2413, 113
        %v2957 = vpop.permute.xlu0 %2956
        %2958 = vrot.lane.b32.xlu0 %v2402, 113
        %v2959 = vpop.permute.xlu0 %2958
        %2960 = vrot.lane.b32.xlu0 %v2406, 113
        %v2961 = vpop.permute.xlu0 %2960
        %2962 = vrot.lane.b32.xlu0 %v2410, 113
        %v2963 = vpop.permute.xlu0 %2962
        %2964 = vrot.lane.b32.xlu0 %v2414, 113
        %v2965 = vpop.permute.xlu0 %2964
        %2966 = vrot.lane.b32.xlu0 %v2403, 113
        %v2967 = vpop.permute.xlu0 %2966
        %2968 = vrot.lane.b32.xlu0 %v2407, 113
        %v2969 = vpop.permute.xlu0 %2968
        %2970 = vrot.lane.b32.xlu0 %v2411, 113
        %v2971 = vpop.permute.xlu0 %2970
        %2972 = vrot.lane.b32.xlu0 %v2415, 113
        %v2973 = vpop.permute.xlu0 %2972
        %v2974 = vsel %vm1184, %v2959, %v2967
        %v2975 = vsel %vm1184, %v2961, %v2969
        %v2976 = vsel %vm1184, %v2963, %v2971
        %v2977 = vsel %vm1184, %v2965, %v2973
        %v2978 = vsel %vm1184, %v2951, %v2959
        %v2979 = vsel %vm1184, %v2953, %v2961
        %v2980 = vsel %vm1184, %v2955, %v2963
        %v2981 = vsel %vm1184, %v2957, %v2965
        %v2982 = vsel %vm1184, %v2943, %v2951
        %v2983 = vsel %vm1184, %v2945, %v2953
        %v2984 = vsel %vm1184, %v2947, %v2955
        %v2985 = vsel %vm1184, %v2949, %v2957
        %v2986 = vsel %vm1184, %v2967, %v2943
        %v2987 = vsel %vm1184, %v2969, %v2945
        %v2988 = vsel %vm1184, %v2971, %v2947
        %v2989 = vsel %vm1184, %v2973, %v2949
        %v2990 = vld [vmem:[%s1201] sm:$0xf]
        %v2992 = vlaneseq
        %v2993 = vshrl.u32 %v2992, 7
        %v2994 = vsub.s32 0, %v2993
        %v2995 = vrot.slane %v2990, %v2994
        %v2996 = vlaneseq
        %v2997 = vshrl.u32 %v2996, 7
        %v2998 = vsub.s32 1, %v2997
        %v2999 = vrot.slane %v2990, %v2998
        %v3000 = vlaneseq
        %v3001 = vshrl.u32 %v3000, 7
        %v3002 = vsub.s32 2, %v3001
        %v3003 = vrot.slane %v2990, %v3002
        %v3004 = vlaneseq
        %v3005 = vshrl.u32 %v3004, 7
        %v3006 = vsub.s32 3, %v3005
        %v3007 = vrot.slane %v2990, %v3006
        %v3012 = vmul.f32 %v2982, %v2995
        %v3013 = vmul.f32 %v2978, %v2999
        %v3014 = vmul.f32 %v2974, %v3003
        %v3015 = vmul.f32 %v2986, %v3007
        %v3016 = vmul.f32 %v2983, %v2995
        %v3017 = vmul.f32 %v2979, %v2999
        %v3018 = vmul.f32 %v2975, %v3003
        %v3019 = vmul.f32 %v2987, %v3007
        %v3020 = vmul.f32 %v2984, %v2995
        %v3021 = vmul.f32 %v2980, %v2999
        %v3022 = vmul.f32 %v2976, %v3003
        %v3023 = vmul.f32 %v2988, %v3007
        %v3024 = vmul.f32 %v2985, %v2995
        %v3025 = vmul.f32 %v2981, %v2999
        %v3026 = vmul.f32 %v2977, %v3003
        %v3027 = vmul.f32 %v2989, %v3007
        %3028 = vst [vmem:[#allocation2 + $0x300] sm:$0xff] %v3012
        %3029 = vst [vmem:[#allocation2 + $0x308] sm:$0xff] %v3013
        %3030 = vst [vmem:[#allocation2 + $0x310] sm:$0xff] %v3014
        %3031 = vst [vmem:[#allocation2 + $0x318] sm:$0xff] %v3015
        %3032 = vst [vmem:[#allocation2 + $0x320] sm:$0xff] %v3016
        %3033 = vst [vmem:[#allocation2 + $0x328] sm:$0xff] %v3017
        %3034 = vst [vmem:[#allocation2 + $0x330] sm:$0xff] %v3018
        %3035 = vst [vmem:[#allocation2 + $0x338] sm:$0xff] %v3019
        %3036 = vst [vmem:[#allocation2 + $0x340] sm:$0xff] %v3020
        %3037 = vst [vmem:[#allocation2 + $0x348] sm:$0xff] %v3021
        %3038 = vst [vmem:[#allocation2 + $0x350] sm:$0xff] %v3022
        %3039 = vst [vmem:[#allocation2 + $0x358] sm:$0xff] %v3023
        %3040 = vst [vmem:[#allocation2 + $0x360] sm:$0xff] %v3024
        %3041 = vst [vmem:[#allocation2 + $0x368] sm:$0xff] %v3025
        %3042 = vst [vmem:[#allocation2 + $0x370] sm:$0xff] %v3026
        %3043 = vst [vmem:[#allocation2 + $0x378] sm:$0xff] %v3027
        %3044 = vrot.lane.b32.xlu0 %v2400, 112
        %v3045 = vpop.permute.xlu0 %3044
        %3046 = vrot.lane.b32.xlu0 %v2404, 112
        %v3047 = vpop.permute.xlu0 %3046
        %3048 = vrot.lane.b32.xlu0 %v2408, 112
        %v3049 = vpop.permute.xlu0 %3048
        %3050 = vrot.lane.b32.xlu0 %v2412, 112
        %v3051 = vpop.permute.xlu0 %3050
        %3052 = vrot.lane.b32.xlu0 %v2401, 112
        %v3053 = vpop.permute.xlu0 %3052
        %3054 = vrot.lane.b32.xlu0 %v2405, 112
        %v3055 = vpop.permute.xlu0 %3054
        %3056 = vrot.lane.b32.xlu0 %v2409, 112
        %v3057 = vpop.permute.xlu0 %3056
        %3058 = vrot.lane.b32.xlu0 %v2413, 112
        %v3059 = vpop.permute.xlu0 %3058
        %3060 = vrot.lane.b32.xlu0 %v2402, 112
        %v3061 = vpop.permute.xlu0 %3060
        %3062 = vrot.lane.b32.xlu0 %v2406, 112
        %v3063 = vpop.permute.xlu0 %3062
        %3064 = vrot.lane.b32.xlu0 %v2410, 112
        %v3065 = vpop.permute.xlu0 %3064
        %3066 = vrot.lane.b32.xlu0 %v2414, 112
        %v3067 = vpop.permute.xlu0 %3066
        %3068 = vrot.lane.b32.xlu0 %v2403, 112
        %v3069 = vpop.permute.xlu0 %3068
        %3070 = vrot.lane.b32.xlu0 %v2407, 112
        %v3071 = vpop.permute.xlu0 %3070
        %3072 = vrot.lane.b32.xlu0 %v2411, 112
        %v3073 = vpop.permute.xlu0 %3072
        %3074 = vrot.lane.b32.xlu0 %v2415, 112
        %v3075 = vpop.permute.xlu0 %3074
        %v3076 = vsel %vm1288, %v3061, %v3069
        %v3077 = vsel %vm1288, %v3063, %v3071
        %v3078 = vsel %vm1288, %v3065, %v3073
        %v3079 = vsel %vm1288, %v3067, %v3075
        %v3080 = vsel %vm1288, %v3053, %v3061
        %v3081 = vsel %vm1288, %v3055, %v3063
        %v3082 = vsel %vm1288, %v3057, %v3065
        %v3083 = vsel %vm1288, %v3059, %v3067
        %v3084 = vsel %vm1288, %v3045, %v3053
        %v3085 = vsel %vm1288, %v3047, %v3055
        %v3086 = vsel %vm1288, %v3049, %v3057
        %v3087 = vsel %vm1288, %v3051, %v3059
        %v3088 = vsel %vm1288, %v3069, %v3045
        %v3089 = vsel %vm1288, %v3071, %v3047
        %v3090 = vsel %vm1288, %v3073, %v3049
        %v3091 = vsel %vm1288, %v3075, %v3051
        %v3092 = vld [vmem:[%s1305] sm:$0xf]
        %v3094 = vlaneseq
        %v3095 = vshrl.u32 %v3094, 7
        %v3096 = vsub.s32 0, %v3095
        %v3097 = vrot.slane %v3092, %v3096
        %v3098 = vlaneseq
        %v3099 = vshrl.u32 %v3098, 7
        %v3100 = vsub.s32 1, %v3099
        %v3101 = vrot.slane %v3092, %v3100
        %v3102 = vlaneseq
        %v3103 = vshrl.u32 %v3102, 7
        %v3104 = vsub.s32 2, %v3103
        %v3105 = vrot.slane %v3092, %v3104
        %v3106 = vlaneseq
        %v3107 = vshrl.u32 %v3106, 7
        %v3108 = vsub.s32 3, %v3107
        %v3109 = vrot.slane %v3092, %v3108
        %v3114 = vmul.f32 %v3084, %v3097
        %v3115 = vmul.f32 %v3080, %v3101
        %v3116 = vmul.f32 %v3076, %v3105
        %v3117 = vmul.f32 %v3088, %v3109
        %v3118 = vmul.f32 %v3085, %v3097
        %v3119 = vmul.f32 %v3081, %v3101
        %v3120 = vmul.f32 %v3077, %v3105
        %v3121 = vmul.f32 %v3089, %v3109
        %v3122 = vmul.f32 %v3086, %v3097
        %v3123 = vmul.f32 %v3082, %v3101
        %v3124 = vmul.f32 %v3078, %v3105
        %v3125 = vmul.f32 %v3090, %v3109
        %v3126 = vmul.f32 %v3087, %v3097
        %v3127 = vmul.f32 %v3083, %v3101
        %v3128 = vmul.f32 %v3079, %v3105
        %v3129 = vmul.f32 %v3091, %v3109
        %3130 = vst [vmem:[#allocation2 + $0x380] sm:$0xff] %v3114
        %3131 = vst [vmem:[#allocation2 + $0x388] sm:$0xff] %v3115
        %3132 = vst [vmem:[#allocation2 + $0x390] sm:$0xff] %v3116
        %3133 = vst [vmem:[#allocation2 + $0x398] sm:$0xff] %v3117
        %3134 = vst [vmem:[#allocation2 + $0x3a0] sm:$0xff] %v3118
        %3135 = vst [vmem:[#allocation2 + $0x3a8] sm:$0xff] %v3119
        %3136 = vst [vmem:[#allocation2 + $0x3b0] sm:$0xff] %v3120
        %3137 = vst [vmem:[#allocation2 + $0x3b8] sm:$0xff] %v3121
        %3138 = vst [vmem:[#allocation2 + $0x3c0] sm:$0xff] %v3122
        %3139 = vst [vmem:[#allocation2 + $0x3c8] sm:$0xff] %v3123
        %3140 = vst [vmem:[#allocation2 + $0x3d0] sm:$0xff] %v3124
        %3141 = vst [vmem:[#allocation2 + $0x3d8] sm:$0xff] %v3125
        %3142 = vst [vmem:[#allocation2 + $0x3e0] sm:$0xff] %v3126
        %3143 = vst [vmem:[#allocation2 + $0x3e8] sm:$0xff] %v3127
        %3144 = vst [vmem:[#allocation2 + $0x3f0] sm:$0xff] %v3128
        %3145 = vst [vmem:[#allocation2 + $0x3f8] sm:$0xff] %v3129
        %3146 = vrot.lane.b32.xlu0 %v2400, 111
        %v3147 = vpop.permute.xlu0 %3146
        %3148 = vrot.lane.b32.xlu0 %v2404, 111
        %v3149 = vpop.permute.xlu0 %3148
        %3150 = vrot.lane.b32.xlu0 %v2408, 111
        %v3151 = vpop.permute.xlu0 %3150
        %3152 = vrot.lane.b32.xlu0 %v2412, 111
        %v3153 = vpop.permute.xlu0 %3152
        %3154 = vrot.lane.b32.xlu0 %v2401, 111
        %v3155 = vpop.permute.xlu0 %3154
        %3156 = vrot.lane.b32.xlu0 %v2405, 111
        %v3157 = vpop.permute.xlu0 %3156
        %3158 = vrot.lane.b32.xlu0 %v2409, 111
        %v3159 = vpop.permute.xlu0 %3158
        %3160 = vrot.lane.b32.xlu0 %v2413, 111
        %v3161 = vpop.permute.xlu0 %3160
        %3162 = vrot.lane.b32.xlu0 %v2402, 111
        %v3163 = vpop.permute.xlu0 %3162
        %3164 = vrot.lane.b32.xlu0 %v2406, 111
        %v3165 = vpop.permute.xlu0 %3164
        %3166 = vrot.lane.b32.xlu0 %v2410, 111
        %v3167 = vpop.permute.xlu0 %3166
        %3168 = vrot.lane.b32.xlu0 %v2414, 111
        %v3169 = vpop.permute.xlu0 %3168
        %3170 = vrot.lane.b32.xlu0 %v2403, 111
        %v3171 = vpop.permute.xlu0 %3170
        %3172 = vrot.lane.b32.xlu0 %v2407, 111
        %v3173 = vpop.permute.xlu0 %3172
        %3174 = vrot.lane.b32.xlu0 %v2411, 111
        %v3175 = vpop.permute.xlu0 %3174
        %3176 = vrot.lane.b32.xlu0 %v2415, 111
        %v3177 = vpop.permute.xlu0 %3176
        %v3178 = vsel %vm1392, %v3163, %v3171
        %v3179 = vsel %vm1392, %v3165, %v3173
        %v3180 = vsel %vm1392, %v3167, %v3175
        %v3181 = vsel %vm1392, %v3169, %v3177
        %v3182 = vsel %vm1392, %v3155, %v3163
        %v3183 = vsel %vm1392, %v3157, %v3165
        %v3184 = vsel %vm1392, %v3159, %v3167
        %v3185 = vsel %vm1392, %v3161, %v3169
        %v3186 = vsel %vm1392, %v3147, %v3155
        %v3187 = vsel %vm1392, %v3149, %v3157
        %v3188 = vsel %vm1392, %v3151, %v3159
        %v3189 = vsel %vm1392, %v3153, %v3161
        %v3190 = vsel %vm1392, %v3171, %v3147
        %v3191 = vsel %vm1392, %v3173, %v3149
        %v3192 = vsel %vm1392, %v3175, %v3151
        %v3193 = vsel %vm1392, %v3177, %v3153
        %v3194 = vld [vmem:[%s1409] sm:$0xf]
        %v3196 = vlaneseq
        %v3197 = vshrl.u32 %v3196, 7
        %v3198 = vsub.s32 0, %v3197
        %v3199 = vrot.slane %v3194, %v3198
        %v3200 = vlaneseq
        %v3201 = vshrl.u32 %v3200, 7
        %v3202 = vsub.s32 1, %v3201
        %v3203 = vrot.slane %v3194, %v3202
        %v3204 = vlaneseq
        %v3205 = vshrl.u32 %v3204, 7
        %v3206 = vsub.s32 2, %v3205
        %v3207 = vrot.slane %v3194, %v3206
        %v3208 = vlaneseq
        %v3209 = vshrl.u32 %v3208, 7
        %v3210 = vsub.s32 3, %v3209
        %v3211 = vrot.slane %v3194, %v3210
        %v3216 = vmul.f32 %v3186, %v3199
        %v3217 = vmul.f32 %v3182, %v3203
        %v3218 = vmul.f32 %v3178, %v3207
        %v3219 = vmul.f32 %v3190, %v3211
        %v3220 = vmul.f32 %v3187, %v3199
        %v3221 = vmul.f32 %v3183, %v3203
        %v3222 = vmul.f32 %v3179, %v3207
        %v3223 = vmul.f32 %v3191, %v3211
        %v3224 = vmul.f32 %v3188, %v3199
        %v3225 = vmul.f32 %v3184, %v3203
        %v3226 = vmul.f32 %v3180, %v3207
        %v3227 = vmul.f32 %v3192, %v3211
        %v3228 = vmul.f32 %v3189, %v3199
        %v3229 = vmul.f32 %v3185, %v3203
        %v3230 = vmul.f32 %v3181, %v3207
        %v3231 = vmul.f32 %v3193, %v3211
        %3232 = vst [vmem:[#allocation2 + $0x400] sm:$0xff] %v3216
        %3233 = vst [vmem:[#allocation2 + $0x408] sm:$0xff] %v3217
        %3234 = vst [vmem:[#allocation2 + $0x410] sm:$0xff] %v3218
        %3235 = vst [vmem:[#allocation2 + $0x418] sm:$0xff] %v3219
        %3236 = vst [vmem:[#allocation2 + $0x420] sm:$0xff] %v3220
        %3237 = vst [vmem:[#allocation2 + $0x428] sm:$0xff] %v3221
        %3238 = vst [vmem:[#allocation2 + $0x430] sm:$0xff] %v3222
        %3239 = vst [vmem:[#allocation2 + $0x438] sm:$0xff] %v3223
        %3240 = vst [vmem:[#allocation2 + $0x440] sm:$0xff] %v3224
        %3241 = vst [vmem:[#allocation2 + $0x448] sm:$0xff] %v3225
        %3242 = vst [vmem:[#allocation2 + $0x450] sm:$0xff] %v3226
        %3243 = vst [vmem:[#allocation2 + $0x458] sm:$0xff] %v3227
        %3244 = vst [vmem:[#allocation2 + $0x460] sm:$0xff] %v3228
        %3245 = vst [vmem:[#allocation2 + $0x468] sm:$0xff] %v3229
        %3246 = vst [vmem:[#allocation2 + $0x470] sm:$0xff] %v3230
        %3247 = vst [vmem:[#allocation2 + $0x478] sm:$0xff] %v3231
        %s3248 = scalar_lea.vmem %s3, 96
        %v3249 = vld [vmem:[%s3248] sm:$0xff]
        %v3250 = vld [vmem:[%s3248 + $0x8] sm:$0xff]
        %v3251 = vld [vmem:[%s3248 + $0x10] sm:$0xff]
        %v3252 = vld [vmem:[%s3248 + $0x18] sm:$0xff]
        %v3253 = vld [vmem:[%s3248 + $0x20] sm:$0xff]
        %v3254 = vld [vmem:[%s3248 + $0x28] sm:$0xff]
        %v3255 = vld [vmem:[%s3248 + $0x30] sm:$0xff]
        %v3256 = vld [vmem:[%s3248 + $0x38] sm:$0xff]
        %v3257 = vld [vmem:[%s3248 + $0x40] sm:$0xff]
        %v3258 = vld [vmem:[%s3248 + $0x48] sm:$0xff]
        %v3259 = vld [vmem:[%s3248 + $0x50] sm:$0xff]
        %v3260 = vld [vmem:[%s3248 + $0x58] sm:$0xff]
        %v3261 = vld [vmem:[#allocation2] sm:$0xff]
        %v3262 = vld [vmem:[#allocation2 + $0x8] sm:$0xff]
        %v3263 = vld [vmem:[#allocation2 + $0x10] sm:$0xff]
        %v3264 = vld [vmem:[#allocation2 + $0x18] sm:$0xff]
        %v3265 = vld [vmem:[#allocation2 + $0x20] sm:$0xff]
        %v3266 = vld [vmem:[#allocation2 + $0x28] sm:$0xff]
        %v3267 = vld [vmem:[#allocation2 + $0x30] sm:$0xff]
        %v3268 = vld [vmem:[#allocation2 + $0x38] sm:$0xff]
        %v3269 = vld [vmem:[#allocation2 + $0x40] sm:$0xff]
        %v3270 = vld [vmem:[#allocation2 + $0x48] sm:$0xff]
        %v3271 = vld [vmem:[#allocation2 + $0x50] sm:$0xff]
        %v3272 = vld [vmem:[#allocation2 + $0x58] sm:$0xff]
        %v3273 = vld [vmem:[#allocation2 + $0x60] sm:$0xff]
        %v3274 = vld [vmem:[#allocation2 + $0x68] sm:$0xff]
        %v3275 = vld [vmem:[#allocation2 + $0x70] sm:$0xff]
        %v3276 = vld [vmem:[#allocation2 + $0x78] sm:$0xff]
        %v3277 = vld [vmem:[#allocation2 + $0x80] sm:$0xff]
        %v3278 = vld [vmem:[#allocation2 + $0x88] sm:$0xff]
        %v3279 = vld [vmem:[#allocation2 + $0x90] sm:$0xff]
        %v3280 = vld [vmem:[#allocation2 + $0x98] sm:$0xff]
        %v3281 = vld [vmem:[#allocation2 + $0xa0] sm:$0xff]
        %v3282 = vld [vmem:[#allocation2 + $0xa8] sm:$0xff]
        %v3283 = vld [vmem:[#allocation2 + $0xb0] sm:$0xff]
        %v3284 = vld [vmem:[#allocation2 + $0xb8] sm:$0xff]
        %v3285 = vld [vmem:[#allocation2 + $0xc0] sm:$0xff]
        %v3286 = vld [vmem:[#allocation2 + $0xc8] sm:$0xff]
        %v3287 = vld [vmem:[#allocation2 + $0xd0] sm:$0xff]
        %v3288 = vld [vmem:[#allocation2 + $0xd8] sm:$0xff]
        %v3289 = vld [vmem:[#allocation2 + $0xe0] sm:$0xff]
        %v3290 = vld [vmem:[#allocation2 + $0xe8] sm:$0xff]
        %v3291 = vld [vmem:[#allocation2 + $0xf0] sm:$0xff]
        %v3292 = vld [vmem:[#allocation2 + $0xf8] sm:$0xff]
        %v3293 = vld [vmem:[#allocation2 + $0x100] sm:$0xff]
        %v3294 = vld [vmem:[#allocation2 + $0x108] sm:$0xff]
        %v3295 = vld [vmem:[#allocation2 + $0x110] sm:$0xff]
        %v3296 = vld [vmem:[#allocation2 + $0x118] sm:$0xff]
        %v3297 = vld [vmem:[#allocation2 + $0x120] sm:$0xff]
        %v3298 = vld [vmem:[#allocation2 + $0x128] sm:$0xff]
        %v3299 = vld [vmem:[#allocation2 + $0x130] sm:$0xff]
        %v3300 = vld [vmem:[#allocation2 + $0x138] sm:$0xff]
        %v3301 = vld [vmem:[#allocation2 + $0x140] sm:$0xff]
        %v3302 = vld [vmem:[#allocation2 + $0x148] sm:$0xff]
        %v3303 = vld [vmem:[#allocation2 + $0x150] sm:$0xff]
        %v3304 = vld [vmem:[#allocation2 + $0x158] sm:$0xff]
        %v3305 = vld [vmem:[#allocation2 + $0x160] sm:$0xff]
        %v3306 = vld [vmem:[#allocation2 + $0x168] sm:$0xff]
        %v3307 = vld [vmem:[#allocation2 + $0x170] sm:$0xff]
        %v3308 = vld [vmem:[#allocation2 + $0x178] sm:$0xff]
        %v3309 = vld [vmem:[#allocation2 + $0x180] sm:$0xff]
        %v3310 = vld [vmem:[#allocation2 + $0x188] sm:$0xff]
        %v3311 = vld [vmem:[#allocation2 + $0x190] sm:$0xff]
        %v3312 = vld [vmem:[#allocation2 + $0x198] sm:$0xff]
        %v3313 = vld [vmem:[#allocation2 + $0x1a0] sm:$0xff]
        %v3314 = vld [vmem:[#allocation2 + $0x1a8] sm:$0xff]
        %v3315 = vld [vmem:[#allocation2 + $0x1b0] sm:$0xff]
        %v3316 = vld [vmem:[#allocation2 + $0x1b8] sm:$0xff]
        %v3317 = vld [vmem:[#allocation2 + $0x1c0] sm:$0xff]
        %v3318 = vld [vmem:[#allocation2 + $0x1c8] sm:$0xff]
        %v3319 = vld [vmem:[#allocation2 + $0x1d0] sm:$0xff]
        %v3320 = vld [vmem:[#allocation2 + $0x1d8] sm:$0xff]
        %v3321 = vld [vmem:[#allocation2 + $0x1e0] sm:$0xff]
        %v3322 = vld [vmem:[#allocation2 + $0x1e8] sm:$0xff]
        %v3323 = vld [vmem:[#allocation2 + $0x1f0] sm:$0xff]
        %v3324 = vld [vmem:[#allocation2 + $0x1f8] sm:$0xff]
        %v3325 = vld [vmem:[#allocation2 + $0x200] sm:$0xff]
        %v3326 = vld [vmem:[#allocation2 + $0x208] sm:$0xff]
        %v3327 = vld [vmem:[#allocation2 + $0x210] sm:$0xff]
        %v3328 = vld [vmem:[#allocation2 + $0x218] sm:$0xff]
        %v3329 = vld [vmem:[#allocation2 + $0x220] sm:$0xff]
        %v3330 = vld [vmem:[#allocation2 + $0x228] sm:$0xff]
        %v3331 = vld [vmem:[#allocation2 + $0x230] sm:$0xff]
        %v3332 = vld [vmem:[#allocation2 + $0x238] sm:$0xff]
        %v3333 = vld [vmem:[#allocation2 + $0x240] sm:$0xff]
        %v3334 = vld [vmem:[#allocation2 + $0x248] sm:$0xff]
        %v3335 = vld [vmem:[#allocation2 + $0x250] sm:$0xff]
        %v3336 = vld [vmem:[#allocation2 + $0x258] sm:$0xff]
        %v3337 = vld [vmem:[#allocation2 + $0x260] sm:$0xff]
        %v3338 = vld [vmem:[#allocation2 + $0x268] sm:$0xff]
        %v3339 = vld [vmem:[#allocation2 + $0x270] sm:$0xff]
        %v3340 = vld [vmem:[#allocation2 + $0x278] sm:$0xff]
        %v3341 = vld [vmem:[#allocation2 + $0x280] sm:$0xff]
        %v3342 = vld [vmem:[#allocation2 + $0x288] sm:$0xff]
        %v3343 = vld [vmem:[#allocation2 + $0x290] sm:$0xff]
        %v3344 = vld [vmem:[#allocation2 + $0x298] sm:$0xff]
        %v3345 = vld [vmem:[#allocation2 + $0x2a0] sm:$0xff]
        %v3346 = vld [vmem:[#allocation2 + $0x2a8] sm:$0xff]
        %v3347 = vld [vmem:[#allocation2 + $0x2b0] sm:$0xff]
        %v3348 = vld [vmem:[#allocation2 + $0x2b8] sm:$0xff]
        %v3349 = vld [vmem:[#allocation2 + $0x2c0] sm:$0xff]
        %v3350 = vld [vmem:[#allocation2 + $0x2c8] sm:$0xff]
        %v3351 = vld [vmem:[#allocation2 + $0x2d0] sm:$0xff]
        %v3352 = vld [vmem:[#allocation2 + $0x2d8] sm:$0xff]
        %v3353 = vld [vmem:[#allocation2 + $0x2e0] sm:$0xff]
        %v3354 = vld [vmem:[#allocation2 + $0x2e8] sm:$0xff]
        %v3355 = vld [vmem:[#allocation2 + $0x2f0] sm:$0xff]
        %v3356 = vld [vmem:[#allocation2 + $0x2f8] sm:$0xff]
        %v3357 = vld [vmem:[#allocation2 + $0x300] sm:$0xff]
        %v3358 = vld [vmem:[#allocation2 + $0x308] sm:$0xff]
        %v3359 = vld [vmem:[#allocation2 + $0x310] sm:$0xff]
        %v3360 = vld [vmem:[#allocation2 + $0x318] sm:$0xff]
        %v3361 = vld [vmem:[#allocation2 + $0x320] sm:$0xff]
        %v3362 = vld [vmem:[#allocation2 + $0x328] sm:$0xff]
        %v3363 = vld [vmem:[#allocation2 + $0x330] sm:$0xff]
        %v3364 = vld [vmem:[#allocation2 + $0x338] sm:$0xff]
        %v3365 = vld [vmem:[#allocation2 + $0x340] sm:$0xff]
        %v3366 = vld [vmem:[#allocation2 + $0x348] sm:$0xff]
        %v3367 = vld [vmem:[#allocation2 + $0x350] sm:$0xff]
        %v3368 = vld [vmem:[#allocation2 + $0x358] sm:$0xff]
        %v3369 = vld [vmem:[#allocation2 + $0x360] sm:$0xff]
        %v3370 = vld [vmem:[#allocation2 + $0x368] sm:$0xff]
        %v3371 = vld [vmem:[#allocation2 + $0x370] sm:$0xff]
        %v3372 = vld [vmem:[#allocation2 + $0x378] sm:$0xff]
        %v3373 = vld [vmem:[#allocation2 + $0x380] sm:$0xff]
        %v3374 = vld [vmem:[#allocation2 + $0x388] sm:$0xff]
        %v3375 = vld [vmem:[#allocation2 + $0x390] sm:$0xff]
        %v3376 = vld [vmem:[#allocation2 + $0x398] sm:$0xff]
        %v3377 = vld [vmem:[#allocation2 + $0x3a0] sm:$0xff]
        %v3378 = vld [vmem:[#allocation2 + $0x3a8] sm:$0xff]
        %v3379 = vld [vmem:[#allocation2 + $0x3b0] sm:$0xff]
        %v3380 = vld [vmem:[#allocation2 + $0x3b8] sm:$0xff]
        %v3381 = vld [vmem:[#allocation2 + $0x3c0] sm:$0xff]
        %v3382 = vld [vmem:[#allocation2 + $0x3c8] sm:$0xff]
        %v3383 = vld [vmem:[#allocation2 + $0x3d0] sm:$0xff]
        %v3384 = vld [vmem:[#allocation2 + $0x3d8] sm:$0xff]
        %v3385 = vld [vmem:[#allocation2 + $0x3e0] sm:$0xff]
        %v3386 = vld [vmem:[#allocation2 + $0x3e8] sm:$0xff]
        %v3387 = vld [vmem:[#allocation2 + $0x3f0] sm:$0xff]
        %v3388 = vld [vmem:[#allocation2 + $0x3f8] sm:$0xff]
        %v3389 = vld [vmem:[#allocation2 + $0x400] sm:$0xff]
        %v3390 = vld [vmem:[#allocation2 + $0x408] sm:$0xff]
        %v3391 = vld [vmem:[#allocation2 + $0x410] sm:$0xff]
        %v3392 = vld [vmem:[#allocation2 + $0x418] sm:$0xff]
        %v3393 = vld [vmem:[#allocation2 + $0x420] sm:$0xff]
        %v3394 = vld [vmem:[#allocation2 + $0x428] sm:$0xff]
        %v3395 = vld [vmem:[#allocation2 + $0x430] sm:$0xff]
        %v3396 = vld [vmem:[#allocation2 + $0x438] sm:$0xff]
        %v3397 = vld [vmem:[#allocation2 + $0x440] sm:$0xff]
        %v3398 = vld [vmem:[#allocation2 + $0x448] sm:$0xff]
        %v3399 = vld [vmem:[#allocation2 + $0x450] sm:$0xff]
        %v3400 = vld [vmem:[#allocation2 + $0x458] sm:$0xff]
        %v3401 = vld [vmem:[#allocation2 + $0x460] sm:$0xff]
        %v3402 = vld [vmem:[#allocation2 + $0x468] sm:$0xff]
        %v3403 = vld [vmem:[#allocation2 + $0x470] sm:$0xff]
        %v3404 = vld [vmem:[#allocation2 + $0x478] sm:$0xff]
        %s3405 = scalar_lea.vmem %s4, 32
        %v3406 = vld [vmem:[%s3405] sm:$0xff]
        %v3407 = vld [vmem:[%s3405 + $0x8] sm:$0xff]
        %v3408 = vld [vmem:[%s3405 + $0x10] sm:$0xff]
        %v3409 = vld [vmem:[%s3405 + $0x18] sm:$0xff]
        %3411 = vset.pattern.permute.xlu0 0
        %3412 = vperm.xlu0 %3411, %v3406
        %v3413 = vpop.permute.xlu0 %3412
        %3416 = vset.pattern.permute.xlu0 0
        %3417 = vperm.xlu0 %3416, %v3407
        %v3418 = vpop.permute.xlu0 %3417
        %3421 = vset.pattern.permute.xlu0 0
        %3422 = vperm.xlu0 %3421, %v3408
        %v3423 = vpop.permute.xlu0 %3422
        %3426 = vset.pattern.permute.xlu0 0
        %3427 = vperm.xlu0 %3426, %v3409
        %v3428 = vpop.permute.xlu0 %3427
        %v3431 = vsel %vm1644, %v3251, 0
        %v3434 = vsel %vm1644, %v3254, 0
        %v3437 = vsel %vm1644, %v3257, 0
        %v3440 = vsel %vm1644, %v3260, 0
        %3442 = vmatprep.subr.mxu0 %v3322
        %3443 = vmatpush1.msra.mxu0 %v3321
        %3444 = vmatprep.subr.mxu0 %v3318
        %3445 = vmatpush1.msra.mxu0 %v3317
        %3446 = vmatprep.subr.mxu0 %v3314
        %3447 = vmatpush1.msra.mxu0 %v3313
        %3448 = vmatprep.subr.mxu0 %v3310
        %3449 = vmatpush1.msra.mxu0 %v3309
        %3450 = vmatprep.subr.mxu0 %v3306
        %3451 = vmatpush1.msra.mxu0 %v3305
        %3452 = vmatprep.subr.mxu0 %v3302
        %3453 = vmatpush1.msra.mxu0 %v3301
        %3454 = vmatprep.subr.mxu0 %v3298
        %3455 = vmatpush1.msra.mxu0 %v3297
        %3456 = vmatprep.subr.mxu0 %v3294
        %3457 = vmatpush1.msra.mxu0 %v3293
        %3458 = vmatprep.subr.mxu0 %v3290
        %3459 = vmatpush1.msra.mxu0 %v3289
        %3460 = vmatprep.subr.mxu0 %v3286
        %3461 = vmatpush1.msra.mxu0 %v3285
        %3462 = vmatprep.subr.mxu0 %v3282
        %3463 = vmatpush1.msra.mxu0 %v3281
        %3464 = vmatprep.subr.mxu0 %v3278
        %3465 = vmatpush1.msra.mxu0 %v3277
        %3466 = vmatprep.subr.mxu0 %v3274
        %3467 = vmatpush1.msra.mxu0 %v3273
        %3468 = vmatprep.subr.mxu0 %v3270
        %3469 = vmatpush1.msra.mxu0 %v3269
        %3470 = vmatprep.subr.mxu0 %v3266
        %3471 = vmatpush1.msra.mxu0 %v3265
        %3472 = vmatprep.subr.mxu0 %v3262
        %3473 = vmatpush1.msra.mxu0 %v3261
        %3474 = vmatprep.subr.mxu0 %v3386
        %3475 = vmatpush2.msra.mxu0 %v3385
        %3476 = vmatprep.subr.mxu0 %v3382
        %3477 = vmatpush2.msra.mxu0 %v3381
        %3478 = vmatprep.subr.mxu0 %v3378
        %3479 = vmatpush2.msra.mxu0 %v3377
        %3480 = vmatprep.subr.mxu0 %v3374
        %3481 = vmatpush2.msra.mxu0 %v3373
        %3482 = vmatprep.subr.mxu0 %v3370
        %3483 = vmatpush2.msra.mxu0 %v3369
        %3484 = vmatprep.subr.mxu0 %v3366
        %3485 = vmatpush2.msra.mxu0 %v3365
        %3486 = vmatprep.subr.mxu0 %v3362
        %3487 = vmatpush2.msra.mxu0 %v3361
        %3488 = vmatprep.subr.mxu0 %v3358
        %3489 = vmatpush2.msra.mxu0 %v3357
        %3490 = vmatprep.subr.mxu0 %v3354
        %3491 = vmatpush2.msra.mxu0 %v3353
        %3492 = vmatprep.subr.mxu0 %v3350
        %3493 = vmatpush2.msra.mxu0 %v3349
        %3494 = vmatprep.subr.mxu0 %v3346
        %3495 = vmatpush2.msra.mxu0 %v3345
        %3496 = vmatprep.subr.mxu0 %v3342
        %3497 = vmatpush2.msra.mxu0 %v3341
        %3498 = vmatprep.subr.mxu0 %v3338
        %3499 = vmatpush2.msra.mxu0 %v3337
        %3500 = vmatprep.subr.mxu0 %v3334
        %3501 = vmatpush2.msra.mxu0 %v3333
        %3502 = vmatprep.subr.mxu0 %v3330
        %3503 = vmatpush2.msra.mxu0 %v3329
        %3504 = vmatprep.subr.mxu0 %v3326
        %3505 = vmatpush2.msra.mxu0 %v3325
        %3506 = vmatprep.mubr.f32.mxu0 %v3250
        %3507 = vmatmul.mubr.f32.gmra.mxu0 %v3249
        %v3508 = vpop.f32.mrf.mxu0
        %v3509 = vadd.f32 %v3413, %v3508
        %v3510 = vpop.f32.mrf.mxu0
        %v3511 = vadd.f32 %v3413, %v3510
        %3512 = vmatprep.mubr.f32.mxu0 %v3253
        %3513 = vmatmul.mubr.f32.gmra.mxu0 %v3252
        %v3514 = vpop.f32.mrf.mxu0
        %v3515 = vadd.f32 %v3418, %v3514
        %v3516 = vpop.f32.mrf.mxu0
        %v3517 = vadd.f32 %v3418, %v3516
        %3518 = vmatprep.mubr.f32.mxu0 %v3256
        %3519 = vmatmul.mubr.f32.gmra.mxu0 %v3255
        %v3520 = vpop.f32.mrf.mxu0
        %v3521 = vadd.f32 %v3423, %v3520
        %v3522 = vpop.f32.mrf.mxu0
        %v3523 = vadd.f32 %v3423, %v3522
        %3524 = vmatprep.mubr.f32.mxu0 %v3259
        %3525 = vmatmul.mubr.f32.gmra.mxu0 %v3258
        %v3526 = vpop.f32.mrf.mxu0
        %v3527 = vadd.f32 %v3428, %v3526
        %v3528 = vpop.f32.mrf.mxu0
        %v3529 = vadd.f32 %v3428, %v3528
        %3530 = vdwg.mxu0
        %3531 = vmatprep.subr.mxu0 0.0
        %3532 = vmatpush1.msra.mxu0 0.0
        %3533 = vmatprep.subr.mxu0 0.0
        %3534 = vmatpush1.msra.mxu0 0.0
        %3535 = vmatprep.subr.mxu0 0.0
        %3536 = vmatpush1.msra.mxu0 0.0
        %3537 = vmatprep.subr.mxu0 0.0
        %3538 = vmatpush1.msra.mxu0 0.0
        %3539 = vmatprep.subr.mxu0 0.0
        %3540 = vmatpush1.msra.mxu0 0.0
        %3541 = vmatprep.subr.mxu0 0.0
        %3542 = vmatpush1.msra.mxu0 0.0
        %3543 = vmatprep.subr.mxu0 0.0
        %3544 = vmatpush1.msra.mxu0 0.0
        %3545 = vmatprep.subr.mxu0 0.0
        %3546 = vmatpush1.msra.mxu0 0.0
        %3547 = vmatprep.subr.mxu0 0.0
        %3548 = vmatpush1.msra.mxu0 0.0
        %3549 = vmatprep.subr.mxu0 0.0
        %3550 = vmatpush1.msra.mxu0 0.0
        %3551 = vmatprep.subr.mxu0 0.0
        %3552 = vmatpush1.msra.mxu0 0.0
        %3553 = vmatprep.subr.mxu0 0.0
        %3554 = vmatpush1.msra.mxu0 0.0
        %3555 = vmatprep.subr.mxu0 %v3402
        %3556 = vmatpush1.msra.mxu0 %v3401
        %3557 = vmatprep.subr.mxu0 %v3398
        %3558 = vmatpush1.msra.mxu0 %v3397
        %3559 = vmatprep.subr.mxu0 %v3394
        %3560 = vmatpush1.msra.mxu0 %v3393
        %3561 = vmatprep.subr.mxu0 %v3390
        %3562 = vmatpush1.msra.mxu0 %v3389
        %3563 = vmatprep.subr.mxu0 0.0
        %3564 = vmatpush2.msra.mxu0 0.0
        %3565 = vmatprep.subr.mxu0 0.0
        %3566 = vmatpush2.msra.mxu0 0.0
        %3567 = vmatprep.subr.mxu0 0.0
        %3568 = vmatpush2.msra.mxu0 0.0
        %3569 = vmatprep.subr.mxu0 0.0
        %3570 = vmatpush2.msra.mxu0 0.0
        %3571 = vmatprep.subr.mxu0 0.0
        %3572 = vmatpush2.msra.mxu0 0.0
        %3573 = vmatprep.subr.mxu0 0.0
        %3574 = vmatpush2.msra.mxu0 0.0
        %3575 = vmatprep.subr.mxu0 0.0
        %3576 = vmatpush2.msra.mxu0 0.0
        %3577 = vmatprep.subr.mxu0 0.0
        %3578 = vmatpush2.msra.mxu0 0.0
        %3579 = vmatprep.subr.mxu0 0.0
        %3580 = vmatpush2.msra.mxu0 0.0
        %3581 = vmatprep.subr.mxu0 0.0
        %3582 = vmatpush2.msra.mxu0 0.0
        %3583 = vmatprep.subr.mxu0 0.0
        %3584 = vmatpush2.msra.mxu0 0.0
        %3585 = vmatprep.subr.mxu0 0.0
        %3586 = vmatpush2.msra.mxu0 0.0
        %3587 = vmatprep.subr.mxu0 0.0
        %3588 = vmatpush2.msra.mxu0 0.0
        %3589 = vmatprep.subr.mxu0 0.0
        %3590 = vmatpush2.msra.mxu0 0.0
        %3591 = vmatprep.subr.mxu0 0.0
        %3592 = vmatpush2.msra.mxu0 0.0
        %3593 = vmatprep.subr.mxu0 0.0
        %3594 = vmatpush2.msra.mxu0 0.0
        %3595 = vmatprep.mubr.f32.mxu0 0.0
        %3596 = vmatmul.mubr.f32.gmra.mxu0 %v3431
        %v3597 = vpop.f32.mrf.mxu0
        %v3598 = vadd.f32 %v3509, %v3597
        %v3599 = vpop.f32.mrf.mxu0
        %v3600 = vadd.f32 %v3511, %v3599
        %3601 = vmatprep.mubr.f32.mxu0 0.0
        %3602 = vmatmul.mubr.f32.gmra.mxu0 %v3434
        %v3603 = vpop.f32.mrf.mxu0
        %v3604 = vadd.f32 %v3515, %v3603
        %v3605 = vpop.f32.mrf.mxu0
        %v3606 = vadd.f32 %v3517, %v3605
        %3607 = vmatprep.mubr.f32.mxu0 0.0
        %3608 = vmatmul.mubr.f32.gmra.mxu0 %v3437
        %v3609 = vpop.f32.mrf.mxu0
        %v3610 = vadd.f32 %v3521, %v3609
        %v3611 = vpop.f32.mrf.mxu0
        %v3612 = vadd.f32 %v3523, %v3611
        %3613 = vmatprep.mubr.f32.mxu0 0.0
        %3614 = vmatmul.mubr.f32.gmra.mxu0 %v3440
        %v3615 = vpop.f32.mrf.mxu0
        %v3616 = vadd.f32 %v3527, %v3615
        %v3617 = vpop.f32.mrf.mxu0
        %v3618 = vadd.f32 %v3529, %v3617
        %3619 = vdwg.mxu0
        %3620 = vmatprep.subr.mxu0 %v3324
        %3621 = vmatpush1.msra.mxu0 %v3323
        %3622 = vmatprep.subr.mxu0 %v3320
        %3623 = vmatpush1.msra.mxu0 %v3319
        %3624 = vmatprep.subr.mxu0 %v3316
        %3625 = vmatpush1.msra.mxu0 %v3315
        %3626 = vmatprep.subr.mxu0 %v3312
        %3627 = vmatpush1.msra.mxu0 %v3311
        %3628 = vmatprep.subr.mxu0 %v3308
        %3629 = vmatpush1.msra.mxu0 %v3307
        %3630 = vmatprep.subr.mxu0 %v3304
        %3631 = vmatpush1.msra.mxu0 %v3303
        %3632 = vmatprep.subr.mxu0 %v3300
        %3633 = vmatpush1.msra.mxu0 %v3299
        %3634 = vmatprep.subr.mxu0 %v3296
        %3635 = vmatpush1.msra.mxu0 %v3295
        %3636 = vmatprep.subr.mxu0 %v3292
        %3637 = vmatpush1.msra.mxu0 %v3291
        %3638 = vmatprep.subr.mxu0 %v3288
        %3639 = vmatpush1.msra.mxu0 %v3287
        %3640 = vmatprep.subr.mxu0 %v3284
        %3641 = vmatpush1.msra.mxu0 %v3283
        %3642 = vmatprep.subr.mxu0 %v3280
        %3643 = vmatpush1.msra.mxu0 %v3279
        %3644 = vmatprep.subr.mxu0 %v3276
        %3645 = vmatpush1.msra.mxu0 %v3275
        %3646 = vmatprep.subr.mxu0 %v3272
        %3647 = vmatpush1.msra.mxu0 %v3271
        %3648 = vmatprep.subr.mxu0 %v3268
        %3649 = vmatpush1.msra.mxu0 %v3267
        %3650 = vmatprep.subr.mxu0 %v3264
        %3651 = vmatpush1.msra.mxu0 %v3263
        %3652 = vmatprep.subr.mxu0 %v3388
        %3653 = vmatpush2.msra.mxu0 %v3387
        %3654 = vmatprep.subr.mxu0 %v3384
        %3655 = vmatpush2.msra.mxu0 %v3383
        %3656 = vmatprep.subr.mxu0 %v3380
        %3657 = vmatpush2.msra.mxu0 %v3379
        %3658 = vmatprep.subr.mxu0 %v3376
        %3659 = vmatpush2.msra.mxu0 %v3375
        %3660 = vmatprep.subr.mxu0 %v3372
        %3661 = vmatpush2.msra.mxu0 %v3371
        %3662 = vmatprep.subr.mxu0 %v3368
        %3663 = vmatpush2.msra.mxu0 %v3367
        %3664 = vmatprep.subr.mxu0 %v3364
        %3665 = vmatpush2.msra.mxu0 %v3363
        %3666 = vmatprep.subr.mxu0 %v3360
        %3667 = vmatpush2.msra.mxu0 %v3359
        %3668 = vmatprep.subr.mxu0 %v3356
        %3669 = vmatpush2.msra.mxu0 %v3355
        %3670 = vmatprep.subr.mxu0 %v3352
        %3671 = vmatpush2.msra.mxu0 %v3351
        %3672 = vmatprep.subr.mxu0 %v3348
        %3673 = vmatpush2.msra.mxu0 %v3347
        %3674 = vmatprep.subr.mxu0 %v3344
        %3675 = vmatpush2.msra.mxu0 %v3343
        %3676 = vmatprep.subr.mxu0 %v3340
        %3677 = vmatpush2.msra.mxu0 %v3339
        %3678 = vmatprep.subr.mxu0 %v3336
        %3679 = vmatpush2.msra.mxu0 %v3335
        %3680 = vmatprep.subr.mxu0 %v3332
        %3681 = vmatpush2.msra.mxu0 %v3331
        %3682 = vmatprep.subr.mxu0 %v3328
        %3683 = vmatpush2.msra.mxu0 %v3327
        %3684 = vmatprep.mubr.f32.mxu0 %v3250
        %3685 = vmatmul.mubr.f32.gmra.mxu0 %v3249
        %v3686 = vpop.f32.mrf.mxu0
        %v3687 = vadd.f32 %v3413, %v3686
        %v3688 = vpop.f32.mrf.mxu0
        %v3689 = vadd.f32 %v3413, %v3688
        %3690 = vmatprep.mubr.f32.mxu0 %v3253
        %3691 = vmatmul.mubr.f32.gmra.mxu0 %v3252
        %v3692 = vpop.f32.mrf.mxu0
        %v3693 = vadd.f32 %v3418, %v3692
        %v3694 = vpop.f32.mrf.mxu0
        %v3695 = vadd.f32 %v3418, %v3694
        %3696 = vmatprep.mubr.f32.mxu0 %v3256
        %3697 = vmatmul.mubr.f32.gmra.mxu0 %v3255
        %v3698 = vpop.f32.mrf.mxu0
        %v3699 = vadd.f32 %v3423, %v3698
        %v3700 = vpop.f32.mrf.mxu0
        %v3701 = vadd.f32 %v3423, %v3700
        %3702 = vmatprep.mubr.f32.mxu0 %v3259
        %3703 = vmatmul.mubr.f32.gmra.mxu0 %v3258
        %v3704 = vpop.f32.mrf.mxu0
        %v3705 = vadd.f32 %v3428, %v3704
        %v3706 = vpop.f32.mrf.mxu0
        %v3707 = vadd.f32 %v3428, %v3706
        %3708 = vdwg.mxu0
        %3709 = vmatprep.subr.mxu0 0.0
        %3710 = vmatpush1.msra.mxu0 0.0
        %3711 = vmatprep.subr.mxu0 0.0
        %3712 = vmatpush1.msra.mxu0 0.0
        %3713 = vmatprep.subr.mxu0 0.0
        %3714 = vmatpush1.msra.mxu0 0.0
        %3715 = vmatprep.subr.mxu0 0.0
        %3716 = vmatpush1.msra.mxu0 0.0
        %3717 = vmatprep.subr.mxu0 0.0
        %3718 = vmatpush1.msra.mxu0 0.0
        %3719 = vmatprep.subr.mxu0 0.0
        %3720 = vmatpush1.msra.mxu0 0.0
        %3721 = vmatprep.subr.mxu0 0.0
        %3722 = vmatpush1.msra.mxu0 0.0
        %3723 = vmatprep.subr.mxu0 0.0
        %3724 = vmatpush1.msra.mxu0 0.0
        %3725 = vmatprep.subr.mxu0 0.0
        %3726 = vmatpush1.msra.mxu0 0.0
        %3727 = vmatprep.subr.mxu0 0.0
        %3728 = vmatpush1.msra.mxu0 0.0
        %3729 = vmatprep.subr.mxu0 0.0
        %3730 = vmatpush1.msra.mxu0 0.0
        %3731 = vmatprep.subr.mxu0 0.0
        %3732 = vmatpush1.msra.mxu0 0.0
        %3733 = vmatprep.subr.mxu0 %v3404
        %3734 = vmatpush1.msra.mxu0 %v3403
        %3735 = vmatprep.subr.mxu0 %v3400
        %3736 = vmatpush1.msra.mxu0 %v3399
        %3737 = vmatprep.subr.mxu0 %v3396
        %3738 = vmatpush1.msra.mxu0 %v3395
        %3739 = vmatprep.subr.mxu0 %v3392
        %3740 = vmatpush1.msra.mxu0 %v3391
        %3741 = vmatprep.subr.mxu0 0.0
        %3742 = vmatpush2.msra.mxu0 0.0
        %3743 = vmatprep.subr.mxu0 0.0
        %3744 = vmatpush2.msra.mxu0 0.0
        %3745 = vmatprep.subr.mxu0 0.0
        %3746 = vmatpush2.msra.mxu0 0.0
        %3747 = vmatprep.subr.mxu0 0.0
        %3748 = vmatpush2.msra.mxu0 0.0
        %3749 = vmatprep.subr.mxu0 0.0
        %3750 = vmatpush2.msra.mxu0 0.0
        %3751 = vmatprep.subr.mxu0 0.0
        %3752 = vmatpush2.msra.mxu0 0.0
        %3753 = vmatprep.subr.mxu0 0.0
        %3754 = vmatpush2.msra.mxu0 0.0
        %3755 = vmatprep.subr.mxu0 0.0
        %3756 = vmatpush2.msra.mxu0 0.0
        %3757 = vmatprep.subr.mxu0 0.0
        %3758 = vmatpush2.msra.mxu0 0.0
        %3759 = vmatprep.subr.mxu0 0.0
        %3760 = vmatpush2.msra.mxu0 0.0
        %3761 = vmatprep.subr.mxu0 0.0
        %3762 = vmatpush2.msra.mxu0 0.0
        %3763 = vmatprep.subr.mxu0 0.0
        %3764 = vmatpush2.msra.mxu0 0.0
        %3765 = vmatprep.subr.mxu0 0.0
        %3766 = vmatpush2.msra.mxu0 0.0
        %3767 = vmatprep.subr.mxu0 0.0
        %3768 = vmatpush2.msra.mxu0 0.0
        %3769 = vmatprep.subr.mxu0 0.0
        %3770 = vmatpush2.msra.mxu0 0.0
        %3771 = vmatprep.subr.mxu0 0.0
        %3772 = vmatpush2.msra.mxu0 0.0
        %3773 = vmatprep.mubr.f32.mxu0 0.0
        %3774 = vmatmul.mubr.f32.gmra.mxu0 %v3431
        %v3775 = vpop.f32.mrf.mxu0
        %v3776 = vadd.f32 %v3687, %v3775
        %v3777 = vpop.f32.mrf.mxu0
        %v3778 = vadd.f32 %v3689, %v3777
        %3779 = vmatprep.mubr.f32.mxu0 0.0
        %3780 = vmatmul.mubr.f32.gmra.mxu0 %v3434
        %v3781 = vpop.f32.mrf.mxu0
        %v3782 = vadd.f32 %v3693, %v3781
        %v3783 = vpop.f32.mrf.mxu0
        %v3784 = vadd.f32 %v3695, %v3783
        %3785 = vmatprep.mubr.f32.mxu0 0.0
        %3786 = vmatmul.mubr.f32.gmra.mxu0 %v3437
        %v3787 = vpop.f32.mrf.mxu0
        %v3788 = vadd.f32 %v3699, %v3787
        %v3789 = vpop.f32.mrf.mxu0
        %v3790 = vadd.f32 %v3701, %v3789
        %3791 = vmatprep.mubr.f32.mxu0 0.0
        %3792 = vmatmul.mubr.f32.gmra.mxu0 %v3440
        %v3793 = vpop.f32.mrf.mxu0
        %v3794 = vadd.f32 %v3705, %v3793
        %v3795 = vpop.f32.mrf.mxu0
        %v3796 = vadd.f32 %v3707, %v3795
        %3797 = vdwg.mxu0
        %v3798 = vadd.f32 %v3598, %v3604
        %v3799 = vadd.f32 %v3798, %v3610
        %v3800 = vadd.f32 %v3799, %v3616
        %v3801 = vrot.slane %v3800, 4
        %v3802 = vadd.f32 %v3800, %v3801
        %v3803 = vrot.slane %v3802, 2
        %v3804 = vadd.f32 %v3802, %v3803
        %v3805 = vrot.slane %v3804, 1
        %v3806 = vadd.f32 %v3804, %v3805
        %v3807 = vadd.f32 %v3600, %v3606
        %v3808 = vadd.f32 %v3807, %v3612
        %v3809 = vadd.f32 %v3808, %v3618
        %v3810 = vrot.slane %v3809, 4
        %v3811 = vadd.f32 %v3809, %v3810
        %v3812 = vrot.slane %v3811, 2
        %v3813 = vadd.f32 %v3811, %v3812
        %v3814 = vrot.slane %v3813, 1
        %v3815 = vadd.f32 %v3813, %v3814
        %v3816 = vadd.f32 %v3776, %v3782
        %v3817 = vadd.f32 %v3816, %v3788
        %v3818 = vadd.f32 %v3817, %v3794
        %v3819 = vrot.slane %v3818, 4
        %v3820 = vadd.f32 %v3818, %v3819
        %v3821 = vrot.slane %v3820, 2
        %v3822 = vadd.f32 %v3820, %v3821
        %v3823 = vrot.slane %v3822, 1
        %v3824 = vadd.f32 %v3822, %v3823
        %v3825 = vadd.f32 %v3778, %v3784
        %v3826 = vadd.f32 %v3825, %v3790
        %v3827 = vadd.f32 %v3826, %v3796
        %v3828 = vrot.slane %v3827, 4
        %v3829 = vadd.f32 %v3827, %v3828
        %v3830 = vrot.slane %v3829, 2
        %v3831 = vadd.f32 %v3829, %v3830
        %v3832 = vrot.slane %v3831, 1
        %v3833 = vadd.f32 %v3831, %v3832
        %v3834 = vmul.f32 %v3598, %v3598
        %v3835 = vmul.f32 %v3600, %v3600
        %v3836 = vmul.f32 %v3776, %v3776
        %v3837 = vmul.f32 %v3778, %v3778
        %v3838 = vmul.f32 %v3604, %v3604
        %v3839 = vmul.f32 %v3606, %v3606
        %v3840 = vmul.f32 %v3782, %v3782
        %v3841 = vmul.f32 %v3784, %v3784
        %v3842 = vmul.f32 %v3610, %v3610
        %v3843 = vmul.f32 %v3612, %v3612
        %v3844 = vmul.f32 %v3788, %v3788
        %v3845 = vmul.f32 %v3790, %v3790
        %v3846 = vmul.f32 %v3616, %v3616
        %v3847 = vmul.f32 %v3618, %v3618
        %v3848 = vmul.f32 %v3794, %v3794
        %v3849 = vmul.f32 %v3796, %v3796
        %v3850 = vadd.f32 %v3834, %v3838
        %v3851 = vadd.f32 %v3850, %v3842
        %v3852 = vadd.f32 %v3851, %v3846
        %v3853 = vrot.slane %v3852, 4
        %v3854 = vadd.f32 %v3852, %v3853
        %v3855 = vrot.slane %v3854, 2
        %v3856 = vadd.f32 %v3854, %v3855
        %v3857 = vrot.slane %v3856, 1
        %v3858 = vadd.f32 %v3856, %v3857
        %v3859 = vadd.f32 %v3835, %v3839
        %v3860 = vadd.f32 %v3859, %v3843
        %v3861 = vadd.f32 %v3860, %v3847
        %v3862 = vrot.slane %v3861, 4
        %v3863 = vadd.f32 %v3861, %v3862
        %v3864 = vrot.slane %v3863, 2
        %v3865 = vadd.f32 %v3863, %v3864
        %v3866 = vrot.slane %v3865, 1
        %v3867 = vadd.f32 %v3865, %v3866
        %v3868 = vadd.f32 %v3836, %v3840
        %v3869 = vadd.f32 %v3868, %v3844
        %v3870 = vadd.f32 %v3869, %v3848
        %v3871 = vrot.slane %v3870, 4
        %v3872 = vadd.f32 %v3870, %v3871
        %v3873 = vrot.slane %v3872, 2
        %v3874 = vadd.f32 %v3872, %v3873
        %v3875 = vrot.slane %v3874, 1
        %v3876 = vadd.f32 %v3874, %v3875
        %v3877 = vadd.f32 %v3837, %v3841
        %v3878 = vadd.f32 %v3877, %v3845
        %v3879 = vadd.f32 %v3878, %v3849
        %v3880 = vrot.slane %v3879, 4
        %v3881 = vadd.f32 %v3879, %v3880
        %v3882 = vrot.slane %v3881, 2
        %v3883 = vadd.f32 %v3881, %v3882
        %v3884 = vrot.slane %v3883, 1
        %v3885 = vadd.f32 %v3883, %v3884
        %v3886 = vld [vmem:[%s9] sm:$0xf]
        %v3888 = vlaneseq
        %v3889 = vshrl.u32 %v3888, 7
        %v3890 = vsub.s32 0, %v3889
        %v3891 = vrot.slane %v3886, %v3890
        %v3892 = vlaneseq
        %v3893 = vshrl.u32 %v3892, 7
        %v3894 = vsub.s32 1, %v3893
        %v3895 = vrot.slane %v3886, %v3894
        %v3896 = vlaneseq
        %v3897 = vshrl.u32 %v3896, 7
        %v3898 = vsub.s32 2, %v3897
        %v3899 = vrot.slane %v3886, %v3898
        %v3900 = vlaneseq
        %v3901 = vshrl.u32 %v3900, 7
        %v3902 = vsub.s32 3, %v3901
        %v3903 = vrot.slane %v3886, %v3902
        %v3908 = vmul.f32 %v3806, %v3891
        %v3909 = vmul.f32 %v3815, %v3895
        %v3910 = vmul.f32 %v3824, %v3899
        %v3911 = vmul.f32 %v3833, %v3903
        %v3912 = vsel %vm2127, %v3908, 0.0
        %v3913 = vsel %vm2127, %v3909, 0.0
        %v3914 = vadd.f32 %v3912, %v3913
        %v3915 = vsel %vm2127, %v3910, 0.0
        %v3916 = vadd.f32 %v3914, %v3915
        %v3917 = vsel %vm2127, %v3911, 0.0
        %v3918 = vadd.f32 %v3916, %v3917
        %3919 = vadd.xlane.f32.xlu0 %v3918
        %v3920 = vpop.xlane.xlu0 %3919
        %v3921 = vrot.slane %v3920, 4
        %v3922 = vadd.f32 %v3920, %v3921
        %v3923 = vrot.slane %v3922, 2
        %v3924 = vadd.f32 %v3922, %v3923
        %v3925 = vrot.slane %v3924, 1
        %v3926 = vadd.f32 %v3924, %v3925
        %s3927 = vtos %v3926
        %v3928 = vstv %s3927
        %v3929 = vmul.f32 %v3928, 0.00012207031
        %v3930 = vmul.f32 %v3929, %v3886
        %v3931 = vadd.f32 %v3930, 0.0
        %v3932 = vld [vmem:[%s476] sm:$0xf]
        %v3934 = vlaneseq
        %v3935 = vshrl.u32 %v3934, 7
        %v3936 = vsub.s32 0, %v3935
        %v3937 = vrot.slane %v3932, %v3936
        %v3938 = vlaneseq
        %v3939 = vshrl.u32 %v3938, 7
        %v3940 = vsub.s32 1, %v3939
        %v3941 = vrot.slane %v3932, %v3940
        %v3942 = vlaneseq
        %v3943 = vshrl.u32 %v3942, 7
        %v3944 = vsub.s32 2, %v3943
        %v3945 = vrot.slane %v3932, %v3944
        %v3946 = vlaneseq
        %v3947 = vshrl.u32 %v3946, 7
        %v3948 = vsub.s32 3, %v3947
        %v3949 = vrot.slane %v3932, %v3948
        %v3954 = vmul.f32 %v3806, %v3937
        %v3955 = vmul.f32 %v3815, %v3941
        %v3956 = vmul.f32 %v3824, %v3945
        %v3957 = vmul.f32 %v3833, %v3949
        %v3958 = vsel %vm2127, %v3954, 0.0
        %v3959 = vsel %vm2127, %v3955, 0.0
        %v3960 = vadd.f32 %v3958, %v3959
        %v3961 = vsel %vm2127, %v3956, 0.0
        %v3962 = vadd.f32 %v3960, %v3961
        %v3963 = vsel %vm2127, %v3957, 0.0
        %v3964 = vadd.f32 %v3962, %v3963
        %3965 = vadd.xlane.f32.xlu0 %v3964
        %v3966 = vpop.xlane.xlu0 %3965
        %v3967 = vrot.slane %v3966, 4
        %v3968 = vadd.f32 %v3966, %v3967
        %v3969 = vrot.slane %v3968, 2
        %v3970 = vadd.f32 %v3968, %v3969
        %v3971 = vrot.slane %v3970, 1
        %v3972 = vadd.f32 %v3970, %v3971
        %s3973 = vtos %v3972
        %v3974 = vstv %s3973
        %v3975 = vmul.f32 %v3974, 0.00012207031
        %v3976 = vmul.f32 %v3975, %v3932
        %v3977 = vadd.f32 %v3931, %v3976
        %v3978 = vmul.f32 %v3858, %v3891
        %v3979 = vmul.f32 %v3867, %v3895
        %v3980 = vmul.f32 %v3876, %v3899
        %v3981 = vmul.f32 %v3885, %v3903
        %v3982 = vsel %vm2127, %v3978, 0.0
        %v3983 = vsel %vm2127, %v3979, 0.0
        %v3984 = vadd.f32 %v3982, %v3983
        %v3985 = vsel %vm2127, %v3980, 0.0
        %v3986 = vadd.f32 %v3984, %v3985
        %v3987 = vsel %vm2127, %v3981, 0.0
        %v3988 = vadd.f32 %v3986, %v3987
        %3989 = vadd.xlane.f32.xlu0 %v3988
        %v3990 = vpop.xlane.xlu0 %3989
        %v3991 = vrot.slane %v3990, 4
        %v3992 = vadd.f32 %v3990, %v3991
        %v3993 = vrot.slane %v3992, 2
        %v3994 = vadd.f32 %v3992, %v3993
        %v3995 = vrot.slane %v3994, 1
        %v3996 = vadd.f32 %v3994, %v3995
        %s3997 = vtos %v3996
        %v3998 = vstv %s3997
        %v3999 = vmul.f32 %v3998, 0.00012207031
        %v4000 = vmul.f32 %v3999, %v3886
        %v4001 = vadd.f32 %v4000, 0.0
        %v4002 = vmul.f32 %v3858, %v3937
        %v4003 = vmul.f32 %v3867, %v3941
        %v4004 = vmul.f32 %v3876, %v3945
        %v4005 = vmul.f32 %v3885, %v3949
        %v4006 = vsel %vm2127, %v4002, 0.0
        %v4007 = vsel %vm2127, %v4003, 0.0
        %v4008 = vadd.f32 %v4006, %v4007
        %v4009 = vsel %vm2127, %v4004, 0.0
        %v4010 = vadd.f32 %v4008, %v4009
        %v4011 = vsel %vm2127, %v4005, 0.0
        %v4012 = vadd.f32 %v4010, %v4011
        %4013 = vadd.xlane.f32.xlu0 %v4012
        %v4014 = vpop.xlane.xlu0 %4013
        %v4015 = vrot.slane %v4014, 4
        %v4016 = vadd.f32 %v4014, %v4015
        %v4017 = vrot.slane %v4016, 2
        %v4018 = vadd.f32 %v4016, %v4017
        %v4019 = vrot.slane %v4018, 1
        %v4020 = vadd.f32 %v4018, %v4019
        %s4021 = vtos %v4020
        %v4022 = vstv %s4021
        %v4023 = vmul.f32 %v4022, 0.00012207031
        %v4024 = vmul.f32 %v4023, %v3932
        %v4025 = vadd.f32 %v4001, %v4024
        %v4026 = vmul.f32 %v3977, %v3977
        %v4027 = vsub.f32 %v4025, %v4026
        %s4028 = scalar_lea.vmem %s5, 32
        %v4029 = vld [vmem:[%s4028] sm:$0xff]
        %v4030 = vld [vmem:[%s4028 + $0x8] sm:$0xff]
        %v4031 = vld [vmem:[%s4028 + $0x10] sm:$0xff]
        %v4032 = vld [vmem:[%s4028 + $0x18] sm:$0xff]
        %v4033 = vadd.f32 %v4027, 1e-05
        %v4034 = vrsqrt.pop %v4033
        %4036 = vset.pattern.permute.xlu0 0
        %4037 = vperm.xlu0 %4036, %v4029
        %v4038 = vpop.permute.xlu0 %4037
        %4041 = vset.pattern.permute.xlu0 0
        %4042 = vperm.xlu0 %4041, %v4030
        %v4043 = vpop.permute.xlu0 %4042
        %4046 = vset.pattern.permute.xlu0 0
        %4047 = vperm.xlu0 %4046, %v4031
        %v4048 = vpop.permute.xlu0 %4047
        %4051 = vset.pattern.permute.xlu0 0
        %4052 = vperm.xlu0 %4051, %v4032
        %v4053 = vpop.permute.xlu0 %4052
        %v4056 = vlaneseq
        %v4057 = vshrl.u32 %v4056, 7
        %v4058 = vsub.s32 0, %v4057
        %v4059 = vrot.slane %v4034, %v4058
        %v4060 = vlaneseq
        %v4061 = vshrl.u32 %v4060, 7
        %v4062 = vsub.s32 1, %v4061
        %v4063 = vrot.slane %v4034, %v4062
        %v4064 = vlaneseq
        %v4065 = vshrl.u32 %v4064, 7
        %v4066 = vsub.s32 2, %v4065
        %v4067 = vrot.slane %v4034, %v4066
        %v4068 = vlaneseq
        %v4069 = vshrl.u32 %v4068, 7
        %v4070 = vsub.s32 3, %v4069
        %v4071 = vrot.slane %v4034, %v4070
        %v4076 = vmul.f32 %v4038, %v4059
        %v4077 = vmul.f32 %v4038, %v4063
        %v4078 = vmul.f32 %v4038, %v4067
        %v4079 = vmul.f32 %v4038, %v4071
        %v4080 = vmul.f32 %v4043, %v4059
        %v4081 = vmul.f32 %v4043, %v4063
        %v4082 = vmul.f32 %v4043, %v4067
        %v4083 = vmul.f32 %v4043, %v4071
        %v4084 = vmul.f32 %v4048, %v4059
        %v4085 = vmul.f32 %v4048, %v4063
        %v4086 = vmul.f32 %v4048, %v4067
        %v4087 = vmul.f32 %v4048, %v4071
        %v4088 = vmul.f32 %v4053, %v4059
        %v4089 = vmul.f32 %v4053, %v4063
        %v4090 = vmul.f32 %v4053, %v4067
        %v4091 = vmul.f32 %v4053, %v4071
        %v4093 = vlaneseq
        %v4094 = vshrl.u32 %v4093, 7
        %v4095 = vsub.s32 0, %v4094
        %v4096 = vrot.slane %v3977, %v4095
        %v4097 = vlaneseq
        %v4098 = vshrl.u32 %v4097, 7
        %v4099 = vsub.s32 1, %v4098
        %v4100 = vrot.slane %v3977, %v4099
        %v4101 = vlaneseq
        %v4102 = vshrl.u32 %v4101, 7
        %v4103 = vsub.s32 2, %v4102
        %v4104 = vrot.slane %v3977, %v4103
        %v4105 = vlaneseq
        %v4106 = vshrl.u32 %v4105, 7
        %v4107 = vsub.s32 3, %v4106
        %v4108 = vrot.slane %v3977, %v4107
        %v4113 = vsub.f32 %v3598, %v4096
        %v4114 = vsub.f32 %v3600, %v4100
        %v4115 = vsub.f32 %v3776, %v4104
        %v4116 = vsub.f32 %v3778, %v4108
        %v4117 = vsub.f32 %v3604, %v4096
        %v4118 = vsub.f32 %v3606, %v4100
        %v4119 = vsub.f32 %v3782, %v4104
        %v4120 = vsub.f32 %v3784, %v4108
        %v4121 = vsub.f32 %v3610, %v4096
        %v4122 = vsub.f32 %v3612, %v4100
        %v4123 = vsub.f32 %v3788, %v4104
        %v4124 = vsub.f32 %v3790, %v4108
        %v4125 = vsub.f32 %v3616, %v4096
        %v4126 = vsub.f32 %v3618, %v4100
        %v4127 = vsub.f32 %v3794, %v4104
        %v4128 = vsub.f32 %v3796, %v4108
        %v4129 = vmul.f32 %v4113, %v4076
        %v4130 = vmul.f32 %v4114, %v4077
        %v4131 = vmul.f32 %v4115, %v4078
        %v4132 = vmul.f32 %v4116, %v4079
        %v4133 = vmul.f32 %v4117, %v4080
        %v4134 = vmul.f32 %v4118, %v4081
        %v4135 = vmul.f32 %v4119, %v4082
        %v4136 = vmul.f32 %v4120, %v4083
        %v4137 = vmul.f32 %v4121, %v4084
        %v4138 = vmul.f32 %v4122, %v4085
        %v4139 = vmul.f32 %v4123, %v4086
        %v4140 = vmul.f32 %v4124, %v4087
        %v4141 = vmul.f32 %v4125, %v4088
        %v4142 = vmul.f32 %v4126, %v4089
        %v4143 = vmul.f32 %v4127, %v4090
        %v4144 = vmul.f32 %v4128, %v4091
        %s4145 = scalar_lea.vmem %s6, 32
        %v4146 = vld [vmem:[%s4145] sm:$0xff]
        %v4147 = vld [vmem:[%s4145 + $0x8] sm:$0xff]
        %v4148 = vld [vmem:[%s4145 + $0x10] sm:$0xff]
        %v4149 = vld [vmem:[%s4145 + $0x18] sm:$0xff]
        %4151 = vset.pattern.permute.xlu0 0
        %4152 = vperm.xlu0 %4151, %v4146
        %v4153 = vpop.permute.xlu0 %4152
        %4156 = vset.pattern.permute.xlu0 0
        %4157 = vperm.xlu0 %4156, %v4147
        %v4158 = vpop.permute.xlu0 %4157
        %4161 = vset.pattern.permute.xlu0 0
        %4162 = vperm.xlu0 %4161, %v4148
        %v4163 = vpop.permute.xlu0 %4162
        %4166 = vset.pattern.permute.xlu0 0
        %4167 = vperm.xlu0 %4166, %v4149
        %v4168 = vpop.permute.xlu0 %4167
        %v4170 = vadd.f32 %v4129, %v4153
        %v4171 = vadd.f32 %v4130, %v4153
        %v4172 = vadd.f32 %v4131, %v4153
        %v4173 = vadd.f32 %v4132, %v4153
        %v4174 = vadd.f32 %v4133, %v4158
        %v4175 = vadd.f32 %v4134, %v4158
        %v4176 = vadd.f32 %v4135, %v4158
        %v4177 = vadd.f32 %v4136, %v4158
        %v4178 = vadd.f32 %v4137, %v4163
        %v4179 = vadd.f32 %v4138, %v4163
        %v4180 = vadd.f32 %v4139, %v4163
        %v4181 = vadd.f32 %v4140, %v4163
        %v4182 = vadd.f32 %v4141, %v4168
        %v4183 = vadd.f32 %v4142, %v4168
        %v4184 = vadd.f32 %v4143, %v4168
        %v4185 = vadd.f32 %v4144, %v4168
        %v4186 = vmax.f32 %v4170, 0.0
        %v4187 = vmax.f32 %v4171, 0.0
        %v4188 = vmax.f32 %v4172, 0.0
        %v4189 = vmax.f32 %v4173, 0.0
        %v4190 = vmax.f32 %v4174, 0.0
        %v4191 = vmax.f32 %v4175, 0.0
        %v4192 = vmax.f32 %v4176, 0.0
        %v4193 = vmax.f32 %v4177, 0.0
        %v4194 = vmax.f32 %v4178, 0.0
        %v4195 = vmax.f32 %v4179, 0.0
        %v4196 = vmax.f32 %v4180, 0.0
        %v4197 = vmax.f32 %v4181, 0.0
        %v4198 = vmax.f32 %v4182, 0.0
        %v4199 = vmax.f32 %v4183, 0.0
        %v4200 = vmax.f32 %v4184, 0.0
        %v4201 = vmax.f32 %v4185, 0.0
        %4202 = vrot.lane.b32.xlu0 %v4186, 17
        %v4203 = vpop.permute.xlu0 %4202
        %4204 = vrot.lane.b32.xlu0 %v4190, 17
        %v4205 = vpop.permute.xlu0 %4204
        %4206 = vrot.lane.b32.xlu0 %v4194, 17
        %v4207 = vpop.permute.xlu0 %4206
        %4208 = vrot.lane.b32.xlu0 %v4198, 17
        %v4209 = vpop.permute.xlu0 %4208
        %4210 = vrot.lane.b32.xlu0 %v4187, 17
        %v4211 = vpop.permute.xlu0 %4210
        %4212 = vrot.lane.b32.xlu0 %v4191, 17
        %v4213 = vpop.permute.xlu0 %4212
        %4214 = vrot.lane.b32.xlu0 %v4195, 17
        %v4215 = vpop.permute.xlu0 %4214
        %4216 = vrot.lane.b32.xlu0 %v4199, 17
        %v4217 = vpop.permute.xlu0 %4216
        %4218 = vrot.lane.b32.xlu0 %v4188, 17
        %v4219 = vpop.permute.xlu0 %4218
        %4220 = vrot.lane.b32.xlu0 %v4192, 17
        %v4221 = vpop.permute.xlu0 %4220
        %4222 = vrot.lane.b32.xlu0 %v4196, 17
        %v4223 = vpop.permute.xlu0 %4222
        %4224 = vrot.lane.b32.xlu0 %v4200, 17
        %v4225 = vpop.permute.xlu0 %4224
        %4226 = vrot.lane.b32.xlu0 %v4189, 17
        %v4227 = vpop.permute.xlu0 %4226
        %4228 = vrot.lane.b32.xlu0 %v4193, 17
        %v4229 = vpop.permute.xlu0 %4228
        %4230 = vrot.lane.b32.xlu0 %v4197, 17
        %v4231 = vpop.permute.xlu0 %4230
        %4232 = vrot.lane.b32.xlu0 %v4201, 17
        %v4233 = vpop.permute.xlu0 %4232
        %v4234 = vsel %vm649, %v4219, %v4227
        %v4235 = vsel %vm649, %v4221, %v4229
        %v4236 = vsel %vm649, %v4223, %v4231
        %v4237 = vsel %vm649, %v4225, %v4233
        %v4238 = vsel %vm649, %v4211, %v4219
        %v4239 = vsel %vm649, %v4213, %v4221
        %v4240 = vsel %vm649, %v4215, %v4223
        %v4241 = vsel %vm649, %v4217, %v4225
        %v4242 = vsel %vm649, %v4203, %v4211
        %v4243 = vsel %vm649, %v4205, %v4213
        %v4244 = vsel %vm649, %v4207, %v4215
        %v4245 = vsel %vm649, %v4209, %v4217
        %v4246 = vsel %vm649, %v4227, %v4203
        %v4247 = vsel %vm649, %v4229, %v4205
        %v4248 = vsel %vm649, %v4231, %v4207
        %v4249 = vsel %vm649, %v4233, %v4209
        %v4250 = vld [vmem:[%s2] sm:$0xf]
        %v4252 = vlaneseq
        %v4253 = vshrl.u32 %v4252, 7
        %v4254 = vsub.s32 0, %v4253
        %v4255 = vrot.slane %v4250, %v4254
        %v4256 = vlaneseq
        %v4257 = vshrl.u32 %v4256, 7
        %v4258 = vsub.s32 1, %v4257
        %v4259 = vrot.slane %v4250, %v4258
        %v4260 = vlaneseq
        %v4261 = vshrl.u32 %v4260, 7
        %v4262 = vsub.s32 2, %v4261
        %v4263 = vrot.slane %v4250, %v4262
        %v4264 = vlaneseq
        %v4265 = vshrl.u32 %v4264, 7
        %v4266 = vsub.s32 3, %v4265
        %v4267 = vrot.slane %v4250, %v4266
        %v4272 = vmul.f32 %v4246, %v4255
        %v4273 = vmul.f32 %v4242, %v4259
        %v4274 = vmul.f32 %v4238, %v4263
        %v4275 = vmul.f32 %v4234, %v4267
        %v4276 = vmul.f32 %v4247, %v4255
        %v4277 = vmul.f32 %v4243, %v4259
        %v4278 = vmul.f32 %v4239, %v4263
        %v4279 = vmul.f32 %v4235, %v4267
        %v4280 = vmul.f32 %v4248, %v4255
        %v4281 = vmul.f32 %v4244, %v4259
        %v4282 = vmul.f32 %v4240, %v4263
        %v4283 = vmul.f32 %v4236, %v4267
        %v4284 = vmul.f32 %v4249, %v4255
        %v4285 = vmul.f32 %v4245, %v4259
        %v4286 = vmul.f32 %v4241, %v4263
        %v4287 = vmul.f32 %v4237, %v4267
        %4288 = vst [vmem:[#allocation2] sm:$0xff] %v4272
        %4289 = vst [vmem:[#allocation2 + $0x8] sm:$0xff] %v4273
        %4290 = vst [vmem:[#allocation2 + $0x10] sm:$0xff] %v4274
        %4291 = vst [vmem:[#allocation2 + $0x18] sm:$0xff] %v4275
        %4292 = vst [vmem:[#allocation2 + $0x20] sm:$0xff] %v4276
        %4293 = vst [vmem:[#allocation2 + $0x28] sm:$0xff] %v4277
        %4294 = vst [vmem:[#allocation2 + $0x30] sm:$0xff] %v4278
        %4295 = vst [vmem:[#allocation2 + $0x38] sm:$0xff] %v4279
        %4296 = vst [vmem:[#allocation2 + $0x40] sm:$0xff] %v4280
        %4297 = vst [vmem:[#allocation2 + $0x48] sm:$0xff] %v4281
        %4298 = vst [vmem:[#allocation2 + $0x50] sm:$0xff] %v4282
        %4299 = vst [vmem:[#allocation2 + $0x58] sm:$0xff] %v4283
        %4300 = vst [vmem:[#allocation2 + $0x60] sm:$0xff] %v4284
        %4301 = vst [vmem:[#allocation2 + $0x68] sm:$0xff] %v4285
        %4302 = vst [vmem:[#allocation2 + $0x70] sm:$0xff] %v4286
        %4303 = vst [vmem:[#allocation2 + $0x78] sm:$0xff] %v4287
        %4304 = vrot.lane.b32.xlu0 %v4186, 16
        %v4305 = vpop.permute.xlu0 %4304
        %4306 = vrot.lane.b32.xlu0 %v4190, 16
        %v4307 = vpop.permute.xlu0 %4306
        %4308 = vrot.lane.b32.xlu0 %v4194, 16
        %v4309 = vpop.permute.xlu0 %4308
        %4310 = vrot.lane.b32.xlu0 %v4198, 16
        %v4311 = vpop.permute.xlu0 %4310
        %4312 = vrot.lane.b32.xlu0 %v4187, 16
        %v4313 = vpop.permute.xlu0 %4312
        %4314 = vrot.lane.b32.xlu0 %v4191, 16
        %v4315 = vpop.permute.xlu0 %4314
        %4316 = vrot.lane.b32.xlu0 %v4195, 16
        %v4317 = vpop.permute.xlu0 %4316
        %4318 = vrot.lane.b32.xlu0 %v4199, 16
        %v4319 = vpop.permute.xlu0 %4318
        %4320 = vrot.lane.b32.xlu0 %v4188, 16
        %v4321 = vpop.permute.xlu0 %4320
        %4322 = vrot.lane.b32.xlu0 %v4192, 16
        %v4323 = vpop.permute.xlu0 %4322
        %4324 = vrot.lane.b32.xlu0 %v4196, 16
        %v4325 = vpop.permute.xlu0 %4324
        %4326 = vrot.lane.b32.xlu0 %v4200, 16
        %v4327 = vpop.permute.xlu0 %4326
        %4328 = vrot.lane.b32.xlu0 %v4189, 16
        %v4329 = vpop.permute.xlu0 %4328
        %4330 = vrot.lane.b32.xlu0 %v4193, 16
        %v4331 = vpop.permute.xlu0 %4330
        %4332 = vrot.lane.b32.xlu0 %v4197, 16
        %v4333 = vpop.permute.xlu0 %4332
        %4334 = vrot.lane.b32.xlu0 %v4201, 16
        %v4335 = vpop.permute.xlu0 %4334
        %v4336 = vsel %vm752, %v4321, %v4329
        %v4337 = vsel %vm752, %v4323, %v4331
        %v4338 = vsel %vm752, %v4325, %v4333
        %v4339 = vsel %vm752, %v4327, %v4335
        %v4340 = vsel %vm752, %v4313, %v4321
        %v4341 = vsel %vm752, %v4315, %v4323
        %v4342 = vsel %vm752, %v4317, %v4325
        %v4343 = vsel %vm752, %v4319, %v4327
        %v4344 = vsel %vm752, %v4305, %v4313
        %v4345 = vsel %vm752, %v4307, %v4315
        %v4346 = vsel %vm752, %v4309, %v4317
        %v4347 = vsel %vm752, %v4311, %v4319
        %v4348 = vsel %vm752, %v4329, %v4305
        %v4349 = vsel %vm752, %v4331, %v4307
        %v4350 = vsel %vm752, %v4333, %v4309
        %v4351 = vsel %vm752, %v4335, %v4311
        %v4352 = vld [vmem:[%s769] sm:$0xf]
        %v4354 = vlaneseq
        %v4355 = vshrl.u32 %v4354, 7
        %v4356 = vsub.s32 0, %v4355
        %v4357 = vrot.slane %v4352, %v4356
        %v4358 = vlaneseq
        %v4359 = vshrl.u32 %v4358, 7
        %v4360 = vsub.s32 1, %v4359
        %v4361 = vrot.slane %v4352, %v4360
        %v4362 = vlaneseq
        %v4363 = vshrl.u32 %v4362, 7
        %v4364 = vsub.s32 2, %v4363
        %v4365 = vrot.slane %v4352, %v4364
        %v4366 = vlaneseq
        %v4367 = vshrl.u32 %v4366, 7
        %v4368 = vsub.s32 3, %v4367
        %v4369 = vrot.slane %v4352, %v4368
        %v4374 = vmul.f32 %v4348, %v4357
        %v4375 = vmul.f32 %v4344, %v4361
        %v4376 = vmul.f32 %v4340, %v4365
        %v4377 = vmul.f32 %v4336, %v4369
        %v4378 = vmul.f32 %v4349, %v4357
        %v4379 = vmul.f32 %v4345, %v4361
        %v4380 = vmul.f32 %v4341, %v4365
        %v4381 = vmul.f32 %v4337, %v4369
        %v4382 = vmul.f32 %v4350, %v4357
        %v4383 = vmul.f32 %v4346, %v4361
        %v4384 = vmul.f32 %v4342, %v4365
        %v4385 = vmul.f32 %v4338, %v4369
        %v4386 = vmul.f32 %v4351, %v4357
        %v4387 = vmul.f32 %v4347, %v4361
        %v4388 = vmul.f32 %v4343, %v4365
        %v4389 = vmul.f32 %v4339, %v4369
        %4390 = vst [vmem:[#allocation2 + $0x80] sm:$0xff] %v4374
        %4391 = vst [vmem:[#allocation2 + $0x88] sm:$0xff] %v4375
        %4392 = vst [vmem:[#allocation2 + $0x90] sm:$0xff] %v4376
        %4393 = vst [vmem:[#allocation2 + $0x98] sm:$0xff] %v4377
        %4394 = vst [vmem:[#allocation2 + $0xa0] sm:$0xff] %v4378
        %4395 = vst [vmem:[#allocation2 + $0xa8] sm:$0xff] %v4379
        %4396 = vst [vmem:[#allocation2 + $0xb0] sm:$0xff] %v4380
        %4397 = vst [vmem:[#allocation2 + $0xb8] sm:$0xff] %v4381
        %4398 = vst [vmem:[#allocation2 + $0xc0] sm:$0xff] %v4382
        %4399 = vst [vmem:[#allocation2 + $0xc8] sm:$0xff] %v4383
        %4400 = vst [vmem:[#allocation2 + $0xd0] sm:$0xff] %v4384
        %4401 = vst [vmem:[#allocation2 + $0xd8] sm:$0xff] %v4385
        %4402 = vst [vmem:[#allocation2 + $0xe0] sm:$0xff] %v4386
        %4403 = vst [vmem:[#allocation2 + $0xe8] sm:$0xff] %v4387
        %4404 = vst [vmem:[#allocation2 + $0xf0] sm:$0xff] %v4388
        %4405 = vst [vmem:[#allocation2 + $0xf8] sm:$0xff] %v4389
        %4406 = vrot.lane.b32.xlu0 %v4186, 15
        %v4407 = vpop.permute.xlu0 %4406
        %4408 = vrot.lane.b32.xlu0 %v4190, 15
        %v4409 = vpop.permute.xlu0 %4408
        %4410 = vrot.lane.b32.xlu0 %v4194, 15
        %v4411 = vpop.permute.xlu0 %4410
        %4412 = vrot.lane.b32.xlu0 %v4198, 15
        %v4413 = vpop.permute.xlu0 %4412
        %4414 = vrot.lane.b32.xlu0 %v4187, 15
        %v4415 = vpop.permute.xlu0 %4414
        %4416 = vrot.lane.b32.xlu0 %v4191, 15
        %v4417 = vpop.permute.xlu0 %4416
        %4418 = vrot.lane.b32.xlu0 %v4195, 15
        %v4419 = vpop.permute.xlu0 %4418
        %4420 = vrot.lane.b32.xlu0 %v4199, 15
        %v4421 = vpop.permute.xlu0 %4420
        %4422 = vrot.lane.b32.xlu0 %v4188, 15
        %v4423 = vpop.permute.xlu0 %4422
        %4424 = vrot.lane.b32.xlu0 %v4192, 15
        %v4425 = vpop.permute.xlu0 %4424
        %4426 = vrot.lane.b32.xlu0 %v4196, 15
        %v4427 = vpop.permute.xlu0 %4426
        %4428 = vrot.lane.b32.xlu0 %v4200, 15
        %v4429 = vpop.permute.xlu0 %4428
        %4430 = vrot.lane.b32.xlu0 %v4189, 15
        %v4431 = vpop.permute.xlu0 %4430
        %4432 = vrot.lane.b32.xlu0 %v4193, 15
        %v4433 = vpop.permute.xlu0 %4432
        %4434 = vrot.lane.b32.xlu0 %v4197, 15
        %v4435 = vpop.permute.xlu0 %4434
        %4436 = vrot.lane.b32.xlu0 %v4201, 15
        %v4437 = vpop.permute.xlu0 %4436
        %v4438 = vsel %vm856, %v4423, %v4431
        %v4439 = vsel %vm856, %v4425, %v4433
        %v4440 = vsel %vm856, %v4427, %v4435
        %v4441 = vsel %vm856, %v4429, %v4437
        %v4442 = vsel %vm856, %v4415, %v4423
        %v4443 = vsel %vm856, %v4417, %v4425
        %v4444 = vsel %vm856, %v4419, %v4427
        %v4445 = vsel %vm856, %v4421, %v4429
        %v4446 = vsel %vm856, %v4407, %v4415
        %v4447 = vsel %vm856, %v4409, %v4417
        %v4448 = vsel %vm856, %v4411, %v4419
        %v4449 = vsel %vm856, %v4413, %v4421
        %v4450 = vsel %vm856, %v4431, %v4407
        %v4451 = vsel %vm856, %v4433, %v4409
        %v4452 = vsel %vm856, %v4435, %v4411
        %v4453 = vsel %vm856, %v4437, %v4413
        %v4454 = vld [vmem:[%s873] sm:$0xf]
        %v4456 = vlaneseq
        %v4457 = vshrl.u32 %v4456, 7
        %v4458 = vsub.s32 0, %v4457
        %v4459 = vrot.slane %v4454, %v4458
        %v4460 = vlaneseq
        %v4461 = vshrl.u32 %v4460, 7
        %v4462 = vsub.s32 1, %v4461
        %v4463 = vrot.slane %v4454, %v4462
        %v4464 = vlaneseq
        %v4465 = vshrl.u32 %v4464, 7
        %v4466 = vsub.s32 2, %v4465
        %v4467 = vrot.slane %v4454, %v4466
        %v4468 = vlaneseq
        %v4469 = vshrl.u32 %v4468, 7
        %v4470 = vsub.s32 3, %v4469
        %v4471 = vrot.slane %v4454, %v4470
        %v4476 = vmul.f32 %v4450, %v4459
        %v4477 = vmul.f32 %v4446, %v4463
        %v4478 = vmul.f32 %v4442, %v4467
        %v4479 = vmul.f32 %v4438, %v4471
        %v4480 = vmul.f32 %v4451, %v4459
        %v4481 = vmul.f32 %v4447, %v4463
        %v4482 = vmul.f32 %v4443, %v4467
        %v4483 = vmul.f32 %v4439, %v4471
        %v4484 = vmul.f32 %v4452, %v4459
        %v4485 = vmul.f32 %v4448, %v4463
        %v4486 = vmul.f32 %v4444, %v4467
        %v4487 = vmul.f32 %v4440, %v4471
        %v4488 = vmul.f32 %v4453, %v4459
        %v4489 = vmul.f32 %v4449, %v4463
        %v4490 = vmul.f32 %v4445, %v4467
        %v4491 = vmul.f32 %v4441, %v4471
        %4492 = vst [vmem:[#allocation2 + $0x100] sm:$0xff] %v4476
        %4493 = vst [vmem:[#allocation2 + $0x108] sm:$0xff] %v4477
        %4494 = vst [vmem:[#allocation2 + $0x110] sm:$0xff] %v4478
        %4495 = vst [vmem:[#allocation2 + $0x118] sm:$0xff] %v4479
        %4496 = vst [vmem:[#allocation2 + $0x120] sm:$0xff] %v4480
        %4497 = vst [vmem:[#allocation2 + $0x128] sm:$0xff] %v4481
        %4498 = vst [vmem:[#allocation2 + $0x130] sm:$0xff] %v4482
        %4499 = vst [vmem:[#allocation2 + $0x138] sm:$0xff] %v4483
        %4500 = vst [vmem:[#allocation2 + $0x140] sm:$0xff] %v4484
        %4501 = vst [vmem:[#allocation2 + $0x148] sm:$0xff] %v4485
        %4502 = vst [vmem:[#allocation2 + $0x150] sm:$0xff] %v4486
        %4503 = vst [vmem:[#allocation2 + $0x158] sm:$0xff] %v4487
        %4504 = vst [vmem:[#allocation2 + $0x160] sm:$0xff] %v4488
        %4505 = vst [vmem:[#allocation2 + $0x168] sm:$0xff] %v4489
        %4506 = vst [vmem:[#allocation2 + $0x170] sm:$0xff] %v4490
        %4507 = vst [vmem:[#allocation2 + $0x178] sm:$0xff] %v4491
        %4508 = vrot.lane.b32.xlu0 %v4186, 1
        %v4509 = vpop.permute.xlu0 %4508
        %4510 = vrot.lane.b32.xlu0 %v4190, 1
        %v4511 = vpop.permute.xlu0 %4510
        %4512 = vrot.lane.b32.xlu0 %v4194, 1
        %v4513 = vpop.permute.xlu0 %4512
        %4514 = vrot.lane.b32.xlu0 %v4198, 1
        %v4515 = vpop.permute.xlu0 %4514
        %4516 = vrot.lane.b32.xlu0 %v4187, 1
        %v4517 = vpop.permute.xlu0 %4516
        %4518 = vrot.lane.b32.xlu0 %v4191, 1
        %v4519 = vpop.permute.xlu0 %4518
        %4520 = vrot.lane.b32.xlu0 %v4195, 1
        %v4521 = vpop.permute.xlu0 %4520
        %4522 = vrot.lane.b32.xlu0 %v4199, 1
        %v4523 = vpop.permute.xlu0 %4522
        %4524 = vrot.lane.b32.xlu0 %v4188, 1
        %v4525 = vpop.permute.xlu0 %4524
        %4526 = vrot.lane.b32.xlu0 %v4192, 1
        %v4527 = vpop.permute.xlu0 %4526
        %4528 = vrot.lane.b32.xlu0 %v4196, 1
        %v4529 = vpop.permute.xlu0 %4528
        %4530 = vrot.lane.b32.xlu0 %v4200, 1
        %v4531 = vpop.permute.xlu0 %4530
        %4532 = vrot.lane.b32.xlu0 %v4189, 1
        %v4533 = vpop.permute.xlu0 %4532
        %4534 = vrot.lane.b32.xlu0 %v4193, 1
        %v4535 = vpop.permute.xlu0 %4534
        %4536 = vrot.lane.b32.xlu0 %v4197, 1
        %v4537 = vpop.permute.xlu0 %4536
        %4538 = vrot.lane.b32.xlu0 %v4201, 1
        %v4539 = vpop.permute.xlu0 %4538
        %v4540 = vsel %vm960, %v4525, %v4533
        %v4541 = vsel %vm960, %v4527, %v4535
        %v4542 = vsel %vm960, %v4529, %v4537
        %v4543 = vsel %vm960, %v4531, %v4539
        %v4544 = vsel %vm960, %v4517, %v4525
        %v4545 = vsel %vm960, %v4519, %v4527
        %v4546 = vsel %vm960, %v4521, %v4529
        %v4547 = vsel %vm960, %v4523, %v4531
        %v4548 = vsel %vm960, %v4509, %v4517
        %v4549 = vsel %vm960, %v4511, %v4519
        %v4550 = vsel %vm960, %v4513, %v4521
        %v4551 = vsel %vm960, %v4515, %v4523
        %v4552 = vsel %vm960, %v4533, %v4509
        %v4553 = vsel %vm960, %v4535, %v4511
        %v4554 = vsel %vm960, %v4537, %v4513
        %v4555 = vsel %vm960, %v4539, %v4515
        %v4556 = vld [vmem:[%s977] sm:$0xf]
        %v4558 = vlaneseq
        %v4559 = vshrl.u32 %v4558, 7
        %v4560 = vsub.s32 0, %v4559
        %v4561 = vrot.slane %v4556, %v4560
        %v4562 = vlaneseq
        %v4563 = vshrl.u32 %v4562, 7
        %v4564 = vsub.s32 1, %v4563
        %v4565 = vrot.slane %v4556, %v4564
        %v4566 = vlaneseq
        %v4567 = vshrl.u32 %v4566, 7
        %v4568 = vsub.s32 2, %v4567
        %v4569 = vrot.slane %v4556, %v4568
        %v4570 = vlaneseq
        %v4571 = vshrl.u32 %v4570, 7
        %v4572 = vsub.s32 3, %v4571
        %v4573 = vrot.slane %v4556, %v4572
        %v4578 = vmul.f32 %v4552, %v4561
        %v4579 = vmul.f32 %v4548, %v4565
        %v4580 = vmul.f32 %v4544, %v4569
        %v4581 = vmul.f32 %v4540, %v4573
        %v4582 = vmul.f32 %v4553, %v4561
        %v4583 = vmul.f32 %v4549, %v4565
        %v4584 = vmul.f32 %v4545, %v4569
        %v4585 = vmul.f32 %v4541, %v4573
        %v4586 = vmul.f32 %v4554, %v4561
        %v4587 = vmul.f32 %v4550, %v4565
        %v4588 = vmul.f32 %v4546, %v4569
        %v4589 = vmul.f32 %v4542, %v4573
        %v4590 = vmul.f32 %v4555, %v4561
        %v4591 = vmul.f32 %v4551, %v4565
        %v4592 = vmul.f32 %v4547, %v4569
        %v4593 = vmul.f32 %v4543, %v4573
        %4594 = vst [vmem:[#allocation2 + $0x180] sm:$0xff] %v4578
        %4595 = vst [vmem:[#allocation2 + $0x188] sm:$0xff] %v4579
        %4596 = vst [vmem:[#allocation2 + $0x190] sm:$0xff] %v4580
        %4597 = vst [vmem:[#allocation2 + $0x198] sm:$0xff] %v4581
        %4598 = vst [vmem:[#allocation2 + $0x1a0] sm:$0xff] %v4582
        %4599 = vst [vmem:[#allocation2 + $0x1a8] sm:$0xff] %v4583
        %4600 = vst [vmem:[#allocation2 + $0x1b0] sm:$0xff] %v4584
        %4601 = vst [vmem:[#allocation2 + $0x1b8] sm:$0xff] %v4585
        %4602 = vst [vmem:[#allocation2 + $0x1c0] sm:$0xff] %v4586
        %4603 = vst [vmem:[#allocation2 + $0x1c8] sm:$0xff] %v4587
        %4604 = vst [vmem:[#allocation2 + $0x1d0] sm:$0xff] %v4588
        %4605 = vst [vmem:[#allocation2 + $0x1d8] sm:$0xff] %v4589
        %4606 = vst [vmem:[#allocation2 + $0x1e0] sm:$0xff] %v4590
        %4607 = vst [vmem:[#allocation2 + $0x1e8] sm:$0xff] %v4591
        %4608 = vst [vmem:[#allocation2 + $0x1f0] sm:$0xff] %v4592
        %4609 = vst [vmem:[#allocation2 + $0x1f8] sm:$0xff] %v4593
        %4610 = vst [vmem:[#allocation2 + $0x200] sm:$0xff] %v4186
        %4611 = vst [vmem:[#allocation2 + $0x208] sm:$0xff] %v4187
        %4612 = vst [vmem:[#allocation2 + $0x210] sm:$0xff] %v4188
        %4613 = vst [vmem:[#allocation2 + $0x218] sm:$0xff] %v4189
        %4614 = vst [vmem:[#allocation2 + $0x220] sm:$0xff] %v4190
        %4615 = vst [vmem:[#allocation2 + $0x228] sm:$0xff] %v4191
        %4616 = vst [vmem:[#allocation2 + $0x230] sm:$0xff] %v4192
        %4617 = vst [vmem:[#allocation2 + $0x238] sm:$0xff] %v4193
        %4618 = vst [vmem:[#allocation2 + $0x240] sm:$0xff] %v4194
        %4619 = vst [vmem:[#allocation2 + $0x248] sm:$0xff] %v4195
        %4620 = vst [vmem:[#allocation2 + $0x250] sm:$0xff] %v4196
        %4621 = vst [vmem:[#allocation2 + $0x258] sm:$0xff] %v4197
        %4622 = vst [vmem:[#allocation2 + $0x260] sm:$0xff] %v4198
        %4623 = vst [vmem:[#allocation2 + $0x268] sm:$0xff] %v4199
        %4624 = vst [vmem:[#allocation2 + $0x270] sm:$0xff] %v4200
        %4625 = vst [vmem:[#allocation2 + $0x278] sm:$0xff] %v4201
        %4626 = vrot.lane.b32.xlu0 %v4186, 127
        %v4627 = vpop.permute.xlu0 %4626
        %4628 = vrot.lane.b32.xlu0 %v4190, 127
        %v4629 = vpop.permute.xlu0 %4628
        %4630 = vrot.lane.b32.xlu0 %v4194, 127
        %v4631 = vpop.permute.xlu0 %4630
        %4632 = vrot.lane.b32.xlu0 %v4198, 127
        %v4633 = vpop.permute.xlu0 %4632
        %4634 = vrot.lane.b32.xlu0 %v4187, 127
        %v4635 = vpop.permute.xlu0 %4634
        %4636 = vrot.lane.b32.xlu0 %v4191, 127
        %v4637 = vpop.permute.xlu0 %4636
        %4638 = vrot.lane.b32.xlu0 %v4195, 127
        %v4639 = vpop.permute.xlu0 %4638
        %4640 = vrot.lane.b32.xlu0 %v4199, 127
        %v4641 = vpop.permute.xlu0 %4640
        %4642 = vrot.lane.b32.xlu0 %v4188, 127
        %v4643 = vpop.permute.xlu0 %4642
        %4644 = vrot.lane.b32.xlu0 %v4192, 127
        %v4645 = vpop.permute.xlu0 %4644
        %4646 = vrot.lane.b32.xlu0 %v4196, 127
        %v4647 = vpop.permute.xlu0 %4646
        %4648 = vrot.lane.b32.xlu0 %v4200, 127
        %v4649 = vpop.permute.xlu0 %4648
        %4650 = vrot.lane.b32.xlu0 %v4189, 127
        %v4651 = vpop.permute.xlu0 %4650
        %4652 = vrot.lane.b32.xlu0 %v4193, 127
        %v4653 = vpop.permute.xlu0 %4652
        %4654 = vrot.lane.b32.xlu0 %v4197, 127
        %v4655 = vpop.permute.xlu0 %4654
        %4656 = vrot.lane.b32.xlu0 %v4201, 127
        %v4657 = vpop.permute.xlu0 %4656
        %v4658 = vsel %vm1080, %v4643, %v4651
        %v4659 = vsel %vm1080, %v4645, %v4653
        %v4660 = vsel %vm1080, %v4647, %v4655
        %v4661 = vsel %vm1080, %v4649, %v4657
        %v4662 = vsel %vm1080, %v4635, %v4643
        %v4663 = vsel %vm1080, %v4637, %v4645
        %v4664 = vsel %vm1080, %v4639, %v4647
        %v4665 = vsel %vm1080, %v4641, %v4649
        %v4666 = vsel %vm1080, %v4627, %v4635
        %v4667 = vsel %vm1080, %v4629, %v4637
        %v4668 = vsel %vm1080, %v4631, %v4639
        %v4669 = vsel %vm1080, %v4633, %v4641
        %v4670 = vsel %vm1080, %v4651, %v4627
        %v4671 = vsel %vm1080, %v4653, %v4629
        %v4672 = vsel %vm1080, %v4655, %v4631
        %v4673 = vsel %vm1080, %v4657, %v4633
        %v4674 = vld [vmem:[%s1097] sm:$0xf]
        %v4676 = vlaneseq
        %v4677 = vshrl.u32 %v4676, 7
        %v4678 = vsub.s32 0, %v4677
        %v4679 = vrot.slane %v4674, %v4678
        %v4680 = vlaneseq
        %v4681 = vshrl.u32 %v4680, 7
        %v4682 = vsub.s32 1, %v4681
        %v4683 = vrot.slane %v4674, %v4682
        %v4684 = vlaneseq
        %v4685 = vshrl.u32 %v4684, 7
        %v4686 = vsub.s32 2, %v4685
        %v4687 = vrot.slane %v4674, %v4686
        %v4688 = vlaneseq
        %v4689 = vshrl.u32 %v4688, 7
        %v4690 = vsub.s32 3, %v4689
        %v4691 = vrot.slane %v4674, %v4690
        %v4696 = vmul.f32 %v4666, %v4679
        %v4697 = vmul.f32 %v4662, %v4683
        %v4698 = vmul.f32 %v4658, %v4687
        %v4699 = vmul.f32 %v4670, %v4691
        %v4700 = vmul.f32 %v4667, %v4679
        %v4701 = vmul.f32 %v4663, %v4683
        %v4702 = vmul.f32 %v4659, %v4687
        %v4703 = vmul.f32 %v4671, %v4691
        %v4704 = vmul.f32 %v4668, %v4679
        %v4705 = vmul.f32 %v4664, %v4683
        %v4706 = vmul.f32 %v4660, %v4687
        %v4707 = vmul.f32 %v4672, %v4691
        %v4708 = vmul.f32 %v4669, %v4679
        %v4709 = vmul.f32 %v4665, %v4683
        %v4710 = vmul.f32 %v4661, %v4687
        %v4711 = vmul.f32 %v4673, %v4691
        %4712 = vst [vmem:[#allocation2 + $0x280] sm:$0xff] %v4696
        %4713 = vst [vmem:[#allocation2 + $0x288] sm:$0xff] %v4697
        %4714 = vst [vmem:[#allocation2 + $0x290] sm:$0xff] %v4698
        %4715 = vst [vmem:[#allocation2 + $0x298] sm:$0xff] %v4699
        %4716 = vst [vmem:[#allocation2 + $0x2a0] sm:$0xff] %v4700
        %4717 = vst [vmem:[#allocation2 + $0x2a8] sm:$0xff] %v4701
        %4718 = vst [vmem:[#allocation2 + $0x2b0] sm:$0xff] %v4702
        %4719 = vst [vmem:[#allocation2 + $0x2b8] sm:$0xff] %v4703
        %4720 = vst [vmem:[#allocation2 + $0x2c0] sm:$0xff] %v4704
        %4721 = vst [vmem:[#allocation2 + $0x2c8] sm:$0xff] %v4705
        %4722 = vst [vmem:[#allocation2 + $0x2d0] sm:$0xff] %v4706
        %4723 = vst [vmem:[#allocation2 + $0x2d8] sm:$0xff] %v4707
        %4724 = vst [vmem:[#allocation2 + $0x2e0] sm:$0xff] %v4708
        %4725 = vst [vmem:[#allocation2 + $0x2e8] sm:$0xff] %v4709
        %4726 = vst [vmem:[#allocation2 + $0x2f0] sm:$0xff] %v4710
        %4727 = vst [vmem:[#allocation2 + $0x2f8] sm:$0xff] %v4711
        %4728 = vrot.lane.b32.xlu0 %v4186, 113
        %v4729 = vpop.permute.xlu0 %4728
        %4730 = vrot.lane.b32.xlu0 %v4190, 113
        %v4731 = vpop.permute.xlu0 %4730
        %4732 = vrot.lane.b32.xlu0 %v4194, 113
        %v4733 = vpop.permute.xlu0 %4732
        %4734 = vrot.lane.b32.xlu0 %v4198, 113
        %v4735 = vpop.permute.xlu0 %4734
        %4736 = vrot.lane.b32.xlu0 %v4187, 113
        %v4737 = vpop.permute.xlu0 %4736
        %4738 = vrot.lane.b32.xlu0 %v4191, 113
        %v4739 = vpop.permute.xlu0 %4738
        %4740 = vrot.lane.b32.xlu0 %v4195, 113
        %v4741 = vpop.permute.xlu0 %4740
        %4742 = vrot.lane.b32.xlu0 %v4199, 113
        %v4743 = vpop.permute.xlu0 %4742
        %4744 = vrot.lane.b32.xlu0 %v4188, 113
        %v4745 = vpop.permute.xlu0 %4744
        %4746 = vrot.lane.b32.xlu0 %v4192, 113
        %v4747 = vpop.permute.xlu0 %4746
        %4748 = vrot.lane.b32.xlu0 %v4196, 113
        %v4749 = vpop.permute.xlu0 %4748
        %4750 = vrot.lane.b32.xlu0 %v4200, 113
        %v4751 = vpop.permute.xlu0 %4750
        %4752 = vrot.lane.b32.xlu0 %v4189, 113
        %v4753 = vpop.permute.xlu0 %4752
        %4754 = vrot.lane.b32.xlu0 %v4193, 113
        %v4755 = vpop.permute.xlu0 %4754
        %4756 = vrot.lane.b32.xlu0 %v4197, 113
        %v4757 = vpop.permute.xlu0 %4756
        %4758 = vrot.lane.b32.xlu0 %v4201, 113
        %v4759 = vpop.permute.xlu0 %4758
        %v4760 = vsel %vm1184, %v4745, %v4753
        %v4761 = vsel %vm1184, %v4747, %v4755
        %v4762 = vsel %vm1184, %v4749, %v4757
        %v4763 = vsel %vm1184, %v4751, %v4759
        %v4764 = vsel %vm1184, %v4737, %v4745
        %v4765 = vsel %vm1184, %v4739, %v4747
        %v4766 = vsel %vm1184, %v4741, %v4749
        %v4767 = vsel %vm1184, %v4743, %v4751
        %v4768 = vsel %vm1184, %v4729, %v4737
        %v4769 = vsel %vm1184, %v4731, %v4739
        %v4770 = vsel %vm1184, %v4733, %v4741
        %v4771 = vsel %vm1184, %v4735, %v4743
        %v4772 = vsel %vm1184, %v4753, %v4729
        %v4773 = vsel %vm1184, %v4755, %v4731
        %v4774 = vsel %vm1184, %v4757, %v4733
        %v4775 = vsel %vm1184, %v4759, %v4735
        %v4776 = vld [vmem:[%s1201] sm:$0xf]
        %v4778 = vlaneseq
        %v4779 = vshrl.u32 %v4778, 7
        %v4780 = vsub.s32 0, %v4779
        %v4781 = vrot.slane %v4776, %v4780
        %v4782 = vlaneseq
        %v4783 = vshrl.u32 %v4782, 7
        %v4784 = vsub.s32 1, %v4783
        %v4785 = vrot.slane %v4776, %v4784
        %v4786 = vlaneseq
        %v4787 = vshrl.u32 %v4786, 7
        %v4788 = vsub.s32 2, %v4787
        %v4789 = vrot.slane %v4776, %v4788
        %v4790 = vlaneseq
        %v4791 = vshrl.u32 %v4790, 7
        %v4792 = vsub.s32 3, %v4791
        %v4793 = vrot.slane %v4776, %v4792
        %v4798 = vmul.f32 %v4768, %v4781
        %v4799 = vmul.f32 %v4764, %v4785
        %v4800 = vmul.f32 %v4760, %v4789
        %v4801 = vmul.f32 %v4772, %v4793
        %v4802 = vmul.f32 %v4769, %v4781
        %v4803 = vmul.f32 %v4765, %v4785
        %v4804 = vmul.f32 %v4761, %v4789
        %v4805 = vmul.f32 %v4773, %v4793
        %v4806 = vmul.f32 %v4770, %v4781
        %v4807 = vmul.f32 %v4766, %v4785
        %v4808 = vmul.f32 %v4762, %v4789
        %v4809 = vmul.f32 %v4774, %v4793
        %v4810 = vmul.f32 %v4771, %v4781
        %v4811 = vmul.f32 %v4767, %v4785
        %v4812 = vmul.f32 %v4763, %v4789
        %v4813 = vmul.f32 %v4775, %v4793
        %4814 = vst [vmem:[#allocation2 + $0x300] sm:$0xff] %v4798
        %4815 = vst [vmem:[#allocation2 + $0x308] sm:$0xff] %v4799
        %4816 = vst [vmem:[#allocation2 + $0x310] sm:$0xff] %v4800
        %4817 = vst [vmem:[#allocation2 + $0x318] sm:$0xff] %v4801
        %4818 = vst [vmem:[#allocation2 + $0x320] sm:$0xff] %v4802
        %4819 = vst [vmem:[#allocation2 + $0x328] sm:$0xff] %v4803
        %4820 = vst [vmem:[#allocation2 + $0x330] sm:$0xff] %v4804
        %4821 = vst [vmem:[#allocation2 + $0x338] sm:$0xff] %v4805
        %4822 = vst [vmem:[#allocation2 + $0x340] sm:$0xff] %v4806
        %4823 = vst [vmem:[#allocation2 + $0x348] sm:$0xff] %v4807
        %4824 = vst [vmem:[#allocation2 + $0x350] sm:$0xff] %v4808
        %4825 = vst [vmem:[#allocation2 + $0x358] sm:$0xff] %v4809
        %4826 = vst [vmem:[#allocation2 + $0x360] sm:$0xff] %v4810
        %4827 = vst [vmem:[#allocation2 + $0x368] sm:$0xff] %v4811
        %4828 = vst [vmem:[#allocation2 + $0x370] sm:$0xff] %v4812
        %4829 = vst [vmem:[#allocation2 + $0x378] sm:$0xff] %v4813
        %4830 = vrot.lane.b32.xlu0 %v4186, 112
        %v4831 = vpop.permute.xlu0 %4830
        %4832 = vrot.lane.b32.xlu0 %v4190, 112
        %v4833 = vpop.permute.xlu0 %4832
        %4834 = vrot.lane.b32.xlu0 %v4194, 112
        %v4835 = vpop.permute.xlu0 %4834
        %4836 = vrot.lane.b32.xlu0 %v4198, 112
        %v4837 = vpop.permute.xlu0 %4836
        %4838 = vrot.lane.b32.xlu0 %v4187, 112
        %v4839 = vpop.permute.xlu0 %4838
        %4840 = vrot.lane.b32.xlu0 %v4191, 112
        %v4841 = vpop.permute.xlu0 %4840
        %4842 = vrot.lane.b32.xlu0 %v4195, 112
        %v4843 = vpop.permute.xlu0 %4842
        %4844 = vrot.lane.b32.xlu0 %v4199, 112
        %v4845 = vpop.permute.xlu0 %4844
        %4846 = vrot.lane.b32.xlu0 %v4188, 112
        %v4847 = vpop.permute.xlu0 %4846
        %4848 = vrot.lane.b32.xlu0 %v4192, 112
        %v4849 = vpop.permute.xlu0 %4848
        %4850 = vrot.lane.b32.xlu0 %v4196, 112
        %v4851 = vpop.permute.xlu0 %4850
        %4852 = vrot.lane.b32.xlu0 %v4200, 112
        %v4853 = vpop.permute.xlu0 %4852
        %4854 = vrot.lane.b32.xlu0 %v4189, 112
        %v4855 = vpop.permute.xlu0 %4854
        %4856 = vrot.lane.b32.xlu0 %v4193, 112
        %v4857 = vpop.permute.xlu0 %4856
        %4858 = vrot.lane.b32.xlu0 %v4197, 112
        %v4859 = vpop.permute.xlu0 %4858
        %4860 = vrot.lane.b32.xlu0 %v4201, 112
        %v4861 = vpop.permute.xlu0 %4860
        %v4862 = vsel %vm1288, %v4847, %v4855
        %v4863 = vsel %vm1288, %v4849, %v4857
        %v4864 = vsel %vm1288, %v4851, %v4859
        %v4865 = vsel %vm1288, %v4853, %v4861
        %v4866 = vsel %vm1288, %v4839, %v4847
        %v4867 = vsel %vm1288, %v4841, %v4849
        %v4868 = vsel %vm1288, %v4843, %v4851
        %v4869 = vsel %vm1288, %v4845, %v4853
        %v4870 = vsel %vm1288, %v4831, %v4839
        %v4871 = vsel %vm1288, %v4833, %v4841
        %v4872 = vsel %vm1288, %v4835, %v4843
        %v4873 = vsel %vm1288, %v4837, %v4845
        %v4874 = vsel %vm1288, %v4855, %v4831
        %v4875 = vsel %vm1288, %v4857, %v4833
        %v4876 = vsel %vm1288, %v4859, %v4835
        %v4877 = vsel %vm1288, %v4861, %v4837
        %v4878 = vld [vmem:[%s1305] sm:$0xf]
        %v4880 = vlaneseq
        %v4881 = vshrl.u32 %v4880, 7
        %v4882 = vsub.s32 0, %v4881
        %v4883 = vrot.slane %v4878, %v4882
        %v4884 = vlaneseq
        %v4885 = vshrl.u32 %v4884, 7
        %v4886 = vsub.s32 1, %v4885
        %v4887 = vrot.slane %v4878, %v4886
        %v4888 = vlaneseq
        %v4889 = vshrl.u32 %v4888, 7
        %v4890 = vsub.s32 2, %v4889
        %v4891 = vrot.slane %v4878, %v4890
        %v4892 = vlaneseq
        %v4893 = vshrl.u32 %v4892, 7
        %v4894 = vsub.s32 3, %v4893
        %v4895 = vrot.slane %v4878, %v4894
        %v4900 = vmul.f32 %v4870, %v4883
        %v4901 = vmul.f32 %v4866, %v4887
        %v4902 = vmul.f32 %v4862, %v4891
        %v4903 = vmul.f32 %v4874, %v4895
        %v4904 = vmul.f32 %v4871, %v4883
        %v4905 = vmul.f32 %v4867, %v4887
        %v4906 = vmul.f32 %v4863, %v4891
        %v4907 = vmul.f32 %v4875, %v4895
        %v4908 = vmul.f32 %v4872, %v4883
        %v4909 = vmul.f32 %v4868, %v4887
        %v4910 = vmul.f32 %v4864, %v4891
        %v4911 = vmul.f32 %v4876, %v4895
        %v4912 = vmul.f32 %v4873, %v4883
        %v4913 = vmul.f32 %v4869, %v4887
        %v4914 = vmul.f32 %v4865, %v4891
        %v4915 = vmul.f32 %v4877, %v4895
        %4916 = vst [vmem:[#allocation2 + $0x380] sm:$0xff] %v4900
        %4917 = vst [vmem:[#allocation2 + $0x388] sm:$0xff] %v4901
        %4918 = vst [vmem:[#allocation2 + $0x390] sm:$0xff] %v4902
        %4919 = vst [vmem:[#allocation2 + $0x398] sm:$0xff] %v4903
        %4920 = vst [vmem:[#allocation2 + $0x3a0] sm:$0xff] %v4904
        %4921 = vst [vmem:[#allocation2 + $0x3a8] sm:$0xff] %v4905
        %4922 = vst [vmem:[#allocation2 + $0x3b0] sm:$0xff] %v4906
        %4923 = vst [vmem:[#allocation2 + $0x3b8] sm:$0xff] %v4907
        %4924 = vst [vmem:[#allocation2 + $0x3c0] sm:$0xff] %v4908
        %4925 = vst [vmem:[#allocation2 + $0x3c8] sm:$0xff] %v4909
        %4926 = vst [vmem:[#allocation2 + $0x3d0] sm:$0xff] %v4910
        %4927 = vst [vmem:[#allocation2 + $0x3d8] sm:$0xff] %v4911
        %4928 = vst [vmem:[#allocation2 + $0x3e0] sm:$0xff] %v4912
        %4929 = vst [vmem:[#allocation2 + $0x3e8] sm:$0xff] %v4913
        %4930 = vst [vmem:[#allocation2 + $0x3f0] sm:$0xff] %v4914
        %4931 = vst [vmem:[#allocation2 + $0x3f8] sm:$0xff] %v4915
        %4932 = vrot.lane.b32.xlu0 %v4186, 111
        %v4933 = vpop.permute.xlu0 %4932
        %4934 = vrot.lane.b32.xlu0 %v4190, 111
        %v4935 = vpop.permute.xlu0 %4934
        %4936 = vrot.lane.b32.xlu0 %v4194, 111
        %v4937 = vpop.permute.xlu0 %4936
        %4938 = vrot.lane.b32.xlu0 %v4198, 111
        %v4939 = vpop.permute.xlu0 %4938
        %4940 = vrot.lane.b32.xlu0 %v4187, 111
        %v4941 = vpop.permute.xlu0 %4940
        %4942 = vrot.lane.b32.xlu0 %v4191, 111
        %v4943 = vpop.permute.xlu0 %4942
        %4944 = vrot.lane.b32.xlu0 %v4195, 111
        %v4945 = vpop.permute.xlu0 %4944
        %4946 = vrot.lane.b32.xlu0 %v4199, 111
        %v4947 = vpop.permute.xlu0 %4946
        %4948 = vrot.lane.b32.xlu0 %v4188, 111
        %v4949 = vpop.permute.xlu0 %4948
        %4950 = vrot.lane.b32.xlu0 %v4192, 111
        %v4951 = vpop.permute.xlu0 %4950
        %4952 = vrot.lane.b32.xlu0 %v4196, 111
        %v4953 = vpop.permute.xlu0 %4952
        %4954 = vrot.lane.b32.xlu0 %v4200, 111
        %v4955 = vpop.permute.xlu0 %4954
        %4956 = vrot.lane.b32.xlu0 %v4189, 111
        %v4957 = vpop.permute.xlu0 %4956
        %4958 = vrot.lane.b32.xlu0 %v4193, 111
        %v4959 = vpop.permute.xlu0 %4958
        %4960 = vrot.lane.b32.xlu0 %v4197, 111
        %v4961 = vpop.permute.xlu0 %4960
        %4962 = vrot.lane.b32.xlu0 %v4201, 111
        %v4963 = vpop.permute.xlu0 %4962
        %v4964 = vsel %vm1392, %v4949, %v4957
        %v4965 = vsel %vm1392, %v4951, %v4959
        %v4966 = vsel %vm1392, %v4953, %v4961
        %v4967 = vsel %vm1392, %v4955, %v4963
        %v4968 = vsel %vm1392, %v4941, %v4949
        %v4969 = vsel %vm1392, %v4943, %v4951
        %v4970 = vsel %vm1392, %v4945, %v4953
        %v4971 = vsel %vm1392, %v4947, %v4955
        %v4972 = vsel %vm1392, %v4933, %v4941
        %v4973 = vsel %vm1392, %v4935, %v4943
        %v4974 = vsel %vm1392, %v4937, %v4945
        %v4975 = vsel %vm1392, %v4939, %v4947
        %v4976 = vsel %vm1392, %v4957, %v4933
        %v4977 = vsel %vm1392, %v4959, %v4935
        %v4978 = vsel %vm1392, %v4961, %v4937
        %v4979 = vsel %vm1392, %v4963, %v4939
        %v4980 = vld [vmem:[%s1409] sm:$0xf]
        %v4982 = vlaneseq
        %v4983 = vshrl.u32 %v4982, 7
        %v4984 = vsub.s32 0, %v4983
        %v4985 = vrot.slane %v4980, %v4984
        %v4986 = vlaneseq
        %v4987 = vshrl.u32 %v4986, 7
        %v4988 = vsub.s32 1, %v4987
        %v4989 = vrot.slane %v4980, %v4988
        %v4990 = vlaneseq
        %v4991 = vshrl.u32 %v4990, 7
        %v4992 = vsub.s32 2, %v4991
        %v4993 = vrot.slane %v4980, %v4992
        %v4994 = vlaneseq
        %v4995 = vshrl.u32 %v4994, 7
        %v4996 = vsub.s32 3, %v4995
        %v4997 = vrot.slane %v4980, %v4996
        %v5002 = vmul.f32 %v4972, %v4985
        %v5003 = vmul.f32 %v4968, %v4989
        %v5004 = vmul.f32 %v4964, %v4993
        %v5005 = vmul.f32 %v4976, %v4997
        %v5006 = vmul.f32 %v4973, %v4985
        %v5007 = vmul.f32 %v4969, %v4989
        %v5008 = vmul.f32 %v4965, %v4993
        %v5009 = vmul.f32 %v4977, %v4997
        %v5010 = vmul.f32 %v4974, %v4985
        %v5011 = vmul.f32 %v4970, %v4989
        %v5012 = vmul.f32 %v4966, %v4993
        %v5013 = vmul.f32 %v4978, %v4997
        %v5014 = vmul.f32 %v4975, %v4985
        %v5015 = vmul.f32 %v4971, %v4989
        %v5016 = vmul.f32 %v4967, %v4993
        %v5017 = vmul.f32 %v4979, %v4997
        %5018 = vst [vmem:[#allocation2 + $0x400] sm:$0xff] %v5002
        %5019 = vst [vmem:[#allocation2 + $0x408] sm:$0xff] %v5003
        %5020 = vst [vmem:[#allocation2 + $0x410] sm:$0xff] %v5004
        %5021 = vst [vmem:[#allocation2 + $0x418] sm:$0xff] %v5005
        %5022 = vst [vmem:[#allocation2 + $0x420] sm:$0xff] %v5006
        %5023 = vst [vmem:[#allocation2 + $0x428] sm:$0xff] %v5007
        %5024 = vst [vmem:[#allocation2 + $0x430] sm:$0xff] %v5008
        %5025 = vst [vmem:[#allocation2 + $0x438] sm:$0xff] %v5009
        %5026 = vst [vmem:[#allocation2 + $0x440] sm:$0xff] %v5010
        %5027 = vst [vmem:[#allocation2 + $0x448] sm:$0xff] %v5011
        %5028 = vst [vmem:[#allocation2 + $0x450] sm:$0xff] %v5012
        %5029 = vst [vmem:[#allocation2 + $0x458] sm:$0xff] %v5013
        %5030 = vst [vmem:[#allocation2 + $0x460] sm:$0xff] %v5014
        %5031 = vst [vmem:[#allocation2 + $0x468] sm:$0xff] %v5015
        %5032 = vst [vmem:[#allocation2 + $0x470] sm:$0xff] %v5016
        %5033 = vst [vmem:[#allocation2 + $0x478] sm:$0xff] %v5017
        %s5034 = scalar_lea.vmem %s3, 192
        %v5035 = vld [vmem:[%s5034] sm:$0xff]
        %v5036 = vld [vmem:[%s5034 + $0x8] sm:$0xff]
        %v5037 = vld [vmem:[%s5034 + $0x10] sm:$0xff]
        %v5038 = vld [vmem:[%s5034 + $0x18] sm:$0xff]
        %v5039 = vld [vmem:[%s5034 + $0x20] sm:$0xff]
        %v5040 = vld [vmem:[%s5034 + $0x28] sm:$0xff]
        %v5041 = vld [vmem:[%s5034 + $0x30] sm:$0xff]
        %v5042 = vld [vmem:[%s5034 + $0x38] sm:$0xff]
        %v5043 = vld [vmem:[%s5034 + $0x40] sm:$0xff]
        %v5044 = vld [vmem:[%s5034 + $0x48] sm:$0xff]
        %v5045 = vld [vmem:[%s5034 + $0x50] sm:$0xff]
        %v5046 = vld [vmem:[%s5034 + $0x58] sm:$0xff]
        %v5047 = vld [vmem:[#allocation2] sm:$0xff]
        %v5048 = vld [vmem:[#allocation2 + $0x8] sm:$0xff]
        %v5049 = vld [vmem:[#allocation2 + $0x10] sm:$0xff]
        %v5050 = vld [vmem:[#allocation2 + $0x18] sm:$0xff]
        %v5051 = vld [vmem:[#allocation2 + $0x20] sm:$0xff]
        %v5052 = vld [vmem:[#allocation2 + $0x28] sm:$0xff]
        %v5053 = vld [vmem:[#allocation2 + $0x30] sm:$0xff]
        %v5054 = vld [vmem:[#allocation2 + $0x38] sm:$0xff]
        %v5055 = vld [vmem:[#allocation2 + $0x40] sm:$0xff]
        %v5056 = vld [vmem:[#allocation2 + $0x48] sm:$0xff]
        %v5057 = vld [vmem:[#allocation2 + $0x50] sm:$0xff]
        %v5058 = vld [vmem:[#allocation2 + $0x58] sm:$0xff]
        %v5059 = vld [vmem:[#allocation2 + $0x60] sm:$0xff]
        %v5060 = vld [vmem:[#allocation2 + $0x68] sm:$0xff]
        %v5061 = vld [vmem:[#allocation2 + $0x70] sm:$0xff]
        %v5062 = vld [vmem:[#allocation2 + $0x78] sm:$0xff]
        %v5063 = vld [vmem:[#allocation2 + $0x80] sm:$0xff]
        %v5064 = vld [vmem:[#allocation2 + $0x88] sm:$0xff]
        %v5065 = vld [vmem:[#allocation2 + $0x90] sm:$0xff]
        %v5066 = vld [vmem:[#allocation2 + $0x98] sm:$0xff]
        %v5067 = vld [vmem:[#allocation2 + $0xa0] sm:$0xff]
        %v5068 = vld [vmem:[#allocation2 + $0xa8] sm:$0xff]
        %v5069 = vld [vmem:[#allocation2 + $0xb0] sm:$0xff]
        %v5070 = vld [vmem:[#allocation2 + $0xb8] sm:$0xff]
        %v5071 = vld [vmem:[#allocation2 + $0xc0] sm:$0xff]
        %v5072 = vld [vmem:[#allocation2 + $0xc8] sm:$0xff]
        %v5073 = vld [vmem:[#allocation2 + $0xd0] sm:$0xff]
        %v5074 = vld [vmem:[#allocation2 + $0xd8] sm:$0xff]
        %v5075 = vld [vmem:[#allocation2 + $0xe0] sm:$0xff]
        %v5076 = vld [vmem:[#allocation2 + $0xe8] sm:$0xff]
        %v5077 = vld [vmem:[#allocation2 + $0xf0] sm:$0xff]
        %v5078 = vld [vmem:[#allocation2 + $0xf8] sm:$0xff]
        %v5079 = vld [vmem:[#allocation2 + $0x100] sm:$0xff]
        %v5080 = vld [vmem:[#allocation2 + $0x108] sm:$0xff]
        %v5081 = vld [vmem:[#allocation2 + $0x110] sm:$0xff]
        %v5082 = vld [vmem:[#allocation2 + $0x118] sm:$0xff]
        %v5083 = vld [vmem:[#allocation2 + $0x120] sm:$0xff]
        %v5084 = vld [vmem:[#allocation2 + $0x128] sm:$0xff]
        %v5085 = vld [vmem:[#allocation2 + $0x130] sm:$0xff]
        %v5086 = vld [vmem:[#allocation2 + $0x138] sm:$0xff]
        %v5087 = vld [vmem:[#allocation2 + $0x140] sm:$0xff]
        %v5088 = vld [vmem:[#allocation2 + $0x148] sm:$0xff]
        %v5089 = vld [vmem:[#allocation2 + $0x150] sm:$0xff]
        %v5090 = vld [vmem:[#allocation2 + $0x158] sm:$0xff]
        %v5091 = vld [vmem:[#allocation2 + $0x160] sm:$0xff]
        %v5092 = vld [vmem:[#allocation2 + $0x168] sm:$0xff]
        %v5093 = vld [vmem:[#allocation2 + $0x170] sm:$0xff]
        %v5094 = vld [vmem:[#allocation2 + $0x178] sm:$0xff]
        %v5095 = vld [vmem:[#allocation2 + $0x180] sm:$0xff]
        %v5096 = vld [vmem:[#allocation2 + $0x188] sm:$0xff]
        %v5097 = vld [vmem:[#allocation2 + $0x190] sm:$0xff]
        %v5098 = vld [vmem:[#allocation2 + $0x198] sm:$0xff]
        %v5099 = vld [vmem:[#allocation2 + $0x1a0] sm:$0xff]
        %v5100 = vld [vmem:[#allocation2 + $0x1a8] sm:$0xff]
        %v5101 = vld [vmem:[#allocation2 + $0x1b0] sm:$0xff]
        %v5102 = vld [vmem:[#allocation2 + $0x1b8] sm:$0xff]
        %v5103 = vld [vmem:[#allocation2 + $0x1c0] sm:$0xff]
        %v5104 = vld [vmem:[#allocation2 + $0x1c8] sm:$0xff]
        %v5105 = vld [vmem:[#allocation2 + $0x1d0] sm:$0xff]
        %v5106 = vld [vmem:[#allocation2 + $0x1d8] sm:$0xff]
        %v5107 = vld [vmem:[#allocation2 + $0x1e0] sm:$0xff]
        %v5108 = vld [vmem:[#allocation2 + $0x1e8] sm:$0xff]
        %v5109 = vld [vmem:[#allocation2 + $0x1f0] sm:$0xff]
        %v5110 = vld [vmem:[#allocation2 + $0x1f8] sm:$0xff]
        %v5111 = vld [vmem:[#allocation2 + $0x200] sm:$0xff]
        %v5112 = vld [vmem:[#allocation2 + $0x208] sm:$0xff]
        %v5113 = vld [vmem:[#allocation2 + $0x210] sm:$0xff]
        %v5114 = vld [vmem:[#allocation2 + $0x218] sm:$0xff]
        %v5115 = vld [vmem:[#allocation2 + $0x220] sm:$0xff]
        %v5116 = vld [vmem:[#allocation2 + $0x228] sm:$0xff]
        %v5117 = vld [vmem:[#allocation2 + $0x230] sm:$0xff]
        %v5118 = vld [vmem:[#allocation2 + $0x238] sm:$0xff]
        %v5119 = vld [vmem:[#allocation2 + $0x240] sm:$0xff]
        %v5120 = vld [vmem:[#allocation2 + $0x248] sm:$0xff]
        %v5121 = vld [vmem:[#allocation2 + $0x250] sm:$0xff]
        %v5122 = vld [vmem:[#allocation2 + $0x258] sm:$0xff]
        %v5123 = vld [vmem:[#allocation2 + $0x260] sm:$0xff]
        %v5124 = vld [vmem:[#allocation2 + $0x268] sm:$0xff]
        %v5125 = vld [vmem:[#allocation2 + $0x270] sm:$0xff]
        %v5126 = vld [vmem:[#allocation2 + $0x278] sm:$0xff]
        %v5127 = vld [vmem:[#allocation2 + $0x280] sm:$0xff]
        %v5128 = vld [vmem:[#allocation2 + $0x288] sm:$0xff]
        %v5129 = vld [vmem:[#allocation2 + $0x290] sm:$0xff]
        %v5130 = vld [vmem:[#allocation2 + $0x298] sm:$0xff]
        %v5131 = vld [vmem:[#allocation2 + $0x2a0] sm:$0xff]
        %v5132 = vld [vmem:[#allocation2 + $0x2a8] sm:$0xff]
        %v5133 = vld [vmem:[#allocation2 + $0x2b0] sm:$0xff]
        %v5134 = vld [vmem:[#allocation2 + $0x2b8] sm:$0xff]
        %v5135 = vld [vmem:[#allocation2 + $0x2c0] sm:$0xff]
        %v5136 = vld [vmem:[#allocation2 + $0x2c8] sm:$0xff]
        %v5137 = vld [vmem:[#allocation2 + $0x2d0] sm:$0xff]
        %v5138 = vld [vmem:[#allocation2 + $0x2d8] sm:$0xff]
        %v5139 = vld [vmem:[#allocation2 + $0x2e0] sm:$0xff]
        %v5140 = vld [vmem:[#allocation2 + $0x2e8] sm:$0xff]
        %v5141 = vld [vmem:[#allocation2 + $0x2f0] sm:$0xff]
        %v5142 = vld [vmem:[#allocation2 + $0x2f8] sm:$0xff]
        %v5143 = vld [vmem:[#allocation2 + $0x300] sm:$0xff]
        %v5144 = vld [vmem:[#allocation2 + $0x308] sm:$0xff]
        %v5145 = vld [vmem:[#allocation2 + $0x310] sm:$0xff]
        %v5146 = vld [vmem:[#allocation2 + $0x318] sm:$0xff]
        %v5147 = vld [vmem:[#allocation2 + $0x320] sm:$0xff]
        %v5148 = vld [vmem:[#allocation2 + $0x328] sm:$0xff]
        %v5149 = vld [vmem:[#allocation2 + $0x330] sm:$0xff]
        %v5150 = vld [vmem:[#allocation2 + $0x338] sm:$0xff]
        %v5151 = vld [vmem:[#allocation2 + $0x340] sm:$0xff]
        %v5152 = vld [vmem:[#allocation2 + $0x348] sm:$0xff]
        %v5153 = vld [vmem:[#allocation2 + $0x350] sm:$0xff]
        %v5154 = vld [vmem:[#allocation2 + $0x358] sm:$0xff]
        %v5155 = vld [vmem:[#allocation2 + $0x360] sm:$0xff]
        %v5156 = vld [vmem:[#allocation2 + $0x368] sm:$0xff]
        %v5157 = vld [vmem:[#allocation2 + $0x370] sm:$0xff]
        %v5158 = vld [vmem:[#allocation2 + $0x378] sm:$0xff]
        %v5159 = vld [vmem:[#allocation2 + $0x380] sm:$0xff]
        %v5160 = vld [vmem:[#allocation2 + $0x388] sm:$0xff]
        %v5161 = vld [vmem:[#allocation2 + $0x390] sm:$0xff]
        %v5162 = vld [vmem:[#allocation2 + $0x398] sm:$0xff]
        %v5163 = vld [vmem:[#allocation2 + $0x3a0] sm:$0xff]
        %v5164 = vld [vmem:[#allocation2 + $0x3a8] sm:$0xff]
        %v5165 = vld [vmem:[#allocation2 + $0x3b0] sm:$0xff]
        %v5166 = vld [vmem:[#allocation2 + $0x3b8] sm:$0xff]
        %v5167 = vld [vmem:[#allocation2 + $0x3c0] sm:$0xff]
        %v5168 = vld [vmem:[#allocation2 + $0x3c8] sm:$0xff]
        %v5169 = vld [vmem:[#allocation2 + $0x3d0] sm:$0xff]
        %v5170 = vld [vmem:[#allocation2 + $0x3d8] sm:$0xff]
        %v5171 = vld [vmem:[#allocation2 + $0x3e0] sm:$0xff]
        %v5172 = vld [vmem:[#allocation2 + $0x3e8] sm:$0xff]
        %v5173 = vld [vmem:[#allocation2 + $0x3f0] sm:$0xff]
        %v5174 = vld [vmem:[#allocation2 + $0x3f8] sm:$0xff]
        %v5175 = vld [vmem:[#allocation2 + $0x400] sm:$0xff]
        %v5176 = vld [vmem:[#allocation2 + $0x408] sm:$0xff]
        %v5177 = vld [vmem:[#allocation2 + $0x410] sm:$0xff]
        %v5178 = vld [vmem:[#allocation2 + $0x418] sm:$0xff]
        %v5179 = vld [vmem:[#allocation2 + $0x420] sm:$0xff]
        %v5180 = vld [vmem:[#allocation2 + $0x428] sm:$0xff]
        %v5181 = vld [vmem:[#allocation2 + $0x430] sm:$0xff]
        %v5182 = vld [vmem:[#allocation2 + $0x438] sm:$0xff]
        %v5183 = vld [vmem:[#allocation2 + $0x440] sm:$0xff]
        %v5184 = vld [vmem:[#allocation2 + $0x448] sm:$0xff]
        %v5185 = vld [vmem:[#allocation2 + $0x450] sm:$0xff]
        %v5186 = vld [vmem:[#allocation2 + $0x458] sm:$0xff]
        %v5187 = vld [vmem:[#allocation2 + $0x460] sm:$0xff]
        %v5188 = vld [vmem:[#allocation2 + $0x468] sm:$0xff]
        %v5189 = vld [vmem:[#allocation2 + $0x470] sm:$0xff]
        %v5190 = vld [vmem:[#allocation2 + $0x478] sm:$0xff]
        %s5191 = scalar_lea.vmem %s4, 64
        %v5192 = vld [vmem:[%s5191] sm:$0xff]
        %v5193 = vld [vmem:[%s5191 + $0x8] sm:$0xff]
        %v5194 = vld [vmem:[%s5191 + $0x10] sm:$0xff]
        %v5195 = vld [vmem:[%s5191 + $0x18] sm:$0xff]
        %5197 = vset.pattern.permute.xlu0 0
        %5198 = vperm.xlu0 %5197, %v5192
        %v5199 = vpop.permute.xlu0 %5198
        %5202 = vset.pattern.permute.xlu0 0
        %5203 = vperm.xlu0 %5202, %v5193
        %v5204 = vpop.permute.xlu0 %5203
        %5207 = vset.pattern.permute.xlu0 0
        %5208 = vperm.xlu0 %5207, %v5194
        %v5209 = vpop.permute.xlu0 %5208
        %5212 = vset.pattern.permute.xlu0 0
        %5213 = vperm.xlu0 %5212, %v5195
        %v5214 = vpop.permute.xlu0 %5213
        %v5217 = vsel %vm1644, %v5037, 0
        %v5220 = vsel %vm1644, %v5040, 0
        %v5223 = vsel %vm1644, %v5043, 0
        %v5226 = vsel %vm1644, %v5046, 0
        %5228 = vmatprep.subr.mxu0 %v5108
        %5229 = vmatpush1.msra.mxu0 %v5107
        %5230 = vmatprep.subr.mxu0 %v5104
        %5231 = vmatpush1.msra.mxu0 %v5103
        %5232 = vmatprep.subr.mxu0 %v5100
        %5233 = vmatpush1.msra.mxu0 %v5099
        %5234 = vmatprep.subr.mxu0 %v5096
        %5235 = vmatpush1.msra.mxu0 %v5095
        %5236 = vmatprep.subr.mxu0 %v5092
        %5237 = vmatpush1.msra.mxu0 %v5091
        %5238 = vmatprep.subr.mxu0 %v5088
        %5239 = vmatpush1.msra.mxu0 %v5087
        %5240 = vmatprep.subr.mxu0 %v5084
        %5241 = vmatpush1.msra.mxu0 %v5083
        %5242 = vmatprep.subr.mxu0 %v5080
        %5243 = vmatpush1.msra.mxu0 %v5079
        %5244 = vmatprep.subr.mxu0 %v5076
        %5245 = vmatpush1.msra.mxu0 %v5075
        %5246 = vmatprep.subr.mxu0 %v5072
        %5247 = vmatpush1.msra.mxu0 %v5071
        %5248 = vmatprep.subr.mxu0 %v5068
        %5249 = vmatpush1.msra.mxu0 %v5067
        %5250 = vmatprep.subr.mxu0 %v5064
        %5251 = vmatpush1.msra.mxu0 %v5063
        %5252 = vmatprep.subr.mxu0 %v5060
        %5253 = vmatpush1.msra.mxu0 %v5059
        %5254 = vmatprep.subr.mxu0 %v5056
        %5255 = vmatpush1.msra.mxu0 %v5055
        %5256 = vmatprep.subr.mxu0 %v5052
        %5257 = vmatpush1.msra.mxu0 %v5051
        %5258 = vmatprep.subr.mxu0 %v5048
        %5259 = vmatpush1.msra.mxu0 %v5047
        %5260 = vmatprep.subr.mxu0 %v5172
        %5261 = vmatpush2.msra.mxu0 %v5171
        %5262 = vmatprep.subr.mxu0 %v5168
        %5263 = vmatpush2.msra.mxu0 %v5167
        %5264 = vmatprep.subr.mxu0 %v5164
        %5265 = vmatpush2.msra.mxu0 %v5163
        %5266 = vmatprep.subr.mxu0 %v5160
        %5267 = vmatpush2.msra.mxu0 %v5159
        %5268 = vmatprep.subr.mxu0 %v5156
        %5269 = vmatpush2.msra.mxu0 %v5155
        %5270 = vmatprep.subr.mxu0 %v5152
        %5271 = vmatpush2.msra.mxu0 %v5151
        %5272 = vmatprep.subr.mxu0 %v5148
        %5273 = vmatpush2.msra.mxu0 %v5147
        %5274 = vmatprep.subr.mxu0 %v5144
        %5275 = vmatpush2.msra.mxu0 %v5143
        %5276 = vmatprep.subr.mxu0 %v5140
        %5277 = vmatpush2.msra.mxu0 %v5139
        %5278 = vmatprep.subr.mxu0 %v5136
        %5279 = vmatpush2.msra.mxu0 %v5135
        %5280 = vmatprep.subr.mxu0 %v5132
        %5281 = vmatpush2.msra.mxu0 %v5131
        %5282 = vmatprep.subr.mxu0 %v5128
        %5283 = vmatpush2.msra.mxu0 %v5127
        %5284 = vmatprep.subr.mxu0 %v5124
        %5285 = vmatpush2.msra.mxu0 %v5123
        %5286 = vmatprep.subr.mxu0 %v5120
        %5287 = vmatpush2.msra.mxu0 %v5119
        %5288 = vmatprep.subr.mxu0 %v5116
        %5289 = vmatpush2.msra.mxu0 %v5115
        %5290 = vmatprep.subr.mxu0 %v5112
        %5291 = vmatpush2.msra.mxu0 %v5111
        %5292 = vmatprep.mubr.f32.mxu0 %v5036
        %5293 = vmatmul.mubr.f32.gmra.mxu0 %v5035
        %v5294 = vpop.f32.mrf.mxu0
        %v5295 = vadd.f32 %v5199, %v5294
        %v5296 = vpop.f32.mrf.mxu0
        %v5297 = vadd.f32 %v5199, %v5296
        %5298 = vmatprep.mubr.f32.mxu0 %v5039
        %5299 = vmatmul.mubr.f32.gmra.mxu0 %v5038
        %v5300 = vpop.f32.mrf.mxu0
        %v5301 = vadd.f32 %v5204, %v5300
        %v5302 = vpop.f32.mrf.mxu0
        %v5303 = vadd.f32 %v5204, %v5302
        %5304 = vmatprep.mubr.f32.mxu0 %v5042
        %5305 = vmatmul.mubr.f32.gmra.mxu0 %v5041
        %v5306 = vpop.f32.mrf.mxu0
        %v5307 = vadd.f32 %v5209, %v5306
        %v5308 = vpop.f32.mrf.mxu0
        %v5309 = vadd.f32 %v5209, %v5308
        %5310 = vmatprep.mubr.f32.mxu0 %v5045
        %5311 = vmatmul.mubr.f32.gmra.mxu0 %v5044
        %v5312 = vpop.f32.mrf.mxu0
        %v5313 = vadd.f32 %v5214, %v5312
        %v5314 = vpop.f32.mrf.mxu0
        %v5315 = vadd.f32 %v5214, %v5314
        %5316 = vdwg.mxu0
        %5317 = vmatprep.subr.mxu0 0.0
        %5318 = vmatpush1.msra.mxu0 0.0
        %5319 = vmatprep.subr.mxu0 0.0
        %5320 = vmatpush1.msra.mxu0 0.0
        %5321 = vmatprep.subr.mxu0 0.0
        %5322 = vmatpush1.msra.mxu0 0.0
        %5323 = vmatprep.subr.mxu0 0.0
        %5324 = vmatpush1.msra.mxu0 0.0
        %5325 = vmatprep.subr.mxu0 0.0
        %5326 = vmatpush1.msra.mxu0 0.0
        %5327 = vmatprep.subr.mxu0 0.0
        %5328 = vmatpush1.msra.mxu0 0.0
        %5329 = vmatprep.subr.mxu0 0.0
        %5330 = vmatpush1.msra.mxu0 0.0
        %5331 = vmatprep.subr.mxu0 0.0
        %5332 = vmatpush1.msra.mxu0 0.0
        %5333 = vmatprep.subr.mxu0 0.0
        %5334 = vmatpush1.msra.mxu0 0.0
        %5335 = vmatprep.subr.mxu0 0.0
        %5336 = vmatpush1.msra.mxu0 0.0
        %5337 = vmatprep.subr.mxu0 0.0
        %5338 = vmatpush1.msra.mxu0 0.0
        %5339 = vmatprep.subr.mxu0 0.0
        %5340 = vmatpush1.msra.mxu0 0.0
        %5341 = vmatprep.subr.mxu0 %v5188
        %5342 = vmatpush1.msra.mxu0 %v5187
        %5343 = vmatprep.subr.mxu0 %v5184
        %5344 = vmatpush1.msra.mxu0 %v5183
        %5345 = vmatprep.subr.mxu0 %v5180
        %5346 = vmatpush1.msra.mxu0 %v5179
        %5347 = vmatprep.subr.mxu0 %v5176
        %5348 = vmatpush1.msra.mxu0 %v5175
        %5349 = vmatprep.subr.mxu0 0.0
        %5350 = vmatpush2.msra.mxu0 0.0
        %5351 = vmatprep.subr.mxu0 0.0
        %5352 = vmatpush2.msra.mxu0 0.0
        %5353 = vmatprep.subr.mxu0 0.0
        %5354 = vmatpush2.msra.mxu0 0.0
        %5355 = vmatprep.subr.mxu0 0.0
        %5356 = vmatpush2.msra.mxu0 0.0
        %5357 = vmatprep.subr.mxu0 0.0
        %5358 = vmatpush2.msra.mxu0 0.0
        %5359 = vmatprep.subr.mxu0 0.0
        %5360 = vmatpush2.msra.mxu0 0.0
        %5361 = vmatprep.subr.mxu0 0.0
        %5362 = vmatpush2.msra.mxu0 0.0
        %5363 = vmatprep.subr.mxu0 0.0
        %5364 = vmatpush2.msra.mxu0 0.0
        %5365 = vmatprep.subr.mxu0 0.0
        %5366 = vmatpush2.msra.mxu0 0.0
        %5367 = vmatprep.subr.mxu0 0.0
        %5368 = vmatpush2.msra.mxu0 0.0
        %5369 = vmatprep.subr.mxu0 0.0
        %5370 = vmatpush2.msra.mxu0 0.0
        %5371 = vmatprep.subr.mxu0 0.0
        %5372 = vmatpush2.msra.mxu0 0.0
        %5373 = vmatprep.subr.mxu0 0.0
        %5374 = vmatpush2.msra.mxu0 0.0
        %5375 = vmatprep.subr.mxu0 0.0
        %5376 = vmatpush2.msra.mxu0 0.0
        %5377 = vmatprep.subr.mxu0 0.0
        %5378 = vmatpush2.msra.mxu0 0.0
        %5379 = vmatprep.subr.mxu0 0.0
        %5380 = vmatpush2.msra.mxu0 0.0
        %5381 = vmatprep.mubr.f32.mxu0 0.0
        %5382 = vmatmul.mubr.f32.gmra.mxu0 %v5217
        %v5383 = vpop.f32.mrf.mxu0
        %v5384 = vadd.f32 %v5295, %v5383
        %v5385 = vpop.f32.mrf.mxu0
        %v5386 = vadd.f32 %v5297, %v5385
        %5387 = vmatprep.mubr.f32.mxu0 0.0
        %5388 = vmatmul.mubr.f32.gmra.mxu0 %v5220
        %v5389 = vpop.f32.mrf.mxu0
        %v5390 = vadd.f32 %v5301, %v5389
        %v5391 = vpop.f32.mrf.mxu0
        %v5392 = vadd.f32 %v5303, %v5391
        %5393 = vmatprep.mubr.f32.mxu0 0.0
        %5394 = vmatmul.mubr.f32.gmra.mxu0 %v5223
        %v5395 = vpop.f32.mrf.mxu0
        %v5396 = vadd.f32 %v5307, %v5395
        %v5397 = vpop.f32.mrf.mxu0
        %v5398 = vadd.f32 %v5309, %v5397
        %5399 = vmatprep.mubr.f32.mxu0 0.0
        %5400 = vmatmul.mubr.f32.gmra.mxu0 %v5226
        %v5401 = vpop.f32.mrf.mxu0
        %v5402 = vadd.f32 %v5313, %v5401
        %v5403 = vpop.f32.mrf.mxu0
        %v5404 = vadd.f32 %v5315, %v5403
        %5405 = vdwg.mxu0
        %5406 = vmatprep.subr.mxu0 %v5110
        %5407 = vmatpush1.msra.mxu0 %v5109
        %5408 = vmatprep.subr.mxu0 %v5106
        %5409 = vmatpush1.msra.mxu0 %v5105
        %5410 = vmatprep.subr.mxu0 %v5102
        %5411 = vmatpush1.msra.mxu0 %v5101
        %5412 = vmatprep.subr.mxu0 %v5098
        %5413 = vmatpush1.msra.mxu0 %v5097
        %5414 = vmatprep.subr.mxu0 %v5094
        %5415 = vmatpush1.msra.mxu0 %v5093
        %5416 = vmatprep.subr.mxu0 %v5090
        %5417 = vmatpush1.msra.mxu0 %v5089
        %5418 = vmatprep.subr.mxu0 %v5086
        %5419 = vmatpush1.msra.mxu0 %v5085
        %5420 = vmatprep.subr.mxu0 %v5082
        %5421 = vmatpush1.msra.mxu0 %v5081
        %5422 = vmatprep.subr.mxu0 %v5078
        %5423 = vmatpush1.msra.mxu0 %v5077
        %5424 = vmatprep.subr.mxu0 %v5074
        %5425 = vmatpush1.msra.mxu0 %v5073
        %5426 = vmatprep.subr.mxu0 %v5070
        %5427 = vmatpush1.msra.mxu0 %v5069
        %5428 = vmatprep.subr.mxu0 %v5066
        %5429 = vmatpush1.msra.mxu0 %v5065
        %5430 = vmatprep.subr.mxu0 %v5062
        %5431 = vmatpush1.msra.mxu0 %v5061
        %5432 = vmatprep.subr.mxu0 %v5058
        %5433 = vmatpush1.msra.mxu0 %v5057
        %5434 = vmatprep.subr.mxu0 %v5054
        %5435 = vmatpush1.msra.mxu0 %v5053
        %5436 = vmatprep.subr.mxu0 %v5050
        %5437 = vmatpush1.msra.mxu0 %v5049
        %5438 = vmatprep.subr.mxu0 %v5174
        %5439 = vmatpush2.msra.mxu0 %v5173
        %5440 = vmatprep.subr.mxu0 %v5170
        %5441 = vmatpush2.msra.mxu0 %v5169
        %5442 = vmatprep.subr.mxu0 %v5166
        %5443 = vmatpush2.msra.mxu0 %v5165
        %5444 = vmatprep.subr.mxu0 %v5162
        %5445 = vmatpush2.msra.mxu0 %v5161
        %5446 = vmatprep.subr.mxu0 %v5158
        %5447 = vmatpush2.msra.mxu0 %v5157
        %5448 = vmatprep.subr.mxu0 %v5154
        %5449 = vmatpush2.msra.mxu0 %v5153
        %5450 = vmatprep.subr.mxu0 %v5150
        %5451 = vmatpush2.msra.mxu0 %v5149
        %5452 = vmatprep.subr.mxu0 %v5146
        %5453 = vmatpush2.msra.mxu0 %v5145
        %5454 = vmatprep.subr.mxu0 %v5142
        %5455 = vmatpush2.msra.mxu0 %v5141
        %5456 = vmatprep.subr.mxu0 %v5138
        %5457 = vmatpush2.msra.mxu0 %v5137
        %5458 = vmatprep.subr.mxu0 %v5134
        %5459 = vmatpush2.msra.mxu0 %v5133
        %5460 = vmatprep.subr.mxu0 %v5130
        %5461 = vmatpush2.msra.mxu0 %v5129
        %5462 = vmatprep.subr.mxu0 %v5126
        %5463 = vmatpush2.msra.mxu0 %v5125
        %5464 = vmatprep.subr.mxu0 %v5122
        %5465 = vmatpush2.msra.mxu0 %v5121
        %5466 = vmatprep.subr.mxu0 %v5118
        %5467 = vmatpush2.msra.mxu0 %v5117
        %5468 = vmatprep.subr.mxu0 %v5114
        %5469 = vmatpush2.msra.mxu0 %v5113
        %5470 = vmatprep.mubr.f32.mxu0 %v5036
        %5471 = vmatmul.mubr.f32.gmra.mxu0 %v5035
        %v5472 = vpop.f32.mrf.mxu0
        %v5473 = vadd.f32 %v5199, %v5472
        %v5474 = vpop.f32.mrf.mxu0
        %v5475 = vadd.f32 %v5199, %v5474
        %5476 = vmatprep.mubr.f32.mxu0 %v5039
        %5477 = vmatmul.mubr.f32.gmra.mxu0 %v5038
        %v5478 = vpop.f32.mrf.mxu0
        %v5479 = vadd.f32 %v5204, %v5478
        %v5480 = vpop.f32.mrf.mxu0
        %v5481 = vadd.f32 %v5204, %v5480
        %5482 = vmatprep.mubr.f32.mxu0 %v5042
        %5483 = vmatmul.mubr.f32.gmra.mxu0 %v5041
        %v5484 = vpop.f32.mrf.mxu0
        %v5485 = vadd.f32 %v5209, %v5484
        %v5486 = vpop.f32.mrf.mxu0
        %v5487 = vadd.f32 %v5209, %v5486
        %5488 = vmatprep.mubr.f32.mxu0 %v5045
        %5489 = vmatmul.mubr.f32.gmra.mxu0 %v5044
        %v5490 = vpop.f32.mrf.mxu0
        %v5491 = vadd.f32 %v5214, %v5490
        %v5492 = vpop.f32.mrf.mxu0
        %v5493 = vadd.f32 %v5214, %v5492
        %5494 = vdwg.mxu0
        %5495 = vmatprep.subr.mxu0 0.0
        %5496 = vmatpush1.msra.mxu0 0.0
        %5497 = vmatprep.subr.mxu0 0.0
        %5498 = vmatpush1.msra.mxu0 0.0
        %5499 = vmatprep.subr.mxu0 0.0
        %5500 = vmatpush1.msra.mxu0 0.0
        %5501 = vmatprep.subr.mxu0 0.0
        %5502 = vmatpush1.msra.mxu0 0.0
        %5503 = vmatprep.subr.mxu0 0.0
        %5504 = vmatpush1.msra.mxu0 0.0
        %5505 = vmatprep.subr.mxu0 0.0
        %5506 = vmatpush1.msra.mxu0 0.0
        %5507 = vmatprep.subr.mxu0 0.0
        %5508 = vmatpush1.msra.mxu0 0.0
        %5509 = vmatprep.subr.mxu0 0.0
        %5510 = vmatpush1.msra.mxu0 0.0
        %5511 = vmatprep.subr.mxu0 0.0
        %5512 = vmatpush1.msra.mxu0 0.0
        %5513 = vmatprep.subr.mxu0 0.0
        %5514 = vmatpush1.msra.mxu0 0.0
        %5515 = vmatprep.subr.mxu0 0.0
        %5516 = vmatpush1.msra.mxu0 0.0
        %5517 = vmatprep.subr.mxu0 0.0
        %5518 = vmatpush1.msra.mxu0 0.0
        %5519 = vmatprep.subr.mxu0 %v5190
        %5520 = vmatpush1.msra.mxu0 %v5189
        %5521 = vmatprep.subr.mxu0 %v5186
        %5522 = vmatpush1.msra.mxu0 %v5185
        %5523 = vmatprep.subr.mxu0 %v5182
        %5524 = vmatpush1.msra.mxu0 %v5181
        %5525 = vmatprep.subr.mxu0 %v5178
        %5526 = vmatpush1.msra.mxu0 %v5177
        %5527 = vmatprep.subr.mxu0 0.0
        %5528 = vmatpush2.msra.mxu0 0.0
        %5529 = vmatprep.subr.mxu0 0.0
        %5530 = vmatpush2.msra.mxu0 0.0
        %5531 = vmatprep.subr.mxu0 0.0
        %5532 = vmatpush2.msra.mxu0 0.0
        %5533 = vmatprep.subr.mxu0 0.0
        %5534 = vmatpush2.msra.mxu0 0.0
        %5535 = vmatprep.subr.mxu0 0.0
        %5536 = vmatpush2.msra.mxu0 0.0
        %5537 = vmatprep.subr.mxu0 0.0
        %5538 = vmatpush2.msra.mxu0 0.0
        %5539 = vmatprep.subr.mxu0 0.0
        %5540 = vmatpush2.msra.mxu0 0.0
        %5541 = vmatprep.subr.mxu0 0.0
        %5542 = vmatpush2.msra.mxu0 0.0
        %5543 = vmatprep.subr.mxu0 0.0
        %5544 = vmatpush2.msra.mxu0 0.0
        %5545 = vmatprep.subr.mxu0 0.0
        %5546 = vmatpush2.msra.mxu0 0.0
        %5547 = vmatprep.subr.mxu0 0.0
        %5548 = vmatpush2.msra.mxu0 0.0
        %5549 = vmatprep.subr.mxu0 0.0
        %5550 = vmatpush2.msra.mxu0 0.0
        %5551 = vmatprep.subr.mxu0 0.0
        %5552 = vmatpush2.msra.mxu0 0.0
        %5553 = vmatprep.subr.mxu0 0.0
        %5554 = vmatpush2.msra.mxu0 0.0
        %5555 = vmatprep.subr.mxu0 0.0
        %5556 = vmatpush2.msra.mxu0 0.0
        %5557 = vmatprep.subr.mxu0 0.0
        %5558 = vmatpush2.msra.mxu0 0.0
        %5559 = vmatprep.mubr.f32.mxu0 0.0
        %5560 = vmatmul.mubr.f32.gmra.mxu0 %v5217
        %v5561 = vpop.f32.mrf.mxu0
        %v5562 = vadd.f32 %v5473, %v5561
        %v5563 = vpop.f32.mrf.mxu0
        %v5564 = vadd.f32 %v5475, %v5563
        %5565 = vmatprep.mubr.f32.mxu0 0.0
        %5566 = vmatmul.mubr.f32.gmra.mxu0 %v5220
        %v5567 = vpop.f32.mrf.mxu0
        %v5568 = vadd.f32 %v5479, %v5567
        %v5569 = vpop.f32.mrf.mxu0
        %v5570 = vadd.f32 %v5481, %v5569
        %5571 = vmatprep.mubr.f32.mxu0 0.0
        %5572 = vmatmul.mubr.f32.gmra.mxu0 %v5223
        %v5573 = vpop.f32.mrf.mxu0
        %v5574 = vadd.f32 %v5485, %v5573
        %v5575 = vpop.f32.mrf.mxu0
        %v5576 = vadd.f32 %v5487, %v5575
        %5577 = vmatprep.mubr.f32.mxu0 0.0
        %5578 = vmatmul.mubr.f32.gmra.mxu0 %v5226
        %v5579 = vpop.f32.mrf.mxu0
        %v5580 = vadd.f32 %v5491, %v5579
        %v5581 = vpop.f32.mrf.mxu0
        %v5582 = vadd.f32 %v5493, %v5581
        %5583 = vdwg.mxu0
        %v5584 = vadd.f32 %v5384, %v5390
        %v5585 = vadd.f32 %v5584, %v5396
        %v5586 = vadd.f32 %v5585, %v5402
        %v5587 = vrot.slane %v5586, 4
        %v5588 = vadd.f32 %v5586, %v5587
        %v5589 = vrot.slane %v5588, 2
        %v5590 = vadd.f32 %v5588, %v5589
        %v5591 = vrot.slane %v5590, 1
        %v5592 = vadd.f32 %v5590, %v5591
        %v5593 = vadd.f32 %v5386, %v5392
        %v5594 = vadd.f32 %v5593, %v5398
        %v5595 = vadd.f32 %v5594, %v5404
        %v5596 = vrot.slane %v5595, 4
        %v5597 = vadd.f32 %v5595, %v5596
        %v5598 = vrot.slane %v5597, 2
        %v5599 = vadd.f32 %v5597, %v5598
        %v5600 = vrot.slane %v5599, 1
        %v5601 = vadd.f32 %v5599, %v5600
        %v5602 = vadd.f32 %v5562, %v5568
        %v5603 = vadd.f32 %v5602, %v5574
        %v5604 = vadd.f32 %v5603, %v5580
        %v5605 = vrot.slane %v5604, 4
        %v5606 = vadd.f32 %v5604, %v5605
        %v5607 = vrot.slane %v5606, 2
        %v5608 = vadd.f32 %v5606, %v5607
        %v5609 = vrot.slane %v5608, 1
        %v5610 = vadd.f32 %v5608, %v5609
        %v5611 = vadd.f32 %v5564, %v5570
        %v5612 = vadd.f32 %v5611, %v5576
        %v5613 = vadd.f32 %v5612, %v5582
        %v5614 = vrot.slane %v5613, 4
        %v5615 = vadd.f32 %v5613, %v5614
        %v5616 = vrot.slane %v5615, 2
        %v5617 = vadd.f32 %v5615, %v5616
        %v5618 = vrot.slane %v5617, 1
        %v5619 = vadd.f32 %v5617, %v5618
        %v5620 = vmul.f32 %v5384, %v5384
        %v5621 = vmul.f32 %v5386, %v5386
        %v5622 = vmul.f32 %v5562, %v5562
        %v5623 = vmul.f32 %v5564, %v5564
        %v5624 = vmul.f32 %v5390, %v5390
        %v5625 = vmul.f32 %v5392, %v5392
        %v5626 = vmul.f32 %v5568, %v5568
        %v5627 = vmul.f32 %v5570, %v5570
        %v5628 = vmul.f32 %v5396, %v5396
        %v5629 = vmul.f32 %v5398, %v5398
        %v5630 = vmul.f32 %v5574, %v5574
        %v5631 = vmul.f32 %v5576, %v5576
        %v5632 = vmul.f32 %v5402, %v5402
        %v5633 = vmul.f32 %v5404, %v5404
        %v5634 = vmul.f32 %v5580, %v5580
        %v5635 = vmul.f32 %v5582, %v5582
        %v5636 = vadd.f32 %v5620, %v5624
        %v5637 = vadd.f32 %v5636, %v5628
        %v5638 = vadd.f32 %v5637, %v5632
        %v5639 = vrot.slane %v5638, 4
        %v5640 = vadd.f32 %v5638, %v5639
        %v5641 = vrot.slane %v5640, 2
        %v5642 = vadd.f32 %v5640, %v5641
        %v5643 = vrot.slane %v5642, 1
        %v5644 = vadd.f32 %v5642, %v5643
        %v5645 = vadd.f32 %v5621, %v5625
        %v5646 = vadd.f32 %v5645, %v5629
        %v5647 = vadd.f32 %v5646, %v5633
        %v5648 = vrot.slane %v5647, 4
        %v5649 = vadd.f32 %v5647, %v5648
        %v5650 = vrot.slane %v5649, 2
        %v5651 = vadd.f32 %v5649, %v5650
        %v5652 = vrot.slane %v5651, 1
        %v5653 = vadd.f32 %v5651, %v5652
        %v5654 = vadd.f32 %v5622, %v5626
        %v5655 = vadd.f32 %v5654, %v5630
        %v5656 = vadd.f32 %v5655, %v5634
        %v5657 = vrot.slane %v5656, 4
        %v5658 = vadd.f32 %v5656, %v5657
        %v5659 = vrot.slane %v5658, 2
        %v5660 = vadd.f32 %v5658, %v5659
        %v5661 = vrot.slane %v5660, 1
        %v5662 = vadd.f32 %v5660, %v5661
        %v5663 = vadd.f32 %v5623, %v5627
        %v5664 = vadd.f32 %v5663, %v5631
        %v5665 = vadd.f32 %v5664, %v5635
        %v5666 = vrot.slane %v5665, 4
        %v5667 = vadd.f32 %v5665, %v5666
        %v5668 = vrot.slane %v5667, 2
        %v5669 = vadd.f32 %v5667, %v5668
        %v5670 = vrot.slane %v5669, 1
        %v5671 = vadd.f32 %v5669, %v5670
        %v5672 = vld [vmem:[%s9] sm:$0xf]
        %v5674 = vlaneseq
        %v5675 = vshrl.u32 %v5674, 7
        %v5676 = vsub.s32 0, %v5675
        %v5677 = vrot.slane %v5672, %v5676
        %v5678 = vlaneseq
        %v5679 = vshrl.u32 %v5678, 7
        %v5680 = vsub.s32 1, %v5679
        %v5681 = vrot.slane %v5672, %v5680
        %v5682 = vlaneseq
        %v5683 = vshrl.u32 %v5682, 7
        %v5684 = vsub.s32 2, %v5683
        %v5685 = vrot.slane %v5672, %v5684
        %v5686 = vlaneseq
        %v5687 = vshrl.u32 %v5686, 7
        %v5688 = vsub.s32 3, %v5687
        %v5689 = vrot.slane %v5672, %v5688
        %v5694 = vmul.f32 %v5592, %v5677
        %v5695 = vmul.f32 %v5601, %v5681
        %v5696 = vmul.f32 %v5610, %v5685
        %v5697 = vmul.f32 %v5619, %v5689
        %v5698 = vsel %vm2127, %v5694, 0.0
        %v5699 = vsel %vm2127, %v5695, 0.0
        %v5700 = vadd.f32 %v5698, %v5699
        %v5701 = vsel %vm2127, %v5696, 0.0
        %v5702 = vadd.f32 %v5700, %v5701
        %v5703 = vsel %vm2127, %v5697, 0.0
        %v5704 = vadd.f32 %v5702, %v5703
        %5705 = vadd.xlane.f32.xlu0 %v5704
        %v5706 = vpop.xlane.xlu0 %5705
        %v5707 = vrot.slane %v5706, 4
        %v5708 = vadd.f32 %v5706, %v5707
        %v5709 = vrot.slane %v5708, 2
        %v5710 = vadd.f32 %v5708, %v5709
        %v5711 = vrot.slane %v5710, 1
        %v5712 = vadd.f32 %v5710, %v5711
        %s5713 = vtos %v5712
        %v5714 = vstv %s5713
        %v5715 = vmul.f32 %v5714, 0.00012207031
        %v5716 = vmul.f32 %v5715, %v5672
        %v5717 = vadd.f32 %v5716, 0.0
        %v5718 = vld [vmem:[%s476] sm:$0xf]
        %v5720 = vlaneseq
        %v5721 = vshrl.u32 %v5720, 7
        %v5722 = vsub.s32 0, %v5721
        %v5723 = vrot.slane %v5718, %v5722
        %v5724 = vlaneseq
        %v5725 = vshrl.u32 %v5724, 7
        %v5726 = vsub.s32 1, %v5725
        %v5727 = vrot.slane %v5718, %v5726
        %v5728 = vlaneseq
        %v5729 = vshrl.u32 %v5728, 7
        %v5730 = vsub.s32 2, %v5729
        %v5731 = vrot.slane %v5718, %v5730
        %v5732 = vlaneseq
        %v5733 = vshrl.u32 %v5732, 7
        %v5734 = vsub.s32 3, %v5733
        %v5735 = vrot.slane %v5718, %v5734
        %v5740 = vmul.f32 %v5592, %v5723
        %v5741 = vmul.f32 %v5601, %v5727
        %v5742 = vmul.f32 %v5610, %v5731
        %v5743 = vmul.f32 %v5619, %v5735
        %v5744 = vsel %vm2127, %v5740, 0.0
        %v5745 = vsel %vm2127, %v5741, 0.0
        %v5746 = vadd.f32 %v5744, %v5745
        %v5747 = vsel %vm2127, %v5742, 0.0
        %v5748 = vadd.f32 %v5746, %v5747
        %v5749 = vsel %vm2127, %v5743, 0.0
        %v5750 = vadd.f32 %v5748, %v5749
        %5751 = vadd.xlane.f32.xlu0 %v5750
        %v5752 = vpop.xlane.xlu0 %5751
        %v5753 = vrot.slane %v5752, 4
        %v5754 = vadd.f32 %v5752, %v5753
        %v5755 = vrot.slane %v5754, 2
        %v5756 = vadd.f32 %v5754, %v5755
        %v5757 = vrot.slane %v5756, 1
        %v5758 = vadd.f32 %v5756, %v5757
        %s5759 = vtos %v5758
        %v5760 = vstv %s5759
        %v5761 = vmul.f32 %v5760, 0.00012207031
        %v5762 = vmul.f32 %v5761, %v5718
        %v5763 = vadd.f32 %v5717, %v5762
        %v5764 = vmul.f32 %v5644, %v5677
        %v5765 = vmul.f32 %v5653, %v5681
        %v5766 = vmul.f32 %v5662, %v5685
        %v5767 = vmul.f32 %v5671, %v5689
        %v5768 = vsel %vm2127, %v5764, 0.0
        %v5769 = vsel %vm2127, %v5765, 0.0
        %v5770 = vadd.f32 %v5768, %v5769
        %v5771 = vsel %vm2127, %v5766, 0.0
        %v5772 = vadd.f32 %v5770, %v5771
        %v5773 = vsel %vm2127, %v5767, 0.0
        %v5774 = vadd.f32 %v5772, %v5773
        %5775 = vadd.xlane.f32.xlu0 %v5774
        %v5776 = vpop.xlane.xlu0 %5775
        %v5777 = vrot.slane %v5776, 4
        %v5778 = vadd.f32 %v5776, %v5777
        %v5779 = vrot.slane %v5778, 2
        %v5780 = vadd.f32 %v5778, %v5779
        %v5781 = vrot.slane %v5780, 1
        %v5782 = vadd.f32 %v5780, %v5781
        %s5783 = vtos %v5782
        %v5784 = vstv %s5783
        %v5785 = vmul.f32 %v5784, 0.00012207031
        %v5786 = vmul.f32 %v5785, %v5672
        %v5787 = vadd.f32 %v5786, 0.0
        %v5788 = vmul.f32 %v5644, %v5723
        %v5789 = vmul.f32 %v5653, %v5727
        %v5790 = vmul.f32 %v5662, %v5731
        %v5791 = vmul.f32 %v5671, %v5735
        %v5792 = vsel %vm2127, %v5788, 0.0
        %v5793 = vsel %vm2127, %v5789, 0.0
        %v5794 = vadd.f32 %v5792, %v5793
        %v5795 = vsel %vm2127, %v5790, 0.0
        %v5796 = vadd.f32 %v5794, %v5795
        %v5797 = vsel %vm2127, %v5791, 0.0
        %v5798 = vadd.f32 %v5796, %v5797
        %5799 = vadd.xlane.f32.xlu0 %v5798
        %v5800 = vpop.xlane.xlu0 %5799
        %v5801 = vrot.slane %v5800, 4
        %v5802 = vadd.f32 %v5800, %v5801
        %v5803 = vrot.slane %v5802, 2
        %v5804 = vadd.f32 %v5802, %v5803
        %v5805 = vrot.slane %v5804, 1
        %v5806 = vadd.f32 %v5804, %v5805
        %s5807 = vtos %v5806
        %v5808 = vstv %s5807
        %v5809 = vmul.f32 %v5808, 0.00012207031
        %v5810 = vmul.f32 %v5809, %v5718
        %v5811 = vadd.f32 %v5787, %v5810
        %v5812 = vmul.f32 %v5763, %v5763
        %v5813 = vsub.f32 %v5811, %v5812
        %s5814 = scalar_lea.vmem %s5, 64
        %v5815 = vld [vmem:[%s5814] sm:$0xff]
        %v5816 = vld [vmem:[%s5814 + $0x8] sm:$0xff]
        %v5817 = vld [vmem:[%s5814 + $0x10] sm:$0xff]
        %v5818 = vld [vmem:[%s5814 + $0x18] sm:$0xff]
        %v5819 = vadd.f32 %v5813, 1e-05
        %v5820 = vrsqrt.pop %v5819
        %5822 = vset.pattern.permute.xlu0 0
        %5823 = vperm.xlu0 %5822, %v5815
        %v5824 = vpop.permute.xlu0 %5823
        %5827 = vset.pattern.permute.xlu0 0
        %5828 = vperm.xlu0 %5827, %v5816
        %v5829 = vpop.permute.xlu0 %5828
        %5832 = vset.pattern.permute.xlu0 0
        %5833 = vperm.xlu0 %5832, %v5817
        %v5834 = vpop.permute.xlu0 %5833
        %5837 = vset.pattern.permute.xlu0 0
        %5838 = vperm.xlu0 %5837, %v5818
        %v5839 = vpop.permute.xlu0 %5838
        %v5842 = vlaneseq
        %v5843 = vshrl.u32 %v5842, 7
        %v5844 = vsub.s32 0, %v5843
        %v5845 = vrot.slane %v5820, %v5844
        %v5846 = vlaneseq
        %v5847 = vshrl.u32 %v5846, 7
        %v5848 = vsub.s32 1, %v5847
        %v5849 = vrot.slane %v5820, %v5848
        %v5850 = vlaneseq
        %v5851 = vshrl.u32 %v5850, 7
        %v5852 = vsub.s32 2, %v5851
        %v5853 = vrot.slane %v5820, %v5852
        %v5854 = vlaneseq
        %v5855 = vshrl.u32 %v5854, 7
        %v5856 = vsub.s32 3, %v5855
        %v5857 = vrot.slane %v5820, %v5856
        %v5862 = vmul.f32 %v5824, %v5845
        %v5863 = vmul.f32 %v5824, %v5849
        %v5864 = vmul.f32 %v5824, %v5853
        %v5865 = vmul.f32 %v5824, %v5857
        %v5866 = vmul.f32 %v5829, %v5845
        %v5867 = vmul.f32 %v5829, %v5849
        %v5868 = vmul.f32 %v5829, %v5853
        %v5869 = vmul.f32 %v5829, %v5857
        %v5870 = vmul.f32 %v5834, %v5845
        %v5871 = vmul.f32 %v5834, %v5849
        %v5872 = vmul.f32 %v5834, %v5853
        %v5873 = vmul.f32 %v5834, %v5857
        %v5874 = vmul.f32 %v5839, %v5845
        %v5875 = vmul.f32 %v5839, %v5849
        %v5876 = vmul.f32 %v5839, %v5853
        %v5877 = vmul.f32 %v5839, %v5857
        %v5879 = vlaneseq
        %v5880 = vshrl.u32 %v5879, 7
        %v5881 = vsub.s32 0, %v5880
        %v5882 = vrot.slane %v5763, %v5881
        %v5883 = vlaneseq
        %v5884 = vshrl.u32 %v5883, 7
        %v5885 = vsub.s32 1, %v5884
        %v5886 = vrot.slane %v5763, %v5885
        %v5887 = vlaneseq
        %v5888 = vshrl.u32 %v5887, 7
        %v5889 = vsub.s32 2, %v5888
        %v5890 = vrot.slane %v5763, %v5889
        %v5891 = vlaneseq
        %v5892 = vshrl.u32 %v5891, 7
        %v5893 = vsub.s32 3, %v5892
        %v5894 = vrot.slane %v5763, %v5893
        %v5899 = vsub.f32 %v5384, %v5882
        %v5900 = vsub.f32 %v5386, %v5886
        %v5901 = vsub.f32 %v5562, %v5890
        %v5902 = vsub.f32 %v5564, %v5894
        %v5903 = vsub.f32 %v5390, %v5882
        %v5904 = vsub.f32 %v5392, %v5886
        %v5905 = vsub.f32 %v5568, %v5890
        %v5906 = vsub.f32 %v5570, %v5894
        %v5907 = vsub.f32 %v5396, %v5882
        %v5908 = vsub.f32 %v5398, %v5886
        %v5909 = vsub.f32 %v5574, %v5890
        %v5910 = vsub.f32 %v5576, %v5894
        %v5911 = vsub.f32 %v5402, %v5882
        %v5912 = vsub.f32 %v5404, %v5886
        %v5913 = vsub.f32 %v5580, %v5890
        %v5914 = vsub.f32 %v5582, %v5894
        %v5915 = vmul.f32 %v5899, %v5862
        %v5916 = vmul.f32 %v5900, %v5863
        %v5917 = vmul.f32 %v5901, %v5864
        %v5918 = vmul.f32 %v5902, %v5865
        %v5919 = vmul.f32 %v5903, %v5866
        %v5920 = vmul.f32 %v5904, %v5867
        %v5921 = vmul.f32 %v5905, %v5868
        %v5922 = vmul.f32 %v5906, %v5869
        %v5923 = vmul.f32 %v5907, %v5870
        %v5924 = vmul.f32 %v5908, %v5871
        %v5925 = vmul.f32 %v5909, %v5872
        %v5926 = vmul.f32 %v5910, %v5873
        %v5927 = vmul.f32 %v5911, %v5874
        %v5928 = vmul.f32 %v5912, %v5875
        %v5929 = vmul.f32 %v5913, %v5876
        %v5930 = vmul.f32 %v5914, %v5877
        %s5931 = scalar_lea.vmem %s6, 64
        %v5932 = vld [vmem:[%s5931] sm:$0xff]
        %v5933 = vld [vmem:[%s5931 + $0x8] sm:$0xff]
        %v5934 = vld [vmem:[%s5931 + $0x10] sm:$0xff]
        %v5935 = vld [vmem:[%s5931 + $0x18] sm:$0xff]
        %5937 = vset.pattern.permute.xlu0 0
        %5938 = vperm.xlu0 %5937, %v5932
        %v5939 = vpop.permute.xlu0 %5938
        %5942 = vset.pattern.permute.xlu0 0
        %5943 = vperm.xlu0 %5942, %v5933
        %v5944 = vpop.permute.xlu0 %5943
        %5947 = vset.pattern.permute.xlu0 0
        %5948 = vperm.xlu0 %5947, %v5934
        %v5949 = vpop.permute.xlu0 %5948
        %5952 = vset.pattern.permute.xlu0 0
        %5953 = vperm.xlu0 %5952, %v5935
        %v5954 = vpop.permute.xlu0 %5953
        %v5956 = vadd.f32 %v5915, %v5939
        %v5957 = vadd.f32 %v5916, %v5939
        %v5958 = vadd.f32 %v5917, %v5939
        %v5959 = vadd.f32 %v5918, %v5939
        %v5960 = vadd.f32 %v5919, %v5944
        %v5961 = vadd.f32 %v5920, %v5944
        %v5962 = vadd.f32 %v5921, %v5944
        %v5963 = vadd.f32 %v5922, %v5944
        %v5964 = vadd.f32 %v5923, %v5949
        %v5965 = vadd.f32 %v5924, %v5949
        %v5966 = vadd.f32 %v5925, %v5949
        %v5967 = vadd.f32 %v5926, %v5949
        %v5968 = vadd.f32 %v5927, %v5954
        %v5969 = vadd.f32 %v5928, %v5954
        %v5970 = vadd.f32 %v5929, %v5954
        %v5971 = vadd.f32 %v5930, %v5954
        %v5972 = vmax.f32 %v5956, 0.0
        %v5973 = vmax.f32 %v5957, 0.0
        %v5974 = vmax.f32 %v5958, 0.0
        %v5975 = vmax.f32 %v5959, 0.0
        %v5976 = vmax.f32 %v5960, 0.0
        %v5977 = vmax.f32 %v5961, 0.0
        %v5978 = vmax.f32 %v5962, 0.0
        %v5979 = vmax.f32 %v5963, 0.0
        %v5980 = vmax.f32 %v5964, 0.0
        %v5981 = vmax.f32 %v5965, 0.0
        %v5982 = vmax.f32 %v5966, 0.0
        %v5983 = vmax.f32 %v5967, 0.0
        %v5984 = vmax.f32 %v5968, 0.0
        %v5985 = vmax.f32 %v5969, 0.0
        %v5986 = vmax.f32 %v5970, 0.0
        %v5987 = vmax.f32 %v5971, 0.0
        %5988 = vrot.lane.b32.xlu0 %v5972, 17
        %v5989 = vpop.permute.xlu0 %5988
        %5990 = vrot.lane.b32.xlu0 %v5976, 17
        %v5991 = vpop.permute.xlu0 %5990
        %5992 = vrot.lane.b32.xlu0 %v5980, 17
        %v5993 = vpop.permute.xlu0 %5992
        %5994 = vrot.lane.b32.xlu0 %v5984, 17
        %v5995 = vpop.permute.xlu0 %5994
        %5996 = vrot.lane.b32.xlu0 %v5973, 17
        %v5997 = vpop.permute.xlu0 %5996
        %5998 = vrot.lane.b32.xlu0 %v5977, 17
        %v5999 = vpop.permute.xlu0 %5998
        %6000 = vrot.lane.b32.xlu0 %v5981, 17
        %v6001 = vpop.permute.xlu0 %6000
        %6002 = vrot.lane.b32.xlu0 %v5985, 17
        %v6003 = vpop.permute.xlu0 %6002
        %6004 = vrot.lane.b32.xlu0 %v5974, 17
        %v6005 = vpop.permute.xlu0 %6004
        %6006 = vrot.lane.b32.xlu0 %v5978, 17
        %v6007 = vpop.permute.xlu0 %6006
        %6008 = vrot.lane.b32.xlu0 %v5982, 17
        %v6009 = vpop.permute.xlu0 %6008
        %6010 = vrot.lane.b32.xlu0 %v5986, 17
        %v6011 = vpop.permute.xlu0 %6010
        %6012 = vrot.lane.b32.xlu0 %v5975, 17
        %v6013 = vpop.permute.xlu0 %6012
        %6014 = vrot.lane.b32.xlu0 %v5979, 17
        %v6015 = vpop.permute.xlu0 %6014
        %6016 = vrot.lane.b32.xlu0 %v5983, 17
        %v6017 = vpop.permute.xlu0 %6016
        %6018 = vrot.lane.b32.xlu0 %v5987, 17
        %v6019 = vpop.permute.xlu0 %6018
        %v6020 = vsel %vm649, %v6005, %v6013
        %v6021 = vsel %vm649, %v6007, %v6015
        %v6022 = vsel %vm649, %v6009, %v6017
        %v6023 = vsel %vm649, %v6011, %v6019
        %v6024 = vsel %vm649, %v5997, %v6005
        %v6025 = vsel %vm649, %v5999, %v6007
        %v6026 = vsel %vm649, %v6001, %v6009
        %v6027 = vsel %vm649, %v6003, %v6011
        %v6028 = vsel %vm649, %v5989, %v5997
        %v6029 = vsel %vm649, %v5991, %v5999
        %v6030 = vsel %vm649, %v5993, %v6001
        %v6031 = vsel %vm649, %v5995, %v6003
        %v6032 = vsel %vm649, %v6013, %v5989
        %v6033 = vsel %vm649, %v6015, %v5991
        %v6034 = vsel %vm649, %v6017, %v5993
        %v6035 = vsel %vm649, %v6019, %v5995
        %v6036 = vld [vmem:[%s2] sm:$0xf]
        %v6038 = vlaneseq
        %v6039 = vshrl.u32 %v6038, 7
        %v6040 = vsub.s32 0, %v6039
        %v6041 = vrot.slane %v6036, %v6040
        %v6042 = vlaneseq
        %v6043 = vshrl.u32 %v6042, 7
        %v6044 = vsub.s32 1, %v6043
        %v6045 = vrot.slane %v6036, %v6044
        %v6046 = vlaneseq
        %v6047 = vshrl.u32 %v6046, 7
        %v6048 = vsub.s32 2, %v6047
        %v6049 = vrot.slane %v6036, %v6048
        %v6050 = vlaneseq
        %v6051 = vshrl.u32 %v6050, 7
        %v6052 = vsub.s32 3, %v6051
        %v6053 = vrot.slane %v6036, %v6052
        %v6058 = vmul.f32 %v6032, %v6041
        %v6059 = vmul.f32 %v6028, %v6045
        %v6060 = vmul.f32 %v6024, %v6049
        %v6061 = vmul.f32 %v6020, %v6053
        %v6062 = vmul.f32 %v6033, %v6041
        %v6063 = vmul.f32 %v6029, %v6045
        %v6064 = vmul.f32 %v6025, %v6049
        %v6065 = vmul.f32 %v6021, %v6053
        %v6066 = vmul.f32 %v6034, %v6041
        %v6067 = vmul.f32 %v6030, %v6045
        %v6068 = vmul.f32 %v6026, %v6049
        %v6069 = vmul.f32 %v6022, %v6053
        %v6070 = vmul.f32 %v6035, %v6041
        %v6071 = vmul.f32 %v6031, %v6045
        %v6072 = vmul.f32 %v6027, %v6049
        %v6073 = vmul.f32 %v6023, %v6053
        %6074 = vst [vmem:[#allocation2] sm:$0xff] %v6058
        %6075 = vst [vmem:[#allocation2 + $0x8] sm:$0xff] %v6059
        %6076 = vst [vmem:[#allocation2 + $0x10] sm:$0xff] %v6060
        %6077 = vst [vmem:[#allocation2 + $0x18] sm:$0xff] %v6061
        %6078 = vst [vmem:[#allocation2 + $0x20] sm:$0xff] %v6062
        %6079 = vst [vmem:[#allocation2 + $0x28] sm:$0xff] %v6063
        %6080 = vst [vmem:[#allocation2 + $0x30] sm:$0xff] %v6064
        %6081 = vst [vmem:[#allocation2 + $0x38] sm:$0xff] %v6065
        %6082 = vst [vmem:[#allocation2 + $0x40] sm:$0xff] %v6066
        %6083 = vst [vmem:[#allocation2 + $0x48] sm:$0xff] %v6067
        %6084 = vst [vmem:[#allocation2 + $0x50] sm:$0xff] %v6068
        %6085 = vst [vmem:[#allocation2 + $0x58] sm:$0xff] %v6069
        %6086 = vst [vmem:[#allocation2 + $0x60] sm:$0xff] %v6070
        %6087 = vst [vmem:[#allocation2 + $0x68] sm:$0xff] %v6071
        %6088 = vst [vmem:[#allocation2 + $0x70] sm:$0xff] %v6072
        %6089 = vst [vmem:[#allocation2 + $0x78] sm:$0xff] %v6073
        %6090 = vrot.lane.b32.xlu0 %v5972, 16
        %v6091 = vpop.permute.xlu0 %6090
        %6092 = vrot.lane.b32.xlu0 %v5976, 16
        %v6093 = vpop.permute.xlu0 %6092
        %6094 = vrot.lane.b32.xlu0 %v5980, 16
        %v6095 = vpop.permute.xlu0 %6094
        %6096 = vrot.lane.b32.xlu0 %v5984, 16
        %v6097 = vpop.permute.xlu0 %6096
        %6098 = vrot.lane.b32.xlu0 %v5973, 16
        %v6099 = vpop.permute.xlu0 %6098
        %6100 = vrot.lane.b32.xlu0 %v5977, 16
        %v6101 = vpop.permute.xlu0 %6100
        %6102 = vrot.lane.b32.xlu0 %v5981, 16
        %v6103 = vpop.permute.xlu0 %6102
        %6104 = vrot.lane.b32.xlu0 %v5985, 16
        %v6105 = vpop.permute.xlu0 %6104
        %6106 = vrot.lane.b32.xlu0 %v5974, 16
        %v6107 = vpop.permute.xlu0 %6106
        %6108 = vrot.lane.b32.xlu0 %v5978, 16
        %v6109 = vpop.permute.xlu0 %6108
        %6110 = vrot.lane.b32.xlu0 %v5982, 16
        %v6111 = vpop.permute.xlu0 %6110
        %6112 = vrot.lane.b32.xlu0 %v5986, 16
        %v6113 = vpop.permute.xlu0 %6112
        %6114 = vrot.lane.b32.xlu0 %v5975, 16
        %v6115 = vpop.permute.xlu0 %6114
        %6116 = vrot.lane.b32.xlu0 %v5979, 16
        %v6117 = vpop.permute.xlu0 %6116
        %6118 = vrot.lane.b32.xlu0 %v5983, 16
        %v6119 = vpop.permute.xlu0 %6118
        %6120 = vrot.lane.b32.xlu0 %v5987, 16
        %v6121 = vpop.permute.xlu0 %6120
        %v6122 = vsel %vm752, %v6107, %v6115
        %v6123 = vsel %vm752, %v6109, %v6117
        %v6124 = vsel %vm752, %v6111, %v6119
        %v6125 = vsel %vm752, %v6113, %v6121
        %v6126 = vsel %vm752, %v6099, %v6107
        %v6127 = vsel %vm752, %v6101, %v6109
        %v6128 = vsel %vm752, %v6103, %v6111
        %v6129 = vsel %vm752, %v6105, %v6113
        %v6130 = vsel %vm752, %v6091, %v6099
        %v6131 = vsel %vm752, %v6093, %v6101
        %v6132 = vsel %vm752, %v6095, %v6103
        %v6133 = vsel %vm752, %v6097, %v6105
        %v6134 = vsel %vm752, %v6115, %v6091
        %v6135 = vsel %vm752, %v6117, %v6093
        %v6136 = vsel %vm752, %v6119, %v6095
        %v6137 = vsel %vm752, %v6121, %v6097
        %v6138 = vld [vmem:[%s769] sm:$0xf]
        %v6140 = vlaneseq
        %v6141 = vshrl.u32 %v6140, 7
        %v6142 = vsub.s32 0, %v6141
        %v6143 = vrot.slane %v6138, %v6142
        %v6144 = vlaneseq
        %v6145 = vshrl.u32 %v6144, 7
        %v6146 = vsub.s32 1, %v6145
        %v6147 = vrot.slane %v6138, %v6146
        %v6148 = vlaneseq
        %v6149 = vshrl.u32 %v6148, 7
        %v6150 = vsub.s32 2, %v6149
        %v6151 = vrot.slane %v6138, %v6150
        %v6152 = vlaneseq
        %v6153 = vshrl.u32 %v6152, 7
        %v6154 = vsub.s32 3, %v6153
        %v6155 = vrot.slane %v6138, %v6154
        %v6160 = vmul.f32 %v6134, %v6143
        %v6161 = vmul.f32 %v6130, %v6147
        %v6162 = vmul.f32 %v6126, %v6151
        %v6163 = vmul.f32 %v6122, %v6155
        %v6164 = vmul.f32 %v6135, %v6143
        %v6165 = vmul.f32 %v6131, %v6147
        %v6166 = vmul.f32 %v6127, %v6151
        %v6167 = vmul.f32 %v6123, %v6155
        %v6168 = vmul.f32 %v6136, %v6143
        %v6169 = vmul.f32 %v6132, %v6147
        %v6170 = vmul.f32 %v6128, %v6151
        %v6171 = vmul.f32 %v6124, %v6155
        %v6172 = vmul.f32 %v6137, %v6143
        %v6173 = vmul.f32 %v6133, %v6147
        %v6174 = vmul.f32 %v6129, %v6151
        %v6175 = vmul.f32 %v6125, %v6155
        %6176 = vst [vmem:[#allocation2 + $0x80] sm:$0xff] %v6160
        %6177 = vst [vmem:[#allocation2 + $0x88] sm:$0xff] %v6161
        %6178 = vst [vmem:[#allocation2 + $0x90] sm:$0xff] %v6162
        %6179 = vst [vmem:[#allocation2 + $0x98] sm:$0xff] %v6163
        %6180 = vst [vmem:[#allocation2 + $0xa0] sm:$0xff] %v6164
        %6181 = vst [vmem:[#allocation2 + $0xa8] sm:$0xff] %v6165
        %6182 = vst [vmem:[#allocation2 + $0xb0] sm:$0xff] %v6166
        %6183 = vst [vmem:[#allocation2 + $0xb8] sm:$0xff] %v6167
        %6184 = vst [vmem:[#allocation2 + $0xc0] sm:$0xff] %v6168
        %6185 = vst [vmem:[#allocation2 + $0xc8] sm:$0xff] %v6169
        %6186 = vst [vmem:[#allocation2 + $0xd0] sm:$0xff] %v6170
        %6187 = vst [vmem:[#allocation2 + $0xd8] sm:$0xff] %v6171
        %6188 = vst [vmem:[#allocation2 + $0xe0] sm:$0xff] %v6172
        %6189 = vst [vmem:[#allocation2 + $0xe8] sm:$0xff] %v6173
        %6190 = vst [vmem:[#allocation2 + $0xf0] sm:$0xff] %v6174
        %6191 = vst [vmem:[#allocation2 + $0xf8] sm:$0xff] %v6175
        %6192 = vrot.lane.b32.xlu0 %v5972, 15
        %v6193 = vpop.permute.xlu0 %6192
        %6194 = vrot.lane.b32.xlu0 %v5976, 15
        %v6195 = vpop.permute.xlu0 %6194
        %6196 = vrot.lane.b32.xlu0 %v5980, 15
        %v6197 = vpop.permute.xlu0 %6196
        %6198 = vrot.lane.b32.xlu0 %v5984, 15
        %v6199 = vpop.permute.xlu0 %6198
        %6200 = vrot.lane.b32.xlu0 %v5973, 15
        %v6201 = vpop.permute.xlu0 %6200
        %6202 = vrot.lane.b32.xlu0 %v5977, 15
        %v6203 = vpop.permute.xlu0 %6202
        %6204 = vrot.lane.b32.xlu0 %v5981, 15
        %v6205 = vpop.permute.xlu0 %6204
        %6206 = vrot.lane.b32.xlu0 %v5985, 15
        %v6207 = vpop.permute.xlu0 %6206
        %6208 = vrot.lane.b32.xlu0 %v5974, 15
        %v6209 = vpop.permute.xlu0 %6208
        %6210 = vrot.lane.b32.xlu0 %v5978, 15
        %v6211 = vpop.permute.xlu0 %6210
        %6212 = vrot.lane.b32.xlu0 %v5982, 15
        %v6213 = vpop.permute.xlu0 %6212
        %6214 = vrot.lane.b32.xlu0 %v5986, 15
        %v6215 = vpop.permute.xlu0 %6214
        %6216 = vrot.lane.b32.xlu0 %v5975, 15
        %v6217 = vpop.permute.xlu0 %6216
        %6218 = vrot.lane.b32.xlu0 %v5979, 15
        %v6219 = vpop.permute.xlu0 %6218
        %6220 = vrot.lane.b32.xlu0 %v5983, 15
        %v6221 = vpop.permute.xlu0 %6220
        %6222 = vrot.lane.b32.xlu0 %v5987, 15
        %v6223 = vpop.permute.xlu0 %6222
        %v6224 = vsel %vm856, %v6209, %v6217
        %v6225 = vsel %vm856, %v6211, %v6219
        %v6226 = vsel %vm856, %v6213, %v6221
        %v6227 = vsel %vm856, %v6215, %v6223
        %v6228 = vsel %vm856, %v6201, %v6209
        %v6229 = vsel %vm856, %v6203, %v6211
        %v6230 = vsel %vm856, %v6205, %v6213
        %v6231 = vsel %vm856, %v6207, %v6215
        %v6232 = vsel %vm856, %v6193, %v6201
        %v6233 = vsel %vm856, %v6195, %v6203
        %v6234 = vsel %vm856, %v6197, %v6205
        %v6235 = vsel %vm856, %v6199, %v6207
        %v6236 = vsel %vm856, %v6217, %v6193
        %v6237 = vsel %vm856, %v6219, %v6195
        %v6238 = vsel %vm856, %v6221, %v6197
        %v6239 = vsel %vm856, %v6223, %v6199
        %v6240 = vld [vmem:[%s873] sm:$0xf]
        %v6242 = vlaneseq
        %v6243 = vshrl.u32 %v6242, 7
        %v6244 = vsub.s32 0, %v6243
        %v6245 = vrot.slane %v6240, %v6244
        %v6246 = vlaneseq
        %v6247 = vshrl.u32 %v6246, 7
        %v6248 = vsub.s32 1, %v6247
        %v6249 = vrot.slane %v6240, %v6248
        %v6250 = vlaneseq
        %v6251 = vshrl.u32 %v6250, 7
        %v6252 = vsub.s32 2, %v6251
        %v6253 = vrot.slane %v6240, %v6252
        %v6254 = vlaneseq
        %v6255 = vshrl.u32 %v6254, 7
        %v6256 = vsub.s32 3, %v6255
        %v6257 = vrot.slane %v6240, %v6256
        %v6262 = vmul.f32 %v6236, %v6245
        %v6263 = vmul.f32 %v6232, %v6249
        %v6264 = vmul.f32 %v6228, %v6253
        %v6265 = vmul.f32 %v6224, %v6257
        %v6266 = vmul.f32 %v6237, %v6245
        %v6267 = vmul.f32 %v6233, %v6249
        %v6268 = vmul.f32 %v6229, %v6253
        %v6269 = vmul.f32 %v6225, %v6257
        %v6270 = vmul.f32 %v6238, %v6245
        %v6271 = vmul.f32 %v6234, %v6249
        %v6272 = vmul.f32 %v6230, %v6253
        %v6273 = vmul.f32 %v6226, %v6257
        %v6274 = vmul.f32 %v6239, %v6245
        %v6275 = vmul.f32 %v6235, %v6249
        %v6276 = vmul.f32 %v6231, %v6253
        %v6277 = vmul.f32 %v6227, %v6257
        %6278 = vst [vmem:[#allocation2 + $0x100] sm:$0xff] %v6262
        %6279 = vst [vmem:[#allocation2 + $0x108] sm:$0xff] %v6263
        %6280 = vst [vmem:[#allocation2 + $0x110] sm:$0xff] %v6264
        %6281 = vst [vmem:[#allocation2 + $0x118] sm:$0xff] %v6265
        %6282 = vst [vmem:[#allocation2 + $0x120] sm:$0xff] %v6266
        %6283 = vst [vmem:[#allocation2 + $0x128] sm:$0xff] %v6267
        %6284 = vst [vmem:[#allocation2 + $0x130] sm:$0xff] %v6268
        %6285 = vst [vmem:[#allocation2 + $0x138] sm:$0xff] %v6269
        %6286 = vst [vmem:[#allocation2 + $0x140] sm:$0xff] %v6270
        %6287 = vst [vmem:[#allocation2 + $0x148] sm:$0xff] %v6271
        %6288 = vst [vmem:[#allocation2 + $0x150] sm:$0xff] %v6272
        %6289 = vst [vmem:[#allocation2 + $0x158] sm:$0xff] %v6273
        %6290 = vst [vmem:[#allocation2 + $0x160] sm:$0xff] %v6274
        %6291 = vst [vmem:[#allocation2 + $0x168] sm:$0xff] %v6275
        %6292 = vst [vmem:[#allocation2 + $0x170] sm:$0xff] %v6276
        %6293 = vst [vmem:[#allocation2 + $0x178] sm:$0xff] %v6277
        %6294 = vrot.lane.b32.xlu0 %v5972, 1
        %v6295 = vpop.permute.xlu0 %6294
        %6296 = vrot.lane.b32.xlu0 %v5976, 1
        %v6297 = vpop.permute.xlu0 %6296
        %6298 = vrot.lane.b32.xlu0 %v5980, 1
        %v6299 = vpop.permute.xlu0 %6298
        %6300 = vrot.lane.b32.xlu0 %v5984, 1
        %v6301 = vpop.permute.xlu0 %6300
        %6302 = vrot.lane.b32.xlu0 %v5973, 1
        %v6303 = vpop.permute.xlu0 %6302
        %6304 = vrot.lane.b32.xlu0 %v5977, 1
        %v6305 = vpop.permute.xlu0 %6304
        %6306 = vrot.lane.b32.xlu0 %v5981, 1
        %v6307 = vpop.permute.xlu0 %6306
        %6308 = vrot.lane.b32.xlu0 %v5985, 1
        %v6309 = vpop.permute.xlu0 %6308
        %6310 = vrot.lane.b32.xlu0 %v5974, 1
        %v6311 = vpop.permute.xlu0 %6310
        %6312 = vrot.lane.b32.xlu0 %v5978, 1
        %v6313 = vpop.permute.xlu0 %6312
        %6314 = vrot.lane.b32.xlu0 %v5982, 1
        %v6315 = vpop.permute.xlu0 %6314
        %6316 = vrot.lane.b32.xlu0 %v5986, 1
        %v6317 = vpop.permute.xlu0 %6316
        %6318 = vrot.lane.b32.xlu0 %v5975, 1
        %v6319 = vpop.permute.xlu0 %6318
        %6320 = vrot.lane.b32.xlu0 %v5979, 1
        %v6321 = vpop.permute.xlu0 %6320
        %6322 = vrot.lane.b32.xlu0 %v5983, 1
        %v6323 = vpop.permute.xlu0 %6322
        %6324 = vrot.lane.b32.xlu0 %v5987, 1
        %v6325 = vpop.permute.xlu0 %6324
        %v6326 = vsel %vm960, %v6311, %v6319
        %v6327 = vsel %vm960, %v6313, %v6321
        %v6328 = vsel %vm960, %v6315, %v6323
        %v6329 = vsel %vm960, %v6317, %v6325
        %v6330 = vsel %vm960, %v6303, %v6311
        %v6331 = vsel %vm960, %v6305, %v6313
        %v6332 = vsel %vm960, %v6307, %v6315
        %v6333 = vsel %vm960, %v6309, %v6317
        %v6334 = vsel %vm960, %v6295, %v6303
        %v6335 = vsel %vm960, %v6297, %v6305
        %v6336 = vsel %vm960, %v6299, %v6307
        %v6337 = vsel %vm960, %v6301, %v6309
        %v6338 = vsel %vm960, %v6319, %v6295
        %v6339 = vsel %vm960, %v6321, %v6297
        %v6340 = vsel %vm960, %v6323, %v6299
        %v6341 = vsel %vm960, %v6325, %v6301
        %v6342 = vld [vmem:[%s977] sm:$0xf]
        %v6344 = vlaneseq
        %v6345 = vshrl.u32 %v6344, 7
        %v6346 = vsub.s32 0, %v6345
        %v6347 = vrot.slane %v6342, %v6346
        %v6348 = vlaneseq
        %v6349 = vshrl.u32 %v6348, 7
        %v6350 = vsub.s32 1, %v6349
        %v6351 = vrot.slane %v6342, %v6350
        %v6352 = vlaneseq
        %v6353 = vshrl.u32 %v6352, 7
        %v6354 = vsub.s32 2, %v6353
        %v6355 = vrot.slane %v6342, %v6354
        %v6356 = vlaneseq
        %v6357 = vshrl.u32 %v6356, 7
        %v6358 = vsub.s32 3, %v6357
        %v6359 = vrot.slane %v6342, %v6358
        %v6364 = vmul.f32 %v6338, %v6347
        %v6365 = vmul.f32 %v6334, %v6351
        %v6366 = vmul.f32 %v6330, %v6355
        %v6367 = vmul.f32 %v6326, %v6359
        %v6368 = vmul.f32 %v6339, %v6347
        %v6369 = vmul.f32 %v6335, %v6351
        %v6370 = vmul.f32 %v6331, %v6355
        %v6371 = vmul.f32 %v6327, %v6359
        %v6372 = vmul.f32 %v6340, %v6347
        %v6373 = vmul.f32 %v6336, %v6351
        %v6374 = vmul.f32 %v6332, %v6355
        %v6375 = vmul.f32 %v6328, %v6359
        %v6376 = vmul.f32 %v6341, %v6347
        %v6377 = vmul.f32 %v6337, %v6351
        %v6378 = vmul.f32 %v6333, %v6355
        %v6379 = vmul.f32 %v6329, %v6359
        %6380 = vst [vmem:[#allocation2 + $0x180] sm:$0xff] %v6364
        %6381 = vst [vmem:[#allocation2 + $0x188] sm:$0xff] %v6365
        %6382 = vst [vmem:[#allocation2 + $0x190] sm:$0xff] %v6366
        %6383 = vst [vmem:[#allocation2 + $0x198] sm:$0xff] %v6367
        %6384 = vst [vmem:[#allocation2 + $0x1a0] sm:$0xff] %v6368
        %6385 = vst [vmem:[#allocation2 + $0x1a8] sm:$0xff] %v6369
        %6386 = vst [vmem:[#allocation2 + $0x1b0] sm:$0xff] %v6370
        %6387 = vst [vmem:[#allocation2 + $0x1b8] sm:$0xff] %v6371
        %6388 = vst [vmem:[#allocation2 + $0x1c0] sm:$0xff] %v6372
        %6389 = vst [vmem:[#allocation2 + $0x1c8] sm:$0xff] %v6373
        %6390 = vst [vmem:[#allocation2 + $0x1d0] sm:$0xff] %v6374
        %6391 = vst [vmem:[#allocation2 + $0x1d8] sm:$0xff] %v6375
        %6392 = vst [vmem:[#allocation2 + $0x1e0] sm:$0xff] %v6376
        %6393 = vst [vmem:[#allocation2 + $0x1e8] sm:$0xff] %v6377
        %6394 = vst [vmem:[#allocation2 + $0x1f0] sm:$0xff] %v6378
        %6395 = vst [vmem:[#allocation2 + $0x1f8] sm:$0xff] %v6379
        %6396 = vst [vmem:[#allocation2 + $0x200] sm:$0xff] %v5972
        %6397 = vst [vmem:[#allocation2 + $0x208] sm:$0xff] %v5973
        %6398 = vst [vmem:[#allocation2 + $0x210] sm:$0xff] %v5974
        %6399 = vst [vmem:[#allocation2 + $0x218] sm:$0xff] %v5975
        %6400 = vst [vmem:[#allocation2 + $0x220] sm:$0xff] %v5976
        %6401 = vst [vmem:[#allocation2 + $0x228] sm:$0xff] %v5977
        %6402 = vst [vmem:[#allocation2 + $0x230] sm:$0xff] %v5978
        %6403 = vst [vmem:[#allocation2 + $0x238] sm:$0xff] %v5979
        %6404 = vst [vmem:[#allocation2 + $0x240] sm:$0xff] %v5980
        %6405 = vst [vmem:[#allocation2 + $0x248] sm:$0xff] %v5981
        %6406 = vst [vmem:[#allocation2 + $0x250] sm:$0xff] %v5982
        %6407 = vst [vmem:[#allocation2 + $0x258] sm:$0xff] %v5983
        %6408 = vst [vmem:[#allocation2 + $0x260] sm:$0xff] %v5984
        %6409 = vst [vmem:[#allocation2 + $0x268] sm:$0xff] %v5985
        %6410 = vst [vmem:[#allocation2 + $0x270] sm:$0xff] %v5986
        %6411 = vst [vmem:[#allocation2 + $0x278] sm:$0xff] %v5987
        %6412 = vrot.lane.b32.xlu0 %v5972, 127
        %v6413 = vpop.permute.xlu0 %6412
        %6414 = vrot.lane.b32.xlu0 %v5976, 127
        %v6415 = vpop.permute.xlu0 %6414
        %6416 = vrot.lane.b32.xlu0 %v5980, 127
        %v6417 = vpop.permute.xlu0 %6416
        %6418 = vrot.lane.b32.xlu0 %v5984, 127
        %v6419 = vpop.permute.xlu0 %6418
        %6420 = vrot.lane.b32.xlu0 %v5973, 127
        %v6421 = vpop.permute.xlu0 %6420
        %6422 = vrot.lane.b32.xlu0 %v5977, 127
        %v6423 = vpop.permute.xlu0 %6422
        %6424 = vrot.lane.b32.xlu0 %v5981, 127
        %v6425 = vpop.permute.xlu0 %6424
        %6426 = vrot.lane.b32.xlu0 %v5985, 127
        %v6427 = vpop.permute.xlu0 %6426
        %6428 = vrot.lane.b32.xlu0 %v5974, 127
        %v6429 = vpop.permute.xlu0 %6428
        %6430 = vrot.lane.b32.xlu0 %v5978, 127
        %v6431 = vpop.permute.xlu0 %6430
        %6432 = vrot.lane.b32.xlu0 %v5982, 127
        %v6433 = vpop.permute.xlu0 %6432
        %6434 = vrot.lane.b32.xlu0 %v5986, 127
        %v6435 = vpop.permute.xlu0 %6434
        %6436 = vrot.lane.b32.xlu0 %v5975, 127
        %v6437 = vpop.permute.xlu0 %6436
        %6438 = vrot.lane.b32.xlu0 %v5979, 127
        %v6439 = vpop.permute.xlu0 %6438
        %6440 = vrot.lane.b32.xlu0 %v5983, 127
        %v6441 = vpop.permute.xlu0 %6440
        %6442 = vrot.lane.b32.xlu0 %v5987, 127
        %v6443 = vpop.permute.xlu0 %6442
        %v6444 = vsel %vm1080, %v6429, %v6437
        %v6445 = vsel %vm1080, %v6431, %v6439
        %v6446 = vsel %vm1080, %v6433, %v6441
        %v6447 = vsel %vm1080, %v6435, %v6443
        %v6448 = vsel %vm1080, %v6421, %v6429
        %v6449 = vsel %vm1080, %v6423, %v6431
        %v6450 = vsel %vm1080, %v6425, %v6433
        %v6451 = vsel %vm1080, %v6427, %v6435
        %v6452 = vsel %vm1080, %v6413, %v6421
        %v6453 = vsel %vm1080, %v6415, %v6423
        %v6454 = vsel %vm1080, %v6417, %v6425
        %v6455 = vsel %vm1080, %v6419, %v6427
        %v6456 = vsel %vm1080, %v6437, %v6413
        %v6457 = vsel %vm1080, %v6439, %v6415
        %v6458 = vsel %vm1080, %v6441, %v6417
        %v6459 = vsel %vm1080, %v6443, %v6419
        %v6460 = vld [vmem:[%s1097] sm:$0xf]
        %v6462 = vlaneseq
        %v6463 = vshrl.u32 %v6462, 7
        %v6464 = vsub.s32 0, %v6463
        %v6465 = vrot.slane %v6460, %v6464
        %v6466 = vlaneseq
        %v6467 = vshrl.u32 %v6466, 7
        %v6468 = vsub.s32 1, %v6467
        %v6469 = vrot.slane %v6460, %v6468
        %v6470 = vlaneseq
        %v6471 = vshrl.u32 %v6470, 7
        %v6472 = vsub.s32 2, %v6471
        %v6473 = vrot.slane %v6460, %v6472
        %v6474 = vlaneseq
        %v6475 = vshrl.u32 %v6474, 7
        %v6476 = vsub.s32 3, %v6475
        %v6477 = vrot.slane %v6460, %v6476
        %v6482 = vmul.f32 %v6452, %v6465
        %v6483 = vmul.f32 %v6448, %v6469
        %v6484 = vmul.f32 %v6444, %v6473
        %v6485 = vmul.f32 %v6456, %v6477
        %v6486 = vmul.f32 %v6453, %v6465
        %v6487 = vmul.f32 %v6449, %v6469
        %v6488 = vmul.f32 %v6445, %v6473
        %v6489 = vmul.f32 %v6457, %v6477
        %v6490 = vmul.f32 %v6454, %v6465
        %v6491 = vmul.f32 %v6450, %v6469
        %v6492 = vmul.f32 %v6446, %v6473
        %v6493 = vmul.f32 %v6458, %v6477
        %v6494 = vmul.f32 %v6455, %v6465
        %v6495 = vmul.f32 %v6451, %v6469
        %v6496 = vmul.f32 %v6447, %v6473
        %v6497 = vmul.f32 %v6459, %v6477
        %6498 = vst [vmem:[#allocation2 + $0x280] sm:$0xff] %v6482
        %6499 = vst [vmem:[#allocation2 + $0x288] sm:$0xff] %v6483
        %6500 = vst [vmem:[#allocation2 + $0x290] sm:$0xff] %v6484
        %6501 = vst [vmem:[#allocation2 + $0x298] sm:$0xff] %v6485
        %6502 = vst [vmem:[#allocation2 + $0x2a0] sm:$0xff] %v6486
        %6503 = vst [vmem:[#allocation2 + $0x2a8] sm:$0xff] %v6487
        %6504 = vst [vmem:[#allocation2 + $0x2b0] sm:$0xff] %v6488
        %6505 = vst [vmem:[#allocation2 + $0x2b8] sm:$0xff] %v6489
        %6506 = vst [vmem:[#allocation2 + $0x2c0] sm:$0xff] %v6490
        %6507 = vst [vmem:[#allocation2 + $0x2c8] sm:$0xff] %v6491
        %6508 = vst [vmem:[#allocation2 + $0x2d0] sm:$0xff] %v6492
        %6509 = vst [vmem:[#allocation2 + $0x2d8] sm:$0xff] %v6493
        %6510 = vst [vmem:[#allocation2 + $0x2e0] sm:$0xff] %v6494
        %6511 = vst [vmem:[#allocation2 + $0x2e8] sm:$0xff] %v6495
        %6512 = vst [vmem:[#allocation2 + $0x2f0] sm:$0xff] %v6496
        %6513 = vst [vmem:[#allocation2 + $0x2f8] sm:$0xff] %v6497
        %6514 = vrot.lane.b32.xlu0 %v5972, 113
        %v6515 = vpop.permute.xlu0 %6514
        %6516 = vrot.lane.b32.xlu0 %v5976, 113
        %v6517 = vpop.permute.xlu0 %6516
        %6518 = vrot.lane.b32.xlu0 %v5980, 113
        %v6519 = vpop.permute.xlu0 %6518
        %6520 = vrot.lane.b32.xlu0 %v5984, 113
        %v6521 = vpop.permute.xlu0 %6520
        %6522 = vrot.lane.b32.xlu0 %v5973, 113
        %v6523 = vpop.permute.xlu0 %6522
        %6524 = vrot.lane.b32.xlu0 %v5977, 113
        %v6525 = vpop.permute.xlu0 %6524
        %6526 = vrot.lane.b32.xlu0 %v5981, 113
        %v6527 = vpop.permute.xlu0 %6526
        %6528 = vrot.lane.b32.xlu0 %v5985, 113
        %v6529 = vpop.permute.xlu0 %6528
        %6530 = vrot.lane.b32.xlu0 %v5974, 113
        %v6531 = vpop.permute.xlu0 %6530
        %6532 = vrot.lane.b32.xlu0 %v5978, 113
        %v6533 = vpop.permute.xlu0 %6532
        %6534 = vrot.lane.b32.xlu0 %v5982, 113
        %v6535 = vpop.permute.xlu0 %6534
        %6536 = vrot.lane.b32.xlu0 %v5986, 113
        %v6537 = vpop.permute.xlu0 %6536
        %6538 = vrot.lane.b32.xlu0 %v5975, 113
        %v6539 = vpop.permute.xlu0 %6538
        %6540 = vrot.lane.b32.xlu0 %v5979, 113
        %v6541 = vpop.permute.xlu0 %6540
        %6542 = vrot.lane.b32.xlu0 %v5983, 113
        %v6543 = vpop.permute.xlu0 %6542
        %6544 = vrot.lane.b32.xlu0 %v5987, 113
        %v6545 = vpop.permute.xlu0 %6544
        %v6546 = vsel %vm1184, %v6531, %v6539
        %v6547 = vsel %vm1184, %v6533, %v6541
        %v6548 = vsel %vm1184, %v6535, %v6543
        %v6549 = vsel %vm1184, %v6537, %v6545
        %v6550 = vsel %vm1184, %v6523, %v6531
        %v6551 = vsel %vm1184, %v6525, %v6533
        %v6552 = vsel %vm1184, %v6527, %v6535
        %v6553 = vsel %vm1184, %v6529, %v6537
        %v6554 = vsel %vm1184, %v6515, %v6523
        %v6555 = vsel %vm1184, %v6517, %v6525
        %v6556 = vsel %vm1184, %v6519, %v6527
        %v6557 = vsel %vm1184, %v6521, %v6529
        %v6558 = vsel %vm1184, %v6539, %v6515
        %v6559 = vsel %vm1184, %v6541, %v6517
        %v6560 = vsel %vm1184, %v6543, %v6519
        %v6561 = vsel %vm1184, %v6545, %v6521
        %v6562 = vld [vmem:[%s1201] sm:$0xf]
        %v6564 = vlaneseq
        %v6565 = vshrl.u32 %v6564, 7
        %v6566 = vsub.s32 0, %v6565
        %v6567 = vrot.slane %v6562, %v6566
        %v6568 = vlaneseq
        %v6569 = vshrl.u32 %v6568, 7
        %v6570 = vsub.s32 1, %v6569
        %v6571 = vrot.slane %v6562, %v6570
        %v6572 = vlaneseq
        %v6573 = vshrl.u32 %v6572, 7
        %v6574 = vsub.s32 2, %v6573
        %v6575 = vrot.slane %v6562, %v6574
        %v6576 = vlaneseq
        %v6577 = vshrl.u32 %v6576, 7
        %v6578 = vsub.s32 3, %v6577
        %v6579 = vrot.slane %v6562, %v6578
        %v6584 = vmul.f32 %v6554, %v6567
        %v6585 = vmul.f32 %v6550, %v6571
        %v6586 = vmul.f32 %v6546, %v6575
        %v6587 = vmul.f32 %v6558, %v6579
        %v6588 = vmul.f32 %v6555, %v6567
        %v6589 = vmul.f32 %v6551, %v6571
        %v6590 = vmul.f32 %v6547, %v6575
        %v6591 = vmul.f32 %v6559, %v6579
        %v6592 = vmul.f32 %v6556, %v6567
        %v6593 = vmul.f32 %v6552, %v6571
        %v6594 = vmul.f32 %v6548, %v6575
        %v6595 = vmul.f32 %v6560, %v6579
        %v6596 = vmul.f32 %v6557, %v6567
        %v6597 = vmul.f32 %v6553, %v6571
        %v6598 = vmul.f32 %v6549, %v6575
        %v6599 = vmul.f32 %v6561, %v6579
        %6600 = vst [vmem:[#allocation2 + $0x300] sm:$0xff] %v6584
        %6601 = vst [vmem:[#allocation2 + $0x308] sm:$0xff] %v6585
        %6602 = vst [vmem:[#allocation2 + $0x310] sm:$0xff] %v6586
        %6603 = vst [vmem:[#allocation2 + $0x318] sm:$0xff] %v6587
        %6604 = vst [vmem:[#allocation2 + $0x320] sm:$0xff] %v6588
        %6605 = vst [vmem:[#allocation2 + $0x328] sm:$0xff] %v6589
        %6606 = vst [vmem:[#allocation2 + $0x330] sm:$0xff] %v6590
        %6607 = vst [vmem:[#allocation2 + $0x338] sm:$0xff] %v6591
        %6608 = vst [vmem:[#allocation2 + $0x340] sm:$0xff] %v6592
        %6609 = vst [vmem:[#allocation2 + $0x348] sm:$0xff] %v6593
        %6610 = vst [vmem:[#allocation2 + $0x350] sm:$0xff] %v6594
        %6611 = vst [vmem:[#allocation2 + $0x358] sm:$0xff] %v6595
        %6612 = vst [vmem:[#allocation2 + $0x360] sm:$0xff] %v6596
        %6613 = vst [vmem:[#allocation2 + $0x368] sm:$0xff] %v6597
        %6614 = vst [vmem:[#allocation2 + $0x370] sm:$0xff] %v6598
        %6615 = vst [vmem:[#allocation2 + $0x378] sm:$0xff] %v6599
        %6616 = vrot.lane.b32.xlu0 %v5972, 112
        %v6617 = vpop.permute.xlu0 %6616
        %6618 = vrot.lane.b32.xlu0 %v5976, 112
        %v6619 = vpop.permute.xlu0 %6618
        %6620 = vrot.lane.b32.xlu0 %v5980, 112
        %v6621 = vpop.permute.xlu0 %6620
        %6622 = vrot.lane.b32.xlu0 %v5984, 112
        %v6623 = vpop.permute.xlu0 %6622
        %6624 = vrot.lane.b32.xlu0 %v5973, 112
        %v6625 = vpop.permute.xlu0 %6624
        %6626 = vrot.lane.b32.xlu0 %v5977, 112
        %v6627 = vpop.permute.xlu0 %6626
        %6628 = vrot.lane.b32.xlu0 %v5981, 112
        %v6629 = vpop.permute.xlu0 %6628
        %6630 = vrot.lane.b32.xlu0 %v5985, 112
        %v6631 = vpop.permute.xlu0 %6630
        %6632 = vrot.lane.b32.xlu0 %v5974, 112
        %v6633 = vpop.permute.xlu0 %6632
        %6634 = vrot.lane.b32.xlu0 %v5978, 112
        %v6635 = vpop.permute.xlu0 %6634
        %6636 = vrot.lane.b32.xlu0 %v5982, 112
        %v6637 = vpop.permute.xlu0 %6636
        %6638 = vrot.lane.b32.xlu0 %v5986, 112
        %v6639 = vpop.permute.xlu0 %6638
        %6640 = vrot.lane.b32.xlu0 %v5975, 112
        %v6641 = vpop.permute.xlu0 %6640
        %6642 = vrot.lane.b32.xlu0 %v5979, 112
        %v6643 = vpop.permute.xlu0 %6642
        %6644 = vrot.lane.b32.xlu0 %v5983, 112
        %v6645 = vpop.permute.xlu0 %6644
        %6646 = vrot.lane.b32.xlu0 %v5987, 112
        %v6647 = vpop.permute.xlu0 %6646
        %v6648 = vsel %vm1288, %v6633, %v6641
        %v6649 = vsel %vm1288, %v6635, %v6643
        %v6650 = vsel %vm1288, %v6637, %v6645
        %v6651 = vsel %vm1288, %v6639, %v6647
        %v6652 = vsel %vm1288, %v6625, %v6633
        %v6653 = vsel %vm1288, %v6627, %v6635
        %v6654 = vsel %vm1288, %v6629, %v6637
        %v6655 = vsel %vm1288, %v6631, %v6639
        %v6656 = vsel %vm1288, %v6617, %v6625
        %v6657 = vsel %vm1288, %v6619, %v6627
        %v6658 = vsel %vm1288, %v6621, %v6629
        %v6659 = vsel %vm1288, %v6623, %v6631
        %v6660 = vsel %vm1288, %v6641, %v6617
        %v6661 = vsel %vm1288, %v6643, %v6619
        %v6662 = vsel %vm1288, %v6645, %v6621
        %v6663 = vsel %vm1288, %v6647, %v6623
        %v6664 = vld [vmem:[%s1305] sm:$0xf]
        %v6666 = vlaneseq
        %v6667 = vshrl.u32 %v6666, 7
        %v6668 = vsub.s32 0, %v6667
        %v6669 = vrot.slane %v6664, %v6668
        %v6670 = vlaneseq
        %v6671 = vshrl.u32 %v6670, 7
        %v6672 = vsub.s32 1, %v6671
        %v6673 = vrot.slane %v6664, %v6672
        %v6674 = vlaneseq
        %v6675 = vshrl.u32 %v6674, 7
        %v6676 = vsub.s32 2, %v6675
        %v6677 = vrot.slane %v6664, %v6676
        %v6678 = vlaneseq
        %v6679 = vshrl.u32 %v6678, 7
        %v6680 = vsub.s32 3, %v6679
        %v6681 = vrot.slane %v6664, %v6680
        %v6686 = vmul.f32 %v6656, %v6669
        %v6687 = vmul.f32 %v6652, %v6673
        %v6688 = vmul.f32 %v6648, %v6677
        %v6689 = vmul.f32 %v6660, %v6681
        %v6690 = vmul.f32 %v6657, %v6669
        %v6691 = vmul.f32 %v6653, %v6673
        %v6692 = vmul.f32 %v6649, %v6677
        %v6693 = vmul.f32 %v6661, %v6681
        %v6694 = vmul.f32 %v6658, %v6669
        %v6695 = vmul.f32 %v6654, %v6673
        %v6696 = vmul.f32 %v6650, %v6677
        %v6697 = vmul.f32 %v6662, %v6681
        %v6698 = vmul.f32 %v6659, %v6669
        %v6699 = vmul.f32 %v6655, %v6673
        %v6700 = vmul.f32 %v6651, %v6677
        %v6701 = vmul.f32 %v6663, %v6681
        %6702 = vst [vmem:[#allocation2 + $0x380] sm:$0xff] %v6686
        %6703 = vst [vmem:[#allocation2 + $0x388] sm:$0xff] %v6687
        %6704 = vst [vmem:[#allocation2 + $0x390] sm:$0xff] %v6688
        %6705 = vst [vmem:[#allocation2 + $0x398] sm:$0xff] %v6689
        %6706 = vst [vmem:[#allocation2 + $0x3a0] sm:$0xff] %v6690
        %6707 = vst [vmem:[#allocation2 + $0x3a8] sm:$0xff] %v6691
        %6708 = vst [vmem:[#allocation2 + $0x3b0] sm:$0xff] %v6692
        %6709 = vst [vmem:[#allocation2 + $0x3b8] sm:$0xff] %v6693
        %6710 = vst [vmem:[#allocation2 + $0x3c0] sm:$0xff] %v6694
        %6711 = vst [vmem:[#allocation2 + $0x3c8] sm:$0xff] %v6695
        %6712 = vst [vmem:[#allocation2 + $0x3d0] sm:$0xff] %v6696
        %6713 = vst [vmem:[#allocation2 + $0x3d8] sm:$0xff] %v6697
        %6714 = vst [vmem:[#allocation2 + $0x3e0] sm:$0xff] %v6698
        %6715 = vst [vmem:[#allocation2 + $0x3e8] sm:$0xff] %v6699
        %6716 = vst [vmem:[#allocation2 + $0x3f0] sm:$0xff] %v6700
        %6717 = vst [vmem:[#allocation2 + $0x3f8] sm:$0xff] %v6701
        %6718 = vrot.lane.b32.xlu0 %v5972, 111
        %v6719 = vpop.permute.xlu0 %6718
        %6720 = vrot.lane.b32.xlu0 %v5976, 111
        %v6721 = vpop.permute.xlu0 %6720
        %6722 = vrot.lane.b32.xlu0 %v5980, 111
        %v6723 = vpop.permute.xlu0 %6722
        %6724 = vrot.lane.b32.xlu0 %v5984, 111
        %v6725 = vpop.permute.xlu0 %6724
        %6726 = vrot.lane.b32.xlu0 %v5973, 111
        %v6727 = vpop.permute.xlu0 %6726
        %6728 = vrot.lane.b32.xlu0 %v5977, 111
        %v6729 = vpop.permute.xlu0 %6728
        %6730 = vrot.lane.b32.xlu0 %v5981, 111
        %v6731 = vpop.permute.xlu0 %6730
        %6732 = vrot.lane.b32.xlu0 %v5985, 111
        %v6733 = vpop.permute.xlu0 %6732
        %6734 = vrot.lane.b32.xlu0 %v5974, 111
        %v6735 = vpop.permute.xlu0 %6734
        %6736 = vrot.lane.b32.xlu0 %v5978, 111
        %v6737 = vpop.permute.xlu0 %6736
        %6738 = vrot.lane.b32.xlu0 %v5982, 111
        %v6739 = vpop.permute.xlu0 %6738
        %6740 = vrot.lane.b32.xlu0 %v5986, 111
        %v6741 = vpop.permute.xlu0 %6740
        %6742 = vrot.lane.b32.xlu0 %v5975, 111
        %v6743 = vpop.permute.xlu0 %6742
        %6744 = vrot.lane.b32.xlu0 %v5979, 111
        %v6745 = vpop.permute.xlu0 %6744
        %6746 = vrot.lane.b32.xlu0 %v5983, 111
        %v6747 = vpop.permute.xlu0 %6746
        %6748 = vrot.lane.b32.xlu0 %v5987, 111
        %v6749 = vpop.permute.xlu0 %6748
        %v6750 = vsel %vm1392, %v6735, %v6743
        %v6751 = vsel %vm1392, %v6737, %v6745
        %v6752 = vsel %vm1392, %v6739, %v6747
        %v6753 = vsel %vm1392, %v6741, %v6749
        %v6754 = vsel %vm1392, %v6727, %v6735
        %v6755 = vsel %vm1392, %v6729, %v6737
        %v6756 = vsel %vm1392, %v6731, %v6739
        %v6757 = vsel %vm1392, %v6733, %v6741
        %v6758 = vsel %vm1392, %v6719, %v6727
        %v6759 = vsel %vm1392, %v6721, %v6729
        %v6760 = vsel %vm1392, %v6723, %v6731
        %v6761 = vsel %vm1392, %v6725, %v6733
        %v6762 = vsel %vm1392, %v6743, %v6719
        %v6763 = vsel %vm1392, %v6745, %v6721
        %v6764 = vsel %vm1392, %v6747, %v6723
        %v6765 = vsel %vm1392, %v6749, %v6725
        %v6766 = vld [vmem:[%s1409] sm:$0xf]
        %v6768 = vlaneseq
        %v6769 = vshrl.u32 %v6768, 7
        %v6770 = vsub.s32 0, %v6769
        %v6771 = vrot.slane %v6766, %v6770
        %v6772 = vlaneseq
        %v6773 = vshrl.u32 %v6772, 7
        %v6774 = vsub.s32 1, %v6773
        %v6775 = vrot.slane %v6766, %v6774
        %v6776 = vlaneseq
        %v6777 = vshrl.u32 %v6776, 7
        %v6778 = vsub.s32 2, %v6777
        %v6779 = vrot.slane %v6766, %v6778
        %v6780 = vlaneseq
        %v6781 = vshrl.u32 %v6780, 7
        %v6782 = vsub.s32 3, %v6781
        %v6783 = vrot.slane %v6766, %v6782
        %v6788 = vmul.f32 %v6758, %v6771
        %v6789 = vmul.f32 %v6754, %v6775
        %v6790 = vmul.f32 %v6750, %v6779
        %v6791 = vmul.f32 %v6762, %v6783
        %v6792 = vmul.f32 %v6759, %v6771
        %v6793 = vmul.f32 %v6755, %v6775
        %v6794 = vmul.f32 %v6751, %v6779
        %v6795 = vmul.f32 %v6763, %v6783
        %v6796 = vmul.f32 %v6760, %v6771
        %v6797 = vmul.f32 %v6756, %v6775
        %v6798 = vmul.f32 %v6752, %v6779
        %v6799 = vmul.f32 %v6764, %v6783
        %v6800 = vmul.f32 %v6761, %v6771
        %v6801 = vmul.f32 %v6757, %v6775
        %v6802 = vmul.f32 %v6753, %v6779
        %v6803 = vmul.f32 %v6765, %v6783
        %6804 = vst [vmem:[#allocation2 + $0x400] sm:$0xff] %v6788
        %6805 = vst [vmem:[#allocation2 + $0x408] sm:$0xff] %v6789
        %6806 = vst [vmem:[#allocation2 + $0x410] sm:$0xff] %v6790
        %6807 = vst [vmem:[#allocation2 + $0x418] sm:$0xff] %v6791
        %6808 = vst [vmem:[#allocation2 + $0x420] sm:$0xff] %v6792
        %6809 = vst [vmem:[#allocation2 + $0x428] sm:$0xff] %v6793
        %6810 = vst [vmem:[#allocation2 + $0x430] sm:$0xff] %v6794
        %6811 = vst [vmem:[#allocation2 + $0x438] sm:$0xff] %v6795
        %6812 = vst [vmem:[#allocation2 + $0x440] sm:$0xff] %v6796
        %6813 = vst [vmem:[#allocation2 + $0x448] sm:$0xff] %v6797
        %6814 = vst [vmem:[#allocation2 + $0x450] sm:$0xff] %v6798
        %6815 = vst [vmem:[#allocation2 + $0x458] sm:$0xff] %v6799
        %6816 = vst [vmem:[#allocation2 + $0x460] sm:$0xff] %v6800
        %6817 = vst [vmem:[#allocation2 + $0x468] sm:$0xff] %v6801
        %6818 = vst [vmem:[#allocation2 + $0x470] sm:$0xff] %v6802
        %6819 = vst [vmem:[#allocation2 + $0x478] sm:$0xff] %v6803
        %s6820 = scalar_lea.vmem %s3, 288
        %v6821 = vld [vmem:[%s6820] sm:$0xff]
        %v6822 = vld [vmem:[%s6820 + $0x8] sm:$0xff]
        %v6823 = vld [vmem:[%s6820 + $0x10] sm:$0xff]
        %v6824 = vld [vmem:[%s6820 + $0x18] sm:$0xff]
        %v6825 = vld [vmem:[%s6820 + $0x20] sm:$0xff]
        %v6826 = vld [vmem:[%s6820 + $0x28] sm:$0xff]
        %v6827 = vld [vmem:[%s6820 + $0x30] sm:$0xff]
        %v6828 = vld [vmem:[%s6820 + $0x38] sm:$0xff]
        %v6829 = vld [vmem:[%s6820 + $0x40] sm:$0xff]
        %v6830 = vld [vmem:[%s6820 + $0x48] sm:$0xff]
        %v6831 = vld [vmem:[%s6820 + $0x50] sm:$0xff]
        %v6832 = vld [vmem:[%s6820 + $0x58] sm:$0xff]
        %v6833 = vld [vmem:[#allocation2] sm:$0xff]
        %v6834 = vld [vmem:[#allocation2 + $0x8] sm:$0xff]
        %v6835 = vld [vmem:[#allocation2 + $0x10] sm:$0xff]
        %v6836 = vld [vmem:[#allocation2 + $0x18] sm:$0xff]
        %v6837 = vld [vmem:[#allocation2 + $0x20] sm:$0xff]
        %v6838 = vld [vmem:[#allocation2 + $0x28] sm:$0xff]
        %v6839 = vld [vmem:[#allocation2 + $0x30] sm:$0xff]
        %v6840 = vld [vmem:[#allocation2 + $0x38] sm:$0xff]
        %v6841 = vld [vmem:[#allocation2 + $0x40] sm:$0xff]
        %v6842 = vld [vmem:[#allocation2 + $0x48] sm:$0xff]
        %v6843 = vld [vmem:[#allocation2 + $0x50] sm:$0xff]
        %v6844 = vld [vmem:[#allocation2 + $0x58] sm:$0xff]
        %v6845 = vld [vmem:[#allocation2 + $0x60] sm:$0xff]
        %v6846 = vld [vmem:[#allocation2 + $0x68] sm:$0xff]
        %v6847 = vld [vmem:[#allocation2 + $0x70] sm:$0xff]
        %v6848 = vld [vmem:[#allocation2 + $0x78] sm:$0xff]
        %v6849 = vld [vmem:[#allocation2 + $0x80] sm:$0xff]
        %v6850 = vld [vmem:[#allocation2 + $0x88] sm:$0xff]
        %v6851 = vld [vmem:[#allocation2 + $0x90] sm:$0xff]
        %v6852 = vld [vmem:[#allocation2 + $0x98] sm:$0xff]
        %v6853 = vld [vmem:[#allocation2 + $0xa0] sm:$0xff]
        %v6854 = vld [vmem:[#allocation2 + $0xa8] sm:$0xff]
        %v6855 = vld [vmem:[#allocation2 + $0xb0] sm:$0xff]
        %v6856 = vld [vmem:[#allocation2 + $0xb8] sm:$0xff]
        %v6857 = vld [vmem:[#allocation2 + $0xc0] sm:$0xff]
        %v6858 = vld [vmem:[#allocation2 + $0xc8] sm:$0xff]
        %v6859 = vld [vmem:[#allocation2 + $0xd0] sm:$0xff]
        %v6860 = vld [vmem:[#allocation2 + $0xd8] sm:$0xff]
        %v6861 = vld [vmem:[#allocation2 + $0xe0] sm:$0xff]
        %v6862 = vld [vmem:[#allocation2 + $0xe8] sm:$0xff]
        %v6863 = vld [vmem:[#allocation2 + $0xf0] sm:$0xff]
        %v6864 = vld [vmem:[#allocation2 + $0xf8] sm:$0xff]
        %v6865 = vld [vmem:[#allocation2 + $0x100] sm:$0xff]
        %v6866 = vld [vmem:[#allocation2 + $0x108] sm:$0xff]
        %v6867 = vld [vmem:[#allocation2 + $0x110] sm:$0xff]
        %v6868 = vld [vmem:[#allocation2 + $0x118] sm:$0xff]
        %v6869 = vld [vmem:[#allocation2 + $0x120] sm:$0xff]
        %v6870 = vld [vmem:[#allocation2 + $0x128] sm:$0xff]
        %v6871 = vld [vmem:[#allocation2 + $0x130] sm:$0xff]
        %v6872 = vld [vmem:[#allocation2 + $0x138] sm:$0xff]
        %v6873 = vld [vmem:[#allocation2 + $0x140] sm:$0xff]
        %v6874 = vld [vmem:[#allocation2 + $0x148] sm:$0xff]
        %v6875 = vld [vmem:[#allocation2 + $0x150] sm:$0xff]
        %v6876 = vld [vmem:[#allocation2 + $0x158] sm:$0xff]
        %v6877 = vld [vmem:[#allocation2 + $0x160] sm:$0xff]
        %v6878 = vld [vmem:[#allocation2 + $0x168] sm:$0xff]
        %v6879 = vld [vmem:[#allocation2 + $0x170] sm:$0xff]
        %v6880 = vld [vmem:[#allocation2 + $0x178] sm:$0xff]
        %v6881 = vld [vmem:[#allocation2 + $0x180] sm:$0xff]
        %v6882 = vld [vmem:[#allocation2 + $0x188] sm:$0xff]
        %v6883 = vld [vmem:[#allocation2 + $0x190] sm:$0xff]
        %v6884 = vld [vmem:[#allocation2 + $0x198] sm:$0xff]
        %v6885 = vld [vmem:[#allocation2 + $0x1a0] sm:$0xff]
        %v6886 = vld [vmem:[#allocation2 + $0x1a8] sm:$0xff]
        %v6887 = vld [vmem:[#allocation2 + $0x1b0] sm:$0xff]
        %v6888 = vld [vmem:[#allocation2 + $0x1b8] sm:$0xff]
        %v6889 = vld [vmem:[#allocation2 + $0x1c0] sm:$0xff]
        %v6890 = vld [vmem:[#allocation2 + $0x1c8] sm:$0xff]
        %v6891 = vld [vmem:[#allocation2 + $0x1d0] sm:$0xff]
        %v6892 = vld [vmem:[#allocation2 + $0x1d8] sm:$0xff]
        %v6893 = vld [vmem:[#allocation2 + $0x1e0] sm:$0xff]
        %v6894 = vld [vmem:[#allocation2 + $0x1e8] sm:$0xff]
        %v6895 = vld [vmem:[#allocation2 + $0x1f0] sm:$0xff]
        %v6896 = vld [vmem:[#allocation2 + $0x1f8] sm:$0xff]
        %v6897 = vld [vmem:[#allocation2 + $0x200] sm:$0xff]
        %v6898 = vld [vmem:[#allocation2 + $0x208] sm:$0xff]
        %v6899 = vld [vmem:[#allocation2 + $0x210] sm:$0xff]
        %v6900 = vld [vmem:[#allocation2 + $0x218] sm:$0xff]
        %v6901 = vld [vmem:[#allocation2 + $0x220] sm:$0xff]
        %v6902 = vld [vmem:[#allocation2 + $0x228] sm:$0xff]
        %v6903 = vld [vmem:[#allocation2 + $0x230] sm:$0xff]
        %v6904 = vld [vmem:[#allocation2 + $0x238] sm:$0xff]
        %v6905 = vld [vmem:[#allocation2 + $0x240] sm:$0xff]
        %v6906 = vld [vmem:[#allocation2 + $0x248] sm:$0xff]
        %v6907 = vld [vmem:[#allocation2 + $0x250] sm:$0xff]
        %v6908 = vld [vmem:[#allocation2 + $0x258] sm:$0xff]
        %v6909 = vld [vmem:[#allocation2 + $0x260] sm:$0xff]
        %v6910 = vld [vmem:[#allocation2 + $0x268] sm:$0xff]
        %v6911 = vld [vmem:[#allocation2 + $0x270] sm:$0xff]
        %v6912 = vld [vmem:[#allocation2 + $0x278] sm:$0xff]
        %v6913 = vld [vmem:[#allocation2 + $0x280] sm:$0xff]
        %v6914 = vld [vmem:[#allocation2 + $0x288] sm:$0xff]
        %v6915 = vld [vmem:[#allocation2 + $0x290] sm:$0xff]
        %v6916 = vld [vmem:[#allocation2 + $0x298] sm:$0xff]
        %v6917 = vld [vmem:[#allocation2 + $0x2a0] sm:$0xff]
        %v6918 = vld [vmem:[#allocation2 + $0x2a8] sm:$0xff]
        %v6919 = vld [vmem:[#allocation2 + $0x2b0] sm:$0xff]
        %v6920 = vld [vmem:[#allocation2 + $0x2b8] sm:$0xff]
        %v6921 = vld [vmem:[#allocation2 + $0x2c0] sm:$0xff]
        %v6922 = vld [vmem:[#allocation2 + $0x2c8] sm:$0xff]
        %v6923 = vld [vmem:[#allocation2 + $0x2d0] sm:$0xff]
        %v6924 = vld [vmem:[#allocation2 + $0x2d8] sm:$0xff]
        %v6925 = vld [vmem:[#allocation2 + $0x2e0] sm:$0xff]
        %v6926 = vld [vmem:[#allocation2 + $0x2e8] sm:$0xff]
        %v6927 = vld [vmem:[#allocation2 + $0x2f0] sm:$0xff]
        %v6928 = vld [vmem:[#allocation2 + $0x2f8] sm:$0xff]
        %v6929 = vld [vmem:[#allocation2 + $0x300] sm:$0xff]
        %v6930 = vld [vmem:[#allocation2 + $0x308] sm:$0xff]
        %v6931 = vld [vmem:[#allocation2 + $0x310] sm:$0xff]
        %v6932 = vld [vmem:[#allocation2 + $0x318] sm:$0xff]
        %v6933 = vld [vmem:[#allocation2 + $0x320] sm:$0xff]
        %v6934 = vld [vmem:[#allocation2 + $0x328] sm:$0xff]
        %v6935 = vld [vmem:[#allocation2 + $0x330] sm:$0xff]
        %v6936 = vld [vmem:[#allocation2 + $0x338] sm:$0xff]
        %v6937 = vld [vmem:[#allocation2 + $0x340] sm:$0xff]
        %v6938 = vld [vmem:[#allocation2 + $0x348] sm:$0xff]
        %v6939 = vld [vmem:[#allocation2 + $0x350] sm:$0xff]
        %v6940 = vld [vmem:[#allocation2 + $0x358] sm:$0xff]
        %v6941 = vld [vmem:[#allocation2 + $0x360] sm:$0xff]
        %v6942 = vld [vmem:[#allocation2 + $0x368] sm:$0xff]
        %v6943 = vld [vmem:[#allocation2 + $0x370] sm:$0xff]
        %v6944 = vld [vmem:[#allocation2 + $0x378] sm:$0xff]
        %v6945 = vld [vmem:[#allocation2 + $0x380] sm:$0xff]
        %v6946 = vld [vmem:[#allocation2 + $0x388] sm:$0xff]
        %v6947 = vld [vmem:[#allocation2 + $0x390] sm:$0xff]
        %v6948 = vld [vmem:[#allocation2 + $0x398] sm:$0xff]
        %v6949 = vld [vmem:[#allocation2 + $0x3a0] sm:$0xff]
        %v6950 = vld [vmem:[#allocation2 + $0x3a8] sm:$0xff]
        %v6951 = vld [vmem:[#allocation2 + $0x3b0] sm:$0xff]
        %v6952 = vld [vmem:[#allocation2 + $0x3b8] sm:$0xff]
        %v6953 = vld [vmem:[#allocation2 + $0x3c0] sm:$0xff]
        %v6954 = vld [vmem:[#allocation2 + $0x3c8] sm:$0xff]
        %v6955 = vld [vmem:[#allocation2 + $0x3d0] sm:$0xff]
        %v6956 = vld [vmem:[#allocation2 + $0x3d8] sm:$0xff]
        %v6957 = vld [vmem:[#allocation2 + $0x3e0] sm:$0xff]
        %v6958 = vld [vmem:[#allocation2 + $0x3e8] sm:$0xff]
        %v6959 = vld [vmem:[#allocation2 + $0x3f0] sm:$0xff]
        %v6960 = vld [vmem:[#allocation2 + $0x3f8] sm:$0xff]
        %v6961 = vld [vmem:[#allocation2 + $0x400] sm:$0xff]
        %v6962 = vld [vmem:[#allocation2 + $0x408] sm:$0xff]
        %v6963 = vld [vmem:[#allocation2 + $0x410] sm:$0xff]
        %v6964 = vld [vmem:[#allocation2 + $0x418] sm:$0xff]
        %v6965 = vld [vmem:[#allocation2 + $0x420] sm:$0xff]
        %v6966 = vld [vmem:[#allocation2 + $0x428] sm:$0xff]
        %v6967 = vld [vmem:[#allocation2 + $0x430] sm:$0xff]
        %v6968 = vld [vmem:[#allocation2 + $0x438] sm:$0xff]
        %v6969 = vld [vmem:[#allocation2 + $0x440] sm:$0xff]
        %v6970 = vld [vmem:[#allocation2 + $0x448] sm:$0xff]
        %v6971 = vld [vmem:[#allocation2 + $0x450] sm:$0xff]
        %v6972 = vld [vmem:[#allocation2 + $0x458] sm:$0xff]
        %v6973 = vld [vmem:[#allocation2 + $0x460] sm:$0xff]
        %v6974 = vld [vmem:[#allocation2 + $0x468] sm:$0xff]
        %v6975 = vld [vmem:[#allocation2 + $0x470] sm:$0xff]
        %v6976 = vld [vmem:[#allocation2 + $0x478] sm:$0xff]
        %s6977 = scalar_lea.vmem %s4, 96
        %v6978 = vld [vmem:[%s6977] sm:$0xff]
        %v6979 = vld [vmem:[%s6977 + $0x8] sm:$0xff]
        %v6980 = vld [vmem:[%s6977 + $0x10] sm:$0xff]
        %v6981 = vld [vmem:[%s6977 + $0x18] sm:$0xff]
        %6983 = vset.pattern.permute.xlu0 0
        %6984 = vperm.xlu0 %6983, %v6978
        %v6985 = vpop.permute.xlu0 %6984
        %6988 = vset.pattern.permute.xlu0 0
        %6989 = vperm.xlu0 %6988, %v6979
        %v6990 = vpop.permute.xlu0 %6989
        %6993 = vset.pattern.permute.xlu0 0
        %6994 = vperm.xlu0 %6993, %v6980
        %v6995 = vpop.permute.xlu0 %6994
        %6998 = vset.pattern.permute.xlu0 0
        %6999 = vperm.xlu0 %6998, %v6981
        %v7000 = vpop.permute.xlu0 %6999
        %v7003 = vsel %vm1644, %v6823, 0
        %v7006 = vsel %vm1644, %v6826, 0
        %v7009 = vsel %vm1644, %v6829, 0
        %v7012 = vsel %vm1644, %v6832, 0
        %7014 = vmatprep.subr.mxu0 %v6894
        %7015 = vmatpush1.msra.mxu0 %v6893
        %7016 = vmatprep.subr.mxu0 %v6890
        %7017 = vmatpush1.msra.mxu0 %v6889
        %7018 = vmatprep.subr.mxu0 %v6886
        %7019 = vmatpush1.msra.mxu0 %v6885
        %7020 = vmatprep.subr.mxu0 %v6882
        %7021 = vmatpush1.msra.mxu0 %v6881
        %7022 = vmatprep.subr.mxu0 %v6878
        %7023 = vmatpush1.msra.mxu0 %v6877
        %7024 = vmatprep.subr.mxu0 %v6874
        %7025 = vmatpush1.msra.mxu0 %v6873
        %7026 = vmatprep.subr.mxu0 %v6870
        %7027 = vmatpush1.msra.mxu0 %v6869
        %7028 = vmatprep.subr.mxu0 %v6866
        %7029 = vmatpush1.msra.mxu0 %v6865
        %7030 = vmatprep.subr.mxu0 %v6862
        %7031 = vmatpush1.msra.mxu0 %v6861
        %7032 = vmatprep.subr.mxu0 %v6858
        %7033 = vmatpush1.msra.mxu0 %v6857
        %7034 = vmatprep.subr.mxu0 %v6854
        %7035 = vmatpush1.msra.mxu0 %v6853
        %7036 = vmatprep.subr.mxu0 %v6850
        %7037 = vmatpush1.msra.mxu0 %v6849
        %7038 = vmatprep.subr.mxu0 %v6846
        %7039 = vmatpush1.msra.mxu0 %v6845
        %7040 = vmatprep.subr.mxu0 %v6842
        %7041 = vmatpush1.msra.mxu0 %v6841
        %7042 = vmatprep.subr.mxu0 %v6838
        %7043 = vmatpush1.msra.mxu0 %v6837
        %7044 = vmatprep.subr.mxu0 %v6834
        %7045 = vmatpush1.msra.mxu0 %v6833
        %7046 = vmatprep.subr.mxu0 %v6958
        %7047 = vmatpush2.msra.mxu0 %v6957
        %7048 = vmatprep.subr.mxu0 %v6954
        %7049 = vmatpush2.msra.mxu0 %v6953
        %7050 = vmatprep.subr.mxu0 %v6950
        %7051 = vmatpush2.msra.mxu0 %v6949
        %7052 = vmatprep.subr.mxu0 %v6946
        %7053 = vmatpush2.msra.mxu0 %v6945
        %7054 = vmatprep.subr.mxu0 %v6942
        %7055 = vmatpush2.msra.mxu0 %v6941
        %7056 = vmatprep.subr.mxu0 %v6938
        %7057 = vmatpush2.msra.mxu0 %v6937
        %7058 = vmatprep.subr.mxu0 %v6934
        %7059 = vmatpush2.msra.mxu0 %v6933
        %7060 = vmatprep.subr.mxu0 %v6930
        %7061 = vmatpush2.msra.mxu0 %v6929
        %7062 = vmatprep.subr.mxu0 %v6926
        %7063 = vmatpush2.msra.mxu0 %v6925
        %7064 = vmatprep.subr.mxu0 %v6922
        %7065 = vmatpush2.msra.mxu0 %v6921
        %7066 = vmatprep.subr.mxu0 %v6918
        %7067 = vmatpush2.msra.mxu0 %v6917
        %7068 = vmatprep.subr.mxu0 %v6914
        %7069 = vmatpush2.msra.mxu0 %v6913
        %7070 = vmatprep.subr.mxu0 %v6910
        %7071 = vmatpush2.msra.mxu0 %v6909
        %7072 = vmatprep.subr.mxu0 %v6906
        %7073 = vmatpush2.msra.mxu0 %v6905
        %7074 = vmatprep.subr.mxu0 %v6902
        %7075 = vmatpush2.msra.mxu0 %v6901
        %7076 = vmatprep.subr.mxu0 %v6898
        %7077 = vmatpush2.msra.mxu0 %v6897
        %7078 = vmatprep.mubr.f32.mxu0 %v6822
        %7079 = vmatmul.mubr.f32.gmra.mxu0 %v6821
        %v7080 = vpop.f32.mrf.mxu0
        %v7081 = vadd.f32 %v6985, %v7080
        %v7082 = vpop.f32.mrf.mxu0
        %v7083 = vadd.f32 %v6985, %v7082
        %7084 = vmatprep.mubr.f32.mxu0 %v6825
        %7085 = vmatmul.mubr.f32.gmra.mxu0 %v6824
        %v7086 = vpop.f32.mrf.mxu0
        %v7087 = vadd.f32 %v6990, %v7086
        %v7088 = vpop.f32.mrf.mxu0
        %v7089 = vadd.f32 %v6990, %v7088
        %7090 = vmatprep.mubr.f32.mxu0 %v6828
        %7091 = vmatmul.mubr.f32.gmra.mxu0 %v6827
        %v7092 = vpop.f32.mrf.mxu0
        %v7093 = vadd.f32 %v6995, %v7092
        %v7094 = vpop.f32.mrf.mxu0
        %v7095 = vadd.f32 %v6995, %v7094
        %7096 = vmatprep.mubr.f32.mxu0 %v6831
        %7097 = vmatmul.mubr.f32.gmra.mxu0 %v6830
        %v7098 = vpop.f32.mrf.mxu0
        %v7099 = vadd.f32 %v7000, %v7098
        %v7100 = vpop.f32.mrf.mxu0
        %v7101 = vadd.f32 %v7000, %v7100
        %7102 = vdwg.mxu0
        %7103 = vmatprep.subr.mxu0 0.0
        %7104 = vmatpush1.msra.mxu0 0.0
        %7105 = vmatprep.subr.mxu0 0.0
        %7106 = vmatpush1.msra.mxu0 0.0
        %7107 = vmatprep.subr.mxu0 0.0
        %7108 = vmatpush1.msra.mxu0 0.0
        %7109 = vmatprep.subr.mxu0 0.0
        %7110 = vmatpush1.msra.mxu0 0.0
        %7111 = vmatprep.subr.mxu0 0.0
        %7112 = vmatpush1.msra.mxu0 0.0
        %7113 = vmatprep.subr.mxu0 0.0
        %7114 = vmatpush1.msra.mxu0 0.0
        %7115 = vmatprep.subr.mxu0 0.0
        %7116 = vmatpush1.msra.mxu0 0.0
        %7117 = vmatprep.subr.mxu0 0.0
        %7118 = vmatpush1.msra.mxu0 0.0
        %7119 = vmatprep.subr.mxu0 0.0
        %7120 = vmatpush1.msra.mxu0 0.0
        %7121 = vmatprep.subr.mxu0 0.0
        %7122 = vmatpush1.msra.mxu0 0.0
        %7123 = vmatprep.subr.mxu0 0.0
        %7124 = vmatpush1.msra.mxu0 0.0
        %7125 = vmatprep.subr.mxu0 0.0
        %7126 = vmatpush1.msra.mxu0 0.0
        %7127 = vmatprep.subr.mxu0 %v6974
        %7128 = vmatpush1.msra.mxu0 %v6973
        %7129 = vmatprep.subr.mxu0 %v6970
        %7130 = vmatpush1.msra.mxu0 %v6969
        %7131 = vmatprep.subr.mxu0 %v6966
        %7132 = vmatpush1.msra.mxu0 %v6965
        %7133 = vmatprep.subr.mxu0 %v6962
        %7134 = vmatpush1.msra.mxu0 %v6961
        %7135 = vmatprep.subr.mxu0 0.0
        %7136 = vmatpush2.msra.mxu0 0.0
        %7137 = vmatprep.subr.mxu0 0.0
        %7138 = vmatpush2.msra.mxu0 0.0
        %7139 = vmatprep.subr.mxu0 0.0
        %7140 = vmatpush2.msra.mxu0 0.0
        %7141 = vmatprep.subr.mxu0 0.0
        %7142 = vmatpush2.msra.mxu0 0.0
        %7143 = vmatprep.subr.mxu0 0.0
        %7144 = vmatpush2.msra.mxu0 0.0
        %7145 = vmatprep.subr.mxu0 0.0
        %7146 = vmatpush2.msra.mxu0 0.0
        %7147 = vmatprep.subr.mxu0 0.0
        %7148 = vmatpush2.msra.mxu0 0.0
        %7149 = vmatprep.subr.mxu0 0.0
        %7150 = vmatpush2.msra.mxu0 0.0
        %7151 = vmatprep.subr.mxu0 0.0
        %7152 = vmatpush2.msra.mxu0 0.0
        %7153 = vmatprep.subr.mxu0 0.0
        %7154 = vmatpush2.msra.mxu0 0.0
        %7155 = vmatprep.subr.mxu0 0.0
        %7156 = vmatpush2.msra.mxu0 0.0
        %7157 = vmatprep.subr.mxu0 0.0
        %7158 = vmatpush2.msra.mxu0 0.0
        %7159 = vmatprep.subr.mxu0 0.0
        %7160 = vmatpush2.msra.mxu0 0.0
        %7161 = vmatprep.subr.mxu0 0.0
        %7162 = vmatpush2.msra.mxu0 0.0
        %7163 = vmatprep.subr.mxu0 0.0
        %7164 = vmatpush2.msra.mxu0 0.0
        %7165 = vmatprep.subr.mxu0 0.0
        %7166 = vmatpush2.msra.mxu0 0.0
        %7167 = vmatprep.mubr.f32.mxu0 0.0
        %7168 = vmatmul.mubr.f32.gmra.mxu0 %v7003
        %v7169 = vpop.f32.mrf.mxu0
        %v7170 = vadd.f32 %v7081, %v7169
        %v7171 = vpop.f32.mrf.mxu0
        %v7172 = vadd.f32 %v7083, %v7171
        %7173 = vmatprep.mubr.f32.mxu0 0.0
        %7174 = vmatmul.mubr.f32.gmra.mxu0 %v7006
        %v7175 = vpop.f32.mrf.mxu0
        %v7176 = vadd.f32 %v7087, %v7175
        %v7177 = vpop.f32.mrf.mxu0
        %v7178 = vadd.f32 %v7089, %v7177
        %7179 = vmatprep.mubr.f32.mxu0 0.0
        %7180 = vmatmul.mubr.f32.gmra.mxu0 %v7009
        %v7181 = vpop.f32.mrf.mxu0
        %v7182 = vadd.f32 %v7093, %v7181
        %v7183 = vpop.f32.mrf.mxu0
        %v7184 = vadd.f32 %v7095, %v7183
        %7185 = vmatprep.mubr.f32.mxu0 0.0
        %7186 = vmatmul.mubr.f32.gmra.mxu0 %v7012
        %v7187 = vpop.f32.mrf.mxu0
        %v7188 = vadd.f32 %v7099, %v7187
        %v7189 = vpop.f32.mrf.mxu0
        %v7190 = vadd.f32 %v7101, %v7189
        %7191 = vdwg.mxu0
        %7192 = vmatprep.subr.mxu0 %v6896
        %7193 = vmatpush1.msra.mxu0 %v6895
        %7194 = vmatprep.subr.mxu0 %v6892
        %7195 = vmatpush1.msra.mxu0 %v6891
        %7196 = vmatprep.subr.mxu0 %v6888
        %7197 = vmatpush1.msra.mxu0 %v6887
        %7198 = vmatprep.subr.mxu0 %v6884
        %7199 = vmatpush1.msra.mxu0 %v6883
        %7200 = vmatprep.subr.mxu0 %v6880
        %7201 = vmatpush1.msra.mxu0 %v6879
        %7202 = vmatprep.subr.mxu0 %v6876
        %7203 = vmatpush1.msra.mxu0 %v6875
        %7204 = vmatprep.subr.mxu0 %v6872
        %7205 = vmatpush1.msra.mxu0 %v6871
        %7206 = vmatprep.subr.mxu0 %v6868
        %7207 = vmatpush1.msra.mxu0 %v6867
        %7208 = vmatprep.subr.mxu0 %v6864
        %7209 = vmatpush1.msra.mxu0 %v6863
        %7210 = vmatprep.subr.mxu0 %v6860
        %7211 = vmatpush1.msra.mxu0 %v6859
        %7212 = vmatprep.subr.mxu0 %v6856
        %7213 = vmatpush1.msra.mxu0 %v6855
        %7214 = vmatprep.subr.mxu0 %v6852
        %7215 = vmatpush1.msra.mxu0 %v6851
        %7216 = vmatprep.subr.mxu0 %v6848
        %7217 = vmatpush1.msra.mxu0 %v6847
        %7218 = vmatprep.subr.mxu0 %v6844
        %7219 = vmatpush1.msra.mxu0 %v6843
        %7220 = vmatprep.subr.mxu0 %v6840
        %7221 = vmatpush1.msra.mxu0 %v6839
        %7222 = vmatprep.subr.mxu0 %v6836
        %7223 = vmatpush1.msra.mxu0 %v6835
        %7224 = vmatprep.subr.mxu0 %v6960
        %7225 = vmatpush2.msra.mxu0 %v6959
        %7226 = vmatprep.subr.mxu0 %v6956
        %7227 = vmatpush2.msra.mxu0 %v6955
        %7228 = vmatprep.subr.mxu0 %v6952
        %7229 = vmatpush2.msra.mxu0 %v6951
        %7230 = vmatprep.subr.mxu0 %v6948
        %7231 = vmatpush2.msra.mxu0 %v6947
        %7232 = vmatprep.subr.mxu0 %v6944
        %7233 = vmatpush2.msra.mxu0 %v6943
        %7234 = vmatprep.subr.mxu0 %v6940
        %7235 = vmatpush2.msra.mxu0 %v6939
        %7236 = vmatprep.subr.mxu0 %v6936
        %7237 = vmatpush2.msra.mxu0 %v6935
        %7238 = vmatprep.subr.mxu0 %v6932
        %7239 = vmatpush2.msra.mxu0 %v6931
        %7240 = vmatprep.subr.mxu0 %v6928
        %7241 = vmatpush2.msra.mxu0 %v6927
        %7242 = vmatprep.subr.mxu0 %v6924
        %7243 = vmatpush2.msra.mxu0 %v6923
        %7244 = vmatprep.subr.mxu0 %v6920
        %7245 = vmatpush2.msra.mxu0 %v6919
        %7246 = vmatprep.subr.mxu0 %v6916
        %7247 = vmatpush2.msra.mxu0 %v6915
        %7248 = vmatprep.subr.mxu0 %v6912
        %7249 = vmatpush2.msra.mxu0 %v6911
        %7250 = vmatprep.subr.mxu0 %v6908
        %7251 = vmatpush2.msra.mxu0 %v6907
        %7252 = vmatprep.subr.mxu0 %v6904
        %7253 = vmatpush2.msra.mxu0 %v6903
        %7254 = vmatprep.subr.mxu0 %v6900
        %7255 = vmatpush2.msra.mxu0 %v6899
        %7256 = vmatprep.mubr.f32.mxu0 %v6822
        %7257 = vmatmul.mubr.f32.gmra.mxu0 %v6821
        %v7258 = vpop.f32.mrf.mxu0
        %v7259 = vadd.f32 %v6985, %v7258
        %v7260 = vpop.f32.mrf.mxu0
        %v7261 = vadd.f32 %v6985, %v7260
        %7262 = vmatprep.mubr.f32.mxu0 %v6825
        %7263 = vmatmul.mubr.f32.gmra.mxu0 %v6824
        %v7264 = vpop.f32.mrf.mxu0
        %v7265 = vadd.f32 %v6990, %v7264
        %v7266 = vpop.f32.mrf.mxu0
        %v7267 = vadd.f32 %v6990, %v7266
        %7268 = vmatprep.mubr.f32.mxu0 %v6828
        %7269 = vmatmul.mubr.f32.gmra.mxu0 %v6827
        %v7270 = vpop.f32.mrf.mxu0
        %v7271 = vadd.f32 %v6995, %v7270
        %v7272 = vpop.f32.mrf.mxu0
        %v7273 = vadd.f32 %v6995, %v7272
        %7274 = vmatprep.mubr.f32.mxu0 %v6831
        %7275 = vmatmul.mubr.f32.gmra.mxu0 %v6830
        %v7276 = vpop.f32.mrf.mxu0
        %v7277 = vadd.f32 %v7000, %v7276
        %v7278 = vpop.f32.mrf.mxu0
        %v7279 = vadd.f32 %v7000, %v7278
        %7280 = vdwg.mxu0
        %7281 = vmatprep.subr.mxu0 0.0
        %7282 = vmatpush1.msra.mxu0 0.0
        %7283 = vmatprep.subr.mxu0 0.0
        %7284 = vmatpush1.msra.mxu0 0.0
        %7285 = vmatprep.subr.mxu0 0.0
        %7286 = vmatpush1.msra.mxu0 0.0
        %7287 = vmatprep.subr.mxu0 0.0
        %7288 = vmatpush1.msra.mxu0 0.0
        %7289 = vmatprep.subr.mxu0 0.0
        %7290 = vmatpush1.msra.mxu0 0.0
        %7291 = vmatprep.subr.mxu0 0.0
        %7292 = vmatpush1.msra.mxu0 0.0
        %7293 = vmatprep.subr.mxu0 0.0
        %7294 = vmatpush1.msra.mxu0 0.0
        %7295 = vmatprep.subr.mxu0 0.0
        %7296 = vmatpush1.msra.mxu0 0.0
        %7297 = vmatprep.subr.mxu0 0.0
        %7298 = vmatpush1.msra.mxu0 0.0
        %7299 = vmatprep.subr.mxu0 0.0
        %7300 = vmatpush1.msra.mxu0 0.0
        %7301 = vmatprep.subr.mxu0 0.0
        %7302 = vmatpush1.msra.mxu0 0.0
        %7303 = vmatprep.subr.mxu0 0.0
        %7304 = vmatpush1.msra.mxu0 0.0
        %7305 = vmatprep.subr.mxu0 %v6976
        %7306 = vmatpush1.msra.mxu0 %v6975
        %7307 = vmatprep.subr.mxu0 %v6972
        %7308 = vmatpush1.msra.mxu0 %v6971
        %7309 = vmatprep.subr.mxu0 %v6968
        %7310 = vmatpush1.msra.mxu0 %v6967
        %7311 = vmatprep.subr.mxu0 %v6964
        %7312 = vmatpush1.msra.mxu0 %v6963
        %7313 = vmatprep.subr.mxu0 0.0
        %7314 = vmatpush2.msra.mxu0 0.0
        %7315 = vmatprep.subr.mxu0 0.0
        %7316 = vmatpush2.msra.mxu0 0.0
        %7317 = vmatprep.subr.mxu0 0.0
        %7318 = vmatpush2.msra.mxu0 0.0
        %7319 = vmatprep.subr.mxu0 0.0
        %7320 = vmatpush2.msra.mxu0 0.0
        %7321 = vmatprep.subr.mxu0 0.0
        %7322 = vmatpush2.msra.mxu0 0.0
        %7323 = vmatprep.subr.mxu0 0.0
        %7324 = vmatpush2.msra.mxu0 0.0
        %7325 = vmatprep.subr.mxu0 0.0
        %7326 = vmatpush2.msra.mxu0 0.0
        %7327 = vmatprep.subr.mxu0 0.0
        %7328 = vmatpush2.msra.mxu0 0.0
        %7329 = vmatprep.subr.mxu0 0.0
        %7330 = vmatpush2.msra.mxu0 0.0
        %7331 = vmatprep.subr.mxu0 0.0
        %7332 = vmatpush2.msra.mxu0 0.0
        %7333 = vmatprep.subr.mxu0 0.0
        %7334 = vmatpush2.msra.mxu0 0.0
        %7335 = vmatprep.subr.mxu0 0.0
        %7336 = vmatpush2.msra.mxu0 0.0
        %7337 = vmatprep.subr.mxu0 0.0
        %7338 = vmatpush2.msra.mxu0 0.0
        %7339 = vmatprep.subr.mxu0 0.0
        %7340 = vmatpush2.msra.mxu0 0.0
        %7341 = vmatprep.subr.mxu0 0.0
        %7342 = vmatpush2.msra.mxu0 0.0
        %7343 = vmatprep.subr.mxu0 0.0
        %7344 = vmatpush2.msra.mxu0 0.0
        %7345 = vmatprep.mubr.f32.mxu0 0.0
        %7346 = vmatmul.mubr.f32.gmra.mxu0 %v7003
        %v7347 = vpop.f32.mrf.mxu0
        %v7348 = vadd.f32 %v7259, %v7347
        %v7349 = vpop.f32.mrf.mxu0
        %v7350 = vadd.f32 %v7261, %v7349
        %7351 = vmatprep.mubr.f32.mxu0 0.0
        %7352 = vmatmul.mubr.f32.gmra.mxu0 %v7006
        %v7353 = vpop.f32.mrf.mxu0
        %v7354 = vadd.f32 %v7265, %v7353
        %v7355 = vpop.f32.mrf.mxu0
        %v7356 = vadd.f32 %v7267, %v7355
        %7357 = vmatprep.mubr.f32.mxu0 0.0
        %7358 = vmatmul.mubr.f32.gmra.mxu0 %v7009
        %v7359 = vpop.f32.mrf.mxu0
        %v7360 = vadd.f32 %v7271, %v7359
        %v7361 = vpop.f32.mrf.mxu0
        %v7362 = vadd.f32 %v7273, %v7361
        %7363 = vmatprep.mubr.f32.mxu0 0.0
        %7364 = vmatmul.mubr.f32.gmra.mxu0 %v7012
        %v7365 = vpop.f32.mrf.mxu0
        %v7366 = vadd.f32 %v7277, %v7365
        %v7367 = vpop.f32.mrf.mxu0
        %v7368 = vadd.f32 %v7279, %v7367
        %7369 = vdwg.mxu0
        %v7370 = vadd.f32 %v7170, %v7176
        %v7371 = vadd.f32 %v7370, %v7182
        %v7372 = vadd.f32 %v7371, %v7188
        %v7373 = vrot.slane %v7372, 4
        %v7374 = vadd.f32 %v7372, %v7373
        %v7375 = vrot.slane %v7374, 2
        %v7376 = vadd.f32 %v7374, %v7375
        %v7377 = vrot.slane %v7376, 1
        %v7378 = vadd.f32 %v7376, %v7377
        %v7379 = vadd.f32 %v7172, %v7178
        %v7380 = vadd.f32 %v7379, %v7184
        %v7381 = vadd.f32 %v7380, %v7190
        %v7382 = vrot.slane %v7381, 4
        %v7383 = vadd.f32 %v7381, %v7382
        %v7384 = vrot.slane %v7383, 2
        %v7385 = vadd.f32 %v7383, %v7384
        %v7386 = vrot.slane %v7385, 1
        %v7387 = vadd.f32 %v7385, %v7386
        %v7388 = vadd.f32 %v7348, %v7354
        %v7389 = vadd.f32 %v7388, %v7360
        %v7390 = vadd.f32 %v7389, %v7366
        %v7391 = vrot.slane %v7390, 4
        %v7392 = vadd.f32 %v7390, %v7391
        %v7393 = vrot.slane %v7392, 2
        %v7394 = vadd.f32 %v7392, %v7393
        %v7395 = vrot.slane %v7394, 1
        %v7396 = vadd.f32 %v7394, %v7395
        %v7397 = vadd.f32 %v7350, %v7356
        %v7398 = vadd.f32 %v7397, %v7362
        %v7399 = vadd.f32 %v7398, %v7368
        %v7400 = vrot.slane %v7399, 4
        %v7401 = vadd.f32 %v7399, %v7400
        %v7402 = vrot.slane %v7401, 2
        %v7403 = vadd.f32 %v7401, %v7402
        %v7404 = vrot.slane %v7403, 1
        %v7405 = vadd.f32 %v7403, %v7404
        %v7406 = vmul.f32 %v7170, %v7170
        %v7407 = vmul.f32 %v7172, %v7172
        %v7408 = vmul.f32 %v7348, %v7348
        %v7409 = vmul.f32 %v7350, %v7350
        %v7410 = vmul.f32 %v7176, %v7176
        %v7411 = vmul.f32 %v7178, %v7178
        %v7412 = vmul.f32 %v7354, %v7354
        %v7413 = vmul.f32 %v7356, %v7356
        %v7414 = vmul.f32 %v7182, %v7182
        %v7415 = vmul.f32 %v7184, %v7184
        %v7416 = vmul.f32 %v7360, %v7360
        %v7417 = vmul.f32 %v7362, %v7362
        %v7418 = vmul.f32 %v7188, %v7188
        %v7419 = vmul.f32 %v7190, %v7190
        %v7420 = vmul.f32 %v7366, %v7366
        %v7421 = vmul.f32 %v7368, %v7368
        %v7422 = vadd.f32 %v7406, %v7410
        %v7423 = vadd.f32 %v7422, %v7414
        %v7424 = vadd.f32 %v7423, %v7418
        %v7425 = vrot.slane %v7424, 4
        %v7426 = vadd.f32 %v7424, %v7425
        %v7427 = vrot.slane %v7426, 2
        %v7428 = vadd.f32 %v7426, %v7427
        %v7429 = vrot.slane %v7428, 1
        %v7430 = vadd.f32 %v7428, %v7429
        %v7431 = vadd.f32 %v7407, %v7411
        %v7432 = vadd.f32 %v7431, %v7415
        %v7433 = vadd.f32 %v7432, %v7419
        %v7434 = vrot.slane %v7433, 4
        %v7435 = vadd.f32 %v7433, %v7434
        %v7436 = vrot.slane %v7435, 2
        %v7437 = vadd.f32 %v7435, %v7436
        %v7438 = vrot.slane %v7437, 1
        %v7439 = vadd.f32 %v7437, %v7438
        %v7440 = vadd.f32 %v7408, %v7412
        %v7441 = vadd.f32 %v7440, %v7416
        %v7442 = vadd.f32 %v7441, %v7420
        %v7443 = vrot.slane %v7442, 4
        %v7444 = vadd.f32 %v7442, %v7443
        %v7445 = vrot.slane %v7444, 2
        %v7446 = vadd.f32 %v7444, %v7445
        %v7447 = vrot.slane %v7446, 1
        %v7448 = vadd.f32 %v7446, %v7447
        %v7449 = vadd.f32 %v7409, %v7413
        %v7450 = vadd.f32 %v7449, %v7417
        %v7451 = vadd.f32 %v7450, %v7421
        %v7452 = vrot.slane %v7451, 4
        %v7453 = vadd.f32 %v7451, %v7452
        %v7454 = vrot.slane %v7453, 2
        %v7455 = vadd.f32 %v7453, %v7454
        %v7456 = vrot.slane %v7455, 1
        %v7457 = vadd.f32 %v7455, %v7456
        %v7458 = vld [vmem:[%s9] sm:$0xf]
        %v7460 = vlaneseq
        %v7461 = vshrl.u32 %v7460, 7
        %v7462 = vsub.s32 0, %v7461
        %v7463 = vrot.slane %v7458, %v7462
        %v7464 = vlaneseq
        %v7465 = vshrl.u32 %v7464, 7
        %v7466 = vsub.s32 1, %v7465
        %v7467 = vrot.slane %v7458, %v7466
        %v7468 = vlaneseq
        %v7469 = vshrl.u32 %v7468, 7
        %v7470 = vsub.s32 2, %v7469
        %v7471 = vrot.slane %v7458, %v7470
        %v7472 = vlaneseq
        %v7473 = vshrl.u32 %v7472, 7
        %v7474 = vsub.s32 3, %v7473
        %v7475 = vrot.slane %v7458, %v7474
        %v7480 = vmul.f32 %v7378, %v7463
        %v7481 = vmul.f32 %v7387, %v7467
        %v7482 = vmul.f32 %v7396, %v7471
        %v7483 = vmul.f32 %v7405, %v7475
        %v7484 = vsel %vm2127, %v7480, 0.0
        %v7485 = vsel %vm2127, %v7481, 0.0
        %v7486 = vadd.f32 %v7484, %v7485
        %v7487 = vsel %vm2127, %v7482, 0.0
        %v7488 = vadd.f32 %v7486, %v7487
        %v7489 = vsel %vm2127, %v7483, 0.0
        %v7490 = vadd.f32 %v7488, %v7489
        %7491 = vadd.xlane.f32.xlu0 %v7490
        %v7492 = vpop.xlane.xlu0 %7491
        %v7493 = vrot.slane %v7492, 4
        %v7494 = vadd.f32 %v7492, %v7493
        %v7495 = vrot.slane %v7494, 2
        %v7496 = vadd.f32 %v7494, %v7495
        %v7497 = vrot.slane %v7496, 1
        %v7498 = vadd.f32 %v7496, %v7497
        %s7499 = vtos %v7498
        %v7500 = vstv %s7499
        %v7501 = vmul.f32 %v7500, 0.00012207031
        %v7502 = vmul.f32 %v7501, %v7458
        %v7503 = vadd.f32 %v7502, 0.0
        %v7504 = vld [vmem:[%s476] sm:$0xf]
        %v7506 = vlaneseq
        %v7507 = vshrl.u32 %v7506, 7
        %v7508 = vsub.s32 0, %v7507
        %v7509 = vrot.slane %v7504, %v7508
        %v7510 = vlaneseq
        %v7511 = vshrl.u32 %v7510, 7
        %v7512 = vsub.s32 1, %v7511
        %v7513 = vrot.slane %v7504, %v7512
        %v7514 = vlaneseq
        %v7515 = vshrl.u32 %v7514, 7
        %v7516 = vsub.s32 2, %v7515
        %v7517 = vrot.slane %v7504, %v7516
        %v7518 = vlaneseq
        %v7519 = vshrl.u32 %v7518, 7
        %v7520 = vsub.s32 3, %v7519
        %v7521 = vrot.slane %v7504, %v7520
        %v7526 = vmul.f32 %v7378, %v7509
        %v7527 = vmul.f32 %v7387, %v7513
        %v7528 = vmul.f32 %v7396, %v7517
        %v7529 = vmul.f32 %v7405, %v7521
        %v7530 = vsel %vm2127, %v7526, 0.0
        %v7531 = vsel %vm2127, %v7527, 0.0
        %v7532 = vadd.f32 %v7530, %v7531
        %v7533 = vsel %vm2127, %v7528, 0.0
        %v7534 = vadd.f32 %v7532, %v7533
        %v7535 = vsel %vm2127, %v7529, 0.0
        %v7536 = vadd.f32 %v7534, %v7535
        %7537 = vadd.xlane.f32.xlu0 %v7536
        %v7538 = vpop.xlane.xlu0 %7537
        %v7539 = vrot.slane %v7538, 4
        %v7540 = vadd.f32 %v7538, %v7539
        %v7541 = vrot.slane %v7540, 2
        %v7542 = vadd.f32 %v7540, %v7541
        %v7543 = vrot.slane %v7542, 1
        %v7544 = vadd.f32 %v7542, %v7543
        %s7545 = vtos %v7544
        %v7546 = vstv %s7545
        %v7547 = vmul.f32 %v7546, 0.00012207031
        %v7548 = vmul.f32 %v7547, %v7504
        %v7549 = vadd.f32 %v7503, %v7548
        %v7550 = vmul.f32 %v7430, %v7463
        %v7551 = vmul.f32 %v7439, %v7467
        %v7552 = vmul.f32 %v7448, %v7471
        %v7553 = vmul.f32 %v7457, %v7475
        %v7554 = vsel %vm2127, %v7550, 0.0
        %v7555 = vsel %vm2127, %v7551, 0.0
        %v7556 = vadd.f32 %v7554, %v7555
        %v7557 = vsel %vm2127, %v7552, 0.0
        %v7558 = vadd.f32 %v7556, %v7557
        %v7559 = vsel %vm2127, %v7553, 0.0
        %v7560 = vadd.f32 %v7558, %v7559
        %7561 = vadd.xlane.f32.xlu0 %v7560
        %v7562 = vpop.xlane.xlu0 %7561
        %v7563 = vrot.slane %v7562, 4
        %v7564 = vadd.f32 %v7562, %v7563
        %v7565 = vrot.slane %v7564, 2
        %v7566 = vadd.f32 %v7564, %v7565
        %v7567 = vrot.slane %v7566, 1
        %v7568 = vadd.f32 %v7566, %v7567
        %s7569 = vtos %v7568
        %v7570 = vstv %s7569
        %v7571 = vmul.f32 %v7570, 0.00012207031
        %v7572 = vmul.f32 %v7571, %v7458
        %v7573 = vadd.f32 %v7572, 0.0
        %v7574 = vmul.f32 %v7430, %v7509
        %v7575 = vmul.f32 %v7439, %v7513
        %v7576 = vmul.f32 %v7448, %v7517
        %v7577 = vmul.f32 %v7457, %v7521
        %v7578 = vsel %vm2127, %v7574, 0.0
        %v7579 = vsel %vm2127, %v7575, 0.0
        %v7580 = vadd.f32 %v7578, %v7579
        %v7581 = vsel %vm2127, %v7576, 0.0
        %v7582 = vadd.f32 %v7580, %v7581
        %v7583 = vsel %vm2127, %v7577, 0.0
        %v7584 = vadd.f32 %v7582, %v7583
        %7585 = vadd.xlane.f32.xlu0 %v7584
        %v7586 = vpop.xlane.xlu0 %7585
        %v7587 = vrot.slane %v7586, 4
        %v7588 = vadd.f32 %v7586, %v7587
        %v7589 = vrot.slane %v7588, 2
        %v7590 = vadd.f32 %v7588, %v7589
        %v7591 = vrot.slane %v7590, 1
        %v7592 = vadd.f32 %v7590, %v7591
        %s7593 = vtos %v7592
        %v7594 = vstv %s7593
        %v7595 = vmul.f32 %v7594, 0.00012207031
        %v7596 = vmul.f32 %v7595, %v7504
        %v7597 = vadd.f32 %v7573, %v7596
        %v7598 = vmul.f32 %v7549, %v7549
        %v7599 = vsub.f32 %v7597, %v7598
        %s7600 = scalar_lea.vmem %s5, 96
        %v7601 = vld [vmem:[%s7600] sm:$0xff]
        %v7602 = vld [vmem:[%s7600 + $0x8] sm:$0xff]
        %v7603 = vld [vmem:[%s7600 + $0x10] sm:$0xff]
        %v7604 = vld [vmem:[%s7600 + $0x18] sm:$0xff]
        %v7605 = vadd.f32 %v7599, 1e-05
        %v7606 = vrsqrt.pop %v7605
        %7608 = vset.pattern.permute.xlu0 0
        %7609 = vperm.xlu0 %7608, %v7601
        %v7610 = vpop.permute.xlu0 %7609
        %7613 = vset.pattern.permute.xlu0 0
        %7614 = vperm.xlu0 %7613, %v7602
        %v7615 = vpop.permute.xlu0 %7614
        %7618 = vset.pattern.permute.xlu0 0
        %7619 = vperm.xlu0 %7618, %v7603
        %v7620 = vpop.permute.xlu0 %7619
        %7623 = vset.pattern.permute.xlu0 0
        %7624 = vperm.xlu0 %7623, %v7604
        %v7625 = vpop.permute.xlu0 %7624
        %v7628 = vlaneseq
        %v7629 = vshrl.u32 %v7628, 7
        %v7630 = vsub.s32 0, %v7629
        %v7631 = vrot.slane %v7606, %v7630
        %v7632 = vlaneseq
        %v7633 = vshrl.u32 %v7632, 7
        %v7634 = vsub.s32 1, %v7633
        %v7635 = vrot.slane %v7606, %v7634
        %v7636 = vlaneseq
        %v7637 = vshrl.u32 %v7636, 7
        %v7638 = vsub.s32 2, %v7637
        %v7639 = vrot.slane %v7606, %v7638
        %v7640 = vlaneseq
        %v7641 = vshrl.u32 %v7640, 7
        %v7642 = vsub.s32 3, %v7641
        %v7643 = vrot.slane %v7606, %v7642
        %v7648 = vmul.f32 %v7610, %v7631
        %v7649 = vmul.f32 %v7610, %v7635
        %v7650 = vmul.f32 %v7610, %v7639
        %v7651 = vmul.f32 %v7610, %v7643
        %v7652 = vmul.f32 %v7615, %v7631
        %v7653 = vmul.f32 %v7615, %v7635
        %v7654 = vmul.f32 %v7615, %v7639
        %v7655 = vmul.f32 %v7615, %v7643
        %v7656 = vmul.f32 %v7620, %v7631
        %v7657 = vmul.f32 %v7620, %v7635
        %v7658 = vmul.f32 %v7620, %v7639
        %v7659 = vmul.f32 %v7620, %v7643
        %v7660 = vmul.f32 %v7625, %v7631
        %v7661 = vmul.f32 %v7625, %v7635
        %v7662 = vmul.f32 %v7625, %v7639
        %v7663 = vmul.f32 %v7625, %v7643
        %v7665 = vlaneseq
        %v7666 = vshrl.u32 %v7665, 7
        %v7667 = vsub.s32 0, %v7666
        %v7668 = vrot.slane %v7549, %v7667
        %v7669 = vlaneseq
        %v7670 = vshrl.u32 %v7669, 7
        %v7671 = vsub.s32 1, %v7670
        %v7672 = vrot.slane %v7549, %v7671
        %v7673 = vlaneseq
        %v7674 = vshrl.u32 %v7673, 7
        %v7675 = vsub.s32 2, %v7674
        %v7676 = vrot.slane %v7549, %v7675
        %v7677 = vlaneseq
        %v7678 = vshrl.u32 %v7677, 7
        %v7679 = vsub.s32 3, %v7678
        %v7680 = vrot.slane %v7549, %v7679
        %v7685 = vsub.f32 %v7170, %v7668
        %v7686 = vsub.f32 %v7172, %v7672
        %v7687 = vsub.f32 %v7348, %v7676
        %v7688 = vsub.f32 %v7350, %v7680
        %v7689 = vsub.f32 %v7176, %v7668
        %v7690 = vsub.f32 %v7178, %v7672
        %v7691 = vsub.f32 %v7354, %v7676
        %v7692 = vsub.f32 %v7356, %v7680
        %v7693 = vsub.f32 %v7182, %v7668
        %v7694 = vsub.f32 %v7184, %v7672
        %v7695 = vsub.f32 %v7360, %v7676
        %v7696 = vsub.f32 %v7362, %v7680
        %v7697 = vsub.f32 %v7188, %v7668
        %v7698 = vsub.f32 %v7190, %v7672
        %v7699 = vsub.f32 %v7366, %v7676
        %v7700 = vsub.f32 %v7368, %v7680
        %v7701 = vmul.f32 %v7685, %v7648
        %v7702 = vmul.f32 %v7686, %v7649
        %v7703 = vmul.f32 %v7687, %v7650
        %v7704 = vmul.f32 %v7688, %v7651
        %v7705 = vmul.f32 %v7689, %v7652
        %v7706 = vmul.f32 %v7690, %v7653
        %v7707 = vmul.f32 %v7691, %v7654
        %v7708 = vmul.f32 %v7692, %v7655
        %v7709 = vmul.f32 %v7693, %v7656
        %v7710 = vmul.f32 %v7694, %v7657
        %v7711 = vmul.f32 %v7695, %v7658
        %v7712 = vmul.f32 %v7696, %v7659
        %v7713 = vmul.f32 %v7697, %v7660
        %v7714 = vmul.f32 %v7698, %v7661
        %v7715 = vmul.f32 %v7699, %v7662
        %v7716 = vmul.f32 %v7700, %v7663
        %s7717 = scalar_lea.vmem %s6, 96
        %v7718 = vld [vmem:[%s7717] sm:$0xff]
        %v7719 = vld [vmem:[%s7717 + $0x8] sm:$0xff]
        %v7720 = vld [vmem:[%s7717 + $0x10] sm:$0xff]
        %v7721 = vld [vmem:[%s7717 + $0x18] sm:$0xff]
        %7723 = vset.pattern.permute.xlu0 0
        %7724 = vperm.xlu0 %7723, %v7718
        %v7725 = vpop.permute.xlu0 %7724
        %7728 = vset.pattern.permute.xlu0 0
        %7729 = vperm.xlu0 %7728, %v7719
        %v7730 = vpop.permute.xlu0 %7729
        %7733 = vset.pattern.permute.xlu0 0
        %7734 = vperm.xlu0 %7733, %v7720
        %v7735 = vpop.permute.xlu0 %7734
        %7738 = vset.pattern.permute.xlu0 0
        %7739 = vperm.xlu0 %7738, %v7721
        %v7740 = vpop.permute.xlu0 %7739
        %v7742 = vadd.f32 %v7701, %v7725
        %v7743 = vadd.f32 %v7702, %v7725
        %v7744 = vadd.f32 %v7703, %v7725
        %v7745 = vadd.f32 %v7704, %v7725
        %v7746 = vadd.f32 %v7705, %v7730
        %v7747 = vadd.f32 %v7706, %v7730
        %v7748 = vadd.f32 %v7707, %v7730
        %v7749 = vadd.f32 %v7708, %v7730
        %v7750 = vadd.f32 %v7709, %v7735
        %v7751 = vadd.f32 %v7710, %v7735
        %v7752 = vadd.f32 %v7711, %v7735
        %v7753 = vadd.f32 %v7712, %v7735
        %v7754 = vadd.f32 %v7713, %v7740
        %v7755 = vadd.f32 %v7714, %v7740
        %v7756 = vadd.f32 %v7715, %v7740
        %v7757 = vadd.f32 %v7716, %v7740
        %v7758 = vmax.f32 %v7742, 0.0
        %v7759 = vmax.f32 %v7743, 0.0
        %v7760 = vmax.f32 %v7744, 0.0
        %v7761 = vmax.f32 %v7745, 0.0
        %v7762 = vmax.f32 %v7746, 0.0
        %v7763 = vmax.f32 %v7747, 0.0
        %v7764 = vmax.f32 %v7748, 0.0
        %v7765 = vmax.f32 %v7749, 0.0
        %v7766 = vmax.f32 %v7750, 0.0
        %v7767 = vmax.f32 %v7751, 0.0
        %v7768 = vmax.f32 %v7752, 0.0
        %v7769 = vmax.f32 %v7753, 0.0
        %v7770 = vmax.f32 %v7754, 0.0
        %v7771 = vmax.f32 %v7755, 0.0
        %v7772 = vmax.f32 %v7756, 0.0
        %v7773 = vmax.f32 %v7757, 0.0
        %7774 = vrot.lane.b32.xlu0 %v7758, 17
        %v7775 = vpop.permute.xlu0 %7774
        %7776 = vrot.lane.b32.xlu0 %v7762, 17
        %v7777 = vpop.permute.xlu0 %7776
        %7778 = vrot.lane.b32.xlu0 %v7766, 17
        %v7779 = vpop.permute.xlu0 %7778
        %7780 = vrot.lane.b32.xlu0 %v7770, 17
        %v7781 = vpop.permute.xlu0 %7780
        %7782 = vrot.lane.b32.xlu0 %v7759, 17
        %v7783 = vpop.permute.xlu0 %7782
        %7784 = vrot.lane.b32.xlu0 %v7763, 17
        %v7785 = vpop.permute.xlu0 %7784
        %7786 = vrot.lane.b32.xlu0 %v7767, 17
        %v7787 = vpop.permute.xlu0 %7786
        %7788 = vrot.lane.b32.xlu0 %v7771, 17
        %v7789 = vpop.permute.xlu0 %7788
        %7790 = vrot.lane.b32.xlu0 %v7760, 17
        %v7791 = vpop.permute.xlu0 %7790
        %7792 = vrot.lane.b32.xlu0 %v7764, 17
        %v7793 = vpop.permute.xlu0 %7792
        %7794 = vrot.lane.b32.xlu0 %v7768, 17
        %v7795 = vpop.permute.xlu0 %7794
        %7796 = vrot.lane.b32.xlu0 %v7772, 17
        %v7797 = vpop.permute.xlu0 %7796
        %7798 = vrot.lane.b32.xlu0 %v7761, 17
        %v7799 = vpop.permute.xlu0 %7798
        %7800 = vrot.lane.b32.xlu0 %v7765, 17
        %v7801 = vpop.permute.xlu0 %7800
        %7802 = vrot.lane.b32.xlu0 %v7769, 17
        %v7803 = vpop.permute.xlu0 %7802
        %7804 = vrot.lane.b32.xlu0 %v7773, 17
        %v7805 = vpop.permute.xlu0 %7804
        %v7806 = vsel %vm649, %v7791, %v7799
        %v7807 = vsel %vm649, %v7793, %v7801
        %v7808 = vsel %vm649, %v7795, %v7803
        %v7809 = vsel %vm649, %v7797, %v7805
        %v7810 = vsel %vm649, %v7783, %v7791
        %v7811 = vsel %vm649, %v7785, %v7793
        %v7812 = vsel %vm649, %v7787, %v7795
        %v7813 = vsel %vm649, %v7789, %v7797
        %v7814 = vsel %vm649, %v7775, %v7783
        %v7815 = vsel %vm649, %v7777, %v7785
        %v7816 = vsel %vm649, %v7779, %v7787
        %v7817 = vsel %vm649, %v7781, %v7789
        %v7818 = vsel %vm649, %v7799, %v7775
        %v7819 = vsel %vm649, %v7801, %v7777
        %v7820 = vsel %vm649, %v7803, %v7779
        %v7821 = vsel %vm649, %v7805, %v7781
        %v7822 = vld [vmem:[%s2] sm:$0xf]
        %v7824 = vlaneseq
        %v7825 = vshrl.u32 %v7824, 7
        %v7826 = vsub.s32 0, %v7825
        %v7827 = vrot.slane %v7822, %v7826
        %v7828 = vlaneseq
        %v7829 = vshrl.u32 %v7828, 7
        %v7830 = vsub.s32 1, %v7829
        %v7831 = vrot.slane %v7822, %v7830
        %v7832 = vlaneseq
        %v7833 = vshrl.u32 %v7832, 7
        %v7834 = vsub.s32 2, %v7833
        %v7835 = vrot.slane %v7822, %v7834
        %v7836 = vlaneseq
        %v7837 = vshrl.u32 %v7836, 7
        %v7838 = vsub.s32 3, %v7837
        %v7839 = vrot.slane %v7822, %v7838
        %v7844 = vmul.f32 %v7818, %v7827
        %v7845 = vmul.f32 %v7814, %v7831
        %v7846 = vmul.f32 %v7810, %v7835
        %v7847 = vmul.f32 %v7806, %v7839
        %v7848 = vmul.f32 %v7819, %v7827
        %v7849 = vmul.f32 %v7815, %v7831
        %v7850 = vmul.f32 %v7811, %v7835
        %v7851 = vmul.f32 %v7807, %v7839
        %v7852 = vmul.f32 %v7820, %v7827
        %v7853 = vmul.f32 %v7816, %v7831
        %v7854 = vmul.f32 %v7812, %v7835
        %v7855 = vmul.f32 %v7808, %v7839
        %v7856 = vmul.f32 %v7821, %v7827
        %v7857 = vmul.f32 %v7817, %v7831
        %v7858 = vmul.f32 %v7813, %v7835
        %v7859 = vmul.f32 %v7809, %v7839
        %7860 = vst [vmem:[#allocation2] sm:$0xff] %v7844
        %7861 = vst [vmem:[#allocation2 + $0x8] sm:$0xff] %v7845
        %7862 = vst [vmem:[#allocation2 + $0x10] sm:$0xff] %v7846
        %7863 = vst [vmem:[#allocation2 + $0x18] sm:$0xff] %v7847
        %7864 = vst [vmem:[#allocation2 + $0x20] sm:$0xff] %v7848
        %7865 = vst [vmem:[#allocation2 + $0x28] sm:$0xff] %v7849
        %7866 = vst [vmem:[#allocation2 + $0x30] sm:$0xff] %v7850
        %7867 = vst [vmem:[#allocation2 + $0x38] sm:$0xff] %v7851
        %7868 = vst [vmem:[#allocation2 + $0x40] sm:$0xff] %v7852
        %7869 = vst [vmem:[#allocation2 + $0x48] sm:$0xff] %v7853
        %7870 = vst [vmem:[#allocation2 + $0x50] sm:$0xff] %v7854
        %7871 = vst [vmem:[#allocation2 + $0x58] sm:$0xff] %v7855
        %7872 = vst [vmem:[#allocation2 + $0x60] sm:$0xff] %v7856
        %7873 = vst [vmem:[#allocation2 + $0x68] sm:$0xff] %v7857
        %7874 = vst [vmem:[#allocation2 + $0x70] sm:$0xff] %v7858
        %7875 = vst [vmem:[#allocation2 + $0x78] sm:$0xff] %v7859
        %7876 = vrot.lane.b32.xlu0 %v7758, 16
        %v7877 = vpop.permute.xlu0 %7876
        %7878 = vrot.lane.b32.xlu0 %v7762, 16
        %v7879 = vpop.permute.xlu0 %7878
        %7880 = vrot.lane.b32.xlu0 %v7766, 16
        %v7881 = vpop.permute.xlu0 %7880
        %7882 = vrot.lane.b32.xlu0 %v7770, 16
        %v7883 = vpop.permute.xlu0 %7882
        %7884 = vrot.lane.b32.xlu0 %v7759, 16
        %v7885 = vpop.permute.xlu0 %7884
        %7886 = vrot.lane.b32.xlu0 %v7763, 16
        %v7887 = vpop.permute.xlu0 %7886
        %7888 = vrot.lane.b32.xlu0 %v7767, 16
        %v7889 = vpop.permute.xlu0 %7888
        %7890 = vrot.lane.b32.xlu0 %v7771, 16
        %v7891 = vpop.permute.xlu0 %7890
        %7892 = vrot.lane.b32.xlu0 %v7760, 16
        %v7893 = vpop.permute.xlu0 %7892
        %7894 = vrot.lane.b32.xlu0 %v7764, 16
        %v7895 = vpop.permute.xlu0 %7894
        %7896 = vrot.lane.b32.xlu0 %v7768, 16
        %v7897 = vpop.permute.xlu0 %7896
        %7898 = vrot.lane.b32.xlu0 %v7772, 16
        %v7899 = vpop.permute.xlu0 %7898
        %7900 = vrot.lane.b32.xlu0 %v7761, 16
        %v7901 = vpop.permute.xlu0 %7900
        %7902 = vrot.lane.b32.xlu0 %v7765, 16
        %v7903 = vpop.permute.xlu0 %7902
        %7904 = vrot.lane.b32.xlu0 %v7769, 16
        %v7905 = vpop.permute.xlu0 %7904
        %7906 = vrot.lane.b32.xlu0 %v7773, 16
        %v7907 = vpop.permute.xlu0 %7906
        %v7908 = vsel %vm752, %v7893, %v7901
        %v7909 = vsel %vm752, %v7895, %v7903
        %v7910 = vsel %vm752, %v7897, %v7905
        %v7911 = vsel %vm752, %v7899, %v7907
        %v7912 = vsel %vm752, %v7885, %v7893
        %v7913 = vsel %vm752, %v7887, %v7895
        %v7914 = vsel %vm752, %v7889, %v7897
        %v7915 = vsel %vm752, %v7891, %v7899
        %v7916 = vsel %vm752, %v7877, %v7885
        %v7917 = vsel %vm752, %v7879, %v7887
        %v7918 = vsel %vm752, %v7881, %v7889
        %v7919 = vsel %vm752, %v7883, %v7891
        %v7920 = vsel %vm752, %v7901, %v7877
        %v7921 = vsel %vm752, %v7903, %v7879
        %v7922 = vsel %vm752, %v7905, %v7881
        %v7923 = vsel %vm752, %v7907, %v7883
        %v7924 = vld [vmem:[%s769] sm:$0xf]
        %v7926 = vlaneseq
        %v7927 = vshrl.u32 %v7926, 7
        %v7928 = vsub.s32 0, %v7927
        %v7929 = vrot.slane %v7924, %v7928
        %v7930 = vlaneseq
        %v7931 = vshrl.u32 %v7930, 7
        %v7932 = vsub.s32 1, %v7931
        %v7933 = vrot.slane %v7924, %v7932
        %v7934 = vlaneseq
        %v7935 = vshrl.u32 %v7934, 7
        %v7936 = vsub.s32 2, %v7935
        %v7937 = vrot.slane %v7924, %v7936
        %v7938 = vlaneseq
        %v7939 = vshrl.u32 %v7938, 7
        %v7940 = vsub.s32 3, %v7939
        %v7941 = vrot.slane %v7924, %v7940
        %v7946 = vmul.f32 %v7920, %v7929
        %v7947 = vmul.f32 %v7916, %v7933
        %v7948 = vmul.f32 %v7912, %v7937
        %v7949 = vmul.f32 %v7908, %v7941
        %v7950 = vmul.f32 %v7921, %v7929
        %v7951 = vmul.f32 %v7917, %v7933
        %v7952 = vmul.f32 %v7913, %v7937
        %v7953 = vmul.f32 %v7909, %v7941
        %v7954 = vmul.f32 %v7922, %v7929
        %v7955 = vmul.f32 %v7918, %v7933
        %v7956 = vmul.f32 %v7914, %v7937
        %v7957 = vmul.f32 %v7910, %v7941
        %v7958 = vmul.f32 %v7923, %v7929
        %v7959 = vmul.f32 %v7919, %v7933
        %v7960 = vmul.f32 %v7915, %v7937
        %v7961 = vmul.f32 %v7911, %v7941
        %7962 = vst [vmem:[#allocation2 + $0x80] sm:$0xff] %v7946
        %7963 = vst [vmem:[#allocation2 + $0x88] sm:$0xff] %v7947
        %7964 = vst [vmem:[#allocation2 + $0x90] sm:$0xff] %v7948
        %7965 = vst [vmem:[#allocation2 + $0x98] sm:$0xff] %v7949
        %7966 = vst [vmem:[#allocation2 + $0xa0] sm:$0xff] %v7950
        %7967 = vst [vmem:[#allocation2 + $0xa8] sm:$0xff] %v7951
        %7968 = vst [vmem:[#allocation2 + $0xb0] sm:$0xff] %v7952
        %7969 = vst [vmem:[#allocation2 + $0xb8] sm:$0xff] %v7953
        %7970 = vst [vmem:[#allocation2 + $0xc0] sm:$0xff] %v7954
        %7971 = vst [vmem:[#allocation2 + $0xc8] sm:$0xff] %v7955
        %7972 = vst [vmem:[#allocation2 + $0xd0] sm:$0xff] %v7956
        %7973 = vst [vmem:[#allocation2 + $0xd8] sm:$0xff] %v7957
        %7974 = vst [vmem:[#allocation2 + $0xe0] sm:$0xff] %v7958
        %7975 = vst [vmem:[#allocation2 + $0xe8] sm:$0xff] %v7959
        %7976 = vst [vmem:[#allocation2 + $0xf0] sm:$0xff] %v7960
        %7977 = vst [vmem:[#allocation2 + $0xf8] sm:$0xff] %v7961
        %7978 = vrot.lane.b32.xlu0 %v7758, 15
        %v7979 = vpop.permute.xlu0 %7978
        %7980 = vrot.lane.b32.xlu0 %v7762, 15
        %v7981 = vpop.permute.xlu0 %7980
        %7982 = vrot.lane.b32.xlu0 %v7766, 15
        %v7983 = vpop.permute.xlu0 %7982
        %7984 = vrot.lane.b32.xlu0 %v7770, 15
        %v7985 = vpop.permute.xlu0 %7984
        %7986 = vrot.lane.b32.xlu0 %v7759, 15
        %v7987 = vpop.permute.xlu0 %7986
        %7988 = vrot.lane.b32.xlu0 %v7763, 15
        %v7989 = vpop.permute.xlu0 %7988
        %7990 = vrot.lane.b32.xlu0 %v7767, 15
        %v7991 = vpop.permute.xlu0 %7990
        %7992 = vrot.lane.b32.xlu0 %v7771, 15
        %v7993 = vpop.permute.xlu0 %7992
        %7994 = vrot.lane.b32.xlu0 %v7760, 15
        %v7995 = vpop.permute.xlu0 %7994
        %7996 = vrot.lane.b32.xlu0 %v7764, 15
        %v7997 = vpop.permute.xlu0 %7996
        %7998 = vrot.lane.b32.xlu0 %v7768, 15
        %v7999 = vpop.permute.xlu0 %7998
        %8000 = vrot.lane.b32.xlu0 %v7772, 15
        %v8001 = vpop.permute.xlu0 %8000
        %8002 = vrot.lane.b32.xlu0 %v7761, 15
        %v8003 = vpop.permute.xlu0 %8002
        %8004 = vrot.lane.b32.xlu0 %v7765, 15
        %v8005 = vpop.permute.xlu0 %8004
        %8006 = vrot.lane.b32.xlu0 %v7769, 15
        %v8007 = vpop.permute.xlu0 %8006
        %8008 = vrot.lane.b32.xlu0 %v7773, 15
        %v8009 = vpop.permute.xlu0 %8008
        %v8010 = vsel %vm856, %v7995, %v8003
        %v8011 = vsel %vm856, %v7997, %v8005
        %v8012 = vsel %vm856, %v7999, %v8007
        %v8013 = vsel %vm856, %v8001, %v8009
        %v8014 = vsel %vm856, %v7987, %v7995
        %v8015 = vsel %vm856, %v7989, %v7997
        %v8016 = vsel %vm856, %v7991, %v7999
        %v8017 = vsel %vm856, %v7993, %v8001
        %v8018 = vsel %vm856, %v7979, %v7987
        %v8019 = vsel %vm856, %v7981, %v7989
        %v8020 = vsel %vm856, %v7983, %v7991
        %v8021 = vsel %vm856, %v7985, %v7993
        %v8022 = vsel %vm856, %v8003, %v7979
        %v8023 = vsel %vm856, %v8005, %v7981
        %v8024 = vsel %vm856, %v8007, %v7983
        %v8025 = vsel %vm856, %v8009, %v7985
        %v8026 = vld [vmem:[%s873] sm:$0xf]
        %v8028 = vlaneseq
        %v8029 = vshrl.u32 %v8028, 7
        %v8030 = vsub.s32 0, %v8029
        %v8031 = vrot.slane %v8026, %v8030
        %v8032 = vlaneseq
        %v8033 = vshrl.u32 %v8032, 7
        %v8034 = vsub.s32 1, %v8033
        %v8035 = vrot.slane %v8026, %v8034
        %v8036 = vlaneseq
        %v8037 = vshrl.u32 %v8036, 7
        %v8038 = vsub.s32 2, %v8037
        %v8039 = vrot.slane %v8026, %v8038
        %v8040 = vlaneseq
        %v8041 = vshrl.u32 %v8040, 7
        %v8042 = vsub.s32 3, %v8041
        %v8043 = vrot.slane %v8026, %v8042
        %v8048 = vmul.f32 %v8022, %v8031
        %v8049 = vmul.f32 %v8018, %v8035
        %v8050 = vmul.f32 %v8014, %v8039
        %v8051 = vmul.f32 %v8010, %v8043
        %v8052 = vmul.f32 %v8023, %v8031
        %v8053 = vmul.f32 %v8019, %v8035
        %v8054 = vmul.f32 %v8015, %v8039
        %v8055 = vmul.f32 %v8011, %v8043
        %v8056 = vmul.f32 %v8024, %v8031
        %v8057 = vmul.f32 %v8020, %v8035
        %v8058 = vmul.f32 %v8016, %v8039
        %v8059 = vmul.f32 %v8012, %v8043
        %v8060 = vmul.f32 %v8025, %v8031
        %v8061 = vmul.f32 %v8021, %v8035
        %v8062 = vmul.f32 %v8017, %v8039
        %v8063 = vmul.f32 %v8013, %v8043
        %8064 = vst [vmem:[#allocation2 + $0x100] sm:$0xff] %v8048
        %8065 = vst [vmem:[#allocation2 + $0x108] sm:$0xff] %v8049
        %8066 = vst [vmem:[#allocation2 + $0x110] sm:$0xff] %v8050
        %8067 = vst [vmem:[#allocation2 + $0x118] sm:$0xff] %v8051
        %8068 = vst [vmem:[#allocation2 + $0x120] sm:$0xff] %v8052
        %8069 = vst [vmem:[#allocation2 + $0x128] sm:$0xff] %v8053
        %8070 = vst [vmem:[#allocation2 + $0x130] sm:$0xff] %v8054
        %8071 = vst [vmem:[#allocation2 + $0x138] sm:$0xff] %v8055
        %8072 = vst [vmem:[#allocation2 + $0x140] sm:$0xff] %v8056
        %8073 = vst [vmem:[#allocation2 + $0x148] sm:$0xff] %v8057
        %8074 = vst [vmem:[#allocation2 + $0x150] sm:$0xff] %v8058
        %8075 = vst [vmem:[#allocation2 + $0x158] sm:$0xff] %v8059
        %8076 = vst [vmem:[#allocation2 + $0x160] sm:$0xff] %v8060
        %8077 = vst [vmem:[#allocation2 + $0x168] sm:$0xff] %v8061
        %8078 = vst [vmem:[#allocation2 + $0x170] sm:$0xff] %v8062
        %8079 = vst [vmem:[#allocation2 + $0x178] sm:$0xff] %v8063
        %8080 = vrot.lane.b32.xlu0 %v7758, 1
        %v8081 = vpop.permute.xlu0 %8080
        %8082 = vrot.lane.b32.xlu0 %v7762, 1
        %v8083 = vpop.permute.xlu0 %8082
        %8084 = vrot.lane.b32.xlu0 %v7766, 1
        %v8085 = vpop.permute.xlu0 %8084
        %8086 = vrot.lane.b32.xlu0 %v7770, 1
        %v8087 = vpop.permute.xlu0 %8086
        %8088 = vrot.lane.b32.xlu0 %v7759, 1
        %v8089 = vpop.permute.xlu0 %8088
        %8090 = vrot.lane.b32.xlu0 %v7763, 1
        %v8091 = vpop.permute.xlu0 %8090
        %8092 = vrot.lane.b32.xlu0 %v7767, 1
        %v8093 = vpop.permute.xlu0 %8092
        %8094 = vrot.lane.b32.xlu0 %v7771, 1
        %v8095 = vpop.permute.xlu0 %8094
        %8096 = vrot.lane.b32.xlu0 %v7760, 1
        %v8097 = vpop.permute.xlu0 %8096
        %8098 = vrot.lane.b32.xlu0 %v7764, 1
        %v8099 = vpop.permute.xlu0 %8098
        %8100 = vrot.lane.b32.xlu0 %v7768, 1
        %v8101 = vpop.permute.xlu0 %8100
        %8102 = vrot.lane.b32.xlu0 %v7772, 1
        %v8103 = vpop.permute.xlu0 %8102
        %8104 = vrot.lane.b32.xlu0 %v7761, 1
        %v8105 = vpop.permute.xlu0 %8104
        %8106 = vrot.lane.b32.xlu0 %v7765, 1
        %v8107 = vpop.permute.xlu0 %8106
        %8108 = vrot.lane.b32.xlu0 %v7769, 1
        %v8109 = vpop.permute.xlu0 %8108
        %8110 = vrot.lane.b32.xlu0 %v7773, 1
        %v8111 = vpop.permute.xlu0 %8110
        %v8112 = vsel %vm960, %v8097, %v8105
        %v8113 = vsel %vm960, %v8099, %v8107
        %v8114 = vsel %vm960, %v8101, %v8109
        %v8115 = vsel %vm960, %v8103, %v8111
        %v8116 = vsel %vm960, %v8089, %v8097
        %v8117 = vsel %vm960, %v8091, %v8099
        %v8118 = vsel %vm960, %v8093, %v8101
        %v8119 = vsel %vm960, %v8095, %v8103
        %v8120 = vsel %vm960, %v8081, %v8089
        %v8121 = vsel %vm960, %v8083, %v8091
        %v8122 = vsel %vm960, %v8085, %v8093
        %v8123 = vsel %vm960, %v8087, %v8095
        %v8124 = vsel %vm960, %v8105, %v8081
        %v8125 = vsel %vm960, %v8107, %v8083
        %v8126 = vsel %vm960, %v8109, %v8085
        %v8127 = vsel %vm960, %v8111, %v8087
        %v8128 = vld [vmem:[%s977] sm:$0xf]
        %v8130 = vlaneseq
        %v8131 = vshrl.u32 %v8130, 7
        %v8132 = vsub.s32 0, %v8131
        %v8133 = vrot.slane %v8128, %v8132
        %v8134 = vlaneseq
        %v8135 = vshrl.u32 %v8134, 7
        %v8136 = vsub.s32 1, %v8135
        %v8137 = vrot.slane %v8128, %v8136
        %v8138 = vlaneseq
        %v8139 = vshrl.u32 %v8138, 7
        %v8140 = vsub.s32 2, %v8139
        %v8141 = vrot.slane %v8128, %v8140
        %v8142 = vlaneseq
        %v8143 = vshrl.u32 %v8142, 7
        %v8144 = vsub.s32 3, %v8143
        %v8145 = vrot.slane %v8128, %v8144
        %v8150 = vmul.f32 %v8124, %v8133
        %v8151 = vmul.f32 %v8120, %v8137
        %v8152 = vmul.f32 %v8116, %v8141
        %v8153 = vmul.f32 %v8112, %v8145
        %v8154 = vmul.f32 %v8125, %v8133
        %v8155 = vmul.f32 %v8121, %v8137
        %v8156 = vmul.f32 %v8117, %v8141
        %v8157 = vmul.f32 %v8113, %v8145
        %v8158 = vmul.f32 %v8126, %v8133
        %v8159 = vmul.f32 %v8122, %v8137
        %v8160 = vmul.f32 %v8118, %v8141
        %v8161 = vmul.f32 %v8114, %v8145
        %v8162 = vmul.f32 %v8127, %v8133
        %v8163 = vmul.f32 %v8123, %v8137
        %v8164 = vmul.f32 %v8119, %v8141
        %v8165 = vmul.f32 %v8115, %v8145
        %8166 = vst [vmem:[#allocation2 + $0x180] sm:$0xff] %v8150
        %8167 = vst [vmem:[#allocation2 + $0x188] sm:$0xff] %v8151
        %8168 = vst [vmem:[#allocation2 + $0x190] sm:$0xff] %v8152
        %8169 = vst [vmem:[#allocation2 + $0x198] sm:$0xff] %v8153
        %8170 = vst [vmem:[#allocation2 + $0x1a0] sm:$0xff] %v8154
        %8171 = vst [vmem:[#allocation2 + $0x1a8] sm:$0xff] %v8155
        %8172 = vst [vmem:[#allocation2 + $0x1b0] sm:$0xff] %v8156
        %8173 = vst [vmem:[#allocation2 + $0x1b8] sm:$0xff] %v8157
        %8174 = vst [vmem:[#allocation2 + $0x1c0] sm:$0xff] %v8158
        %8175 = vst [vmem:[#allocation2 + $0x1c8] sm:$0xff] %v8159
        %8176 = vst [vmem:[#allocation2 + $0x1d0] sm:$0xff] %v8160
        %8177 = vst [vmem:[#allocation2 + $0x1d8] sm:$0xff] %v8161
        %8178 = vst [vmem:[#allocation2 + $0x1e0] sm:$0xff] %v8162
        %8179 = vst [vmem:[#allocation2 + $0x1e8] sm:$0xff] %v8163
        %8180 = vst [vmem:[#allocation2 + $0x1f0] sm:$0xff] %v8164
        %8181 = vst [vmem:[#allocation2 + $0x1f8] sm:$0xff] %v8165
        %8182 = vst [vmem:[#allocation2 + $0x200] sm:$0xff] %v7758
        %8183 = vst [vmem:[#allocation2 + $0x208] sm:$0xff] %v7759
        %8184 = vst [vmem:[#allocation2 + $0x210] sm:$0xff] %v7760
        %8185 = vst [vmem:[#allocation2 + $0x218] sm:$0xff] %v7761
        %8186 = vst [vmem:[#allocation2 + $0x220] sm:$0xff] %v7762
        %8187 = vst [vmem:[#allocation2 + $0x228] sm:$0xff] %v7763
        %8188 = vst [vmem:[#allocation2 + $0x230] sm:$0xff] %v7764
        %8189 = vst [vmem:[#allocation2 + $0x238] sm:$0xff] %v7765
        %8190 = vst [vmem:[#allocation2 + $0x240] sm:$0xff] %v7766
        %8191 = vst [vmem:[#allocation2 + $0x248] sm:$0xff] %v7767
        %8192 = vst [vmem:[#allocation2 + $0x250] sm:$0xff] %v7768
        %8193 = vst [vmem:[#allocation2 + $0x258] sm:$0xff] %v7769
        %8194 = vst [vmem:[#allocation2 + $0x260] sm:$0xff] %v7770
        %8195 = vst [vmem:[#allocation2 + $0x268] sm:$0xff] %v7771
        %8196 = vst [vmem:[#allocation2 + $0x270] sm:$0xff] %v7772
        %8197 = vst [vmem:[#allocation2 + $0x278] sm:$0xff] %v7773
        %8198 = vrot.lane.b32.xlu0 %v7758, 127
        %v8199 = vpop.permute.xlu0 %8198
        %8200 = vrot.lane.b32.xlu0 %v7762, 127
        %v8201 = vpop.permute.xlu0 %8200
        %8202 = vrot.lane.b32.xlu0 %v7766, 127
        %v8203 = vpop.permute.xlu0 %8202
        %8204 = vrot.lane.b32.xlu0 %v7770, 127
        %v8205 = vpop.permute.xlu0 %8204
        %8206 = vrot.lane.b32.xlu0 %v7759, 127
        %v8207 = vpop.permute.xlu0 %8206
        %8208 = vrot.lane.b32.xlu0 %v7763, 127
        %v8209 = vpop.permute.xlu0 %8208
        %8210 = vrot.lane.b32.xlu0 %v7767, 127
        %v8211 = vpop.permute.xlu0 %8210
        %8212 = vrot.lane.b32.xlu0 %v7771, 127
        %v8213 = vpop.permute.xlu0 %8212
        %8214 = vrot.lane.b32.xlu0 %v7760, 127
        %v8215 = vpop.permute.xlu0 %8214
        %8216 = vrot.lane.b32.xlu0 %v7764, 127
        %v8217 = vpop.permute.xlu0 %8216
        %8218 = vrot.lane.b32.xlu0 %v7768, 127
        %v8219 = vpop.permute.xlu0 %8218
        %8220 = vrot.lane.b32.xlu0 %v7772, 127
        %v8221 = vpop.permute.xlu0 %8220
        %8222 = vrot.lane.b32.xlu0 %v7761, 127
        %v8223 = vpop.permute.xlu0 %8222
        %8224 = vrot.lane.b32.xlu0 %v7765, 127
        %v8225 = vpop.permute.xlu0 %8224
        %8226 = vrot.lane.b32.xlu0 %v7769, 127
        %v8227 = vpop.permute.xlu0 %8226
        %8228 = vrot.lane.b32.xlu0 %v7773, 127
        %v8229 = vpop.permute.xlu0 %8228
        %v8230 = vsel %vm1080, %v8215, %v8223
        %v8231 = vsel %vm1080, %v8217, %v8225
        %v8232 = vsel %vm1080, %v8219, %v8227
        %v8233 = vsel %vm1080, %v8221, %v8229
        %v8234 = vsel %vm1080, %v8207, %v8215
        %v8235 = vsel %vm1080, %v8209, %v8217
        %v8236 = vsel %vm1080, %v8211, %v8219
        %v8237 = vsel %vm1080, %v8213, %v8221
        %v8238 = vsel %vm1080, %v8199, %v8207
        %v8239 = vsel %vm1080, %v8201, %v8209
        %v8240 = vsel %vm1080, %v8203, %v8211
        %v8241 = vsel %vm1080, %v8205, %v8213
        %v8242 = vsel %vm1080, %v8223, %v8199
        %v8243 = vsel %vm1080, %v8225, %v8201
        %v8244 = vsel %vm1080, %v8227, %v8203
        %v8245 = vsel %vm1080, %v8229, %v8205
        %v8246 = vld [vmem:[%s1097] sm:$0xf]
        %v8248 = vlaneseq
        %v8249 = vshrl.u32 %v8248, 7
        %v8250 = vsub.s32 0, %v8249
        %v8251 = vrot.slane %v8246, %v8250
        %v8252 = vlaneseq
        %v8253 = vshrl.u32 %v8252, 7
        %v8254 = vsub.s32 1, %v8253
        %v8255 = vrot.slane %v8246, %v8254
        %v8256 = vlaneseq
        %v8257 = vshrl.u32 %v8256, 7
        %v8258 = vsub.s32 2, %v8257
        %v8259 = vrot.slane %v8246, %v8258
        %v8260 = vlaneseq
        %v8261 = vshrl.u32 %v8260, 7
        %v8262 = vsub.s32 3, %v8261
        %v8263 = vrot.slane %v8246, %v8262
        %v8268 = vmul.f32 %v8238, %v8251
        %v8269 = vmul.f32 %v8234, %v8255
        %v8270 = vmul.f32 %v8230, %v8259
        %v8271 = vmul.f32 %v8242, %v8263
        %v8272 = vmul.f32 %v8239, %v8251
        %v8273 = vmul.f32 %v8235, %v8255
        %v8274 = vmul.f32 %v8231, %v8259
        %v8275 = vmul.f32 %v8243, %v8263
        %v8276 = vmul.f32 %v8240, %v8251
        %v8277 = vmul.f32 %v8236, %v8255
        %v8278 = vmul.f32 %v8232, %v8259
        %v8279 = vmul.f32 %v8244, %v8263
        %v8280 = vmul.f32 %v8241, %v8251
        %v8281 = vmul.f32 %v8237, %v8255
        %v8282 = vmul.f32 %v8233, %v8259
        %v8283 = vmul.f32 %v8245, %v8263
        %8284 = vst [vmem:[#allocation2 + $0x280] sm:$0xff] %v8268
        %8285 = vst [vmem:[#allocation2 + $0x288] sm:$0xff] %v8269
        %8286 = vst [vmem:[#allocation2 + $0x290] sm:$0xff] %v8270
        %8287 = vst [vmem:[#allocation2 + $0x298] sm:$0xff] %v8271
        %8288 = vst [vmem:[#allocation2 + $0x2a0] sm:$0xff] %v8272
        %8289 = vst [vmem:[#allocation2 + $0x2a8] sm:$0xff] %v8273
        %8290 = vst [vmem:[#allocation2 + $0x2b0] sm:$0xff] %v8274
        %8291 = vst [vmem:[#allocation2 + $0x2b8] sm:$0xff] %v8275
        %8292 = vst [vmem:[#allocation2 + $0x2c0] sm:$0xff] %v8276
        %8293 = vst [vmem:[#allocation2 + $0x2c8] sm:$0xff] %v8277
        %8294 = vst [vmem:[#allocation2 + $0x2d0] sm:$0xff] %v8278
        %8295 = vst [vmem:[#allocation2 + $0x2d8] sm:$0xff] %v8279
        %8296 = vst [vmem:[#allocation2 + $0x2e0] sm:$0xff] %v8280
        %8297 = vst [vmem:[#allocation2 + $0x2e8] sm:$0xff] %v8281
        %8298 = vst [vmem:[#allocation2 + $0x2f0] sm:$0xff] %v8282
        %8299 = vst [vmem:[#allocation2 + $0x2f8] sm:$0xff] %v8283
        %8300 = vrot.lane.b32.xlu0 %v7758, 113
        %v8301 = vpop.permute.xlu0 %8300
        %8302 = vrot.lane.b32.xlu0 %v7762, 113
        %v8303 = vpop.permute.xlu0 %8302
        %8304 = vrot.lane.b32.xlu0 %v7766, 113
        %v8305 = vpop.permute.xlu0 %8304
        %8306 = vrot.lane.b32.xlu0 %v7770, 113
        %v8307 = vpop.permute.xlu0 %8306
        %8308 = vrot.lane.b32.xlu0 %v7759, 113
        %v8309 = vpop.permute.xlu0 %8308
        %8310 = vrot.lane.b32.xlu0 %v7763, 113
        %v8311 = vpop.permute.xlu0 %8310
        %8312 = vrot.lane.b32.xlu0 %v7767, 113
        %v8313 = vpop.permute.xlu0 %8312
        %8314 = vrot.lane.b32.xlu0 %v7771, 113
        %v8315 = vpop.permute.xlu0 %8314
        %8316 = vrot.lane.b32.xlu0 %v7760, 113
        %v8317 = vpop.permute.xlu0 %8316
        %8318 = vrot.lane.b32.xlu0 %v7764, 113
        %v8319 = vpop.permute.xlu0 %8318
        %8320 = vrot.lane.b32.xlu0 %v7768, 113
        %v8321 = vpop.permute.xlu0 %8320
        %8322 = vrot.lane.b32.xlu0 %v7772, 113
        %v8323 = vpop.permute.xlu0 %8322
        %8324 = vrot.lane.b32.xlu0 %v7761, 113
        %v8325 = vpop.permute.xlu0 %8324
        %8326 = vrot.lane.b32.xlu0 %v7765, 113
        %v8327 = vpop.permute.xlu0 %8326
        %8328 = vrot.lane.b32.xlu0 %v7769, 113
        %v8329 = vpop.permute.xlu0 %8328
        %8330 = vrot.lane.b32.xlu0 %v7773, 113
        %v8331 = vpop.permute.xlu0 %8330
        %v8332 = vsel %vm1184, %v8317, %v8325
        %v8333 = vsel %vm1184, %v8319, %v8327
        %v8334 = vsel %vm1184, %v8321, %v8329
        %v8335 = vsel %vm1184, %v8323, %v8331
        %v8336 = vsel %vm1184, %v8309, %v8317
        %v8337 = vsel %vm1184, %v8311, %v8319
        %v8338 = vsel %vm1184, %v8313, %v8321
        %v8339 = vsel %vm1184, %v8315, %v8323
        %v8340 = vsel %vm1184, %v8301, %v8309
        %v8341 = vsel %vm1184, %v8303, %v8311
        %v8342 = vsel %vm1184, %v8305, %v8313
        %v8343 = vsel %vm1184, %v8307, %v8315
        %v8344 = vsel %vm1184, %v8325, %v8301
        %v8345 = vsel %vm1184, %v8327, %v8303
        %v8346 = vsel %vm1184, %v8329, %v8305
        %v8347 = vsel %vm1184, %v8331, %v8307
        %v8348 = vld [vmem:[%s1201] sm:$0xf]
        %v8350 = vlaneseq
        %v8351 = vshrl.u32 %v8350, 7
        %v8352 = vsub.s32 0, %v8351
        %v8353 = vrot.slane %v8348, %v8352
        %v8354 = vlaneseq
        %v8355 = vshrl.u32 %v8354, 7
        %v8356 = vsub.s32 1, %v8355
        %v8357 = vrot.slane %v8348, %v8356
        %v8358 = vlaneseq
        %v8359 = vshrl.u32 %v8358, 7
        %v8360 = vsub.s32 2, %v8359
        %v8361 = vrot.slane %v8348, %v8360
        %v8362 = vlaneseq
        %v8363 = vshrl.u32 %v8362, 7
        %v8364 = vsub.s32 3, %v8363
        %v8365 = vrot.slane %v8348, %v8364
        %v8370 = vmul.f32 %v8340, %v8353
        %v8371 = vmul.f32 %v8336, %v8357
        %v8372 = vmul.f32 %v8332, %v8361
        %v8373 = vmul.f32 %v8344, %v8365
        %v8374 = vmul.f32 %v8341, %v8353
        %v8375 = vmul.f32 %v8337, %v8357
        %v8376 = vmul.f32 %v8333, %v8361
        %v8377 = vmul.f32 %v8345, %v8365
        %v8378 = vmul.f32 %v8342, %v8353
        %v8379 = vmul.f32 %v8338, %v8357
        %v8380 = vmul.f32 %v8334, %v8361
        %v8381 = vmul.f32 %v8346, %v8365
        %v8382 = vmul.f32 %v8343, %v8353
        %v8383 = vmul.f32 %v8339, %v8357
        %v8384 = vmul.f32 %v8335, %v8361
        %v8385 = vmul.f32 %v8347, %v8365
        %8386 = vst [vmem:[#allocation2 + $0x300] sm:$0xff] %v8370
        %8387 = vst [vmem:[#allocation2 + $0x308] sm:$0xff] %v8371
        %8388 = vst [vmem:[#allocation2 + $0x310] sm:$0xff] %v8372
        %8389 = vst [vmem:[#allocation2 + $0x318] sm:$0xff] %v8373
        %8390 = vst [vmem:[#allocation2 + $0x320] sm:$0xff] %v8374
        %8391 = vst [vmem:[#allocation2 + $0x328] sm:$0xff] %v8375
        %8392 = vst [vmem:[#allocation2 + $0x330] sm:$0xff] %v8376
        %8393 = vst [vmem:[#allocation2 + $0x338] sm:$0xff] %v8377
        %8394 = vst [vmem:[#allocation2 + $0x340] sm:$0xff] %v8378
        %8395 = vst [vmem:[#allocation2 + $0x348] sm:$0xff] %v8379
        %8396 = vst [vmem:[#allocation2 + $0x350] sm:$0xff] %v8380
        %8397 = vst [vmem:[#allocation2 + $0x358] sm:$0xff] %v8381
        %8398 = vst [vmem:[#allocation2 + $0x360] sm:$0xff] %v8382
        %8399 = vst [vmem:[#allocation2 + $0x368] sm:$0xff] %v8383
        %8400 = vst [vmem:[#allocation2 + $0x370] sm:$0xff] %v8384
        %8401 = vst [vmem:[#allocation2 + $0x378] sm:$0xff] %v8385
        %8402 = vrot.lane.b32.xlu0 %v7758, 112
        %v8403 = vpop.permute.xlu0 %8402
        %8404 = vrot.lane.b32.xlu0 %v7762, 112
        %v8405 = vpop.permute.xlu0 %8404
        %8406 = vrot.lane.b32.xlu0 %v7766, 112
        %v8407 = vpop.permute.xlu0 %8406
        %8408 = vrot.lane.b32.xlu0 %v7770, 112
        %v8409 = vpop.permute.xlu0 %8408
        %8410 = vrot.lane.b32.xlu0 %v7759, 112
        %v8411 = vpop.permute.xlu0 %8410
        %8412 = vrot.lane.b32.xlu0 %v7763, 112
        %v8413 = vpop.permute.xlu0 %8412
        %8414 = vrot.lane.b32.xlu0 %v7767, 112
        %v8415 = vpop.permute.xlu0 %8414
        %8416 = vrot.lane.b32.xlu0 %v7771, 112
        %v8417 = vpop.permute.xlu0 %8416
        %8418 = vrot.lane.b32.xlu0 %v7760, 112
        %v8419 = vpop.permute.xlu0 %8418
        %8420 = vrot.lane.b32.xlu0 %v7764, 112
        %v8421 = vpop.permute.xlu0 %8420
        %8422 = vrot.lane.b32.xlu0 %v7768, 112
        %v8423 = vpop.permute.xlu0 %8422
        %8424 = vrot.lane.b32.xlu0 %v7772, 112
        %v8425 = vpop.permute.xlu0 %8424
        %8426 = vrot.lane.b32.xlu0 %v7761, 112
        %v8427 = vpop.permute.xlu0 %8426
        %8428 = vrot.lane.b32.xlu0 %v7765, 112
        %v8429 = vpop.permute.xlu0 %8428
        %8430 = vrot.lane.b32.xlu0 %v7769, 112
        %v8431 = vpop.permute.xlu0 %8430
        %8432 = vrot.lane.b32.xlu0 %v7773, 112
        %v8433 = vpop.permute.xlu0 %8432
        %v8434 = vsel %vm1288, %v8419, %v8427
        %v8435 = vsel %vm1288, %v8421, %v8429
        %v8436 = vsel %vm1288, %v8423, %v8431
        %v8437 = vsel %vm1288, %v8425, %v8433
        %v8438 = vsel %vm1288, %v8411, %v8419
        %v8439 = vsel %vm1288, %v8413, %v8421
        %v8440 = vsel %vm1288, %v8415, %v8423
        %v8441 = vsel %vm1288, %v8417, %v8425
        %v8442 = vsel %vm1288, %v8403, %v8411
        %v8443 = vsel %vm1288, %v8405, %v8413
        %v8444 = vsel %vm1288, %v8407, %v8415
        %v8445 = vsel %vm1288, %v8409, %v8417
        %v8446 = vsel %vm1288, %v8427, %v8403
        %v8447 = vsel %vm1288, %v8429, %v8405
        %v8448 = vsel %vm1288, %v8431, %v8407
        %v8449 = vsel %vm1288, %v8433, %v8409
        %v8450 = vld [vmem:[%s1305] sm:$0xf]
        %v8452 = vlaneseq
        %v8453 = vshrl.u32 %v8452, 7
        %v8454 = vsub.s32 0, %v8453
        %v8455 = vrot.slane %v8450, %v8454
        %v8456 = vlaneseq
        %v8457 = vshrl.u32 %v8456, 7
        %v8458 = vsub.s32 1, %v8457
        %v8459 = vrot.slane %v8450, %v8458
        %v8460 = vlaneseq
        %v8461 = vshrl.u32 %v8460, 7
        %v8462 = vsub.s32 2, %v8461
        %v8463 = vrot.slane %v8450, %v8462
        %v8464 = vlaneseq
        %v8465 = vshrl.u32 %v8464, 7
        %v8466 = vsub.s32 3, %v8465
        %v8467 = vrot.slane %v8450, %v8466
        %v8472 = vmul.f32 %v8442, %v8455
        %v8473 = vmul.f32 %v8438, %v8459
        %v8474 = vmul.f32 %v8434, %v8463
        %v8475 = vmul.f32 %v8446, %v8467
        %v8476 = vmul.f32 %v8443, %v8455
        %v8477 = vmul.f32 %v8439, %v8459
        %v8478 = vmul.f32 %v8435, %v8463
        %v8479 = vmul.f32 %v8447, %v8467
        %v8480 = vmul.f32 %v8444, %v8455
        %v8481 = vmul.f32 %v8440, %v8459
        %v8482 = vmul.f32 %v8436, %v8463
        %v8483 = vmul.f32 %v8448, %v8467
        %v8484 = vmul.f32 %v8445, %v8455
        %v8485 = vmul.f32 %v8441, %v8459
        %v8486 = vmul.f32 %v8437, %v8463
        %v8487 = vmul.f32 %v8449, %v8467
        %8488 = vst [vmem:[#allocation2 + $0x380] sm:$0xff] %v8472
        %8489 = vst [vmem:[#allocation2 + $0x388] sm:$0xff] %v8473
        %8490 = vst [vmem:[#allocation2 + $0x390] sm:$0xff] %v8474
        %8491 = vst [vmem:[#allocation2 + $0x398] sm:$0xff] %v8475
        %8492 = vst [vmem:[#allocation2 + $0x3a0] sm:$0xff] %v8476
        %8493 = vst [vmem:[#allocation2 + $0x3a8] sm:$0xff] %v8477
        %8494 = vst [vmem:[#allocation2 + $0x3b0] sm:$0xff] %v8478
        %8495 = vst [vmem:[#allocation2 + $0x3b8] sm:$0xff] %v8479
        %8496 = vst [vmem:[#allocation2 + $0x3c0] sm:$0xff] %v8480
        %8497 = vst [vmem:[#allocation2 + $0x3c8] sm:$0xff] %v8481
        %8498 = vst [vmem:[#allocation2 + $0x3d0] sm:$0xff] %v8482
        %8499 = vst [vmem:[#allocation2 + $0x3d8] sm:$0xff] %v8483
        %8500 = vst [vmem:[#allocation2 + $0x3e0] sm:$0xff] %v8484
        %8501 = vst [vmem:[#allocation2 + $0x3e8] sm:$0xff] %v8485
        %8502 = vst [vmem:[#allocation2 + $0x3f0] sm:$0xff] %v8486
        %8503 = vst [vmem:[#allocation2 + $0x3f8] sm:$0xff] %v8487
        %8504 = vrot.lane.b32.xlu0 %v7758, 111
        %v8505 = vpop.permute.xlu0 %8504
        %8506 = vrot.lane.b32.xlu0 %v7762, 111
        %v8507 = vpop.permute.xlu0 %8506
        %8508 = vrot.lane.b32.xlu0 %v7766, 111
        %v8509 = vpop.permute.xlu0 %8508
        %8510 = vrot.lane.b32.xlu0 %v7770, 111
        %v8511 = vpop.permute.xlu0 %8510
        %8512 = vrot.lane.b32.xlu0 %v7759, 111
        %v8513 = vpop.permute.xlu0 %8512
        %8514 = vrot.lane.b32.xlu0 %v7763, 111
        %v8515 = vpop.permute.xlu0 %8514
        %8516 = vrot.lane.b32.xlu0 %v7767, 111
        %v8517 = vpop.permute.xlu0 %8516
        %8518 = vrot.lane.b32.xlu0 %v7771, 111
        %v8519 = vpop.permute.xlu0 %8518
        %8520 = vrot.lane.b32.xlu0 %v7760, 111
        %v8521 = vpop.permute.xlu0 %8520
        %8522 = vrot.lane.b32.xlu0 %v7764, 111
        %v8523 = vpop.permute.xlu0 %8522
        %8524 = vrot.lane.b32.xlu0 %v7768, 111
        %v8525 = vpop.permute.xlu0 %8524
        %8526 = vrot.lane.b32.xlu0 %v7772, 111
        %v8527 = vpop.permute.xlu0 %8526
        %8528 = vrot.lane.b32.xlu0 %v7761, 111
        %v8529 = vpop.permute.xlu0 %8528
        %8530 = vrot.lane.b32.xlu0 %v7765, 111
        %v8531 = vpop.permute.xlu0 %8530
        %8532 = vrot.lane.b32.xlu0 %v7769, 111
        %v8533 = vpop.permute.xlu0 %8532
        %8534 = vrot.lane.b32.xlu0 %v7773, 111
        %v8535 = vpop.permute.xlu0 %8534
        %v8536 = vsel %vm1392, %v8521, %v8529
        %v8537 = vsel %vm1392, %v8523, %v8531
        %v8538 = vsel %vm1392, %v8525, %v8533
        %v8539 = vsel %vm1392, %v8527, %v8535
        %v8540 = vsel %vm1392, %v8513, %v8521
        %v8541 = vsel %vm1392, %v8515, %v8523
        %v8542 = vsel %vm1392, %v8517, %v8525
        %v8543 = vsel %vm1392, %v8519, %v8527
        %v8544 = vsel %vm1392, %v8505, %v8513
        %v8545 = vsel %vm1392, %v8507, %v8515
        %v8546 = vsel %vm1392, %v8509, %v8517
        %v8547 = vsel %vm1392, %v8511, %v8519
        %v8548 = vsel %vm1392, %v8529, %v8505
        %v8549 = vsel %vm1392, %v8531, %v8507
        %v8550 = vsel %vm1392, %v8533, %v8509
        %v8551 = vsel %vm1392, %v8535, %v8511
        %v8552 = vld [vmem:[%s1409] sm:$0xf]
        %v8554 = vlaneseq
        %v8555 = vshrl.u32 %v8554, 7
        %v8556 = vsub.s32 0, %v8555
        %v8557 = vrot.slane %v8552, %v8556
        %v8558 = vlaneseq
        %v8559 = vshrl.u32 %v8558, 7
        %v8560 = vsub.s32 1, %v8559
        %v8561 = vrot.slane %v8552, %v8560
        %v8562 = vlaneseq
        %v8563 = vshrl.u32 %v8562, 7
        %v8564 = vsub.s32 2, %v8563
        %v8565 = vrot.slane %v8552, %v8564
        %v8566 = vlaneseq
        %v8567 = vshrl.u32 %v8566, 7
        %v8568 = vsub.s32 3, %v8567
        %v8569 = vrot.slane %v8552, %v8568
        %v8574 = vmul.f32 %v8544, %v8557
        %v8575 = vmul.f32 %v8540, %v8561
        %v8576 = vmul.f32 %v8536, %v8565
        %v8577 = vmul.f32 %v8548, %v8569
        %v8578 = vmul.f32 %v8545, %v8557
        %v8579 = vmul.f32 %v8541, %v8561
        %v8580 = vmul.f32 %v8537, %v8565
        %v8581 = vmul.f32 %v8549, %v8569
        %v8582 = vmul.f32 %v8546, %v8557
        %v8583 = vmul.f32 %v8542, %v8561
        %v8584 = vmul.f32 %v8538, %v8565
        %v8585 = vmul.f32 %v8550, %v8569
        %v8586 = vmul.f32 %v8547, %v8557
        %v8587 = vmul.f32 %v8543, %v8561
        %v8588 = vmul.f32 %v8539, %v8565
        %v8589 = vmul.f32 %v8551, %v8569
        %8590 = vst [vmem:[#allocation2 + $0x400] sm:$0xff] %v8574
        %8591 = vst [vmem:[#allocation2 + $0x408] sm:$0xff] %v8575
        %8592 = vst [vmem:[#allocation2 + $0x410] sm:$0xff] %v8576
        %8593 = vst [vmem:[#allocation2 + $0x418] sm:$0xff] %v8577
        %8594 = vst [vmem:[#allocation2 + $0x420] sm:$0xff] %v8578
        %8595 = vst [vmem:[#allocation2 + $0x428] sm:$0xff] %v8579
        %8596 = vst [vmem:[#allocation2 + $0x430] sm:$0xff] %v8580
        %8597 = vst [vmem:[#allocation2 + $0x438] sm:$0xff] %v8581
        %8598 = vst [vmem:[#allocation2 + $0x440] sm:$0xff] %v8582
        %8599 = vst [vmem:[#allocation2 + $0x448] sm:$0xff] %v8583
        %8600 = vst [vmem:[#allocation2 + $0x450] sm:$0xff] %v8584
        %8601 = vst [vmem:[#allocation2 + $0x458] sm:$0xff] %v8585
        %8602 = vst [vmem:[#allocation2 + $0x460] sm:$0xff] %v8586
        %8603 = vst [vmem:[#allocation2 + $0x468] sm:$0xff] %v8587
        %8604 = vst [vmem:[#allocation2 + $0x470] sm:$0xff] %v8588
        %8605 = vst [vmem:[#allocation2 + $0x478] sm:$0xff] %v8589
        %v8606 = vld [vmem:[%s7] sm:$0xff]
        %v8607 = vld [vmem:[%s7 + $0x8] sm:$0xf]
        %v8608 = vld [vmem:[#allocation2] sm:$0xff]
        %v8609 = vld [vmem:[#allocation2 + $0x8] sm:$0xff]
        %v8610 = vld [vmem:[#allocation2 + $0x10] sm:$0xff]
        %v8611 = vld [vmem:[#allocation2 + $0x18] sm:$0xff]
        %v8612 = vld [vmem:[#allocation2 + $0x20] sm:$0xff]
        %v8613 = vld [vmem:[#allocation2 + $0x28] sm:$0xff]
        %v8614 = vld [vmem:[#allocation2 + $0x30] sm:$0xff]
        %v8615 = vld [vmem:[#allocation2 + $0x38] sm:$0xff]
        %v8616 = vld [vmem:[#allocation2 + $0x40] sm:$0xff]
        %v8617 = vld [vmem:[#allocation2 + $0x48] sm:$0xff]
        %v8618 = vld [vmem:[#allocation2 + $0x50] sm:$0xff]
        %v8619 = vld [vmem:[#allocation2 + $0x58] sm:$0xff]
        %v8620 = vld [vmem:[#allocation2 + $0x60] sm:$0xff]
        %v8621 = vld [vmem:[#allocation2 + $0x68] sm:$0xff]
        %v8622 = vld [vmem:[#allocation2 + $0x70] sm:$0xff]
        %v8623 = vld [vmem:[#allocation2 + $0x78] sm:$0xff]
        %v8624 = vld [vmem:[#allocation2 + $0x80] sm:$0xff]
        %v8625 = vld [vmem:[#allocation2 + $0x88] sm:$0xff]
        %v8626 = vld [vmem:[#allocation2 + $0x90] sm:$0xff]
        %v8627 = vld [vmem:[#allocation2 + $0x98] sm:$0xff]
        %v8628 = vld [vmem:[#allocation2 + $0xa0] sm:$0xff]
        %v8629 = vld [vmem:[#allocation2 + $0xa8] sm:$0xff]
        %v8630 = vld [vmem:[#allocation2 + $0xb0] sm:$0xff]
        %v8631 = vld [vmem:[#allocation2 + $0xb8] sm:$0xff]
        %v8632 = vld [vmem:[#allocation2 + $0xc0] sm:$0xff]
        %v8633 = vld [vmem:[#allocation2 + $0xc8] sm:$0xff]
        %v8634 = vld [vmem:[#allocation2 + $0xd0] sm:$0xff]
        %v8635 = vld [vmem:[#allocation2 + $0xd8] sm:$0xff]
        %v8636 = vld [vmem:[#allocation2 + $0xe0] sm:$0xff]
        %v8637 = vld [vmem:[#allocation2 + $0xe8] sm:$0xff]
        %v8638 = vld [vmem:[#allocation2 + $0xf0] sm:$0xff]
        %v8639 = vld [vmem:[#allocation2 + $0xf8] sm:$0xff]
        %v8640 = vld [vmem:[#allocation2 + $0x100] sm:$0xff]
        %v8641 = vld [vmem:[#allocation2 + $0x108] sm:$0xff]
        %v8642 = vld [vmem:[#allocation2 + $0x110] sm:$0xff]
        %v8643 = vld [vmem:[#allocation2 + $0x118] sm:$0xff]
        %v8644 = vld [vmem:[#allocation2 + $0x120] sm:$0xff]
        %v8645 = vld [vmem:[#allocation2 + $0x128] sm:$0xff]
        %v8646 = vld [vmem:[#allocation2 + $0x130] sm:$0xff]
        %v8647 = vld [vmem:[#allocation2 + $0x138] sm:$0xff]
        %v8648 = vld [vmem:[#allocation2 + $0x140] sm:$0xff]
        %v8649 = vld [vmem:[#allocation2 + $0x148] sm:$0xff]
        %v8650 = vld [vmem:[#allocation2 + $0x150] sm:$0xff]
        %v8651 = vld [vmem:[#allocation2 + $0x158] sm:$0xff]
        %v8652 = vld [vmem:[#allocation2 + $0x160] sm:$0xff]
        %v8653 = vld [vmem:[#allocation2 + $0x168] sm:$0xff]
        %v8654 = vld [vmem:[#allocation2 + $0x170] sm:$0xff]
        %v8655 = vld [vmem:[#allocation2 + $0x178] sm:$0xff]
        %v8656 = vld [vmem:[#allocation2 + $0x180] sm:$0xff]
        %v8657 = vld [vmem:[#allocation2 + $0x188] sm:$0xff]
        %v8658 = vld [vmem:[#allocation2 + $0x190] sm:$0xff]
        %v8659 = vld [vmem:[#allocation2 + $0x198] sm:$0xff]
        %v8660 = vld [vmem:[#allocation2 + $0x1a0] sm:$0xff]
        %v8661 = vld [vmem:[#allocation2 + $0x1a8] sm:$0xff]
        %v8662 = vld [vmem:[#allocation2 + $0x1b0] sm:$0xff]
        %v8663 = vld [vmem:[#allocation2 + $0x1b8] sm:$0xff]
        %v8664 = vld [vmem:[#allocation2 + $0x1c0] sm:$0xff]
        %v8665 = vld [vmem:[#allocation2 + $0x1c8] sm:$0xff]
        %v8666 = vld [vmem:[#allocation2 + $0x1d0] sm:$0xff]
        %v8667 = vld [vmem:[#allocation2 + $0x1d8] sm:$0xff]
        %v8668 = vld [vmem:[#allocation2 + $0x1e0] sm:$0xff]
        %v8669 = vld [vmem:[#allocation2 + $0x1e8] sm:$0xff]
        %v8670 = vld [vmem:[#allocation2 + $0x1f0] sm:$0xff]
        %v8671 = vld [vmem:[#allocation2 + $0x1f8] sm:$0xff]
        %v8672 = vld [vmem:[#allocation2 + $0x200] sm:$0xff]
        %v8673 = vld [vmem:[#allocation2 + $0x208] sm:$0xff]
        %v8674 = vld [vmem:[#allocation2 + $0x210] sm:$0xff]
        %v8675 = vld [vmem:[#allocation2 + $0x218] sm:$0xff]
        %v8676 = vld [vmem:[#allocation2 + $0x220] sm:$0xff]
        %v8677 = vld [vmem:[#allocation2 + $0x228] sm:$0xff]
        %v8678 = vld [vmem:[#allocation2 + $0x230] sm:$0xff]
        %v8679 = vld [vmem:[#allocation2 + $0x238] sm:$0xff]
        %v8680 = vld [vmem:[#allocation2 + $0x240] sm:$0xff]
        %v8681 = vld [vmem:[#allocation2 + $0x248] sm:$0xff]
        %v8682 = vld [vmem:[#allocation2 + $0x250] sm:$0xff]
        %v8683 = vld [vmem:[#allocation2 + $0x258] sm:$0xff]
        %v8684 = vld [vmem:[#allocation2 + $0x260] sm:$0xff]
        %v8685 = vld [vmem:[#allocation2 + $0x268] sm:$0xff]
        %v8686 = vld [vmem:[#allocation2 + $0x270] sm:$0xff]
        %v8687 = vld [vmem:[#allocation2 + $0x278] sm:$0xff]
        %v8688 = vld [vmem:[#allocation2 + $0x280] sm:$0xff]
        %v8689 = vld [vmem:[#allocation2 + $0x288] sm:$0xff]
        %v8690 = vld [vmem:[#allocation2 + $0x290] sm:$0xff]
        %v8691 = vld [vmem:[#allocation2 + $0x298] sm:$0xff]
        %v8692 = vld [vmem:[#allocation2 + $0x2a0] sm:$0xff]
        %v8693 = vld [vmem:[#allocation2 + $0x2a8] sm:$0xff]
        %v8694 = vld [vmem:[#allocation2 + $0x2b0] sm:$0xff]
        %v8695 = vld [vmem:[#allocation2 + $0x2b8] sm:$0xff]
        %v8696 = vld [vmem:[#allocation2 + $0x2c0] sm:$0xff]
        %v8697 = vld [vmem:[#allocation2 + $0x2c8] sm:$0xff]
        %v8698 = vld [vmem:[#allocation2 + $0x2d0] sm:$0xff]
        %v8699 = vld [vmem:[#allocation2 + $0x2d8] sm:$0xff]
        %v8700 = vld [vmem:[#allocation2 + $0x2e0] sm:$0xff]
        %v8701 = vld [vmem:[#allocation2 + $0x2e8] sm:$0xff]
        %v8702 = vld [vmem:[#allocation2 + $0x2f0] sm:$0xff]
        %v8703 = vld [vmem:[#allocation2 + $0x2f8] sm:$0xff]
        %v8704 = vld [vmem:[#allocation2 + $0x300] sm:$0xff]
        %v8705 = vld [vmem:[#allocation2 + $0x308] sm:$0xff]
        %v8706 = vld [vmem:[#allocation2 + $0x310] sm:$0xff]
        %v8707 = vld [vmem:[#allocation2 + $0x318] sm:$0xff]
        %v8708 = vld [vmem:[#allocation2 + $0x320] sm:$0xff]
        %v8709 = vld [vmem:[#allocation2 + $0x328] sm:$0xff]
        %v8710 = vld [vmem:[#allocation2 + $0x330] sm:$0xff]
        %v8711 = vld [vmem:[#allocation2 + $0x338] sm:$0xff]
        %v8712 = vld [vmem:[#allocation2 + $0x340] sm:$0xff]
        %v8713 = vld [vmem:[#allocation2 + $0x348] sm:$0xff]
        %v8714 = vld [vmem:[#allocation2 + $0x350] sm:$0xff]
        %v8715 = vld [vmem:[#allocation2 + $0x358] sm:$0xff]
        %v8716 = vld [vmem:[#allocation2 + $0x360] sm:$0xff]
        %v8717 = vld [vmem:[#allocation2 + $0x368] sm:$0xff]
        %v8718 = vld [vmem:[#allocation2 + $0x370] sm:$0xff]
        %v8719 = vld [vmem:[#allocation2 + $0x378] sm:$0xff]
        %v8720 = vld [vmem:[#allocation2 + $0x380] sm:$0xff]
        %v8721 = vld [vmem:[#allocation2 + $0x388] sm:$0xff]
        %v8722 = vld [vmem:[#allocation2 + $0x390] sm:$0xff]
        %v8723 = vld [vmem:[#allocation2 + $0x398] sm:$0xff]
        %v8724 = vld [vmem:[#allocation2 + $0x3a0] sm:$0xff]
        %v8725 = vld [vmem:[#allocation2 + $0x3a8] sm:$0xff]
        %v8726 = vld [vmem:[#allocation2 + $0x3b0] sm:$0xff]
        %v8727 = vld [vmem:[#allocation2 + $0x3b8] sm:$0xff]
        %v8728 = vld [vmem:[#allocation2 + $0x3c0] sm:$0xff]
        %v8729 = vld [vmem:[#allocation2 + $0x3c8] sm:$0xff]
        %v8730 = vld [vmem:[#allocation2 + $0x3d0] sm:$0xff]
        %v8731 = vld [vmem:[#allocation2 + $0x3d8] sm:$0xff]
        %v8732 = vld [vmem:[#allocation2 + $0x3e0] sm:$0xff]
        %v8733 = vld [vmem:[#allocation2 + $0x3e8] sm:$0xff]
        %v8734 = vld [vmem:[#allocation2 + $0x3f0] sm:$0xff]
        %v8735 = vld [vmem:[#allocation2 + $0x3f8] sm:$0xff]
        %v8736 = vld [vmem:[#allocation2 + $0x400] sm:$0xff]
        %v8737 = vld [vmem:[#allocation2 + $0x408] sm:$0xff]
        %v8738 = vld [vmem:[#allocation2 + $0x410] sm:$0xff]
        %v8739 = vld [vmem:[#allocation2 + $0x418] sm:$0xff]
        %v8740 = vld [vmem:[#allocation2 + $0x420] sm:$0xff]
        %v8741 = vld [vmem:[#allocation2 + $0x428] sm:$0xff]
        %v8742 = vld [vmem:[#allocation2 + $0x430] sm:$0xff]
        %v8743 = vld [vmem:[#allocation2 + $0x438] sm:$0xff]
        %v8744 = vld [vmem:[#allocation2 + $0x440] sm:$0xff]
        %v8745 = vld [vmem:[#allocation2 + $0x448] sm:$0xff]
        %v8746 = vld [vmem:[#allocation2 + $0x450] sm:$0xff]
        %v8747 = vld [vmem:[#allocation2 + $0x458] sm:$0xff]
        %v8748 = vld [vmem:[#allocation2 + $0x460] sm:$0xff]
        %v8749 = vld [vmem:[#allocation2 + $0x468] sm:$0xff]
        %v8750 = vld [vmem:[#allocation2 + $0x470] sm:$0xff]
        %v8751 = vld [vmem:[#allocation2 + $0x478] sm:$0xff]
        %v8752 = vld [vmem:[%s8] sm:$0xf]
        %8754 = vset.pattern.permute.xlu0 0
        %8755 = vperm.xlu0 %8754, %v8752
        %v8756 = vpop.permute.xlu0 %8755
        %v8760 = vcombine.high %v8606, %v8606
        %v8762 = vsel %vm1644, %v8607, 0
        %8764 = vmatprep.subr.mxu0 %v8669
        %8765 = vmatpush1.msra.mxu0 %v8668
        %8766 = vmatprep.subr.mxu0 %v8665
        %8767 = vmatpush1.msra.mxu0 %v8664
        %8768 = vmatprep.subr.mxu0 %v8661
        %8769 = vmatpush1.msra.mxu0 %v8660
        %8770 = vmatprep.subr.mxu0 %v8657
        %8771 = vmatpush1.msra.mxu0 %v8656
        %8772 = vmatprep.subr.mxu0 %v8653
        %8773 = vmatpush1.msra.mxu0 %v8652
        %8774 = vmatprep.subr.mxu0 %v8649
        %8775 = vmatpush1.msra.mxu0 %v8648
        %8776 = vmatprep.subr.mxu0 %v8645
        %8777 = vmatpush1.msra.mxu0 %v8644
        %8778 = vmatprep.subr.mxu0 %v8641
        %8779 = vmatpush1.msra.mxu0 %v8640
        %8780 = vmatprep.subr.mxu0 %v8637
        %8781 = vmatpush1.msra.mxu0 %v8636
        %8782 = vmatprep.subr.mxu0 %v8633
        %8783 = vmatpush1.msra.mxu0 %v8632
        %8784 = vmatprep.subr.mxu0 %v8629
        %8785 = vmatpush1.msra.mxu0 %v8628
        %8786 = vmatprep.subr.mxu0 %v8625
        %8787 = vmatpush1.msra.mxu0 %v8624
        %8788 = vmatprep.subr.mxu0 %v8621
        %8789 = vmatpush1.msra.mxu0 %v8620
        %8790 = vmatprep.subr.mxu0 %v8617
        %8791 = vmatpush1.msra.mxu0 %v8616
        %8792 = vmatprep.subr.mxu0 %v8613
        %8793 = vmatpush1.msra.mxu0 %v8612
        %8794 = vmatprep.subr.mxu0 %v8609
        %8795 = vmatpush1.msra.mxu0 %v8608
        %8796 = vmatprep.subr.mxu0 %v8733
        %8797 = vmatpush2.msra.mxu0 %v8732
        %8798 = vmatprep.subr.mxu0 %v8729
        %8799 = vmatpush2.msra.mxu0 %v8728
        %8800 = vmatprep.subr.mxu0 %v8725
        %8801 = vmatpush2.msra.mxu0 %v8724
        %8802 = vmatprep.subr.mxu0 %v8721
        %8803 = vmatpush2.msra.mxu0 %v8720
        %8804 = vmatprep.subr.mxu0 %v8717
        %8805 = vmatpush2.msra.mxu0 %v8716
        %8806 = vmatprep.subr.mxu0 %v8713
        %8807 = vmatpush2.msra.mxu0 %v8712
        %8808 = vmatprep.subr.mxu0 %v8709
        %8809 = vmatpush2.msra.mxu0 %v8708
        %8810 = vmatprep.subr.mxu0 %v8705
        %8811 = vmatpush2.msra.mxu0 %v8704
        %8812 = vmatprep.subr.mxu0 %v8701
        %8813 = vmatpush2.msra.mxu0 %v8700
        %8814 = vmatprep.subr.mxu0 %v8697
        %8815 = vmatpush2.msra.mxu0 %v8696
        %8816 = vmatprep.subr.mxu0 %v8693
        %8817 = vmatpush2.msra.mxu0 %v8692
        %8818 = vmatprep.subr.mxu0 %v8689
        %8819 = vmatpush2.msra.mxu0 %v8688
        %8820 = vmatprep.subr.mxu0 %v8685
        %8821 = vmatpush2.msra.mxu0 %v8684
        %8822 = vmatprep.subr.mxu0 %v8681
        %8823 = vmatpush2.msra.mxu0 %v8680
        %8824 = vmatprep.subr.mxu0 %v8677
        %8825 = vmatpush2.msra.mxu0 %v8676
        %8826 = vmatprep.subr.mxu0 %v8673
        %8827 = vmatpush2.msra.mxu0 %v8672
        %8828 = vmatprep.mubr.f32.mxu0 %v8760
        %8829 = vmatmul.mubr.f32.gmra.mxu0 %v8606
        %v8830 = vpop.f32.mrf.mxu0
        %v8831 = vadd.f32 %v8756, %v8830
        %v8832 = vpop.f32.mrf.mxu0
        %v8833 = vadd.f32 %v8756, %v8832
        %8834 = vdwg.mxu0
        %8835 = vmatprep.subr.mxu0 0.0
        %8836 = vmatpush1.msra.mxu0 0.0
        %8837 = vmatprep.subr.mxu0 0.0
        %8838 = vmatpush1.msra.mxu0 0.0
        %8839 = vmatprep.subr.mxu0 0.0
        %8840 = vmatpush1.msra.mxu0 0.0
        %8841 = vmatprep.subr.mxu0 0.0
        %8842 = vmatpush1.msra.mxu0 0.0
        %8843 = vmatprep.subr.mxu0 0.0
        %8844 = vmatpush1.msra.mxu0 0.0
        %8845 = vmatprep.subr.mxu0 0.0
        %8846 = vmatpush1.msra.mxu0 0.0
        %8847 = vmatprep.subr.mxu0 0.0
        %8848 = vmatpush1.msra.mxu0 0.0
        %8849 = vmatprep.subr.mxu0 0.0
        %8850 = vmatpush1.msra.mxu0 0.0
        %8851 = vmatprep.subr.mxu0 0.0
        %8852 = vmatpush1.msra.mxu0 0.0
        %8853 = vmatprep.subr.mxu0 0.0
        %8854 = vmatpush1.msra.mxu0 0.0
        %8855 = vmatprep.subr.mxu0 0.0
        %8856 = vmatpush1.msra.mxu0 0.0
        %8857 = vmatprep.subr.mxu0 0.0
        %8858 = vmatpush1.msra.mxu0 0.0
        %8859 = vmatprep.subr.mxu0 %v8749
        %8860 = vmatpush1.msra.mxu0 %v8748
        %8861 = vmatprep.subr.mxu0 %v8745
        %8862 = vmatpush1.msra.mxu0 %v8744
        %8863 = vmatprep.subr.mxu0 %v8741
        %8864 = vmatpush1.msra.mxu0 %v8740
        %8865 = vmatprep.subr.mxu0 %v8737
        %8866 = vmatpush1.msra.mxu0 %v8736
        %8867 = vmatprep.subr.mxu0 0.0
        %8868 = vmatpush2.msra.mxu0 0.0
        %8869 = vmatprep.subr.mxu0 0.0
        %8870 = vmatpush2.msra.mxu0 0.0
        %8871 = vmatprep.subr.mxu0 0.0
        %8872 = vmatpush2.msra.mxu0 0.0
        %8873 = vmatprep.subr.mxu0 0.0
        %8874 = vmatpush2.msra.mxu0 0.0
        %8875 = vmatprep.subr.mxu0 0.0
        %8876 = vmatpush2.msra.mxu0 0.0
        %8877 = vmatprep.subr.mxu0 0.0
        %8878 = vmatpush2.msra.mxu0 0.0
        %8879 = vmatprep.subr.mxu0 0.0
        %8880 = vmatpush2.msra.mxu0 0.0
        %8881 = vmatprep.subr.mxu0 0.0
        %8882 = vmatpush2.msra.mxu0 0.0
        %8883 = vmatprep.subr.mxu0 0.0
        %8884 = vmatpush2.msra.mxu0 0.0
        %8885 = vmatprep.subr.mxu0 0.0
        %8886 = vmatpush2.msra.mxu0 0.0
        %8887 = vmatprep.subr.mxu0 0.0
        %8888 = vmatpush2.msra.mxu0 0.0
        %8889 = vmatprep.subr.mxu0 0.0
        %8890 = vmatpush2.msra.mxu0 0.0
        %8891 = vmatprep.subr.mxu0 0.0
        %8892 = vmatpush2.msra.mxu0 0.0
        %8893 = vmatprep.subr.mxu0 0.0
        %8894 = vmatpush2.msra.mxu0 0.0
        %8895 = vmatprep.subr.mxu0 0.0
        %8896 = vmatpush2.msra.mxu0 0.0
        %8897 = vmatprep.subr.mxu0 0.0
        %8898 = vmatpush2.msra.mxu0 0.0
        %8899 = vmatprep.mubr.f32.mxu0 0.0
        %8900 = vmatmul.mubr.f32.gmra.mxu0 %v8762
        %v8901 = vpop.f32.mrf.mxu0
        %v8902 = vadd.f32 %v8831, %v8901
        %v8903 = vpop.f32.mrf.mxu0
        %v8904 = vadd.f32 %v8833, %v8903
        %8905 = vdwg.mxu0
        %8906 = vmatprep.subr.mxu0 %v8671
        %8907 = vmatpush1.msra.mxu0 %v8670
        %8908 = vmatprep.subr.mxu0 %v8667
        %8909 = vmatpush1.msra.mxu0 %v8666
        %8910 = vmatprep.subr.mxu0 %v8663
        %8911 = vmatpush1.msra.mxu0 %v8662
        %8912 = vmatprep.subr.mxu0 %v8659
        %8913 = vmatpush1.msra.mxu0 %v8658
        %8914 = vmatprep.subr.mxu0 %v8655
        %8915 = vmatpush1.msra.mxu0 %v8654
        %8916 = vmatprep.subr.mxu0 %v8651
        %8917 = vmatpush1.msra.mxu0 %v8650
        %8918 = vmatprep.subr.mxu0 %v8647
        %8919 = vmatpush1.msra.mxu0 %v8646
        %8920 = vmatprep.subr.mxu0 %v8643
        %8921 = vmatpush1.msra.mxu0 %v8642
        %8922 = vmatprep.subr.mxu0 %v8639
        %8923 = vmatpush1.msra.mxu0 %v8638
        %8924 = vmatprep.subr.mxu0 %v8635
        %8925 = vmatpush1.msra.mxu0 %v8634
        %8926 = vmatprep.subr.mxu0 %v8631
        %8927 = vmatpush1.msra.mxu0 %v8630
        %8928 = vmatprep.subr.mxu0 %v8627
        %8929 = vmatpush1.msra.mxu0 %v8626
        %8930 = vmatprep.subr.mxu0 %v8623
        %8931 = vmatpush1.msra.mxu0 %v8622
        %8932 = vmatprep.subr.mxu0 %v8619
        %8933 = vmatpush1.msra.mxu0 %v8618
        %8934 = vmatprep.subr.mxu0 %v8615
        %8935 = vmatpush1.msra.mxu0 %v8614
        %8936 = vmatprep.subr.mxu0 %v8611
        %8937 = vmatpush1.msra.mxu0 %v8610
        %8938 = vmatprep.subr.mxu0 %v8735
        %8939 = vmatpush2.msra.mxu0 %v8734
        %8940 = vmatprep.subr.mxu0 %v8731
        %8941 = vmatpush2.msra.mxu0 %v8730
        %8942 = vmatprep.subr.mxu0 %v8727
        %8943 = vmatpush2.msra.mxu0 %v8726
        %8944 = vmatprep.subr.mxu0 %v8723
        %8945 = vmatpush2.msra.mxu0 %v8722
        %8946 = vmatprep.subr.mxu0 %v8719
        %8947 = vmatpush2.msra.mxu0 %v8718
        %8948 = vmatprep.subr.mxu0 %v8715
        %8949 = vmatpush2.msra.mxu0 %v8714
        %8950 = vmatprep.subr.mxu0 %v8711
        %8951 = vmatpush2.msra.mxu0 %v8710
        %8952 = vmatprep.subr.mxu0 %v8707
        %8953 = vmatpush2.msra.mxu0 %v8706
        %8954 = vmatprep.subr.mxu0 %v8703
        %8955 = vmatpush2.msra.mxu0 %v8702
        %8956 = vmatprep.subr.mxu0 %v8699
        %8957 = vmatpush2.msra.mxu0 %v8698
        %8958 = vmatprep.subr.mxu0 %v8695
        %8959 = vmatpush2.msra.mxu0 %v8694
        %8960 = vmatprep.subr.mxu0 %v8691
        %8961 = vmatpush2.msra.mxu0 %v8690
        %8962 = vmatprep.subr.mxu0 %v8687
        %8963 = vmatpush2.msra.mxu0 %v8686
        %8964 = vmatprep.subr.mxu0 %v8683
        %8965 = vmatpush2.msra.mxu0 %v8682
        %8966 = vmatprep.subr.mxu0 %v8679
        %8967 = vmatpush2.msra.mxu0 %v8678
        %8968 = vmatprep.subr.mxu0 %v8675
        %8969 = vmatpush2.msra.mxu0 %v8674
        %8970 = vmatprep.mubr.f32.mxu0 %v8760
        %8971 = vmatmul.mubr.f32.gmra.mxu0 %v8606
        %v8972 = vpop.f32.mrf.mxu0
        %v8973 = vadd.f32 %v8756, %v8972
        %v8974 = vpop.f32.mrf.mxu0
        %v8975 = vadd.f32 %v8756, %v8974
        %8976 = vdwg.mxu0
        %8977 = vmatprep.subr.mxu0 0.0
        %8978 = vmatpush1.msra.mxu0 0.0
        %8979 = vmatprep.subr.mxu0 0.0
        %8980 = vmatpush1.msra.mxu0 0.0
        %8981 = vmatprep.subr.mxu0 0.0
        %8982 = vmatpush1.msra.mxu0 0.0
        %8983 = vmatprep.subr.mxu0 0.0
        %8984 = vmatpush1.msra.mxu0 0.0
        %8985 = vmatprep.subr.mxu0 0.0
        %8986 = vmatpush1.msra.mxu0 0.0
        %8987 = vmatprep.subr.mxu0 0.0
        %8988 = vmatpush1.msra.mxu0 0.0
        %8989 = vmatprep.subr.mxu0 0.0
        %8990 = vmatpush1.msra.mxu0 0.0
        %8991 = vmatprep.subr.mxu0 0.0
        %8992 = vmatpush1.msra.mxu0 0.0
        %8993 = vmatprep.subr.mxu0 0.0
        %8994 = vmatpush1.msra.mxu0 0.0
        %8995 = vmatprep.subr.mxu0 0.0
        %8996 = vmatpush1.msra.mxu0 0.0
        %8997 = vmatprep.subr.mxu0 0.0
        %8998 = vmatpush1.msra.mxu0 0.0
        %8999 = vmatprep.subr.mxu0 0.0
        %9000 = vmatpush1.msra.mxu0 0.0
        %9001 = vmatprep.subr.mxu0 %v8751
        %9002 = vmatpush1.msra.mxu0 %v8750
        %9003 = vmatprep.subr.mxu0 %v8747
        %9004 = vmatpush1.msra.mxu0 %v8746
        %9005 = vmatprep.subr.mxu0 %v8743
        %9006 = vmatpush1.msra.mxu0 %v8742
        %9007 = vmatprep.subr.mxu0 %v8739
        %9008 = vmatpush1.msra.mxu0 %v8738
        %9009 = vmatprep.subr.mxu0 0.0
        %9010 = vmatpush2.msra.mxu0 0.0
        %9011 = vmatprep.subr.mxu0 0.0
        %9012 = vmatpush2.msra.mxu0 0.0
        %9013 = vmatprep.subr.mxu0 0.0
        %9014 = vmatpush2.msra.mxu0 0.0
        %9015 = vmatprep.subr.mxu0 0.0
        %9016 = vmatpush2.msra.mxu0 0.0
        %9017 = vmatprep.subr.mxu0 0.0
        %9018 = vmatpush2.msra.mxu0 0.0
        %9019 = vmatprep.subr.mxu0 0.0
        %9020 = vmatpush2.msra.mxu0 0.0
        %9021 = vmatprep.subr.mxu0 0.0
        %9022 = vmatpush2.msra.mxu0 0.0
        %9023 = vmatprep.subr.mxu0 0.0
        %9024 = vmatpush2.msra.mxu0 0.0
        %9025 = vmatprep.subr.mxu0 0.0
        %9026 = vmatpush2.msra.mxu0 0.0
        %9027 = vmatprep.subr.mxu0 0.0
        %9028 = vmatpush2.msra.mxu0 0.0
        %9029 = vmatprep.subr.mxu0 0.0
        %9030 = vmatpush2.msra.mxu0 0.0
        %9031 = vmatprep.subr.mxu0 0.0
        %9032 = vmatpush2.msra.mxu0 0.0
        %9033 = vmatprep.subr.mxu0 0.0
        %9034 = vmatpush2.msra.mxu0 0.0
        %9035 = vmatprep.subr.mxu0 0.0
        %9036 = vmatpush2.msra.mxu0 0.0
        %9037 = vmatprep.subr.mxu0 0.0
        %9038 = vmatpush2.msra.mxu0 0.0
        %9039 = vmatprep.subr.mxu0 0.0
        %9040 = vmatpush2.msra.mxu0 0.0
        %9041 = vmatprep.mubr.f32.mxu0 0.0
        %9042 = vmatmul.mubr.f32.gmra.mxu0 %v8762
        %v9043 = vpop.f32.mrf.mxu0
        %v9044 = vadd.f32 %v8973, %v9043
        %v9045 = vpop.f32.mrf.mxu0
        %v9046 = vadd.f32 %v8975, %v9045
        %9047 = vdwg.mxu0
        %v9048 = vmul.f32 %v8902, 1.442695
        %v9049 = vpow.pop %v9048
        %v9050 = vmul.f32 %v8904, 1.442695
        %v9051 = vpow.pop %v9050
        %v9052 = vmul.f32 %v9044, 1.442695
        %v9053 = vpow.pop %v9052
        %v9054 = vmul.f32 %v9046, 1.442695
        %v9055 = vpow.pop %v9054
        %v9060 = vcombine.low %v9049, %v9051
        %v9061 = vcombine.low %v9053, %v9055
        %9064 = vst [vmem:[%s392] sm:$0xff] %v9060
        %9065 = vst [vmem:[%s392 + $0x8] sm:$0xff] %v9061
        %s9066 = sand.u32 %s255, 1
        %s9067 = scalar_lea.sflag [#allocation5], %s9066
        %s9068 = sand.u32 %s255, 1
        %s9069 = smul.addr %s9068, 16
        %s9070 = scalar_lea.vmem [#allocation6], %s9069
        // Predicated region
        $region65: #{tpu_custom_call.1} parent=59 // pred_check
          %p9071 = pneg %p265
        $region66: #{tpu_custom_call.1} parent=59 // pred_check_branch
          %9073 = sbr.rel (%p9071) target = $region68
        $region67: #{tpu_custom_call.1} parent=59 // pred_region
          %s9075 = ssub.s32 256, 256
          %9076 = vsyncadd %s9067, %s9075
          %s9077 = smul.addr %s27, 4
          %s9078 = smul.addr %s9077, 64
          %s9079 = scalar_lea.hbm %s10, %s9078
          %s9081 = sshll.u32 %s9070, 4
          %s9082 = int_to_ptr.vmem [resolvable:$true] %s9081
          %9084 = dma.vmem_to_hbm [thread:$0]  %s9082, 256, %s9079, %s9067
        $region68: #{tpu_custom_call.1} parent=59 // pred_fallthru
          _
      $region60: #{tpu_custom_call.1} parent=5 // pred_fallthru
        _
      %p9085 = scmp.le.s32.totalorder 2, %s22
      // Predicated region
      $region69: #{tpu_custom_call.1} parent=5 // pred_check
        %p9086 = pneg %p9085
      $region70: #{tpu_custom_call.1} parent=5 // pred_check_branch
        %9088 = sbr.rel (%p9086) target = $region72
      $region71: #{tpu_custom_call.1} parent=5 // pred_region
        %s9089 = ssub.s32 %s22, 2
        // Predicated region
        $region73: #{tpu_custom_call.1} parent=71 // pred_check
          %p9090 = pneg %p271
        $region74: #{tpu_custom_call.1} parent=71 // pred_check_branch
          %9092 = sbr.rel (%p9090) target = $region76
        $region75: #{tpu_custom_call.1} parent=71 // pred_region
          %s9093 = sand.u32 %s256, 1
          %s9094 = scalar_lea.sflag [#allocation5], %s9093
          %s9095 = sand.u32 %s256, 1
          %s9096 = smul.addr %s9095, 16
          %s9097 = scalar_lea.vmem [#allocation6], %s9096
          %9098 = dma.done %s9094, 256
        $region76: #{tpu_custom_call.1} parent=71 // pred_fallthru
          _
      $region72: #{tpu_custom_call.1} parent=5 // pred_fallthru
        _
    $region6: #{tpu_custom_call.1} parent=1 // loop_footer
      %s26 = sadd.s32 1, %s22
    $region7: #{tpu_custom_call.1} parent=1 // loop_footer_branch
      %21 = sbr.rel target = $region3
    $region8: #{tpu_custom_call.1} parent=1 // loop_exit
      _
    %9099 = vsyncpa [#allocation4], 1
    %s9100 = scalar_lea.sflag [#allocation4], 1
    %9101 = vsyncpa %s9100, 1
    %9102 = vsyncpa [#allocation5], 1
    %s9103 = scalar_lea.sflag [#allocation5], 1
    %9104 = vsyncpa %s9103, 1

</llo_original>
